<compile_context>
chip_gen: v7x
topology: tpu7x:2x2x1
jax: 0.10.0
libtpu: 0.0.40
codegen_flags: <defaults>
</compile_context>

<pallas_src>
import jax
import jax.numpy as jnp
from jax.experimental import pallas as pl
from jax.experimental.pallas import tpu as pltpu

# ----------------------------- model dimensions -----------------------------
TEXT_DIM   = 128                       # stand-in for text_encoder.config.hidden_size
TIME_DIM   = 128                       # nn.Linear(1, 128)
D_MODEL    = TEXT_DIM + TIME_DIM       # 256, nhead=8 -> head_dim 32
N_LAYERS   = 4
D_FF       = 1024
CLS_HIDDEN = 64
CLS_PAD    = 128                       # classifier hidden padded to a lane tile
OUT_PAD    = 128                       # classifier output padded to a lane tile
N_PHASE    = 3
VOCAB      = 64
LN_EPS     = 1e-5                      # PyTorch LayerNorm default


# --------------------------------- kernel -----------------------------------
def _layernorm(h, g, b):
    mu = jnp.mean(h, axis=-1, keepdims=True)
    var = jnp.mean((h - mu) ** 2, axis=-1, keepdims=True)
    return (h - mu) * jax.lax.rsqrt(var + LN_EPS) * g + b


def fusion_classifier_kernel(x_ref,
                             wv_ref, bv_ref, wo_ref, bo_ref,
                             ln1g_ref, ln1b_ref,
                             w1_ref, b1_ref, w2_ref, b2_ref,
                             ln2g_ref, ln2b_ref,
                             wc1_ref, bc1_ref, wc2_ref, bc2_ref,
                             out_ref):
    """All 4 transformer layers + classifier head in one invocation."""
    x = x_ref[...]                                          # (Bp, D) f32

    for l in range(N_LAYERS):
        # seq_len == 1 => softmax over a single key == 1 => attn == out_proj(V).
        # Q/K projections are mathematically dead here and were stripped on the
        # host (document loudly if a real sequence dimension is ever introduced).
        v = jnp.dot(x.astype(jnp.bfloat16), wv_ref[l],
                    preferred_element_type=jnp.float32) + bv_ref[l]
        attn = jnp.dot(v.astype(jnp.bfloat16), wo_ref[l],
                       preferred_element_type=jnp.float32) + bo_ref[l]
        x = _layernorm(x + attn, ln1g_ref[l], ln1b_ref[l])

        # Feed-forward: Linear(D, 1024) -> ReLU -> Linear(1024, D)
        h = jnp.maximum(
            jnp.dot(x.astype(jnp.bfloat16), w1_ref[l],
                    preferred_element_type=jnp.float32) + b1_ref[l], 0.0)
        ff = jnp.dot(h.astype(jnp.bfloat16), w2_ref[l],
                     preferred_element_type=jnp.float32) + b2_ref[l]
        x = _layernorm(x + ff, ln2g_ref[l], ln2b_ref[l])

    # Classifier: Linear(D, 64) -> ReLU -> Linear(64, 1), zero-padded to full
    # lane tiles (extra columns/rows are zero, so they do not affect column 0).
    hc = jnp.maximum(
        jnp.dot(x, wc1_ref[...], preferred_element_type=jnp.float32)
        + bc1_ref[...], 0.0)
    out_ref[...] = (jnp.dot(hc, wc2_ref[...],
                            preferred_element_type=jnp.float32)
                    + bc2_ref[...])


def fusion_classifier(combined, p):
    """combined: (B, D_MODEL) f32 pre-fused [text ++ temporal] features."""
    B = combined.shape[0]
    B_pad = max(8, ((B + 7) // 8) * 8)                      # full f32 sublane tile

    x = jnp.zeros((B_pad, D_MODEL), jnp.float32).at[:B].set(combined)

    # Zero-pad the tiny classifier to lane-dense tiles (host-side, negligible).
    wc1 = jnp.zeros((D_MODEL, CLS_PAD), jnp.float32).at[:, :CLS_HIDDEN].set(p['wc1'])
    bc1 = jnp.zeros((1, CLS_PAD), jnp.float32).at[:, :CLS_HIDDEN].set(p['bc1'])
    wc2 = jnp.zeros((CLS_PAD, OUT_PAD), jnp.float32).at[:CLS_HIDDEN, :1].set(p['wc2'])
    bc2 = jnp.zeros((1, OUT_PAD), jnp.float32).at[:, :1].set(p['bc2'])

    vmem_spec = pl.BlockSpec(memory_space=pltpu.MemorySpace.VMEM)
    n_inputs = 17

    out = pl.pallas_call(
        fusion_classifier_kernel,
        out_shape=jax.ShapeDtypeStruct((B_pad, OUT_PAD), jnp.float32),
        in_specs=[vmem_spec] * n_inputs,
        out_specs=vmem_spec,
        compiler_params=pltpu.CompilerParams(
            vmem_limit_bytes=32 * 1024 * 1024,   # ~5.3 MiB weights, ample headroom
        ),
    )(x,
      p['wv'], p['bv'], p['wo'], p['bo'],
      p['ln1g'], p['ln1b'], p['w1'], p['b1'], p['w2'], p['b2'],
      p['ln2g'], p['ln2b'], wc1, bc1, wc2, bc2)

    return out[:B, :1]


# ------------------------------ parameter init ------------------------------
def init_params(key):
    keys = iter(jax.random.split(key, 32))

    def nrm(shape, scale=0.02, dtype=jnp.float32):
        return (scale * jax.random.normal(next(keys), shape)).astype(dtype)

    p = {}
    # text encoder stand-in: deterministic token-embedding table
    p['text_embed_table'] = nrm((VOCAB, TEXT_DIM), 1.0)
    # time_embed = nn.Sequential(nn.Linear(1, 128), nn.GELU())
    p['wt'] = nrm((1, TIME_DIM), 0.5)
    p['bt'] = nrm((TIME_DIM,), 0.1)
    # phase_embed = nn.Embedding(3, 128)
    p['phase_table'] = nrm((N_PHASE, TIME_DIM), 1.0)
    # fusion_transformer: 4 layers; only the V slice of the QKV projection is
    # stored (Q/K are dead under seq_len == 1).  Matmul weights in bf16,
    # pre-transposed as [in, out]; biases / LayerNorm params stay f32.
    p['wv']   = nrm((N_LAYERS, D_MODEL, D_MODEL), dtype=jnp.bfloat16)
    p['bv']   = nrm((N_LAYERS, 1, D_MODEL), 0.01)
    p['wo']   = nrm((N_LAYERS, D_MODEL, D_MODEL), dtype=jnp.bfloat16)
    p['bo']   = nrm((N_LAYERS, 1, D_MODEL), 0.01)
    p['ln1g'] = jnp.ones((N_LAYERS, 1, D_MODEL), jnp.float32)
    p['ln1b'] = jnp.zeros((N_LAYERS, 1, D_MODEL), jnp.float32)
    p['w1']   = nrm((N_LAYERS, D_MODEL, D_FF), dtype=jnp.bfloat16)
    p['b1']   = nrm((N_LAYERS, 1, D_FF), 0.01)
    p['w2']   = nrm((N_LAYERS, D_FF, D_MODEL), dtype=jnp.bfloat16)
    p['b2']   = nrm((N_LAYERS, 1, D_MODEL), 0.01)
    p['ln2g'] = jnp.ones((N_LAYERS, 1, D_MODEL), jnp.float32)
    p['ln2b'] = jnp.zeros((N_LAYERS, 1, D_MODEL), jnp.float32)
    # classifier = Linear(D, 64) -> ReLU -> Linear(64, 1)   (tiny; keep f32)
    p['wc1'] = nrm((D_MODEL, CLS_HIDDEN), 0.1)
    p['bc1'] = nrm((1, CLS_HIDDEN), 0.01)
    p['wc2'] = nrm((CLS_HIDDEN, 1), 0.1)
    p['bc2'] = nrm((1, 1), 0.01)
    return p


# --------------------------------- forward ----------------------------------
def enhanced_time_llm_forward(p, time_deltas, phase_labels, input_ids, attention_mask):
    # TODO(synk): the pretrained DeepSeek causal LM (AutoModelForCausalLM) has no
    # Pallas equivalent; it is replaced by a deterministic token-embedding
    # stand-in whose "hidden_states[-1][:, -1, :]" is the last token's embedding.
    hidden = p['text_embed_table'][input_ids]            # (B, L, TEXT_DIM)
    text_features = hidden[:, -1, :]                     # (B, TEXT_DIM)
    del attention_mask  # reference picks the last position regardless of mask

    # time_embed: Linear(1,128) + exact GELU (tiny; plain-JAX glue)
    t = time_deltas[:, None].astype(jnp.float32)         # (B, 1)
    time_features = jax.nn.gelu(t @ p['wt'] + p['bt'], approximate=False)
    phase_features = p['phase_table'][phase_labels]      # (B, 128)
    temporal_features = time_features + phase_features

    # Pre-fuse the concat in the wrapper (lane-axis concat kept out of the kernel).
    # (reference's combined.permute(1,0,2) implies a seq dim; with 2-D combined
    #  the only consistent reading is a length-1 sequence -> fused[-1] == fused[0])
    combined = jnp.concatenate([text_features, temporal_features], axis=-1)

    # Pallas hot path: 4-layer fusion transformer + classifier.
    return fusion_classifier(combined, p)


# --------------------------- pure-JAX reference ------------------------------
def reference_forward(p, time_deltas, phase_labels, input_ids, attention_mask):
    hidden = p['text_embed_table'][input_ids]
    text_features = hidden[:, -1, :]
    t = time_deltas[:, None].astype(jnp.float32)
    time_features = jax.nn.gelu(t @ p['wt'] + p['bt'], approximate=False)
    temporal = time_features + p['phase_table'][phase_labels]
    x = jnp.concatenate([text_features, temporal], axis=-1)

    def ln(h, g, b):
        mu = jnp.mean(h, -1, keepdims=True)
        var = jnp.mean((h - mu) ** 2, -1, keepdims=True)
        return (h - mu) / jnp.sqrt(var + LN_EPS) * g + b

    for l in range(N_LAYERS):
        v = jnp.dot(x.astype(jnp.bfloat16), p['wv'][l],
                    preferred_element_type=jnp.float32) + p['bv'][l]
        attn = jnp.dot(v.astype(jnp.bfloat16), p['wo'][l],
                       preferred_element_type=jnp.float32) + p['bo'][l]
        x = ln(x + attn, p['ln1g'][l], p['ln1b'][l])
        h = jax.nn.relu(jnp.dot(x.astype(jnp.bfloat16), p['w1'][l],
                                preferred_element_type=jnp.float32) + p['b1'][l])
        ff = jnp.dot(h.astype(jnp.bfloat16), p['w2'][l],
                     preferred_element_type=jnp.float32) + p['b2'][l]
        x = ln(x + ff, p['ln2g'][l], p['ln2b'][l])
    h = jax.nn.relu(x @ p['wc1'] + p['bc1'])
    return h @ p['wc2'] + p['bc2']


# ----------------------------------- main ------------------------------------
if __name__ == "__main__":
    key = jax.random.PRNGKey(0)
    kp, k1, k2, k3 = jax.random.split(key, 4)

    B, L = 4, 8
    params = init_params(kp)
    time_deltas = jax.random.uniform(k1, (B,), jnp.float32) * 10.0
    phase_labels = jax.random.randint(k2, (B,), 0, N_PHASE)
    input_ids = jax.random.randint(k3, (B, L), 0, VOCAB)
    attention_mask = jnp.ones((B, L), jnp.int32)

    out = enhanced_time_llm_forward(params, time_deltas, phase_labels,
                                    input_ids, attention_mask)
    out = jax.block_until_ready(out)

    ref = reference_forward(params, time_deltas, phase_labels,
                            input_ids, attention_mask)

    assert out.shape == (B, 1)
    assert bool(jnp.all(jnp.isfinite(out)))
    assert bool(jnp.allclose(out, ref, atol=2e-2, rtol=2e-2))
    print("KERNEL_OK")
</pallas_src>

<mosaic_0001>
module attributes {stable_mosaic.version = 11 : i64} {
  func.func @fusion_classifier_kernel(%arg0: memref<8x256xf32, #tpu.memory_space<vmem>>, %arg1: memref<4x256x256xbf16, #tpu.memory_space<vmem>>, %arg2: memref<4x1x256xf32, #tpu.memory_space<vmem>>, %arg3: memref<4x256x256xbf16, #tpu.memory_space<vmem>>, %arg4: memref<4x1x256xf32, #tpu.memory_space<vmem>>, %arg5: memref<4x1x256xf32, #tpu.memory_space<vmem>>, %arg6: memref<4x1x256xf32, #tpu.memory_space<vmem>>, %arg7: memref<4x256x1024xbf16, #tpu.memory_space<vmem>>, %arg8: memref<4x1x1024xf32, #tpu.memory_space<vmem>>, %arg9: memref<4x1024x256xbf16, #tpu.memory_space<vmem>>, %arg10: memref<4x1x256xf32, #tpu.memory_space<vmem>>, %arg11: memref<4x1x256xf32, #tpu.memory_space<vmem>>, %arg12: memref<4x1x256xf32, #tpu.memory_space<vmem>>, %arg13: memref<256x128xf32, #tpu.memory_space<vmem>>, %arg14: memref<1x128xf32, #tpu.memory_space<vmem>>, %arg15: memref<128x128xf32, #tpu.memory_space<vmem>>, %arg16: memref<1x128xf32, #tpu.memory_space<vmem>>, %arg17: memref<8x128xf32, #tpu.memory_space<vmem>>) attributes {dimension_semantics = [], scalar_prefetch = 0 : i64, scratch_operands = 0 : i64, tpu.core_type = #tpu.core_type<tc>} {
    %c0 = arith.constant 0 : index
    %c0_0 = arith.constant 0 : index
    %0 = vector.load %arg0[%c0, %c0_0] : memref<8x256xf32, #tpu.memory_space<vmem>>, vector<8x256xf32>
    %1 = arith.truncf %0 : vector<8x256xf32> to vector<8x256xbf16>
    %c0_1 = arith.constant 0 : index
    %c0_2 = arith.constant 0 : index
    %c0_3 = arith.constant 0 : index
    %2 = vector.load %arg1[%c0_1, %c0_2, %c0_3] : memref<4x256x256xbf16, #tpu.memory_space<vmem>>, vector<1x256x256xbf16>
    %3 = vector.shape_cast %2 : vector<1x256x256xbf16> to vector<256x256xbf16>
    %cst = arith.constant dense<0.000000e+00> : vector<8x256xf32>
    %4 = tpu.matmul %1, %3, %cst {dimension_numbers = #tpu.dot_dimension_numbers<[1], [0], [0], [1], [0, 0, 1, 1], [], []>} : vector<8x256xbf16>, vector<256x256xbf16>, vector<8x256xf32> -> vector<8x256xf32>
    %c0_4 = arith.constant 0 : index
    %c0_5 = arith.constant 0 : index
    %c0_6 = arith.constant 0 : index
    %5 = vector.load %arg2[%c0_4, %c0_5, %c0_6] : memref<4x1x256xf32, #tpu.memory_space<vmem>>, vector<1x1x256xf32>
    %6 = vector.shape_cast %5 : vector<1x1x256xf32> to vector<1x256xf32>
    %7 = vector.broadcast %6 : vector<1x256xf32> to vector<8x256xf32>
    %8 = arith.addf %4, %7 : vector<8x256xf32>
    %9 = arith.truncf %8 : vector<8x256xf32> to vector<8x256xbf16>
    %c0_7 = arith.constant 0 : index
    %c0_8 = arith.constant 0 : index
    %c0_9 = arith.constant 0 : index
    %10 = vector.load %arg3[%c0_7, %c0_8, %c0_9] : memref<4x256x256xbf16, #tpu.memory_space<vmem>>, vector<1x256x256xbf16>
    %11 = vector.shape_cast %10 : vector<1x256x256xbf16> to vector<256x256xbf16>
    %cst_10 = arith.constant dense<0.000000e+00> : vector<8x256xf32>
    %12 = tpu.matmul %9, %11, %cst_10 {dimension_numbers = #tpu.dot_dimension_numbers<[1], [0], [0], [1], [0, 0, 1, 1], [], []>} : vector<8x256xbf16>, vector<256x256xbf16>, vector<8x256xf32> -> vector<8x256xf32>
    %c0_11 = arith.constant 0 : index
    %c0_12 = arith.constant 0 : index
    %c0_13 = arith.constant 0 : index
    %13 = vector.load %arg4[%c0_11, %c0_12, %c0_13] : memref<4x1x256xf32, #tpu.memory_space<vmem>>, vector<1x1x256xf32>
    %14 = vector.shape_cast %13 : vector<1x1x256xf32> to vector<1x256xf32>
    %15 = vector.broadcast %14 : vector<1x256xf32> to vector<8x256xf32>
    %16 = arith.addf %12, %15 : vector<8x256xf32>
    %17 = arith.addf %0, %16 : vector<8x256xf32>
    %c0_14 = arith.constant 0 : index
    %c0_15 = arith.constant 0 : index
    %c0_16 = arith.constant 0 : index
    %18 = vector.load %arg5[%c0_14, %c0_15, %c0_16] : memref<4x1x256xf32, #tpu.memory_space<vmem>>, vector<1x1x256xf32>
    %19 = vector.shape_cast %18 : vector<1x1x256xf32> to vector<1x256xf32>
    %c0_17 = arith.constant 0 : index
    %c0_18 = arith.constant 0 : index
    %c0_19 = arith.constant 0 : index
    %20 = vector.load %arg6[%c0_17, %c0_18, %c0_19] : memref<4x1x256xf32, #tpu.memory_space<vmem>>, vector<1x1x256xf32>
    %21 = vector.shape_cast %20 : vector<1x1x256xf32> to vector<1x256xf32>
    %cst_20 = arith.constant dense<0.000000e+00> : vector<8xf32>
    %22 = vector.multi_reduction <add>, %17, %cst_20 [1] : vector<8x256xf32> to vector<8xf32>
    %23 = vector.shape_cast %22 : vector<8xf32> to vector<8x1xf32>
    %cst_21 = arith.constant 2.560000e+02 : f32
    %24 = vector.broadcast %cst_21 : f32 to vector<8x1xf32>
    %25 = arith.divf %23, %24 : vector<8x1xf32>
    %26 = vector.broadcast %25 : vector<8x1xf32> to vector<8x256xf32>
    %27 = arith.subf %17, %26 : vector<8x256xf32>
    %28 = arith.mulf %27, %27 : vector<8x256xf32>
    %cst_22 = arith.constant dense<0.000000e+00> : vector<8xf32>
    %29 = vector.multi_reduction <add>, %28, %cst_22 [1] : vector<8x256xf32> to vector<8xf32>
    %30 = vector.shape_cast %29 : vector<8xf32> to vector<8x1xf32>
    %cst_23 = arith.constant 2.560000e+02 : f32
    %31 = vector.broadcast %cst_23 : f32 to vector<8x1xf32>
    %32 = arith.divf %30, %31 : vector<8x1xf32>
    %33 = vector.broadcast %25 : vector<8x1xf32> to vector<8x256xf32>
    %34 = arith.subf %17, %33 : vector<8x256xf32>
    %cst_24 = arith.constant 9.99999974E-6 : f32
    %35 = vector.broadcast %cst_24 : f32 to vector<8x1xf32>
    %36 = arith.addf %32, %35 : vector<8x1xf32>
    %37 = math.rsqrt %36 : vector<8x1xf32>
    %38 = vector.broadcast %37 : vector<8x1xf32> to vector<8x256xf32>
    %39 = arith.mulf %34, %38 : vector<8x256xf32>
    %40 = vector.broadcast %19 : vector<1x256xf32> to vector<8x256xf32>
    %41 = arith.mulf %39, %40 : vector<8x256xf32>
    %42 = vector.broadcast %21 : vector<1x256xf32> to vector<8x256xf32>
    %43 = arith.addf %41, %42 : vector<8x256xf32>
    %44 = arith.truncf %43 : vector<8x256xf32> to vector<8x256xbf16>
    %c0_25 = arith.constant 0 : index
    %c0_26 = arith.constant 0 : index
    %c0_27 = arith.constant 0 : index
    %45 = vector.load %arg7[%c0_25, %c0_26, %c0_27] : memref<4x256x1024xbf16, #tpu.memory_space<vmem>>, vector<1x256x1024xbf16>
    %46 = vector.shape_cast %45 : vector<1x256x1024xbf16> to vector<256x1024xbf16>
    %cst_28 = arith.constant dense<0.000000e+00> : vector<8x1024xf32>
    %47 = tpu.matmul %44, %46, %cst_28 {dimension_numbers = #tpu.dot_dimension_numbers<[1], [0], [0], [1], [0, 0, 1, 1], [], []>} : vector<8x256xbf16>, vector<256x1024xbf16>, vector<8x1024xf32> -> vector<8x1024xf32>
    %c0_29 = arith.constant 0 : index
    %c0_30 = arith.constant 0 : index
    %c0_31 = arith.constant 0 : index
    %48 = vector.load %arg8[%c0_29, %c0_30, %c0_31] : memref<4x1x1024xf32, #tpu.memory_space<vmem>>, vector<1x1x1024xf32>
    %49 = vector.shape_cast %48 : vector<1x1x1024xf32> to vector<1x1024xf32>
    %50 = vector.broadcast %49 : vector<1x1024xf32> to vector<8x1024xf32>
    %51 = arith.addf %47, %50 : vector<8x1024xf32>
    %cst_32 = arith.constant 0.000000e+00 : f32
    %52 = vector.broadcast %cst_32 : f32 to vector<8x1024xf32>
    %53 = arith.maximumf %51, %52 : vector<8x1024xf32>
    %54 = arith.truncf %53 : vector<8x1024xf32> to vector<8x1024xbf16>
    %c0_33 = arith.constant 0 : index
    %c0_34 = arith.constant 0 : index
    %c0_35 = arith.constant 0 : index
    %55 = vector.load %arg9[%c0_33, %c0_34, %c0_35] : memref<4x1024x256xbf16, #tpu.memory_space<vmem>>, vector<1x1024x256xbf16>
    %56 = vector.shape_cast %55 : vector<1x1024x256xbf16> to vector<1024x256xbf16>
    %cst_36 = arith.constant dense<0.000000e+00> : vector<8x256xf32>
    %57 = tpu.matmul %54, %56, %cst_36 {dimension_numbers = #tpu.dot_dimension_numbers<[1], [0], [0], [1], [0, 0, 1, 1], [], []>} : vector<8x1024xbf16>, vector<1024x256xbf16>, vector<8x256xf32> -> vector<8x256xf32>
    %c0_37 = arith.constant 0 : index
    %c0_38 = arith.constant 0 : index
    %c0_39 = arith.constant 0 : index
    %58 = vector.load %arg10[%c0_37, %c0_38, %c0_39] : memref<4x1x256xf32, #tpu.memory_space<vmem>>, vector<1x1x256xf32>
    %59 = vector.shape_cast %58 : vector<1x1x256xf32> to vector<1x256xf32>
    %60 = vector.broadcast %59 : vector<1x256xf32> to vector<8x256xf32>
    %61 = arith.addf %57, %60 : vector<8x256xf32>
    %62 = arith.addf %43, %61 : vector<8x256xf32>
    %c0_40 = arith.constant 0 : index
    %c0_41 = arith.constant 0 : index
    %c0_42 = arith.constant 0 : index
    %63 = vector.load %arg11[%c0_40, %c0_41, %c0_42] : memref<4x1x256xf32, #tpu.memory_space<vmem>>, vector<1x1x256xf32>
    %64 = vector.shape_cast %63 : vector<1x1x256xf32> to vector<1x256xf32>
    %c0_43 = arith.constant 0 : index
    %c0_44 = arith.constant 0 : index
    %c0_45 = arith.constant 0 : index
    %65 = vector.load %arg12[%c0_43, %c0_44, %c0_45] : memref<4x1x256xf32, #tpu.memory_space<vmem>>, vector<1x1x256xf32>
    %66 = vector.shape_cast %65 : vector<1x1x256xf32> to vector<1x256xf32>
    %cst_46 = arith.constant dense<0.000000e+00> : vector<8xf32>
    %67 = vector.multi_reduction <add>, %62, %cst_46 [1] : vector<8x256xf32> to vector<8xf32>
    %68 = vector.shape_cast %67 : vector<8xf32> to vector<8x1xf32>
    %cst_47 = arith.constant 2.560000e+02 : f32
    %69 = vector.broadcast %cst_47 : f32 to vector<8x1xf32>
    %70 = arith.divf %68, %69 : vector<8x1xf32>
    %71 = vector.broadcast %70 : vector<8x1xf32> to vector<8x256xf32>
    %72 = arith.subf %62, %71 : vector<8x256xf32>
    %73 = arith.mulf %72, %72 : vector<8x256xf32>
    %cst_48 = arith.constant dense<0.000000e+00> : vector<8xf32>
    %74 = vector.multi_reduction <add>, %73, %cst_48 [1] : vector<8x256xf32> to vector<8xf32>
    %75 = vector.shape_cast %74 : vector<8xf32> to vector<8x1xf32>
    %cst_49 = arith.constant 2.560000e+02 : f32
    %76 = vector.broadcast %cst_49 : f32 to vector<8x1xf32>
    %77 = arith.divf %75, %76 : vector<8x1xf32>
    %78 = vector.broadcast %70 : vector<8x1xf32> to vector<8x256xf32>
    %79 = arith.subf %62, %78 : vector<8x256xf32>
    %cst_50 = arith.constant 9.99999974E-6 : f32
    %80 = vector.broadcast %cst_50 : f32 to vector<8x1xf32>
    %81 = arith.addf %77, %80 : vector<8x1xf32>
    %82 = math.rsqrt %81 : vector<8x1xf32>
    %83 = vector.broadcast %82 : vector<8x1xf32> to vector<8x256xf32>
    %84 = arith.mulf %79, %83 : vector<8x256xf32>
    %85 = vector.broadcast %64 : vector<1x256xf32> to vector<8x256xf32>
    %86 = arith.mulf %84, %85 : vector<8x256xf32>
    %87 = vector.broadcast %66 : vector<1x256xf32> to vector<8x256xf32>
    %88 = arith.addf %86, %87 : vector<8x256xf32>
    %89 = arith.truncf %88 : vector<8x256xf32> to vector<8x256xbf16>
    %c1 = arith.constant 1 : index
    %c0_51 = arith.constant 0 : index
    %c0_52 = arith.constant 0 : index
    %90 = vector.load %arg1[%c1, %c0_51, %c0_52] : memref<4x256x256xbf16, #tpu.memory_space<vmem>>, vector<1x256x256xbf16>
    %91 = vector.shape_cast %90 : vector<1x256x256xbf16> to vector<256x256xbf16>
    %cst_53 = arith.constant dense<0.000000e+00> : vector<8x256xf32>
    %92 = tpu.matmul %89, %91, %cst_53 {dimension_numbers = #tpu.dot_dimension_numbers<[1], [0], [0], [1], [0, 0, 1, 1], [], []>} : vector<8x256xbf16>, vector<256x256xbf16>, vector<8x256xf32> -> vector<8x256xf32>
    %c1_54 = arith.constant 1 : index
    %c0_55 = arith.constant 0 : index
    %c0_56 = arith.constant 0 : index
    %93 = vector.load %arg2[%c1_54, %c0_55, %c0_56] : memref<4x1x256xf32, #tpu.memory_space<vmem>>, vector<1x1x256xf32>
    %94 = vector.shape_cast %93 : vector<1x1x256xf32> to vector<1x256xf32>
    %95 = vector.broadcast %94 : vector<1x256xf32> to vector<8x256xf32>
    %96 = arith.addf %92, %95 : vector<8x256xf32>
    %97 = arith.truncf %96 : vector<8x256xf32> to vector<8x256xbf16>
    %c1_57 = arith.constant 1 : index
    %c0_58 = arith.constant 0 : index
    %c0_59 = arith.constant 0 : index
    %98 = vector.load %arg3[%c1_57, %c0_58, %c0_59] : memref<4x256x256xbf16, #tpu.memory_space<vmem>>, vector<1x256x256xbf16>
    %99 = vector.shape_cast %98 : vector<1x256x256xbf16> to vector<256x256xbf16>
    %cst_60 = arith.constant dense<0.000000e+00> : vector<8x256xf32>
    %100 = tpu.matmul %97, %99, %cst_60 {dimension_numbers = #tpu.dot_dimension_numbers<[1], [0], [0], [1], [0, 0, 1, 1], [], []>} : vector<8x256xbf16>, vector<256x256xbf16>, vector<8x256xf32> -> vector<8x256xf32>
    %c1_61 = arith.constant 1 : index
    %c0_62 = arith.constant 0 : index
    %c0_63 = arith.constant 0 : index
    %101 = vector.load %arg4[%c1_61, %c0_62, %c0_63] : memref<4x1x256xf32, #tpu.memory_space<vmem>>, vector<1x1x256xf32>
    %102 = vector.shape_cast %101 : vector<1x1x256xf32> to vector<1x256xf32>
    %103 = vector.broadcast %102 : vector<1x256xf32> to vector<8x256xf32>
    %104 = arith.addf %100, %103 : vector<8x256xf32>
    %105 = arith.addf %88, %104 : vector<8x256xf32>
    %c1_64 = arith.constant 1 : index
    %c0_65 = arith.constant 0 : index
    %c0_66 = arith.constant 0 : index
    %106 = vector.load %arg5[%c1_64, %c0_65, %c0_66] : memref<4x1x256xf32, #tpu.memory_space<vmem>>, vector<1x1x256xf32>
    %107 = vector.shape_cast %106 : vector<1x1x256xf32> to vector<1x256xf32>
    %c1_67 = arith.constant 1 : index
    %c0_68 = arith.constant 0 : index
    %c0_69 = arith.constant 0 : index
    %108 = vector.load %arg6[%c1_67, %c0_68, %c0_69] : memref<4x1x256xf32, #tpu.memory_space<vmem>>, vector<1x1x256xf32>
    %109 = vector.shape_cast %108 : vector<1x1x256xf32> to vector<1x256xf32>
    %cst_70 = arith.constant dense<0.000000e+00> : vector<8xf32>
    %110 = vector.multi_reduction <add>, %105, %cst_70 [1] : vector<8x256xf32> to vector<8xf32>
    %111 = vector.shape_cast %110 : vector<8xf32> to vector<8x1xf32>
    %cst_71 = arith.constant 2.560000e+02 : f32
    %112 = vector.broadcast %cst_71 : f32 to vector<8x1xf32>
    %113 = arith.divf %111, %112 : vector<8x1xf32>
    %114 = vector.broadcast %113 : vector<8x1xf32> to vector<8x256xf32>
    %115 = arith.subf %105, %114 : vector<8x256xf32>
    %116 = arith.mulf %115, %115 : vector<8x256xf32>
    %cst_72 = arith.constant dense<0.000000e+00> : vector<8xf32>
    %117 = vector.multi_reduction <add>, %116, %cst_72 [1] : vector<8x256xf32> to vector<8xf32>
    %118 = vector.shape_cast %117 : vector<8xf32> to vector<8x1xf32>
    %cst_73 = arith.constant 2.560000e+02 : f32
    %119 = vector.broadcast %cst_73 : f32 to vector<8x1xf32>
    %120 = arith.divf %118, %119 : vector<8x1xf32>
    %121 = vector.broadcast %113 : vector<8x1xf32> to vector<8x256xf32>
    %122 = arith.subf %105, %121 : vector<8x256xf32>
    %cst_74 = arith.constant 9.99999974E-6 : f32
    %123 = vector.broadcast %cst_74 : f32 to vector<8x1xf32>
    %124 = arith.addf %120, %123 : vector<8x1xf32>
    %125 = math.rsqrt %124 : vector<8x1xf32>
    %126 = vector.broadcast %125 : vector<8x1xf32> to vector<8x256xf32>
    %127 = arith.mulf %122, %126 : vector<8x256xf32>
    %128 = vector.broadcast %107 : vector<1x256xf32> to vector<8x256xf32>
    %129 = arith.mulf %127, %128 : vector<8x256xf32>
    %130 = vector.broadcast %109 : vector<1x256xf32> to vector<8x256xf32>
    %131 = arith.addf %129, %130 : vector<8x256xf32>
    %132 = arith.truncf %131 : vector<8x256xf32> to vector<8x256xbf16>
    %c1_75 = arith.constant 1 : index
    %c0_76 = arith.constant 0 : index
    %c0_77 = arith.constant 0 : index
    %133 = vector.load %arg7[%c1_75, %c0_76, %c0_77] : memref<4x256x1024xbf16, #tpu.memory_space<vmem>>, vector<1x256x1024xbf16>
    %134 = vector.shape_cast %133 : vector<1x256x1024xbf16> to vector<256x1024xbf16>
    %cst_78 = arith.constant dense<0.000000e+00> : vector<8x1024xf32>
    %135 = tpu.matmul %132, %134, %cst_78 {dimension_numbers = #tpu.dot_dimension_numbers<[1], [0], [0], [1], [0, 0, 1, 1], [], []>} : vector<8x256xbf16>, vector<256x1024xbf16>, vector<8x1024xf32> -> vector<8x1024xf32>
    %c1_79 = arith.constant 1 : index
    %c0_80 = arith.constant 0 : index
    %c0_81 = arith.constant 0 : index
    %136 = vector.load %arg8[%c1_79, %c0_80, %c0_81] : memref<4x1x1024xf32, #tpu.memory_space<vmem>>, vector<1x1x1024xf32>
    %137 = vector.shape_cast %136 : vector<1x1x1024xf32> to vector<1x1024xf32>
    %138 = vector.broadcast %137 : vector<1x1024xf32> to vector<8x1024xf32>
    %139 = arith.addf %135, %138 : vector<8x1024xf32>
    %cst_82 = arith.constant 0.000000e+00 : f32
    %140 = vector.broadcast %cst_82 : f32 to vector<8x1024xf32>
    %141 = arith.maximumf %139, %140 : vector<8x1024xf32>
    %142 = arith.truncf %141 : vector<8x1024xf32> to vector<8x1024xbf16>
    %c1_83 = arith.constant 1 : index
    %c0_84 = arith.constant 0 : index
    %c0_85 = arith.constant 0 : index
    %143 = vector.load %arg9[%c1_83, %c0_84, %c0_85] : memref<4x1024x256xbf16, #tpu.memory_space<vmem>>, vector<1x1024x256xbf16>
    %144 = vector.shape_cast %143 : vector<1x1024x256xbf16> to vector<1024x256xbf16>
    %cst_86 = arith.constant dense<0.000000e+00> : vector<8x256xf32>
    %145 = tpu.matmul %142, %144, %cst_86 {dimension_numbers = #tpu.dot_dimension_numbers<[1], [0], [0], [1], [0, 0, 1, 1], [], []>} : vector<8x1024xbf16>, vector<1024x256xbf16>, vector<8x256xf32> -> vector<8x256xf32>
    %c1_87 = arith.constant 1 : index
    %c0_88 = arith.constant 0 : index
    %c0_89 = arith.constant 0 : index
    %146 = vector.load %arg10[%c1_87, %c0_88, %c0_89] : memref<4x1x256xf32, #tpu.memory_space<vmem>>, vector<1x1x256xf32>
    %147 = vector.shape_cast %146 : vector<1x1x256xf32> to vector<1x256xf32>
    %148 = vector.broadcast %147 : vector<1x256xf32> to vector<8x256xf32>
    %149 = arith.addf %145, %148 : vector<8x256xf32>
    %150 = arith.addf %131, %149 : vector<8x256xf32>
    %c1_90 = arith.constant 1 : index
    %c0_91 = arith.constant 0 : index
    %c0_92 = arith.constant 0 : index
    %151 = vector.load %arg11[%c1_90, %c0_91, %c0_92] : memref<4x1x256xf32, #tpu.memory_space<vmem>>, vector<1x1x256xf32>
    %152 = vector.shape_cast %151 : vector<1x1x256xf32> to vector<1x256xf32>
    %c1_93 = arith.constant 1 : index
    %c0_94 = arith.constant 0 : index
    %c0_95 = arith.constant 0 : index
    %153 = vector.load %arg12[%c1_93, %c0_94, %c0_95] : memref<4x1x256xf32, #tpu.memory_space<vmem>>, vector<1x1x256xf32>
    %154 = vector.shape_cast %153 : vector<1x1x256xf32> to vector<1x256xf32>
    %cst_96 = arith.constant dense<0.000000e+00> : vector<8xf32>
    %155 = vector.multi_reduction <add>, %150, %cst_96 [1] : vector<8x256xf32> to vector<8xf32>
    %156 = vector.shape_cast %155 : vector<8xf32> to vector<8x1xf32>
    %cst_97 = arith.constant 2.560000e+02 : f32
    %157 = vector.broadcast %cst_97 : f32 to vector<8x1xf32>
    %158 = arith.divf %156, %157 : vector<8x1xf32>
    %159 = vector.broadcast %158 : vector<8x1xf32> to vector<8x256xf32>
    %160 = arith.subf %150, %159 : vector<8x256xf32>
    %161 = arith.mulf %160, %160 : vector<8x256xf32>
    %cst_98 = arith.constant dense<0.000000e+00> : vector<8xf32>
    %162 = vector.multi_reduction <add>, %161, %cst_98 [1] : vector<8x256xf32> to vector<8xf32>
    %163 = vector.shape_cast %162 : vector<8xf32> to vector<8x1xf32>
    %cst_99 = arith.constant 2.560000e+02 : f32
    %164 = vector.broadcast %cst_99 : f32 to vector<8x1xf32>
    %165 = arith.divf %163, %164 : vector<8x1xf32>
    %166 = vector.broadcast %158 : vector<8x1xf32> to vector<8x256xf32>
    %167 = arith.subf %150, %166 : vector<8x256xf32>
    %cst_100 = arith.constant 9.99999974E-6 : f32
    %168 = vector.broadcast %cst_100 : f32 to vector<8x1xf32>
    %169 = arith.addf %165, %168 : vector<8x1xf32>
    %170 = math.rsqrt %169 : vector<8x1xf32>
    %171 = vector.broadcast %170 : vector<8x1xf32> to vector<8x256xf32>
    %172 = arith.mulf %167, %171 : vector<8x256xf32>
    %173 = vector.broadcast %152 : vector<1x256xf32> to vector<8x256xf32>
    %174 = arith.mulf %172, %173 : vector<8x256xf32>
    %175 = vector.broadcast %154 : vector<1x256xf32> to vector<8x256xf32>
    %176 = arith.addf %174, %175 : vector<8x256xf32>
    %177 = arith.truncf %176 : vector<8x256xf32> to vector<8x256xbf16>
    %c2 = arith.constant 2 : index
    %c0_101 = arith.constant 0 : index
    %c0_102 = arith.constant 0 : index
    %178 = vector.load %arg1[%c2, %c0_101, %c0_102] : memref<4x256x256xbf16, #tpu.memory_space<vmem>>, vector<1x256x256xbf16>
    %179 = vector.shape_cast %178 : vector<1x256x256xbf16> to vector<256x256xbf16>
    %cst_103 = arith.constant dense<0.000000e+00> : vector<8x256xf32>
    %180 = tpu.matmul %177, %179, %cst_103 {dimension_numbers = #tpu.dot_dimension_numbers<[1], [0], [0], [1], [0, 0, 1, 1], [], []>} : vector<8x256xbf16>, vector<256x256xbf16>, vector<8x256xf32> -> vector<8x256xf32>
    %c2_104 = arith.constant 2 : index
    %c0_105 = arith.constant 0 : index
    %c0_106 = arith.constant 0 : index
    %181 = vector.load %arg2[%c2_104, %c0_105, %c0_106] : memref<4x1x256xf32, #tpu.memory_space<vmem>>, vector<1x1x256xf32>
    %182 = vector.shape_cast %181 : vector<1x1x256xf32> to vector<1x256xf32>
    %183 = vector.broadcast %182 : vector<1x256xf32> to vector<8x256xf32>
    %184 = arith.addf %180, %183 : vector<8x256xf32>
    %185 = arith.truncf %184 : vector<8x256xf32> to vector<8x256xbf16>
    %c2_107 = arith.constant 2 : index
    %c0_108 = arith.constant 0 : index
    %c0_109 = arith.constant 0 : index
    %186 = vector.load %arg3[%c2_107, %c0_108, %c0_109] : memref<4x256x256xbf16, #tpu.memory_space<vmem>>, vector<1x256x256xbf16>
    %187 = vector.shape_cast %186 : vector<1x256x256xbf16> to vector<256x256xbf16>
    %cst_110 = arith.constant dense<0.000000e+00> : vector<8x256xf32>
    %188 = tpu.matmul %185, %187, %cst_110 {dimension_numbers = #tpu.dot_dimension_numbers<[1], [0], [0], [1], [0, 0, 1, 1], [], []>} : vector<8x256xbf16>, vector<256x256xbf16>, vector<8x256xf32> -> vector<8x256xf32>
    %c2_111 = arith.constant 2 : index
    %c0_112 = arith.constant 0 : index
    %c0_113 = arith.constant 0 : index
    %189 = vector.load %arg4[%c2_111, %c0_112, %c0_113] : memref<4x1x256xf32, #tpu.memory_space<vmem>>, vector<1x1x256xf32>
    %190 = vector.shape_cast %189 : vector<1x1x256xf32> to vector<1x256xf32>
    %191 = vector.broadcast %190 : vector<1x256xf32> to vector<8x256xf32>
    %192 = arith.addf %188, %191 : vector<8x256xf32>
    %193 = arith.addf %176, %192 : vector<8x256xf32>
    %c2_114 = arith.constant 2 : index
    %c0_115 = arith.constant 0 : index
    %c0_116 = arith.constant 0 : index
    %194 = vector.load %arg5[%c2_114, %c0_115, %c0_116] : memref<4x1x256xf32, #tpu.memory_space<vmem>>, vector<1x1x256xf32>
    %195 = vector.shape_cast %194 : vector<1x1x256xf32> to vector<1x256xf32>
    %c2_117 = arith.constant 2 : index
    %c0_118 = arith.constant 0 : index
    %c0_119 = arith.constant 0 : index
    %196 = vector.load %arg6[%c2_117, %c0_118, %c0_119] : memref<4x1x256xf32, #tpu.memory_space<vmem>>, vector<1x1x256xf32>
    %197 = vector.shape_cast %196 : vector<1x1x256xf32> to vector<1x256xf32>
    %cst_120 = arith.constant dense<0.000000e+00> : vector<8xf32>
    %198 = vector.multi_reduction <add>, %193, %cst_120 [1] : vector<8x256xf32> to vector<8xf32>
    %199 = vector.shape_cast %198 : vector<8xf32> to vector<8x1xf32>
    %cst_121 = arith.constant 2.560000e+02 : f32
    %200 = vector.broadcast %cst_121 : f32 to vector<8x1xf32>
    %201 = arith.divf %199, %200 : vector<8x1xf32>
    %202 = vector.broadcast %201 : vector<8x1xf32> to vector<8x256xf32>
    %203 = arith.subf %193, %202 : vector<8x256xf32>
    %204 = arith.mulf %203, %203 : vector<8x256xf32>
    %cst_122 = arith.constant dense<0.000000e+00> : vector<8xf32>
    %205 = vector.multi_reduction <add>, %204, %cst_122 [1] : vector<8x256xf32> to vector<8xf32>
    %206 = vector.shape_cast %205 : vector<8xf32> to vector<8x1xf32>
    %cst_123 = arith.constant 2.560000e+02 : f32
    %207 = vector.broadcast %cst_123 : f32 to vector<8x1xf32>
    %208 = arith.divf %206, %207 : vector<8x1xf32>
    %209 = vector.broadcast %201 : vector<8x1xf32> to vector<8x256xf32>
    %210 = arith.subf %193, %209 : vector<8x256xf32>
    %cst_124 = arith.constant 9.99999974E-6 : f32
    %211 = vector.broadcast %cst_124 : f32 to vector<8x1xf32>
    %212 = arith.addf %208, %211 : vector<8x1xf32>
    %213 = math.rsqrt %212 : vector<8x1xf32>
    %214 = vector.broadcast %213 : vector<8x1xf32> to vector<8x256xf32>
    %215 = arith.mulf %210, %214 : vector<8x256xf32>
    %216 = vector.broadcast %195 : vector<1x256xf32> to vector<8x256xf32>
    %217 = arith.mulf %215, %216 : vector<8x256xf32>
    %218 = vector.broadcast %197 : vector<1x256xf32> to vector<8x256xf32>
    %219 = arith.addf %217, %218 : vector<8x256xf32>
    %220 = arith.truncf %219 : vector<8x256xf32> to vector<8x256xbf16>
    %c2_125 = arith.constant 2 : index
    %c0_126 = arith.constant 0 : index
    %c0_127 = arith.constant 0 : index
    %221 = vector.load %arg7[%c2_125, %c0_126, %c0_127] : memref<4x256x1024xbf16, #tpu.memory_space<vmem>>, vector<1x256x1024xbf16>
    %222 = vector.shape_cast %221 : vector<1x256x1024xbf16> to vector<256x1024xbf16>
    %cst_128 = arith.constant dense<0.000000e+00> : vector<8x1024xf32>
    %223 = tpu.matmul %220, %222, %cst_128 {dimension_numbers = #tpu.dot_dimension_numbers<[1], [0], [0], [1], [0, 0, 1, 1], [], []>} : vector<8x256xbf16>, vector<256x1024xbf16>, vector<8x1024xf32> -> vector<8x1024xf32>
    %c2_129 = arith.constant 2 : index
    %c0_130 = arith.constant 0 : index
    %c0_131 = arith.constant 0 : index
    %224 = vector.load %arg8[%c2_129, %c0_130, %c0_131] : memref<4x1x1024xf32, #tpu.memory_space<vmem>>, vector<1x1x1024xf32>
    %225 = vector.shape_cast %224 : vector<1x1x1024xf32> to vector<1x1024xf32>
    %226 = vector.broadcast %225 : vector<1x1024xf32> to vector<8x1024xf32>
    %227 = arith.addf %223, %226 : vector<8x1024xf32>
    %cst_132 = arith.constant 0.000000e+00 : f32
    %228 = vector.broadcast %cst_132 : f32 to vector<8x1024xf32>
    %229 = arith.maximumf %227, %228 : vector<8x1024xf32>
    %230 = arith.truncf %229 : vector<8x1024xf32> to vector<8x1024xbf16>
    %c2_133 = arith.constant 2 : index
    %c0_134 = arith.constant 0 : index
    %c0_135 = arith.constant 0 : index
    %231 = vector.load %arg9[%c2_133, %c0_134, %c0_135] : memref<4x1024x256xbf16, #tpu.memory_space<vmem>>, vector<1x1024x256xbf16>
    %232 = vector.shape_cast %231 : vector<1x1024x256xbf16> to vector<1024x256xbf16>
    %cst_136 = arith.constant dense<0.000000e+00> : vector<8x256xf32>
    %233 = tpu.matmul %230, %232, %cst_136 {dimension_numbers = #tpu.dot_dimension_numbers<[1], [0], [0], [1], [0, 0, 1, 1], [], []>} : vector<8x1024xbf16>, vector<1024x256xbf16>, vector<8x256xf32> -> vector<8x256xf32>
    %c2_137 = arith.constant 2 : index
    %c0_138 = arith.constant 0 : index
    %c0_139 = arith.constant 0 : index
    %234 = vector.load %arg10[%c2_137, %c0_138, %c0_139] : memref<4x1x256xf32, #tpu.memory_space<vmem>>, vector<1x1x256xf32>
    %235 = vector.shape_cast %234 : vector<1x1x256xf32> to vector<1x256xf32>
    %236 = vector.broadcast %235 : vector<1x256xf32> to vector<8x256xf32>
    %237 = arith.addf %233, %236 : vector<8x256xf32>
    %238 = arith.addf %219, %237 : vector<8x256xf32>
    %c2_140 = arith.constant 2 : index
    %c0_141 = arith.constant 0 : index
    %c0_142 = arith.constant 0 : index
    %239 = vector.load %arg11[%c2_140, %c0_141, %c0_142] : memref<4x1x256xf32, #tpu.memory_space<vmem>>, vector<1x1x256xf32>
    %240 = vector.shape_cast %239 : vector<1x1x256xf32> to vector<1x256xf32>
    %c2_143 = arith.constant 2 : index
    %c0_144 = arith.constant 0 : index
    %c0_145 = arith.constant 0 : index
    %241 = vector.load %arg12[%c2_143, %c0_144, %c0_145] : memref<4x1x256xf32, #tpu.memory_space<vmem>>, vector<1x1x256xf32>
    %242 = vector.shape_cast %241 : vector<1x1x256xf32> to vector<1x256xf32>
    %cst_146 = arith.constant dense<0.000000e+00> : vector<8xf32>
    %243 = vector.multi_reduction <add>, %238, %cst_146 [1] : vector<8x256xf32> to vector<8xf32>
    %244 = vector.shape_cast %243 : vector<8xf32> to vector<8x1xf32>
    %cst_147 = arith.constant 2.560000e+02 : f32
    %245 = vector.broadcast %cst_147 : f32 to vector<8x1xf32>
    %246 = arith.divf %244, %245 : vector<8x1xf32>
    %247 = vector.broadcast %246 : vector<8x1xf32> to vector<8x256xf32>
    %248 = arith.subf %238, %247 : vector<8x256xf32>
    %249 = arith.mulf %248, %248 : vector<8x256xf32>
    %cst_148 = arith.constant dense<0.000000e+00> : vector<8xf32>
    %250 = vector.multi_reduction <add>, %249, %cst_148 [1] : vector<8x256xf32> to vector<8xf32>
    %251 = vector.shape_cast %250 : vector<8xf32> to vector<8x1xf32>
    %cst_149 = arith.constant 2.560000e+02 : f32
    %252 = vector.broadcast %cst_149 : f32 to vector<8x1xf32>
    %253 = arith.divf %251, %252 : vector<8x1xf32>
    %254 = vector.broadcast %246 : vector<8x1xf32> to vector<8x256xf32>
    %255 = arith.subf %238, %254 : vector<8x256xf32>
    %cst_150 = arith.constant 9.99999974E-6 : f32
    %256 = vector.broadcast %cst_150 : f32 to vector<8x1xf32>
    %257 = arith.addf %253, %256 : vector<8x1xf32>
    %258 = math.rsqrt %257 : vector<8x1xf32>
    %259 = vector.broadcast %258 : vector<8x1xf32> to vector<8x256xf32>
    %260 = arith.mulf %255, %259 : vector<8x256xf32>
    %261 = vector.broadcast %240 : vector<1x256xf32> to vector<8x256xf32>
    %262 = arith.mulf %260, %261 : vector<8x256xf32>
    %263 = vector.broadcast %242 : vector<1x256xf32> to vector<8x256xf32>
    %264 = arith.addf %262, %263 : vector<8x256xf32>
    %265 = arith.truncf %264 : vector<8x256xf32> to vector<8x256xbf16>
    %c3 = arith.constant 3 : index
    %c0_151 = arith.constant 0 : index
    %c0_152 = arith.constant 0 : index
    %266 = vector.load %arg1[%c3, %c0_151, %c0_152] : memref<4x256x256xbf16, #tpu.memory_space<vmem>>, vector<1x256x256xbf16>
    %267 = vector.shape_cast %266 : vector<1x256x256xbf16> to vector<256x256xbf16>
    %cst_153 = arith.constant dense<0.000000e+00> : vector<8x256xf32>
    %268 = tpu.matmul %265, %267, %cst_153 {dimension_numbers = #tpu.dot_dimension_numbers<[1], [0], [0], [1], [0, 0, 1, 1], [], []>} : vector<8x256xbf16>, vector<256x256xbf16>, vector<8x256xf32> -> vector<8x256xf32>
    %c3_154 = arith.constant 3 : index
    %c0_155 = arith.constant 0 : index
    %c0_156 = arith.constant 0 : index
    %269 = vector.load %arg2[%c3_154, %c0_155, %c0_156] : memref<4x1x256xf32, #tpu.memory_space<vmem>>, vector<1x1x256xf32>
    %270 = vector.shape_cast %269 : vector<1x1x256xf32> to vector<1x256xf32>
    %271 = vector.broadcast %270 : vector<1x256xf32> to vector<8x256xf32>
    %272 = arith.addf %268, %271 : vector<8x256xf32>
    %273 = arith.truncf %272 : vector<8x256xf32> to vector<8x256xbf16>
    %c3_157 = arith.constant 3 : index
    %c0_158 = arith.constant 0 : index
    %c0_159 = arith.constant 0 : index
    %274 = vector.load %arg3[%c3_157, %c0_158, %c0_159] : memref<4x256x256xbf16, #tpu.memory_space<vmem>>, vector<1x256x256xbf16>
    %275 = vector.shape_cast %274 : vector<1x256x256xbf16> to vector<256x256xbf16>
    %cst_160 = arith.constant dense<0.000000e+00> : vector<8x256xf32>
    %276 = tpu.matmul %273, %275, %cst_160 {dimension_numbers = #tpu.dot_dimension_numbers<[1], [0], [0], [1], [0, 0, 1, 1], [], []>} : vector<8x256xbf16>, vector<256x256xbf16>, vector<8x256xf32> -> vector<8x256xf32>
    %c3_161 = arith.constant 3 : index
    %c0_162 = arith.constant 0 : index
    %c0_163 = arith.constant 0 : index
    %277 = vector.load %arg4[%c3_161, %c0_162, %c0_163] : memref<4x1x256xf32, #tpu.memory_space<vmem>>, vector<1x1x256xf32>
    %278 = vector.shape_cast %277 : vector<1x1x256xf32> to vector<1x256xf32>
    %279 = vector.broadcast %278 : vector<1x256xf32> to vector<8x256xf32>
    %280 = arith.addf %276, %279 : vector<8x256xf32>
    %281 = arith.addf %264, %280 : vector<8x256xf32>
    %c3_164 = arith.constant 3 : index
    %c0_165 = arith.constant 0 : index
    %c0_166 = arith.constant 0 : index
    %282 = vector.load %arg5[%c3_164, %c0_165, %c0_166] : memref<4x1x256xf32, #tpu.memory_space<vmem>>, vector<1x1x256xf32>
    %283 = vector.shape_cast %282 : vector<1x1x256xf32> to vector<1x256xf32>
    %c3_167 = arith.constant 3 : index
    %c0_168 = arith.constant 0 : index
    %c0_169 = arith.constant 0 : index
    %284 = vector.load %arg6[%c3_167, %c0_168, %c0_169] : memref<4x1x256xf32, #tpu.memory_space<vmem>>, vector<1x1x256xf32>
    %285 = vector.shape_cast %284 : vector<1x1x256xf32> to vector<1x256xf32>
    %cst_170 = arith.constant dense<0.000000e+00> : vector<8xf32>
    %286 = vector.multi_reduction <add>, %281, %cst_170 [1] : vector<8x256xf32> to vector<8xf32>
    %287 = vector.shape_cast %286 : vector<8xf32> to vector<8x1xf32>
    %cst_171 = arith.constant 2.560000e+02 : f32
    %288 = vector.broadcast %cst_171 : f32 to vector<8x1xf32>
    %289 = arith.divf %287, %288 : vector<8x1xf32>
    %290 = vector.broadcast %289 : vector<8x1xf32> to vector<8x256xf32>
    %291 = arith.subf %281, %290 : vector<8x256xf32>
    %292 = arith.mulf %291, %291 : vector<8x256xf32>
    %cst_172 = arith.constant dense<0.000000e+00> : vector<8xf32>
    %293 = vector.multi_reduction <add>, %292, %cst_172 [1] : vector<8x256xf32> to vector<8xf32>
    %294 = vector.shape_cast %293 : vector<8xf32> to vector<8x1xf32>
    %cst_173 = arith.constant 2.560000e+02 : f32
    %295 = vector.broadcast %cst_173 : f32 to vector<8x1xf32>
    %296 = arith.divf %294, %295 : vector<8x1xf32>
    %297 = vector.broadcast %289 : vector<8x1xf32> to vector<8x256xf32>
    %298 = arith.subf %281, %297 : vector<8x256xf32>
    %cst_174 = arith.constant 9.99999974E-6 : f32
    %299 = vector.broadcast %cst_174 : f32 to vector<8x1xf32>
    %300 = arith.addf %296, %299 : vector<8x1xf32>
    %301 = math.rsqrt %300 : vector<8x1xf32>
    %302 = vector.broadcast %301 : vector<8x1xf32> to vector<8x256xf32>
    %303 = arith.mulf %298, %302 : vector<8x256xf32>
    %304 = vector.broadcast %283 : vector<1x256xf32> to vector<8x256xf32>
    %305 = arith.mulf %303, %304 : vector<8x256xf32>
    %306 = vector.broadcast %285 : vector<1x256xf32> to vector<8x256xf32>
    %307 = arith.addf %305, %306 : vector<8x256xf32>
    %308 = arith.truncf %307 : vector<8x256xf32> to vector<8x256xbf16>
    %c3_175 = arith.constant 3 : index
    %c0_176 = arith.constant 0 : index
    %c0_177 = arith.constant 0 : index
    %309 = vector.load %arg7[%c3_175, %c0_176, %c0_177] : memref<4x256x1024xbf16, #tpu.memory_space<vmem>>, vector<1x256x1024xbf16>
    %310 = vector.shape_cast %309 : vector<1x256x1024xbf16> to vector<256x1024xbf16>
    %cst_178 = arith.constant dense<0.000000e+00> : vector<8x1024xf32>
    %311 = tpu.matmul %308, %310, %cst_178 {dimension_numbers = #tpu.dot_dimension_numbers<[1], [0], [0], [1], [0, 0, 1, 1], [], []>} : vector<8x256xbf16>, vector<256x1024xbf16>, vector<8x1024xf32> -> vector<8x1024xf32>
    %c3_179 = arith.constant 3 : index
    %c0_180 = arith.constant 0 : index
    %c0_181 = arith.constant 0 : index
    %312 = vector.load %arg8[%c3_179, %c0_180, %c0_181] : memref<4x1x1024xf32, #tpu.memory_space<vmem>>, vector<1x1x1024xf32>
    %313 = vector.shape_cast %312 : vector<1x1x1024xf32> to vector<1x1024xf32>
    %314 = vector.broadcast %313 : vector<1x1024xf32> to vector<8x1024xf32>
    %315 = arith.addf %311, %314 : vector<8x1024xf32>
    %cst_182 = arith.constant 0.000000e+00 : f32
    %316 = vector.broadcast %cst_182 : f32 to vector<8x1024xf32>
    %317 = arith.maximumf %315, %316 : vector<8x1024xf32>
    %318 = arith.truncf %317 : vector<8x1024xf32> to vector<8x1024xbf16>
    %c3_183 = arith.constant 3 : index
    %c0_184 = arith.constant 0 : index
    %c0_185 = arith.constant 0 : index
    %319 = vector.load %arg9[%c3_183, %c0_184, %c0_185] : memref<4x1024x256xbf16, #tpu.memory_space<vmem>>, vector<1x1024x256xbf16>
    %320 = vector.shape_cast %319 : vector<1x1024x256xbf16> to vector<1024x256xbf16>
    %cst_186 = arith.constant dense<0.000000e+00> : vector<8x256xf32>
    %321 = tpu.matmul %318, %320, %cst_186 {dimension_numbers = #tpu.dot_dimension_numbers<[1], [0], [0], [1], [0, 0, 1, 1], [], []>} : vector<8x1024xbf16>, vector<1024x256xbf16>, vector<8x256xf32> -> vector<8x256xf32>
    %c3_187 = arith.constant 3 : index
    %c0_188 = arith.constant 0 : index
    %c0_189 = arith.constant 0 : index
    %322 = vector.load %arg10[%c3_187, %c0_188, %c0_189] : memref<4x1x256xf32, #tpu.memory_space<vmem>>, vector<1x1x256xf32>
    %323 = vector.shape_cast %322 : vector<1x1x256xf32> to vector<1x256xf32>
    %324 = vector.broadcast %323 : vector<1x256xf32> to vector<8x256xf32>
    %325 = arith.addf %321, %324 : vector<8x256xf32>
    %326 = arith.addf %307, %325 : vector<8x256xf32>
    %c3_190 = arith.constant 3 : index
    %c0_191 = arith.constant 0 : index
    %c0_192 = arith.constant 0 : index
    %327 = vector.load %arg11[%c3_190, %c0_191, %c0_192] : memref<4x1x256xf32, #tpu.memory_space<vmem>>, vector<1x1x256xf32>
    %328 = vector.shape_cast %327 : vector<1x1x256xf32> to vector<1x256xf32>
    %c3_193 = arith.constant 3 : index
    %c0_194 = arith.constant 0 : index
    %c0_195 = arith.constant 0 : index
    %329 = vector.load %arg12[%c3_193, %c0_194, %c0_195] : memref<4x1x256xf32, #tpu.memory_space<vmem>>, vector<1x1x256xf32>
    %330 = vector.shape_cast %329 : vector<1x1x256xf32> to vector<1x256xf32>
    %cst_196 = arith.constant dense<0.000000e+00> : vector<8xf32>
    %331 = vector.multi_reduction <add>, %326, %cst_196 [1] : vector<8x256xf32> to vector<8xf32>
    %332 = vector.shape_cast %331 : vector<8xf32> to vector<8x1xf32>
    %cst_197 = arith.constant 2.560000e+02 : f32
    %333 = vector.broadcast %cst_197 : f32 to vector<8x1xf32>
    %334 = arith.divf %332, %333 : vector<8x1xf32>
    %335 = vector.broadcast %334 : vector<8x1xf32> to vector<8x256xf32>
    %336 = arith.subf %326, %335 : vector<8x256xf32>
    %337 = arith.mulf %336, %336 : vector<8x256xf32>
    %cst_198 = arith.constant dense<0.000000e+00> : vector<8xf32>
    %338 = vector.multi_reduction <add>, %337, %cst_198 [1] : vector<8x256xf32> to vector<8xf32>
    %339 = vector.shape_cast %338 : vector<8xf32> to vector<8x1xf32>
    %cst_199 = arith.constant 2.560000e+02 : f32
    %340 = vector.broadcast %cst_199 : f32 to vector<8x1xf32>
    %341 = arith.divf %339, %340 : vector<8x1xf32>
    %342 = vector.broadcast %334 : vector<8x1xf32> to vector<8x256xf32>
    %343 = arith.subf %326, %342 : vector<8x256xf32>
    %cst_200 = arith.constant 9.99999974E-6 : f32
    %344 = vector.broadcast %cst_200 : f32 to vector<8x1xf32>
    %345 = arith.addf %341, %344 : vector<8x1xf32>
    %346 = math.rsqrt %345 : vector<8x1xf32>
    %347 = vector.broadcast %346 : vector<8x1xf32> to vector<8x256xf32>
    %348 = arith.mulf %343, %347 : vector<8x256xf32>
    %349 = vector.broadcast %328 : vector<1x256xf32> to vector<8x256xf32>
    %350 = arith.mulf %348, %349 : vector<8x256xf32>
    %351 = vector.broadcast %330 : vector<1x256xf32> to vector<8x256xf32>
    %352 = arith.addf %350, %351 : vector<8x256xf32>
    %c0_201 = arith.constant 0 : index
    %c0_202 = arith.constant 0 : index
    %353 = vector.load %arg13[%c0_201, %c0_202] : memref<256x128xf32, #tpu.memory_space<vmem>>, vector<256x128xf32>
    %cst_203 = arith.constant dense<0.000000e+00> : vector<8x128xf32>
    %354 = tpu.matmul %352, %353, %cst_203 {dimension_numbers = #tpu.dot_dimension_numbers<[1], [0], [0], [1], [0, 0, 1, 1], [], []>} : vector<8x256xf32>, vector<256x128xf32>, vector<8x128xf32> -> vector<8x128xf32>
    %c0_204 = arith.constant 0 : index
    %c0_205 = arith.constant 0 : index
    %355 = vector.load %arg14[%c0_204, %c0_205] : memref<1x128xf32, #tpu.memory_space<vmem>>, vector<1x128xf32>
    %356 = vector.broadcast %355 : vector<1x128xf32> to vector<8x128xf32>
    %357 = arith.addf %354, %356 : vector<8x128xf32>
    %cst_206 = arith.constant 0.000000e+00 : f32
    %358 = vector.broadcast %cst_206 : f32 to vector<8x128xf32>
    %359 = arith.maximumf %357, %358 : vector<8x128xf32>
    %c0_207 = arith.constant 0 : index
    %c0_208 = arith.constant 0 : index
    %360 = vector.load %arg15[%c0_207, %c0_208] : memref<128x128xf32, #tpu.memory_space<vmem>>, vector<128x128xf32>
    %cst_209 = arith.constant dense<0.000000e+00> : vector<8x128xf32>
    %361 = tpu.matmul %359, %360, %cst_209 {dimension_numbers = #tpu.dot_dimension_numbers<[1], [0], [0], [1], [0, 0, 1, 1], [], []>} : vector<8x128xf32>, vector<128x128xf32>, vector<8x128xf32> -> vector<8x128xf32>
    %c0_210 = arith.constant 0 : index
    %c0_211 = arith.constant 0 : index
    %362 = vector.load %arg16[%c0_210, %c0_211] : memref<1x128xf32, #tpu.memory_space<vmem>>, vector<1x128xf32>
    %363 = vector.broadcast %362 : vector<1x128xf32> to vector<8x128xf32>
    %364 = arith.addf %361, %363 : vector<8x128xf32>
    %c0_212 = arith.constant 0 : index
    %c0_213 = arith.constant 0 : index
    %365 = vector.load %arg17[%c0_212, %c0_213] : memref<8x128xf32, #tpu.memory_space<vmem>>, vector<8x128xf32>
    tpu.vector_store %arg17[%c0_212, %c0_213], %364 {strides = array<i32>} : memref<8x128xf32, #tpu.memory_space<vmem>>, vector<8x128xf32>,
    return
  }
}

</mosaic_0001>

<llo_original>
// kernel: tpu_custom_call.1
$region0: #{tpu_custom_call.1}
  #allocation0 [shape = 'u32[]', space=smem, size = 0x4, offset = 0x4, fixed_abs, tag = 'smem constant byte address 0x4 - core index']
  #allocation1 [shape = 'u32[144,128]{1,0:T(1,128)}', space=vmem, size = 0x12000, scoped, tag = 'internal scratch']
  %s0 = inlined_call_operand.hbm [shape: f32[8,256], index: 0, kind: input, shape index: {}]
  %s1 = inlined_call_operand.hbm [shape: bf16[4,256,256], index: 1, kind: input, shape index: {}]
  %s2 = inlined_call_operand.hbm [shape: f32[4,1,256], index: 2, kind: input, shape index: {}]
  %s3 = inlined_call_operand.hbm [shape: bf16[4,256,256], index: 3, kind: input, shape index: {}]
  %s4 = inlined_call_operand.hbm [shape: f32[4,1,256], index: 4, kind: input, shape index: {}]
  %s5 = inlined_call_operand.hbm [shape: f32[4,1,256], index: 5, kind: input, shape index: {}]
  %s6 = inlined_call_operand.hbm [shape: f32[4,1,256], index: 6, kind: input, shape index: {}]
  %s7 = inlined_call_operand.hbm [shape: bf16[4,256,1024], index: 7, kind: input, shape index: {}]
  %s8 = inlined_call_operand.hbm [shape: f32[4,1,1024], index: 8, kind: input, shape index: {}]
  %s9 = inlined_call_operand.hbm [shape: bf16[4,1024,256], index: 9, kind: input, shape index: {}]
  %s10 = inlined_call_operand.hbm [shape: f32[4,1,256], index: 10, kind: input, shape index: {}]
  %s11 = inlined_call_operand.hbm [shape: f32[4,1,256], index: 11, kind: input, shape index: {}]
  %s12 = inlined_call_operand.hbm [shape: f32[4,1,256], index: 12, kind: input, shape index: {}]
  %s13 = inlined_call_operand.hbm [shape: f32[256,128], index: 13, kind: input, shape index: {}]
  %s14 = inlined_call_operand.hbm [shape: f32[1,128], index: 14, kind: input, shape index: {}]
  %s15 = inlined_call_operand.hbm [shape: f32[128,128], index: 15, kind: input, shape index: {}]
  %s16 = inlined_call_operand.hbm [shape: f32[1,128], index: 16, kind: input, shape index: {}]
  %s17 = inlined_call_operand.hbm [shape: f32[8,128], index: 17, kind: output, shape index: {}]
  %s18 = sld [smem:[#allocation0]]
  $region146: #{tpu_custom_call.1} parent=0
    _
  %s20 = ssub.s32 1, %s18
  %s21 = scalar_select 0, %s20, %s18
  $region1: #{tpu_custom_call.1} parent=0
    #allocation2 [shape = 'u8[8192]{0}', space=vmem, size = 0x2000, scoped, tag = 'input window, operand 0, single buffered']
    #allocation3 [shape = 's32[1]{0}', space=sflag, size = 0x4, scoped, tag = 'scoped memory for tpu_custom_call.1']
    #allocation4 [shape = 's32[1]{0}', space=sflag, size = 0x4, scoped, tag = 'scoped memory for tpu_custom_call.1']
    #allocation5 [shape = 'u8[524288]{0}', space=vmem, size = 0x80000, scoped, tag = 'input window, operand 1, single buffered']
    #allocation6 [shape = 's32[1]{0}', space=sflag, size = 0x4, scoped, tag = 'scoped memory for tpu_custom_call.1']
    #allocation7 [shape = 'u8[4096]{0}', space=vmem, size = 0x1000, scoped, tag = 'input window, operand 2, single buffered']
    #allocation8 [shape = 'u8[524288]{0}', space=vmem, size = 0x80000, scoped, tag = 'input window, operand 3, single buffered']
    #allocation9 [shape = 's32[1]{0}', space=sflag, size = 0x4, scoped, tag = 'scoped memory for tpu_custom_call.1']
    #allocation10 [shape = 'u8[4096]{0}', space=vmem, size = 0x1000, scoped, tag = 'input window, operand 4, single buffered']
    #allocation11 [shape = 'u8[4096]{0}', space=vmem, size = 0x1000, scoped, tag = 'input window, operand 5, single buffered']
    #allocation12 [shape = 's32[1]{0}', space=sflag, size = 0x4, scoped, tag = 'scoped memory for tpu_custom_call.1']
    #allocation13 [shape = 'u8[4096]{0}', space=vmem, size = 0x1000, scoped, tag = 'input window, operand 6, single buffered']
    #allocation14 [shape = 'u8[2097152]{0}', space=vmem, size = 0x200000, scoped, tag = 'input window, operand 7, single buffered']
    #allocation15 [shape = 's32[1]{0}', space=sflag, size = 0x4, scoped, tag = 'scoped memory for tpu_custom_call.1']
    #allocation16 [shape = 'u8[16384]{0}', space=vmem, size = 0x4000, scoped, tag = 'input window, operand 8, single buffered']
    #allocation17 [shape = 'u8[2097152]{0}', space=vmem, size = 0x200000, scoped, tag = 'input window, operand 9, single buffered']
    #allocation18 [shape = 's32[1]{0}', space=sflag, size = 0x4, scoped, tag = 'scoped memory for tpu_custom_call.1']
    #allocation19 [shape = 'u8[4096]{0}', space=vmem, size = 0x1000, scoped, tag = 'input window, operand 10, single buffered']
    #allocation20 [shape = 'u8[4096]{0}', space=vmem, size = 0x1000, scoped, tag = 'input window, operand 11, single buffered']
    #allocation21 [shape = 's32[1]{0}', space=sflag, size = 0x4, scoped, tag = 'scoped memory for tpu_custom_call.1']
    #allocation22 [shape = 'u8[4096]{0}', space=vmem, size = 0x1000, scoped, tag = 'input window, operand 12, single buffered']
    #allocation23 [shape = 'u8[131072]{0}', space=vmem, size = 0x20000, scoped, tag = 'input window, operand 13, single buffered']
    #allocation24 [shape = 's32[1]{0}', space=sflag, size = 0x4, scoped, tag = 'scoped memory for tpu_custom_call.1']
    #allocation25 [shape = 'u8[512]{0}', space=vmem, size = 0x400, scoped, tag = 'input window, operand 14, single buffered']
    #allocation26 [shape = 'u8[65536]{0}', space=vmem, size = 0x10000, scoped, tag = 'input window, operand 15, single buffered']
    #allocation27 [shape = 's32[1]{0}', space=sflag, size = 0x4, scoped, tag = 'scoped memory for tpu_custom_call.1']
    #allocation28 [shape = 'u8[512]{0}', space=vmem, size = 0x400, scoped, tag = 'input window, operand 16, single buffered']
    #allocation29 [shape = 'u8[4096]{0}', space=vmem, size = 0x1000, scoped, tag = 'output window, operand 0, single buffered']
    %22 = vsyncpa [#allocation3], 0
    %23 = vsyncpa [#allocation6], 0
    %24 = vsyncpa [#allocation9], 0
    %25 = vsyncpa [#allocation12], 0
    %26 = vsyncpa [#allocation15], 0
    %27 = vsyncpa [#allocation18], 0
    %28 = vsyncpa [#allocation21], 0
    %29 = vsyncpa [#allocation24], 0
    %30 = vsyncpa [#allocation27], 0
    %31 = vsyncpa [#allocation4], 0
    // Predicated region
    $region2: #{tpu_custom_call.1} parent=1 // pred_check
      _
    $region3: #{tpu_custom_call.1} parent=1 // pred_check_branch
      %33 = sbr.rel (0) target = $region5
    $region4: #{tpu_custom_call.1} parent=1 // pred_region
      %s35 = ssub.s32 256, 256
      %36 = vsyncadd [#allocation3], %s35
      %s38 = sshll.u32 [#allocation2], 4
      %s39 = int_to_ptr.vmem [resolvable:$true] %s38
      %41 = dma.hbm_to_vmem [thread:$0]  %s0, 256, %s39, [#allocation3]
    $region5: #{tpu_custom_call.1} parent=1 // pred_fallthru
      _
    // Predicated region
    $region6: #{tpu_custom_call.1} parent=1 // pred_check
      _
    $region7: #{tpu_custom_call.1} parent=1 // pred_check_branch
      %43 = sbr.rel (0) target = $region9
    $region8: #{tpu_custom_call.1} parent=1 // pred_region
      %s45 = ssub.s32 16384, 16384
      %46 = vsyncadd [#allocation6], %s45
      %s47 = sshll.u32 [#allocation5], 4
      %s48 = int_to_ptr.vmem [resolvable:$true] %s47
      %53 = dma.hbm_to_vmem [thread:$0]  %s1, 16384, %s48, [#allocation6], 128, 128, 8
    $region9: #{tpu_custom_call.1} parent=1 // pred_fallthru
      _
    // Predicated region
    $region10: #{tpu_custom_call.1} parent=1 // pred_check
      _
    $region11: #{tpu_custom_call.1} parent=1 // pred_check_branch
      %55 = sbr.rel (0) target = $region13
    $region12: #{tpu_custom_call.1} parent=1 // pred_region
      %s57 = ssub.s32 128, 128
      %58 = vsyncadd [#allocation6], %s57
      %s59 = sshll.u32 [#allocation7], 4
      %s60 = int_to_ptr.vmem [resolvable:$true] %s59
      %65 = dma.hbm_to_vmem [thread:$0]  %s2, 128, %s60, [#allocation6], 32, 32, 2
    $region13: #{tpu_custom_call.1} parent=1 // pred_fallthru
      _
    // Predicated region
    $region14: #{tpu_custom_call.1} parent=1 // pred_check
      _
    $region15: #{tpu_custom_call.1} parent=1 // pred_check_branch
      %67 = sbr.rel (0) target = $region17
    $region16: #{tpu_custom_call.1} parent=1 // pred_region
      %s69 = ssub.s32 16384, 16384
      %70 = vsyncadd [#allocation9], %s69
      %s71 = sshll.u32 [#allocation8], 4
      %s72 = int_to_ptr.vmem [resolvable:$true] %s71
      %77 = dma.hbm_to_vmem [thread:$0]  %s3, 16384, %s72, [#allocation9], 128, 128, 8
    $region17: #{tpu_custom_call.1} parent=1 // pred_fallthru
      _
    // Predicated region
    $region18: #{tpu_custom_call.1} parent=1 // pred_check
      _
    $region19: #{tpu_custom_call.1} parent=1 // pred_check_branch
      %79 = sbr.rel (0) target = $region21
    $region20: #{tpu_custom_call.1} parent=1 // pred_region
      %s81 = ssub.s32 128, 128
      %82 = vsyncadd [#allocation9], %s81
      %s83 = sshll.u32 [#allocation10], 4
      %s84 = int_to_ptr.vmem [resolvable:$true] %s83
      %89 = dma.hbm_to_vmem [thread:$0]  %s4, 128, %s84, [#allocation9], 32, 32, 2
    $region21: #{tpu_custom_call.1} parent=1 // pred_fallthru
      _
    // Predicated region
    $region22: #{tpu_custom_call.1} parent=1 // pred_check
      _
    $region23: #{tpu_custom_call.1} parent=1 // pred_check_branch
      %91 = sbr.rel (0) target = $region25
    $region24: #{tpu_custom_call.1} parent=1 // pred_region
      %s93 = ssub.s32 128, 128
      %94 = vsyncadd [#allocation12], %s93
      %s95 = sshll.u32 [#allocation11], 4
      %s96 = int_to_ptr.vmem [resolvable:$true] %s95
      %101 = dma.hbm_to_vmem [thread:$0]  %s5, 128, %s96, [#allocation12], 32, 32, 2
    $region25: #{tpu_custom_call.1} parent=1 // pred_fallthru
      _
    // Predicated region
    $region26: #{tpu_custom_call.1} parent=1 // pred_check
      _
    $region27: #{tpu_custom_call.1} parent=1 // pred_check_branch
      %103 = sbr.rel (0) target = $region29
    $region28: #{tpu_custom_call.1} parent=1 // pred_region
      %s105 = ssub.s32 128, 128
      %106 = vsyncadd [#allocation12], %s105
      %s107 = sshll.u32 [#allocation13], 4
      %s108 = int_to_ptr.vmem [resolvable:$true] %s107
      %113 = dma.hbm_to_vmem [thread:$0]  %s6, 128, %s108, [#allocation12], 32, 32, 2
    $region29: #{tpu_custom_call.1} parent=1 // pred_fallthru
      _
    // Predicated region
    $region30: #{tpu_custom_call.1} parent=1 // pred_check
      _
    $region31: #{tpu_custom_call.1} parent=1 // pred_check_branch
      %115 = sbr.rel (0) target = $region33
    $region32: #{tpu_custom_call.1} parent=1 // pred_region
      %s117 = ssub.s32 65536, 65536
      %118 = vsyncadd [#allocation15], %s117
      %s119 = sshll.u32 [#allocation14], 4
      %s120 = int_to_ptr.vmem [resolvable:$true] %s119
      %125 = dma.hbm_to_vmem [thread:$0]  %s7, 65536, %s120, [#allocation15], 512, 512, 32
    $region33: #{tpu_custom_call.1} parent=1 // pred_fallthru
      _
    // Predicated region
    $region34: #{tpu_custom_call.1} parent=1 // pred_check
      _
    $region35: #{tpu_custom_call.1} parent=1 // pred_check_branch
      %127 = sbr.rel (0) target = $region37
    $region36: #{tpu_custom_call.1} parent=1 // pred_region
      %s129 = ssub.s32 512, 512
      %130 = vsyncadd [#allocation15], %s129
      %s131 = sshll.u32 [#allocation16], 4
      %s132 = int_to_ptr.vmem [resolvable:$true] %s131
      %137 = dma.hbm_to_vmem [thread:$0]  %s8, 512, %s132, [#allocation15], 128, 128, 8
    $region37: #{tpu_custom_call.1} parent=1 // pred_fallthru
      _
    // Predicated region
    $region38: #{tpu_custom_call.1} parent=1 // pred_check
      _
    $region39: #{tpu_custom_call.1} parent=1 // pred_check_branch
      %139 = sbr.rel (0) target = $region41
    $region40: #{tpu_custom_call.1} parent=1 // pred_region
      %s141 = ssub.s32 65536, 65536
      %142 = vsyncadd [#allocation18], %s141
      %s143 = sshll.u32 [#allocation17], 4
      %s144 = int_to_ptr.vmem [resolvable:$true] %s143
      %149 = dma.hbm_to_vmem [thread:$0]  %s9, 65536, %s144, [#allocation18], 128, 128, 8
    $region41: #{tpu_custom_call.1} parent=1 // pred_fallthru
      _
    // Predicated region
    $region42: #{tpu_custom_call.1} parent=1 // pred_check
      _
    $region43: #{tpu_custom_call.1} parent=1 // pred_check_branch
      %151 = sbr.rel (0) target = $region45
    $region44: #{tpu_custom_call.1} parent=1 // pred_region
      %s153 = ssub.s32 128, 128
      %154 = vsyncadd [#allocation18], %s153
      %s155 = sshll.u32 [#allocation19], 4
      %s156 = int_to_ptr.vmem [resolvable:$true] %s155
      %161 = dma.hbm_to_vmem [thread:$0]  %s10, 128, %s156, [#allocation18], 32, 32, 2
    $region45: #{tpu_custom_call.1} parent=1 // pred_fallthru
      _
    // Predicated region
    $region46: #{tpu_custom_call.1} parent=1 // pred_check
      _
    $region47: #{tpu_custom_call.1} parent=1 // pred_check_branch
      %163 = sbr.rel (0) target = $region49
    $region48: #{tpu_custom_call.1} parent=1 // pred_region
      %s165 = ssub.s32 128, 128
      %166 = vsyncadd [#allocation21], %s165
      %s167 = sshll.u32 [#allocation20], 4
      %s168 = int_to_ptr.vmem [resolvable:$true] %s167
      %173 = dma.hbm_to_vmem [thread:$0]  %s11, 128, %s168, [#allocation21], 32, 32, 2
    $region49: #{tpu_custom_call.1} parent=1 // pred_fallthru
      _
    // Predicated region
    $region50: #{tpu_custom_call.1} parent=1 // pred_check
      _
    $region51: #{tpu_custom_call.1} parent=1 // pred_check_branch
      %175 = sbr.rel (0) target = $region53
    $region52: #{tpu_custom_call.1} parent=1 // pred_region
      %s177 = ssub.s32 128, 128
      %178 = vsyncadd [#allocation21], %s177
      %s179 = sshll.u32 [#allocation22], 4
      %s180 = int_to_ptr.vmem [resolvable:$true] %s179
      %185 = dma.hbm_to_vmem [thread:$0]  %s12, 128, %s180, [#allocation21], 32, 32, 2
    $region53: #{tpu_custom_call.1} parent=1 // pred_fallthru
      _
    // Predicated region
    $region54: #{tpu_custom_call.1} parent=1 // pred_check
      _
    $region55: #{tpu_custom_call.1} parent=1 // pred_check_branch
      %187 = sbr.rel (0) target = $region57
    $region56: #{tpu_custom_call.1} parent=1 // pred_region
      %s189 = ssub.s32 4096, 4096
      %190 = vsyncadd [#allocation24], %s189
      %s191 = sshll.u32 [#allocation23], 4
      %s192 = int_to_ptr.vmem [resolvable:$true] %s191
      %197 = dma.hbm_to_vmem [thread:$0]  %s13, 4096, %s192, [#allocation24], 128, 128, 8
    $region57: #{tpu_custom_call.1} parent=1 // pred_fallthru
      _
    // Predicated region
    $region58: #{tpu_custom_call.1} parent=1 // pred_check
      _
    $region59: #{tpu_custom_call.1} parent=1 // pred_check_branch
      %199 = sbr.rel (0) target = $region61
    $region60: #{tpu_custom_call.1} parent=1 // pred_region
      %s201 = ssub.s32 16, 16
      %202 = vsyncadd [#allocation24], %s201
      %s204 = sshll.u32 [#allocation25], 4
      %s205 = int_to_ptr.vmem [resolvable:$true] %s204
      %207 = dma.hbm_to_vmem [thread:$0]  %s14, 16, %s205, [#allocation24]
    $region61: #{tpu_custom_call.1} parent=1 // pred_fallthru
      _
    // Predicated region
    $region62: #{tpu_custom_call.1} parent=1 // pred_check
      _
    $region63: #{tpu_custom_call.1} parent=1 // pred_check_branch
      %209 = sbr.rel (0) target = $region65
    $region64: #{tpu_custom_call.1} parent=1 // pred_region
      %s211 = ssub.s32 2048, 2048
      %212 = vsyncadd [#allocation27], %s211
      %s213 = sshll.u32 [#allocation26], 4
      %s214 = int_to_ptr.vmem [resolvable:$true] %s213
      %219 = dma.hbm_to_vmem [thread:$0]  %s15, 2048, %s214, [#allocation27], 128, 128, 8
    $region65: #{tpu_custom_call.1} parent=1 // pred_fallthru
      _
    // Predicated region
    $region66: #{tpu_custom_call.1} parent=1 // pred_check
      _
    $region67: #{tpu_custom_call.1} parent=1 // pred_check_branch
      %221 = sbr.rel (0) target = $region69
    $region68: #{tpu_custom_call.1} parent=1 // pred_region
      %s223 = ssub.s32 16, 16
      %224 = vsyncadd [#allocation27], %s223
      %s226 = sshll.u32 [#allocation28], 4
      %s227 = int_to_ptr.vmem [resolvable:$true] %s226
      %229 = dma.hbm_to_vmem [thread:$0]  %s16, 16, %s227, [#allocation27]
    $region69: #{tpu_custom_call.1} parent=1 // pred_fallthru
      _
    // Predicated region
    $region70: #{tpu_custom_call.1} parent=1 // pred_check
      _
    $region71: #{tpu_custom_call.1} parent=1 // pred_check_branch
      %231 = sbr.rel (0) target = $region73
    $region72: #{tpu_custom_call.1} parent=1 // pred_region
      %232 = dma.done [#allocation3], 256
    $region73: #{tpu_custom_call.1} parent=1 // pred_fallthru
      _
    // Predicated region
    $region74: #{tpu_custom_call.1} parent=1 // pred_check
      _
    $region75: #{tpu_custom_call.1} parent=1 // pred_check_branch
      %234 = sbr.rel (0) target = $region77
    $region76: #{tpu_custom_call.1} parent=1 // pred_region
      %235 = dma.done [#allocation6], 16384
    $region77: #{tpu_custom_call.1} parent=1 // pred_fallthru
      _
    // Predicated region
    $region78: #{tpu_custom_call.1} parent=1 // pred_check
      _
    $region79: #{tpu_custom_call.1} parent=1 // pred_check_branch
      %237 = sbr.rel (0) target = $region81
    $region80: #{tpu_custom_call.1} parent=1 // pred_region
      %238 = dma.done [#allocation6], 128
    $region81: #{tpu_custom_call.1} parent=1 // pred_fallthru
      _
    // Predicated region
    $region82: #{tpu_custom_call.1} parent=1 // pred_check
      _
    $region83: #{tpu_custom_call.1} parent=1 // pred_check_branch
      %240 = sbr.rel (0) target = $region85
    $region84: #{tpu_custom_call.1} parent=1 // pred_region
      %241 = dma.done [#allocation9], 16384
    $region85: #{tpu_custom_call.1} parent=1 // pred_fallthru
      _
    // Predicated region
    $region86: #{tpu_custom_call.1} parent=1 // pred_check
      _
    $region87: #{tpu_custom_call.1} parent=1 // pred_check_branch
      %243 = sbr.rel (0) target = $region89
    $region88: #{tpu_custom_call.1} parent=1 // pred_region
      %244 = dma.done [#allocation9], 128
    $region89: #{tpu_custom_call.1} parent=1 // pred_fallthru
      _
    // Predicated region
    $region90: #{tpu_custom_call.1} parent=1 // pred_check
      _
    $region91: #{tpu_custom_call.1} parent=1 // pred_check_branch
      %246 = sbr.rel (0) target = $region93
    $region92: #{tpu_custom_call.1} parent=1 // pred_region
      %247 = dma.done [#allocation12], 128
    $region93: #{tpu_custom_call.1} parent=1 // pred_fallthru
      _
    // Predicated region
    $region94: #{tpu_custom_call.1} parent=1 // pred_check
      _
    $region95: #{tpu_custom_call.1} parent=1 // pred_check_branch
      %249 = sbr.rel (0) target = $region97
    $region96: #{tpu_custom_call.1} parent=1 // pred_region
      %250 = dma.done [#allocation12], 128
    $region97: #{tpu_custom_call.1} parent=1 // pred_fallthru
      _
    // Predicated region
    $region98: #{tpu_custom_call.1} parent=1 // pred_check
      _
    $region99: #{tpu_custom_call.1} parent=1 // pred_check_branch
      %252 = sbr.rel (0) target = $region101
    $region100: #{tpu_custom_call.1} parent=1 // pred_region
      %253 = dma.done [#allocation15], 65536
    $region101: #{tpu_custom_call.1} parent=1 // pred_fallthru
      _
    // Predicated region
    $region102: #{tpu_custom_call.1} parent=1 // pred_check
      _
    $region103: #{tpu_custom_call.1} parent=1 // pred_check_branch
      %255 = sbr.rel (0) target = $region105
    $region104: #{tpu_custom_call.1} parent=1 // pred_region
      %256 = dma.done [#allocation15], 512
    $region105: #{tpu_custom_call.1} parent=1 // pred_fallthru
      _
    // Predicated region
    $region106: #{tpu_custom_call.1} parent=1 // pred_check
      _
    $region107: #{tpu_custom_call.1} parent=1 // pred_check_branch
      %258 = sbr.rel (0) target = $region109
    $region108: #{tpu_custom_call.1} parent=1 // pred_region
      %259 = dma.done [#allocation18], 65536
    $region109: #{tpu_custom_call.1} parent=1 // pred_fallthru
      _
    // Predicated region
    $region110: #{tpu_custom_call.1} parent=1 // pred_check
      _
    $region111: #{tpu_custom_call.1} parent=1 // pred_check_branch
      %261 = sbr.rel (0) target = $region113
    $region112: #{tpu_custom_call.1} parent=1 // pred_region
      %262 = dma.done [#allocation18], 128
    $region113: #{tpu_custom_call.1} parent=1 // pred_fallthru
      _
    // Predicated region
    $region114: #{tpu_custom_call.1} parent=1 // pred_check
      _
    $region115: #{tpu_custom_call.1} parent=1 // pred_check_branch
      %264 = sbr.rel (0) target = $region117
    $region116: #{tpu_custom_call.1} parent=1 // pred_region
      %265 = dma.done [#allocation21], 128
    $region117: #{tpu_custom_call.1} parent=1 // pred_fallthru
      _
    // Predicated region
    $region118: #{tpu_custom_call.1} parent=1 // pred_check
      _
    $region119: #{tpu_custom_call.1} parent=1 // pred_check_branch
      %267 = sbr.rel (0) target = $region121
    $region120: #{tpu_custom_call.1} parent=1 // pred_region
      %268 = dma.done [#allocation21], 128
    $region121: #{tpu_custom_call.1} parent=1 // pred_fallthru
      _
    // Predicated region
    $region122: #{tpu_custom_call.1} parent=1 // pred_check
      _
    $region123: #{tpu_custom_call.1} parent=1 // pred_check_branch
      %270 = sbr.rel (0) target = $region125
    $region124: #{tpu_custom_call.1} parent=1 // pred_region
      %271 = dma.done [#allocation24], 4096
    $region125: #{tpu_custom_call.1} parent=1 // pred_fallthru
      _
    // Predicated region
    $region126: #{tpu_custom_call.1} parent=1 // pred_check
      _
    $region127: #{tpu_custom_call.1} parent=1 // pred_check_branch
      %273 = sbr.rel (0) target = $region129
    $region128: #{tpu_custom_call.1} parent=1 // pred_region
      %274 = dma.done [#allocation24], 16
    $region129: #{tpu_custom_call.1} parent=1 // pred_fallthru
      _
    // Predicated region
    $region130: #{tpu_custom_call.1} parent=1 // pred_check
      _
    $region131: #{tpu_custom_call.1} parent=1 // pred_check_branch
      %276 = sbr.rel (0) target = $region133
    $region132: #{tpu_custom_call.1} parent=1 // pred_region
      %277 = dma.done [#allocation27], 2048
    $region133: #{tpu_custom_call.1} parent=1 // pred_fallthru
      _
    // Predicated region
    $region134: #{tpu_custom_call.1} parent=1 // pred_check
      _
    $region135: #{tpu_custom_call.1} parent=1 // pred_check_branch
      %279 = sbr.rel (0) target = $region137
    $region136: #{tpu_custom_call.1} parent=1 // pred_region
      %280 = dma.done [#allocation27], 16
    $region137: #{tpu_custom_call.1} parent=1 // pred_fallthru
      _
    %v281 = vld [vmem:[#allocation2] sm:$0xff]
    %v282 = vld [vmem:[#allocation2 + $0x8] sm:$0xff]
    %v283 = vpack.c.bf16 %v281, %v281
    %v284 = vpack.c.bf16 %v282, %v282
    %v285 = vld [vmem:[#allocation5] sm:$0xff]
    %v286 = vld [vmem:[#allocation5 + $0x8] sm:$0xff]
    %v287 = vld [vmem:[#allocation5 + $0x10] sm:$0xff]
    %v288 = vld [vmem:[#allocation5 + $0x18] sm:$0xff]
    %v289 = vld [vmem:[#allocation5 + $0x20] sm:$0xff]
    %v290 = vld [vmem:[#allocation5 + $0x28] sm:$0xff]
    %v291 = vld [vmem:[#allocation5 + $0x30] sm:$0xff]
    %v292 = vld [vmem:[#allocation5 + $0x38] sm:$0xff]
    %v293 = vld [vmem:[#allocation5 + $0x40] sm:$0xff]
    %v294 = vld [vmem:[#allocation5 + $0x48] sm:$0xff]
    %v295 = vld [vmem:[#allocation5 + $0x50] sm:$0xff]
    %v296 = vld [vmem:[#allocation5 + $0x58] sm:$0xff]
    %v297 = vld [vmem:[#allocation5 + $0x60] sm:$0xff]
    %v298 = vld [vmem:[#allocation5 + $0x68] sm:$0xff]
    %v299 = vld [vmem:[#allocation5 + $0x70] sm:$0xff]
    %v300 = vld [vmem:[#allocation5 + $0x78] sm:$0xff]
    %v301 = vld [vmem:[#allocation5 + $0x80] sm:$0xff]
    %v302 = vld [vmem:[#allocation5 + $0x88] sm:$0xff]
    %v303 = vld [vmem:[#allocation5 + $0x90] sm:$0xff]
    %v304 = vld [vmem:[#allocation5 + $0x98] sm:$0xff]
    %v305 = vld [vmem:[#allocation5 + $0xa0] sm:$0xff]
    %v306 = vld [vmem:[#allocation5 + $0xa8] sm:$0xff]
    %v307 = vld [vmem:[#allocation5 + $0xb0] sm:$0xff]
    %v308 = vld [vmem:[#allocation5 + $0xb8] sm:$0xff]
    %v309 = vld [vmem:[#allocation5 + $0xc0] sm:$0xff]
    %v310 = vld [vmem:[#allocation5 + $0xc8] sm:$0xff]
    %v311 = vld [vmem:[#allocation5 + $0xd0] sm:$0xff]
    %v312 = vld [vmem:[#allocation5 + $0xd8] sm:$0xff]
    %v313 = vld [vmem:[#allocation5 + $0xe0] sm:$0xff]
    %v314 = vld [vmem:[#allocation5 + $0xe8] sm:$0xff]
    %v315 = vld [vmem:[#allocation5 + $0xf0] sm:$0xff]
    %v316 = vld [vmem:[#allocation5 + $0xf8] sm:$0xff]
    %v317 = vld [vmem:[#allocation7] sm:$0x3]
    %v319 = vlaneseq
    %v320 = vshrl.u32 %v319, 7
    %v321 = vsub.s32 0, %v320
    %v322 = vrot.slane %v317, %v321
    %v323 = vlaneseq
    %v324 = vshrl.u32 %v323, 7
    %v325 = vsub.s32 1, %v324
    %v326 = vrot.slane %v317, %v325
    %v361 = vunpack.c.l.b16 %v285
    %v362 = vunpack.c.h.b16 %v285
    %v363 = vunpack.c.l.b16 %v286
    %v364 = vunpack.c.h.b16 %v286
    %v365 = vunpack.c.l.b16 %v287
    %v366 = vunpack.c.h.b16 %v287
    %v367 = vunpack.c.l.b16 %v288
    %v368 = vunpack.c.h.b16 %v288
    %v369 = vunpack.c.l.b16 %v289
    %v370 = vunpack.c.h.b16 %v289
    %v371 = vunpack.c.l.b16 %v290
    %v372 = vunpack.c.h.b16 %v290
    %v373 = vunpack.c.l.b16 %v291
    %v374 = vunpack.c.h.b16 %v291
    %v375 = vunpack.c.l.b16 %v292
    %v376 = vunpack.c.h.b16 %v292
    %v377 = vunpack.c.l.b16 %v293
    %v378 = vunpack.c.h.b16 %v293
    %v379 = vunpack.c.l.b16 %v294
    %v380 = vunpack.c.h.b16 %v294
    %v381 = vunpack.c.l.b16 %v295
    %v382 = vunpack.c.h.b16 %v295
    %v383 = vunpack.c.l.b16 %v296
    %v384 = vunpack.c.h.b16 %v296
    %v385 = vunpack.c.l.b16 %v297
    %v386 = vunpack.c.h.b16 %v297
    %v387 = vunpack.c.l.b16 %v298
    %v388 = vunpack.c.h.b16 %v298
    %v389 = vunpack.c.l.b16 %v299
    %v390 = vunpack.c.h.b16 %v299
    %v391 = vunpack.c.l.b16 %v300
    %v392 = vunpack.c.h.b16 %v300
    %v393 = vunpack.c.l.b16 %v301
    %v394 = vunpack.c.h.b16 %v301
    %v395 = vunpack.c.l.b16 %v302
    %v396 = vunpack.c.h.b16 %v302
    %v397 = vunpack.c.l.b16 %v303
    %v398 = vunpack.c.h.b16 %v303
    %v399 = vunpack.c.l.b16 %v304
    %v400 = vunpack.c.h.b16 %v304
    %v401 = vunpack.c.l.b16 %v305
    %v402 = vunpack.c.h.b16 %v305
    %v403 = vunpack.c.l.b16 %v306
    %v404 = vunpack.c.h.b16 %v306
    %v405 = vunpack.c.l.b16 %v307
    %v406 = vunpack.c.h.b16 %v307
    %v407 = vunpack.c.l.b16 %v308
    %v408 = vunpack.c.h.b16 %v308
    %v409 = vunpack.c.l.b16 %v309
    %v410 = vunpack.c.h.b16 %v309
    %v411 = vunpack.c.l.b16 %v310
    %v412 = vunpack.c.h.b16 %v310
    %v413 = vunpack.c.l.b16 %v311
    %v414 = vunpack.c.h.b16 %v311
    %v415 = vunpack.c.l.b16 %v312
    %v416 = vunpack.c.h.b16 %v312
    %v417 = vunpack.c.l.b16 %v313
    %v418 = vunpack.c.h.b16 %v313
    %v419 = vunpack.c.l.b16 %v314
    %v420 = vunpack.c.h.b16 %v314
    %v421 = vunpack.c.l.b16 %v315
    %v422 = vunpack.c.h.b16 %v315
    %v423 = vunpack.c.l.b16 %v316
    %v424 = vunpack.c.h.b16 %v316
    %v425 = vpack.c.b16 %v363, %v361
    %v426 = vpack.c.b16 %v364, %v362
    %v427 = vpack.c.b16 %v367, %v365
    %v428 = vpack.c.b16 %v368, %v366
    %v429 = vpack.c.b16 %v371, %v369
    %v430 = vpack.c.b16 %v372, %v370
    %v431 = vpack.c.b16 %v375, %v373
    %v432 = vpack.c.b16 %v376, %v374
    %v433 = vpack.c.b16 %v379, %v377
    %v434 = vpack.c.b16 %v380, %v378
    %v435 = vpack.c.b16 %v383, %v381
    %v436 = vpack.c.b16 %v384, %v382
    %v437 = vpack.c.b16 %v387, %v385
    %v438 = vpack.c.b16 %v388, %v386
    %v439 = vpack.c.b16 %v391, %v389
    %v440 = vpack.c.b16 %v392, %v390
    %v441 = vpack.c.b16 %v395, %v393
    %v442 = vpack.c.b16 %v396, %v394
    %v443 = vpack.c.b16 %v399, %v397
    %v444 = vpack.c.b16 %v400, %v398
    %v445 = vpack.c.b16 %v403, %v401
    %v446 = vpack.c.b16 %v404, %v402
    %v447 = vpack.c.b16 %v407, %v405
    %v448 = vpack.c.b16 %v408, %v406
    %v449 = vpack.c.b16 %v411, %v409
    %v450 = vpack.c.b16 %v412, %v410
    %v451 = vpack.c.b16 %v415, %v413
    %v452 = vpack.c.b16 %v416, %v414
    %v453 = vpack.c.b16 %v419, %v417
    %v454 = vpack.c.b16 %v420, %v418
    %v455 = vpack.c.b16 %v423, %v421
    %v456 = vpack.c.b16 %v424, %v422
    %489 = vmatprep.subr.bf16.mxu0 %v426
    %490 = vmatpush1.bf16.msra.mxu0 %v425
    %491 = vmatprep.subr.bf16.mxu0 %v428
    %492 = vmatpush1.bf16.msra.mxu0 %v427
    %493 = vmatprep.subr.bf16.mxu0 %v430
    %494 = vmatpush1.bf16.msra.mxu0 %v429
    %495 = vmatprep.subr.bf16.mxu0 %v432
    %496 = vmatpush1.bf16.msra.mxu0 %v431
    %497 = vmatprep.subr.bf16.mxu0 %v434
    %498 = vmatpush1.bf16.msra.mxu0 %v433
    %499 = vmatprep.subr.bf16.mxu0 %v436
    %500 = vmatpush1.bf16.msra.mxu0 %v435
    %501 = vmatprep.subr.bf16.mxu0 %v438
    %502 = vmatpush1.bf16.msra.mxu0 %v437
    %503 = vmatprep.subr.bf16.mxu0 %v440
    %504 = vmatpush1.bf16.msra.mxu0 %v439
    %505 = vmatprep.subr.bf16.mxu0 %v442
    %506 = vmatpush1.bf16.msra.mxu0 %v441
    %507 = vmatprep.subr.bf16.mxu0 %v444
    %508 = vmatpush1.bf16.msra.mxu0 %v443
    %509 = vmatprep.subr.bf16.mxu0 %v446
    %510 = vmatpush1.bf16.msra.mxu0 %v445
    %511 = vmatprep.subr.bf16.mxu0 %v448
    %512 = vmatpush1.bf16.msra.mxu0 %v447
    %513 = vmatprep.subr.bf16.mxu0 %v450
    %514 = vmatpush1.bf16.msra.mxu0 %v449
    %515 = vmatprep.subr.bf16.mxu0 %v452
    %516 = vmatpush1.bf16.msra.mxu0 %v451
    %517 = vmatprep.subr.bf16.mxu0 %v454
    %518 = vmatpush1.bf16.msra.mxu0 %v453
    %519 = vmatprep.subr.bf16.mxu0 %v456
    %520 = vmatpush1.bf16.msra.mxu0 %v455
    %521 = vmatprep.mubr.bf16.mxu0 %v284
    %522 = vmatmul.mubr.bf16.gmra.mrb[0].mxu0 %v283
    %v523 = vpop.f32.mrb[0].mxu0
    %v524 = vadd.f32 %v322, %v523
    %v525 = vpop.f32.mrb[0].mxu0
    %v526 = vadd.f32 %v326, %v525
    %v527 = vpop.f32.mrb[0].mxu0
    %v528 = vpop.f32.mrb[0].mxu0
    %529 = vdwg.mxu0
    %v530 = vpack.c.bf16 %v524, %v524
    %v531 = vpack.c.bf16 %v526, %v526
    %v532 = vld [vmem:[#allocation8] sm:$0xff]
    %v533 = vld [vmem:[#allocation8 + $0x8] sm:$0xff]
    %v534 = vld [vmem:[#allocation8 + $0x10] sm:$0xff]
    %v535 = vld [vmem:[#allocation8 + $0x18] sm:$0xff]
    %v536 = vld [vmem:[#allocation8 + $0x20] sm:$0xff]
    %v537 = vld [vmem:[#allocation8 + $0x28] sm:$0xff]
    %v538 = vld [vmem:[#allocation8 + $0x30] sm:$0xff]
    %v539 = vld [vmem:[#allocation8 + $0x38] sm:$0xff]
    %v540 = vld [vmem:[#allocation8 + $0x40] sm:$0xff]
    %v541 = vld [vmem:[#allocation8 + $0x48] sm:$0xff]
    %v542 = vld [vmem:[#allocation8 + $0x50] sm:$0xff]
    %v543 = vld [vmem:[#allocation8 + $0x58] sm:$0xff]
    %v544 = vld [vmem:[#allocation8 + $0x60] sm:$0xff]
    %v545 = vld [vmem:[#allocation8 + $0x68] sm:$0xff]
    %v546 = vld [vmem:[#allocation8 + $0x70] sm:$0xff]
    %v547 = vld [vmem:[#allocation8 + $0x78] sm:$0xff]
    %v548 = vld [vmem:[#allocation8 + $0x80] sm:$0xff]
    %v549 = vld [vmem:[#allocation8 + $0x88] sm:$0xff]
    %v550 = vld [vmem:[#allocation8 + $0x90] sm:$0xff]
    %v551 = vld [vmem:[#allocation8 + $0x98] sm:$0xff]
    %v552 = vld [vmem:[#allocation8 + $0xa0] sm:$0xff]
    %v553 = vld [vmem:[#allocation8 + $0xa8] sm:$0xff]
    %v554 = vld [vmem:[#allocation8 + $0xb0] sm:$0xff]
    %v555 = vld [vmem:[#allocation8 + $0xb8] sm:$0xff]
    %v556 = vld [vmem:[#allocation8 + $0xc0] sm:$0xff]
    %v557 = vld [vmem:[#allocation8 + $0xc8] sm:$0xff]
    %v558 = vld [vmem:[#allocation8 + $0xd0] sm:$0xff]
    %v559 = vld [vmem:[#allocation8 + $0xd8] sm:$0xff]
    %v560 = vld [vmem:[#allocation8 + $0xe0] sm:$0xff]
    %v561 = vld [vmem:[#allocation8 + $0xe8] sm:$0xff]
    %v562 = vld [vmem:[#allocation8 + $0xf0] sm:$0xff]
    %v563 = vld [vmem:[#allocation8 + $0xf8] sm:$0xff]
    %v564 = vld [vmem:[#allocation10] sm:$0x3]
    %v566 = vlaneseq
    %v567 = vshrl.u32 %v566, 7
    %v568 = vsub.s32 0, %v567
    %v569 = vrot.slane %v564, %v568
    %v570 = vlaneseq
    %v571 = vshrl.u32 %v570, 7
    %v572 = vsub.s32 1, %v571
    %v573 = vrot.slane %v564, %v572
    %v608 = vunpack.c.l.b16 %v532
    %v609 = vunpack.c.h.b16 %v532
    %v610 = vunpack.c.l.b16 %v533
    %v611 = vunpack.c.h.b16 %v533
    %v612 = vunpack.c.l.b16 %v534
    %v613 = vunpack.c.h.b16 %v534
    %v614 = vunpack.c.l.b16 %v535
    %v615 = vunpack.c.h.b16 %v535
    %v616 = vunpack.c.l.b16 %v536
    %v617 = vunpack.c.h.b16 %v536
    %v618 = vunpack.c.l.b16 %v537
    %v619 = vunpack.c.h.b16 %v537
    %v620 = vunpack.c.l.b16 %v538
    %v621 = vunpack.c.h.b16 %v538
    %v622 = vunpack.c.l.b16 %v539
    %v623 = vunpack.c.h.b16 %v539
    %v624 = vunpack.c.l.b16 %v540
    %v625 = vunpack.c.h.b16 %v540
    %v626 = vunpack.c.l.b16 %v541
    %v627 = vunpack.c.h.b16 %v541
    %v628 = vunpack.c.l.b16 %v542
    %v629 = vunpack.c.h.b16 %v542
    %v630 = vunpack.c.l.b16 %v543
    %v631 = vunpack.c.h.b16 %v543
    %v632 = vunpack.c.l.b16 %v544
    %v633 = vunpack.c.h.b16 %v544
    %v634 = vunpack.c.l.b16 %v545
    %v635 = vunpack.c.h.b16 %v545
    %v636 = vunpack.c.l.b16 %v546
    %v637 = vunpack.c.h.b16 %v546
    %v638 = vunpack.c.l.b16 %v547
    %v639 = vunpack.c.h.b16 %v547
    %v640 = vunpack.c.l.b16 %v548
    %v641 = vunpack.c.h.b16 %v548
    %v642 = vunpack.c.l.b16 %v549
    %v643 = vunpack.c.h.b16 %v549
    %v644 = vunpack.c.l.b16 %v550
    %v645 = vunpack.c.h.b16 %v550
    %v646 = vunpack.c.l.b16 %v551
    %v647 = vunpack.c.h.b16 %v551
    %v648 = vunpack.c.l.b16 %v552
    %v649 = vunpack.c.h.b16 %v552
    %v650 = vunpack.c.l.b16 %v553
    %v651 = vunpack.c.h.b16 %v553
    %v652 = vunpack.c.l.b16 %v554
    %v653 = vunpack.c.h.b16 %v554
    %v654 = vunpack.c.l.b16 %v555
    %v655 = vunpack.c.h.b16 %v555
    %v656 = vunpack.c.l.b16 %v556
    %v657 = vunpack.c.h.b16 %v556
    %v658 = vunpack.c.l.b16 %v557
    %v659 = vunpack.c.h.b16 %v557
    %v660 = vunpack.c.l.b16 %v558
    %v661 = vunpack.c.h.b16 %v558
    %v662 = vunpack.c.l.b16 %v559
    %v663 = vunpack.c.h.b16 %v559
    %v664 = vunpack.c.l.b16 %v560
    %v665 = vunpack.c.h.b16 %v560
    %v666 = vunpack.c.l.b16 %v561
    %v667 = vunpack.c.h.b16 %v561
    %v668 = vunpack.c.l.b16 %v562
    %v669 = vunpack.c.h.b16 %v562
    %v670 = vunpack.c.l.b16 %v563
    %v671 = vunpack.c.h.b16 %v563
    %v672 = vpack.c.b16 %v610, %v608
    %v673 = vpack.c.b16 %v611, %v609
    %v674 = vpack.c.b16 %v614, %v612
    %v675 = vpack.c.b16 %v615, %v613
    %v676 = vpack.c.b16 %v618, %v616
    %v677 = vpack.c.b16 %v619, %v617
    %v678 = vpack.c.b16 %v622, %v620
    %v679 = vpack.c.b16 %v623, %v621
    %v680 = vpack.c.b16 %v626, %v624
    %v681 = vpack.c.b16 %v627, %v625
    %v682 = vpack.c.b16 %v630, %v628
    %v683 = vpack.c.b16 %v631, %v629
    %v684 = vpack.c.b16 %v634, %v632
    %v685 = vpack.c.b16 %v635, %v633
    %v686 = vpack.c.b16 %v638, %v636
    %v687 = vpack.c.b16 %v639, %v637
    %v688 = vpack.c.b16 %v642, %v640
    %v689 = vpack.c.b16 %v643, %v641
    %v690 = vpack.c.b16 %v646, %v644
    %v691 = vpack.c.b16 %v647, %v645
    %v692 = vpack.c.b16 %v650, %v648
    %v693 = vpack.c.b16 %v651, %v649
    %v694 = vpack.c.b16 %v654, %v652
    %v695 = vpack.c.b16 %v655, %v653
    %v696 = vpack.c.b16 %v658, %v656
    %v697 = vpack.c.b16 %v659, %v657
    %v698 = vpack.c.b16 %v662, %v660
    %v699 = vpack.c.b16 %v663, %v661
    %v700 = vpack.c.b16 %v666, %v664
    %v701 = vpack.c.b16 %v667, %v665
    %v702 = vpack.c.b16 %v670, %v668
    %v703 = vpack.c.b16 %v671, %v669
    %736 = vmatprep.subr.bf16.mxu0 %v673
    %737 = vmatpush1.bf16.msra.mxu0 %v672
    %738 = vmatprep.subr.bf16.mxu0 %v675
    %739 = vmatpush1.bf16.msra.mxu0 %v674
    %740 = vmatprep.subr.bf16.mxu0 %v677
    %741 = vmatpush1.bf16.msra.mxu0 %v676
    %742 = vmatprep.subr.bf16.mxu0 %v679
    %743 = vmatpush1.bf16.msra.mxu0 %v678
    %744 = vmatprep.subr.bf16.mxu0 %v681
    %745 = vmatpush1.bf16.msra.mxu0 %v680
    %746 = vmatprep.subr.bf16.mxu0 %v683
    %747 = vmatpush1.bf16.msra.mxu0 %v682
    %748 = vmatprep.subr.bf16.mxu0 %v685
    %749 = vmatpush1.bf16.msra.mxu0 %v684
    %750 = vmatprep.subr.bf16.mxu0 %v687
    %751 = vmatpush1.bf16.msra.mxu0 %v686
    %752 = vmatprep.subr.bf16.mxu0 %v689
    %753 = vmatpush1.bf16.msra.mxu0 %v688
    %754 = vmatprep.subr.bf16.mxu0 %v691
    %755 = vmatpush1.bf16.msra.mxu0 %v690
    %756 = vmatprep.subr.bf16.mxu0 %v693
    %757 = vmatpush1.bf16.msra.mxu0 %v692
    %758 = vmatprep.subr.bf16.mxu0 %v695
    %759 = vmatpush1.bf16.msra.mxu0 %v694
    %760 = vmatprep.subr.bf16.mxu0 %v697
    %761 = vmatpush1.bf16.msra.mxu0 %v696
    %762 = vmatprep.subr.bf16.mxu0 %v699
    %763 = vmatpush1.bf16.msra.mxu0 %v698
    %764 = vmatprep.subr.bf16.mxu0 %v701
    %765 = vmatpush1.bf16.msra.mxu0 %v700
    %766 = vmatprep.subr.bf16.mxu0 %v703
    %767 = vmatpush1.bf16.msra.mxu0 %v702
    %768 = vmatprep.mubr.bf16.mxu0 %v531
    %769 = vmatmul.mubr.bf16.gmra.mrb[0].mxu0 %v530
    %v770 = vpop.f32.mrb[0].mxu0
    %v771 = vadd.f32 %v569, %v770
    %v772 = vpop.f32.mrb[0].mxu0
    %v773 = vadd.f32 %v573, %v772
    %v774 = vpop.f32.mrb[0].mxu0
    %v775 = vpop.f32.mrb[0].mxu0
    %776 = vdwg.mxu0
    %v777 = vadd.f32 %v281, %v771
    %v778 = vadd.f32 %v282, %v773
    %v779 = vld [vmem:[#allocation11] sm:$0x3]
    %v780 = vld [vmem:[#allocation13] sm:$0x3]
    %v781 = vadd.f32 %v777, %v778
    %782 = vadd.xlane.f32.xlu0 %v781
    %v783 = vpop.xlane.xlu0 %782
    %v784 = vrcp.pop 256.0
    %v785 = vmul.f32 %v783, %v784
    %v786 = vsub.f32 %v777, %v785
    %v787 = vsub.f32 %v778, %v785
    %v788 = vmul.f32 %v786, %v786
    %v789 = vmul.f32 %v787, %v787
    %v790 = vadd.f32 %v788, %v789
    %791 = vadd.xlane.f32.xlu0 %v790
    %v792 = vpop.xlane.xlu0 %791
    %v793 = vmul.f32 %v792, %v784
    %v794 = vadd.f32 %v793, 1e-05
    %v795 = vrsqrt.pop %v794
    %v796 = vmul.f32 %v786, %v795
    %v797 = vmul.f32 %v787, %v795
    %v799 = vlaneseq
    %v800 = vshrl.u32 %v799, 7
    %v801 = vsub.s32 0, %v800
    %v802 = vrot.slane %v779, %v801
    %v803 = vlaneseq
    %v804 = vshrl.u32 %v803, 7
    %v805 = vsub.s32 1, %v804
    %v806 = vrot.slane %v779, %v805
    %v809 = vmul.f32 %v796, %v802
    %v810 = vmul.f32 %v797, %v806
    %v812 = vlaneseq
    %v813 = vshrl.u32 %v812, 7
    %v814 = vsub.s32 0, %v813
    %v815 = vrot.slane %v780, %v814
    %v816 = vlaneseq
    %v817 = vshrl.u32 %v816, 7
    %v818 = vsub.s32 1, %v817
    %v819 = vrot.slane %v780, %v818
    %v822 = vadd.f32 %v809, %v815
    %v823 = vadd.f32 %v810, %v819
    %v824 = vpack.c.bf16 %v822, %v822
    %v825 = vpack.c.bf16 %v823, %v823
    %v826 = vld [vmem:[#allocation14] sm:$0xff]
    %v827 = vld [vmem:[#allocation14 + $0x8] sm:$0xff]
    %v828 = vld [vmem:[#allocation14 + $0x10] sm:$0xff]
    %v829 = vld [vmem:[#allocation14 + $0x18] sm:$0xff]
    %v830 = vld [vmem:[#allocation14 + $0x20] sm:$0xff]
    %v831 = vld [vmem:[#allocation14 + $0x28] sm:$0xff]
    %v832 = vld [vmem:[#allocation14 + $0x30] sm:$0xff]
    %v833 = vld [vmem:[#allocation14 + $0x38] sm:$0xff]
    %v834 = vld [vmem:[#allocation14 + $0x40] sm:$0xff]
    %v835 = vld [vmem:[#allocation14 + $0x48] sm:$0xff]
    %v836 = vld [vmem:[#allocation14 + $0x50] sm:$0xff]
    %v837 = vld [vmem:[#allocation14 + $0x58] sm:$0xff]
    %v838 = vld [vmem:[#allocation14 + $0x60] sm:$0xff]
    %v839 = vld [vmem:[#allocation14 + $0x68] sm:$0xff]
    %v840 = vld [vmem:[#allocation14 + $0x70] sm:$0xff]
    %v841 = vld [vmem:[#allocation14 + $0x78] sm:$0xff]
    %v842 = vld [vmem:[#allocation14 + $0x80] sm:$0xff]
    %v843 = vld [vmem:[#allocation14 + $0x88] sm:$0xff]
    %v844 = vld [vmem:[#allocation14 + $0x90] sm:$0xff]
    %v845 = vld [vmem:[#allocation14 + $0x98] sm:$0xff]
    %v846 = vld [vmem:[#allocation14 + $0xa0] sm:$0xff]
    %v847 = vld [vmem:[#allocation14 + $0xa8] sm:$0xff]
    %v848 = vld [vmem:[#allocation14 + $0xb0] sm:$0xff]
    %v849 = vld [vmem:[#allocation14 + $0xb8] sm:$0xff]
    %v850 = vld [vmem:[#allocation14 + $0xc0] sm:$0xff]
    %v851 = vld [vmem:[#allocation14 + $0xc8] sm:$0xff]
    %v852 = vld [vmem:[#allocation14 + $0xd0] sm:$0xff]
    %v853 = vld [vmem:[#allocation14 + $0xd8] sm:$0xff]
    %v854 = vld [vmem:[#allocation14 + $0xe0] sm:$0xff]
    %v855 = vld [vmem:[#allocation14 + $0xe8] sm:$0xff]
    %v856 = vld [vmem:[#allocation14 + $0xf0] sm:$0xff]
    %v857 = vld [vmem:[#allocation14 + $0xf8] sm:$0xff]
    %v858 = vld [vmem:[#allocation14 + $0x100] sm:$0xff]
    %v859 = vld [vmem:[#allocation14 + $0x108] sm:$0xff]
    %v860 = vld [vmem:[#allocation14 + $0x110] sm:$0xff]
    %v861 = vld [vmem:[#allocation14 + $0x118] sm:$0xff]
    %v862 = vld [vmem:[#allocation14 + $0x120] sm:$0xff]
    %v863 = vld [vmem:[#allocation14 + $0x128] sm:$0xff]
    %v864 = vld [vmem:[#allocation14 + $0x130] sm:$0xff]
    %v865 = vld [vmem:[#allocation14 + $0x138] sm:$0xff]
    %v866 = vld [vmem:[#allocation14 + $0x140] sm:$0xff]
    %v867 = vld [vmem:[#allocation14 + $0x148] sm:$0xff]
    %v868 = vld [vmem:[#allocation14 + $0x150] sm:$0xff]
    %v869 = vld [vmem:[#allocation14 + $0x158] sm:$0xff]
    %v870 = vld [vmem:[#allocation14 + $0x160] sm:$0xff]
    %v871 = vld [vmem:[#allocation14 + $0x168] sm:$0xff]
    %v872 = vld [vmem:[#allocation14 + $0x170] sm:$0xff]
    %v873 = vld [vmem:[#allocation14 + $0x178] sm:$0xff]
    %v874 = vld [vmem:[#allocation14 + $0x180] sm:$0xff]
    %v875 = vld [vmem:[#allocation14 + $0x188] sm:$0xff]
    %v876 = vld [vmem:[#allocation14 + $0x190] sm:$0xff]
    %v877 = vld [vmem:[#allocation14 + $0x198] sm:$0xff]
    %v878 = vld [vmem:[#allocation14 + $0x1a0] sm:$0xff]
    %v879 = vld [vmem:[#allocation14 + $0x1a8] sm:$0xff]
    %v880 = vld [vmem:[#allocation14 + $0x1b0] sm:$0xff]
    %v881 = vld [vmem:[#allocation14 + $0x1b8] sm:$0xff]
    %v882 = vld [vmem:[#allocation14 + $0x1c0] sm:$0xff]
    %v883 = vld [vmem:[#allocation14 + $0x1c8] sm:$0xff]
    %v884 = vld [vmem:[#allocation14 + $0x1d0] sm:$0xff]
    %v885 = vld [vmem:[#allocation14 + $0x1d8] sm:$0xff]
    %v886 = vld [vmem:[#allocation14 + $0x1e0] sm:$0xff]
    %v887 = vld [vmem:[#allocation14 + $0x1e8] sm:$0xff]
    %v888 = vld [vmem:[#allocation14 + $0x1f0] sm:$0xff]
    %v889 = vld [vmem:[#allocation14 + $0x1f8] sm:$0xff]
    %v890 = vld [vmem:[#allocation14 + $0x200] sm:$0xff]
    %v891 = vld [vmem:[#allocation14 + $0x208] sm:$0xff]
    %v892 = vld [vmem:[#allocation14 + $0x210] sm:$0xff]
    %v893 = vld [vmem:[#allocation14 + $0x218] sm:$0xff]
    %v894 = vld [vmem:[#allocation14 + $0x220] sm:$0xff]
    %v895 = vld [vmem:[#allocation14 + $0x228] sm:$0xff]
    %v896 = vld [vmem:[#allocation14 + $0x230] sm:$0xff]
    %v897 = vld [vmem:[#allocation14 + $0x238] sm:$0xff]
    %v898 = vld [vmem:[#allocation14 + $0x240] sm:$0xff]
    %v899 = vld [vmem:[#allocation14 + $0x248] sm:$0xff]
    %v900 = vld [vmem:[#allocation14 + $0x250] sm:$0xff]
    %v901 = vld [vmem:[#allocation14 + $0x258] sm:$0xff]
    %v902 = vld [vmem:[#allocation14 + $0x260] sm:$0xff]
    %v903 = vld [vmem:[#allocation14 + $0x268] sm:$0xff]
    %v904 = vld [vmem:[#allocation14 + $0x270] sm:$0xff]
    %v905 = vld [vmem:[#allocation14 + $0x278] sm:$0xff]
    %v906 = vld [vmem:[#allocation14 + $0x280] sm:$0xff]
    %v907 = vld [vmem:[#allocation14 + $0x288] sm:$0xff]
    %v908 = vld [vmem:[#allocation14 + $0x290] sm:$0xff]
    %v909 = vld [vmem:[#allocation14 + $0x298] sm:$0xff]
    %v910 = vld [vmem:[#allocation14 + $0x2a0] sm:$0xff]
    %v911 = vld [vmem:[#allocation14 + $0x2a8] sm:$0xff]
    %v912 = vld [vmem:[#allocation14 + $0x2b0] sm:$0xff]
    %v913 = vld [vmem:[#allocation14 + $0x2b8] sm:$0xff]
    %v914 = vld [vmem:[#allocation14 + $0x2c0] sm:$0xff]
    %v915 = vld [vmem:[#allocation14 + $0x2c8] sm:$0xff]
    %v916 = vld [vmem:[#allocation14 + $0x2d0] sm:$0xff]
    %v917 = vld [vmem:[#allocation14 + $0x2d8] sm:$0xff]
    %v918 = vld [vmem:[#allocation14 + $0x2e0] sm:$0xff]
    %v919 = vld [vmem:[#allocation14 + $0x2e8] sm:$0xff]
    %v920 = vld [vmem:[#allocation14 + $0x2f0] sm:$0xff]
    %v921 = vld [vmem:[#allocation14 + $0x2f8] sm:$0xff]
    %v922 = vld [vmem:[#allocation14 + $0x300] sm:$0xff]
    %v923 = vld [vmem:[#allocation14 + $0x308] sm:$0xff]
    %v924 = vld [vmem:[#allocation14 + $0x310] sm:$0xff]
    %v925 = vld [vmem:[#allocation14 + $0x318] sm:$0xff]
    %v926 = vld [vmem:[#allocation14 + $0x320] sm:$0xff]
    %v927 = vld [vmem:[#allocation14 + $0x328] sm:$0xff]
    %v928 = vld [vmem:[#allocation14 + $0x330] sm:$0xff]
    %v929 = vld [vmem:[#allocation14 + $0x338] sm:$0xff]
    %v930 = vld [vmem:[#allocation14 + $0x340] sm:$0xff]
    %v931 = vld [vmem:[#allocation14 + $0x348] sm:$0xff]
    %v932 = vld [vmem:[#allocation14 + $0x350] sm:$0xff]
    %v933 = vld [vmem:[#allocation14 + $0x358] sm:$0xff]
    %v934 = vld [vmem:[#allocation14 + $0x360] sm:$0xff]
    %v935 = vld [vmem:[#allocation14 + $0x368] sm:$0xff]
    %v936 = vld [vmem:[#allocation14 + $0x370] sm:$0xff]
    %v937 = vld [vmem:[#allocation14 + $0x378] sm:$0xff]
    %v938 = vld [vmem:[#allocation14 + $0x380] sm:$0xff]
    %v939 = vld [vmem:[#allocation14 + $0x388] sm:$0xff]
    %v940 = vld [vmem:[#allocation14 + $0x390] sm:$0xff]
    %v941 = vld [vmem:[#allocation14 + $0x398] sm:$0xff]
    %v942 = vld [vmem:[#allocation14 + $0x3a0] sm:$0xff]
    %v943 = vld [vmem:[#allocation14 + $0x3a8] sm:$0xff]
    %v944 = vld [vmem:[#allocation14 + $0x3b0] sm:$0xff]
    %v945 = vld [vmem:[#allocation14 + $0x3b8] sm:$0xff]
    %v946 = vld [vmem:[#allocation14 + $0x3c0] sm:$0xff]
    %v947 = vld [vmem:[#allocation14 + $0x3c8] sm:$0xff]
    %v948 = vld [vmem:[#allocation14 + $0x3d0] sm:$0xff]
    %v949 = vld [vmem:[#allocation14 + $0x3d8] sm:$0xff]
    %v950 = vld [vmem:[#allocation14 + $0x3e0] sm:$0xff]
    %v951 = vld [vmem:[#allocation14 + $0x3e8] sm:$0xff]
    %v952 = vld [vmem:[#allocation14 + $0x3f0] sm:$0xff]
    %v953 = vld [vmem:[#allocation14 + $0x3f8] sm:$0xff]
    %v954 = vld [vmem:[#allocation16] sm:$0xff]
    %v956 = vlaneseq
    %v957 = vshrl.u32 %v956, 7
    %v958 = vsub.s32 0, %v957
    %v959 = vrot.slane %v954, %v958
    %v960 = vlaneseq
    %v961 = vshrl.u32 %v960, 7
    %v962 = vsub.s32 1, %v961
    %v963 = vrot.slane %v954, %v962
    %v964 = vlaneseq
    %v965 = vshrl.u32 %v964, 7
    %v966 = vsub.s32 2, %v965
    %v967 = vrot.slane %v954, %v966
    %v968 = vlaneseq
    %v969 = vshrl.u32 %v968, 7
    %v970 = vsub.s32 3, %v969
    %v971 = vrot.slane %v954, %v970
    %v972 = vlaneseq
    %v973 = vshrl.u32 %v972, 7
    %v974 = vsub.s32 4, %v973
    %v975 = vrot.slane %v954, %v974
    %v976 = vlaneseq
    %v977 = vshrl.u32 %v976, 7
    %v978 = vsub.s32 5, %v977
    %v979 = vrot.slane %v954, %v978
    %v980 = vlaneseq
    %v981 = vshrl.u32 %v980, 7
    %v982 = vsub.s32 6, %v981
    %v983 = vrot.slane %v954, %v982
    %v984 = vlaneseq
    %v985 = vshrl.u32 %v984, 7
    %v986 = vsub.s32 7, %v985
    %v987 = vrot.slane %v954, %v986
    %v1124 = vunpack.c.l.b16 %v826
    %v1125 = vunpack.c.h.b16 %v826
    %v1126 = vunpack.c.l.b16 %v827
    %v1127 = vunpack.c.h.b16 %v827
    %v1128 = vunpack.c.l.b16 %v828
    %v1129 = vunpack.c.h.b16 %v828
    %v1130 = vunpack.c.l.b16 %v829
    %v1131 = vunpack.c.h.b16 %v829
    %v1132 = vunpack.c.l.b16 %v830
    %v1133 = vunpack.c.h.b16 %v830
    %v1134 = vunpack.c.l.b16 %v831
    %v1135 = vunpack.c.h.b16 %v831
    %v1136 = vunpack.c.l.b16 %v832
    %v1137 = vunpack.c.h.b16 %v832
    %v1138 = vunpack.c.l.b16 %v833
    %v1139 = vunpack.c.h.b16 %v833
    %v1140 = vunpack.c.l.b16 %v834
    %v1141 = vunpack.c.h.b16 %v834
    %v1142 = vunpack.c.l.b16 %v835
    %v1143 = vunpack.c.h.b16 %v835
    %v1144 = vunpack.c.l.b16 %v836
    %v1145 = vunpack.c.h.b16 %v836
    %v1146 = vunpack.c.l.b16 %v837
    %v1147 = vunpack.c.h.b16 %v837
    %v1148 = vunpack.c.l.b16 %v838
    %v1149 = vunpack.c.h.b16 %v838
    %v1150 = vunpack.c.l.b16 %v839
    %v1151 = vunpack.c.h.b16 %v839
    %v1152 = vunpack.c.l.b16 %v840
    %v1153 = vunpack.c.h.b16 %v840
    %v1154 = vunpack.c.l.b16 %v841
    %v1155 = vunpack.c.h.b16 %v841
    %v1156 = vunpack.c.l.b16 %v842
    %v1157 = vunpack.c.h.b16 %v842
    %v1158 = vunpack.c.l.b16 %v843
    %v1159 = vunpack.c.h.b16 %v843
    %v1160 = vunpack.c.l.b16 %v844
    %v1161 = vunpack.c.h.b16 %v844
    %v1162 = vunpack.c.l.b16 %v845
    %v1163 = vunpack.c.h.b16 %v845
    %v1164 = vunpack.c.l.b16 %v846
    %v1165 = vunpack.c.h.b16 %v846
    %v1166 = vunpack.c.l.b16 %v847
    %v1167 = vunpack.c.h.b16 %v847
    %v1168 = vunpack.c.l.b16 %v848
    %v1169 = vunpack.c.h.b16 %v848
    %v1170 = vunpack.c.l.b16 %v849
    %v1171 = vunpack.c.h.b16 %v849
    %v1172 = vunpack.c.l.b16 %v850
    %v1173 = vunpack.c.h.b16 %v850
    %v1174 = vunpack.c.l.b16 %v851
    %v1175 = vunpack.c.h.b16 %v851
    %v1176 = vunpack.c.l.b16 %v852
    %v1177 = vunpack.c.h.b16 %v852
    %v1178 = vunpack.c.l.b16 %v853
    %v1179 = vunpack.c.h.b16 %v853
    %v1180 = vunpack.c.l.b16 %v854
    %v1181 = vunpack.c.h.b16 %v854
    %v1182 = vunpack.c.l.b16 %v855
    %v1183 = vunpack.c.h.b16 %v855
    %v1184 = vunpack.c.l.b16 %v856
    %v1185 = vunpack.c.h.b16 %v856
    %v1186 = vunpack.c.l.b16 %v857
    %v1187 = vunpack.c.h.b16 %v857
    %v1188 = vunpack.c.l.b16 %v858
    %v1189 = vunpack.c.h.b16 %v858
    %v1190 = vunpack.c.l.b16 %v859
    %v1191 = vunpack.c.h.b16 %v859
    %v1192 = vunpack.c.l.b16 %v860
    %v1193 = vunpack.c.h.b16 %v860
    %v1194 = vunpack.c.l.b16 %v861
    %v1195 = vunpack.c.h.b16 %v861
    %v1196 = vunpack.c.l.b16 %v862
    %v1197 = vunpack.c.h.b16 %v862
    %v1198 = vunpack.c.l.b16 %v863
    %v1199 = vunpack.c.h.b16 %v863
    %v1200 = vunpack.c.l.b16 %v864
    %v1201 = vunpack.c.h.b16 %v864
    %v1202 = vunpack.c.l.b16 %v865
    %v1203 = vunpack.c.h.b16 %v865
    %v1204 = vunpack.c.l.b16 %v866
    %v1205 = vunpack.c.h.b16 %v866
    %v1206 = vunpack.c.l.b16 %v867
    %v1207 = vunpack.c.h.b16 %v867
    %v1208 = vunpack.c.l.b16 %v868
    %v1209 = vunpack.c.h.b16 %v868
    %v1210 = vunpack.c.l.b16 %v869
    %v1211 = vunpack.c.h.b16 %v869
    %v1212 = vunpack.c.l.b16 %v870
    %v1213 = vunpack.c.h.b16 %v870
    %v1214 = vunpack.c.l.b16 %v871
    %v1215 = vunpack.c.h.b16 %v871
    %v1216 = vunpack.c.l.b16 %v872
    %v1217 = vunpack.c.h.b16 %v872
    %v1218 = vunpack.c.l.b16 %v873
    %v1219 = vunpack.c.h.b16 %v873
    %v1220 = vunpack.c.l.b16 %v874
    %v1221 = vunpack.c.h.b16 %v874
    %v1222 = vunpack.c.l.b16 %v875
    %v1223 = vunpack.c.h.b16 %v875
    %v1224 = vunpack.c.l.b16 %v876
    %v1225 = vunpack.c.h.b16 %v876
    %v1226 = vunpack.c.l.b16 %v877
    %v1227 = vunpack.c.h.b16 %v877
    %v1228 = vunpack.c.l.b16 %v878
    %v1229 = vunpack.c.h.b16 %v878
    %v1230 = vunpack.c.l.b16 %v879
    %v1231 = vunpack.c.h.b16 %v879
    %v1232 = vunpack.c.l.b16 %v880
    %v1233 = vunpack.c.h.b16 %v880
    %v1234 = vunpack.c.l.b16 %v881
    %v1235 = vunpack.c.h.b16 %v881
    %v1236 = vunpack.c.l.b16 %v882
    %v1237 = vunpack.c.h.b16 %v882
    %v1238 = vunpack.c.l.b16 %v883
    %v1239 = vunpack.c.h.b16 %v883
    %v1240 = vunpack.c.l.b16 %v884
    %v1241 = vunpack.c.h.b16 %v884
    %v1242 = vunpack.c.l.b16 %v885
    %v1243 = vunpack.c.h.b16 %v885
    %v1244 = vunpack.c.l.b16 %v886
    %v1245 = vunpack.c.h.b16 %v886
    %v1246 = vunpack.c.l.b16 %v887
    %v1247 = vunpack.c.h.b16 %v887
    %v1248 = vunpack.c.l.b16 %v888
    %v1249 = vunpack.c.h.b16 %v888
    %v1250 = vunpack.c.l.b16 %v889
    %v1251 = vunpack.c.h.b16 %v889
    %v1252 = vunpack.c.l.b16 %v890
    %v1253 = vunpack.c.h.b16 %v890
    %v1254 = vunpack.c.l.b16 %v891
    %v1255 = vunpack.c.h.b16 %v891
    %v1256 = vunpack.c.l.b16 %v892
    %v1257 = vunpack.c.h.b16 %v892
    %v1258 = vunpack.c.l.b16 %v893
    %v1259 = vunpack.c.h.b16 %v893
    %v1260 = vunpack.c.l.b16 %v894
    %v1261 = vunpack.c.h.b16 %v894
    %v1262 = vunpack.c.l.b16 %v895
    %v1263 = vunpack.c.h.b16 %v895
    %v1264 = vunpack.c.l.b16 %v896
    %v1265 = vunpack.c.h.b16 %v896
    %v1266 = vunpack.c.l.b16 %v897
    %v1267 = vunpack.c.h.b16 %v897
    %v1268 = vunpack.c.l.b16 %v898
    %v1269 = vunpack.c.h.b16 %v898
    %v1270 = vunpack.c.l.b16 %v899
    %v1271 = vunpack.c.h.b16 %v899
    %v1272 = vunpack.c.l.b16 %v900
    %v1273 = vunpack.c.h.b16 %v900
    %v1274 = vunpack.c.l.b16 %v901
    %v1275 = vunpack.c.h.b16 %v901
    %v1276 = vunpack.c.l.b16 %v902
    %v1277 = vunpack.c.h.b16 %v902
    %v1278 = vunpack.c.l.b16 %v903
    %v1279 = vunpack.c.h.b16 %v903
    %v1280 = vunpack.c.l.b16 %v904
    %v1281 = vunpack.c.h.b16 %v904
    %v1282 = vunpack.c.l.b16 %v905
    %v1283 = vunpack.c.h.b16 %v905
    %v1284 = vunpack.c.l.b16 %v906
    %v1285 = vunpack.c.h.b16 %v906
    %v1286 = vunpack.c.l.b16 %v907
    %v1287 = vunpack.c.h.b16 %v907
    %v1288 = vunpack.c.l.b16 %v908
    %v1289 = vunpack.c.h.b16 %v908
    %v1290 = vunpack.c.l.b16 %v909
    %v1291 = vunpack.c.h.b16 %v909
    %v1292 = vunpack.c.l.b16 %v910
    %v1293 = vunpack.c.h.b16 %v910
    %v1294 = vunpack.c.l.b16 %v911
    %v1295 = vunpack.c.h.b16 %v911
    %v1296 = vunpack.c.l.b16 %v912
    %v1297 = vunpack.c.h.b16 %v912
    %v1298 = vunpack.c.l.b16 %v913
    %v1299 = vunpack.c.h.b16 %v913
    %v1300 = vunpack.c.l.b16 %v914
    %v1301 = vunpack.c.h.b16 %v914
    %v1302 = vunpack.c.l.b16 %v915
    %v1303 = vunpack.c.h.b16 %v915
    %v1304 = vunpack.c.l.b16 %v916
    %v1305 = vunpack.c.h.b16 %v916
    %v1306 = vunpack.c.l.b16 %v917
    %v1307 = vunpack.c.h.b16 %v917
    %v1308 = vunpack.c.l.b16 %v918
    %v1309 = vunpack.c.h.b16 %v918
    %v1310 = vunpack.c.l.b16 %v919
    %v1311 = vunpack.c.h.b16 %v919
    %v1312 = vunpack.c.l.b16 %v920
    %v1313 = vunpack.c.h.b16 %v920
    %v1314 = vunpack.c.l.b16 %v921
    %v1315 = vunpack.c.h.b16 %v921
    %v1316 = vunpack.c.l.b16 %v922
    %v1317 = vunpack.c.h.b16 %v922
    %v1318 = vunpack.c.l.b16 %v923
    %v1319 = vunpack.c.h.b16 %v923
    %v1320 = vunpack.c.l.b16 %v924
    %v1321 = vunpack.c.h.b16 %v924
    %v1322 = vunpack.c.l.b16 %v925
    %v1323 = vunpack.c.h.b16 %v925
    %v1324 = vunpack.c.l.b16 %v926
    %v1325 = vunpack.c.h.b16 %v926
    %v1326 = vunpack.c.l.b16 %v927
    %v1327 = vunpack.c.h.b16 %v927
    %v1328 = vunpack.c.l.b16 %v928
    %v1329 = vunpack.c.h.b16 %v928
    %v1330 = vunpack.c.l.b16 %v929
    %v1331 = vunpack.c.h.b16 %v929
    %v1332 = vunpack.c.l.b16 %v930
    %v1333 = vunpack.c.h.b16 %v930
    %v1334 = vunpack.c.l.b16 %v931
    %v1335 = vunpack.c.h.b16 %v931
    %v1336 = vunpack.c.l.b16 %v932
    %v1337 = vunpack.c.h.b16 %v932
    %v1338 = vunpack.c.l.b16 %v933
    %v1339 = vunpack.c.h.b16 %v933
    %v1340 = vunpack.c.l.b16 %v934
    %v1341 = vunpack.c.h.b16 %v934
    %v1342 = vunpack.c.l.b16 %v935
    %v1343 = vunpack.c.h.b16 %v935
    %v1344 = vunpack.c.l.b16 %v936
    %v1345 = vunpack.c.h.b16 %v936
    %v1346 = vunpack.c.l.b16 %v937
    %v1347 = vunpack.c.h.b16 %v937
    %v1348 = vunpack.c.l.b16 %v938
    %v1349 = vunpack.c.h.b16 %v938
    %v1350 = vunpack.c.l.b16 %v939
    %v1351 = vunpack.c.h.b16 %v939
    %v1352 = vunpack.c.l.b16 %v940
    %v1353 = vunpack.c.h.b16 %v940
    %v1354 = vunpack.c.l.b16 %v941
    %v1355 = vunpack.c.h.b16 %v941
    %v1356 = vunpack.c.l.b16 %v942
    %v1357 = vunpack.c.h.b16 %v942
    %v1358 = vunpack.c.l.b16 %v943
    %v1359 = vunpack.c.h.b16 %v943
    %v1360 = vunpack.c.l.b16 %v944
    %v1361 = vunpack.c.h.b16 %v944
    %v1362 = vunpack.c.l.b16 %v945
    %v1363 = vunpack.c.h.b16 %v945
    %v1364 = vunpack.c.l.b16 %v946
    %v1365 = vunpack.c.h.b16 %v946
    %v1366 = vunpack.c.l.b16 %v947
    %v1367 = vunpack.c.h.b16 %v947
    %v1368 = vunpack.c.l.b16 %v948
    %v1369 = vunpack.c.h.b16 %v948
    %v1370 = vunpack.c.l.b16 %v949
    %v1371 = vunpack.c.h.b16 %v949
    %v1372 = vunpack.c.l.b16 %v950
    %v1373 = vunpack.c.h.b16 %v950
    %v1374 = vunpack.c.l.b16 %v951
    %v1375 = vunpack.c.h.b16 %v951
    %v1376 = vunpack.c.l.b16 %v952
    %v1377 = vunpack.c.h.b16 %v952
    %v1378 = vunpack.c.l.b16 %v953
    %v1379 = vunpack.c.h.b16 %v953
    %v1380 = vpack.c.b16 %v1132, %v1124
    %v1381 = vpack.c.b16 %v1133, %v1125
    %v1382 = vpack.c.b16 %v1134, %v1126
    %v1383 = vpack.c.b16 %v1135, %v1127
    %v1384 = vpack.c.b16 %v1136, %v1128
    %v1385 = vpack.c.b16 %v1137, %v1129
    %v1386 = vpack.c.b16 %v1138, %v1130
    %v1387 = vpack.c.b16 %v1139, %v1131
    %v1388 = vpack.c.b16 %v1148, %v1140
    %v1389 = vpack.c.b16 %v1149, %v1141
    %v1390 = vpack.c.b16 %v1150, %v1142
    %v1391 = vpack.c.b16 %v1151, %v1143
    %v1392 = vpack.c.b16 %v1152, %v1144
    %v1393 = vpack.c.b16 %v1153, %v1145
    %v1394 = vpack.c.b16 %v1154, %v1146
    %v1395 = vpack.c.b16 %v1155, %v1147
    %v1396 = vpack.c.b16 %v1164, %v1156
    %v1397 = vpack.c.b16 %v1165, %v1157
    %v1398 = vpack.c.b16 %v1166, %v1158
    %v1399 = vpack.c.b16 %v1167, %v1159
    %v1400 = vpack.c.b16 %v1168, %v1160
    %v1401 = vpack.c.b16 %v1169, %v1161
    %v1402 = vpack.c.b16 %v1170, %v1162
    %v1403 = vpack.c.b16 %v1171, %v1163
    %v1404 = vpack.c.b16 %v1180, %v1172
    %v1405 = vpack.c.b16 %v1181, %v1173
    %v1406 = vpack.c.b16 %v1182, %v1174
    %v1407 = vpack.c.b16 %v1183, %v1175
    %v1408 = vpack.c.b16 %v1184, %v1176
    %v1409 = vpack.c.b16 %v1185, %v1177
    %v1410 = vpack.c.b16 %v1186, %v1178
    %v1411 = vpack.c.b16 %v1187, %v1179
    %v1412 = vpack.c.b16 %v1196, %v1188
    %v1413 = vpack.c.b16 %v1197, %v1189
    %v1414 = vpack.c.b16 %v1198, %v1190
    %v1415 = vpack.c.b16 %v1199, %v1191
    %v1416 = vpack.c.b16 %v1200, %v1192
    %v1417 = vpack.c.b16 %v1201, %v1193
    %v1418 = vpack.c.b16 %v1202, %v1194
    %v1419 = vpack.c.b16 %v1203, %v1195
    %v1420 = vpack.c.b16 %v1212, %v1204
    %v1421 = vpack.c.b16 %v1213, %v1205
    %v1422 = vpack.c.b16 %v1214, %v1206
    %v1423 = vpack.c.b16 %v1215, %v1207
    %v1424 = vpack.c.b16 %v1216, %v1208
    %v1425 = vpack.c.b16 %v1217, %v1209
    %v1426 = vpack.c.b16 %v1218, %v1210
    %v1427 = vpack.c.b16 %v1219, %v1211
    %v1428 = vpack.c.b16 %v1228, %v1220
    %v1429 = vpack.c.b16 %v1229, %v1221
    %v1430 = vpack.c.b16 %v1230, %v1222
    %v1431 = vpack.c.b16 %v1231, %v1223
    %v1432 = vpack.c.b16 %v1232, %v1224
    %v1433 = vpack.c.b16 %v1233, %v1225
    %v1434 = vpack.c.b16 %v1234, %v1226
    %v1435 = vpack.c.b16 %v1235, %v1227
    %v1436 = vpack.c.b16 %v1244, %v1236
    %v1437 = vpack.c.b16 %v1245, %v1237
    %v1438 = vpack.c.b16 %v1246, %v1238
    %v1439 = vpack.c.b16 %v1247, %v1239
    %v1440 = vpack.c.b16 %v1248, %v1240
    %v1441 = vpack.c.b16 %v1249, %v1241
    %v1442 = vpack.c.b16 %v1250, %v1242
    %v1443 = vpack.c.b16 %v1251, %v1243
    %v1444 = vpack.c.b16 %v1260, %v1252
    %v1445 = vpack.c.b16 %v1261, %v1253
    %v1446 = vpack.c.b16 %v1262, %v1254
    %v1447 = vpack.c.b16 %v1263, %v1255
    %v1448 = vpack.c.b16 %v1264, %v1256
    %v1449 = vpack.c.b16 %v1265, %v1257
    %v1450 = vpack.c.b16 %v1266, %v1258
    %v1451 = vpack.c.b16 %v1267, %v1259
    %v1452 = vpack.c.b16 %v1276, %v1268
    %v1453 = vpack.c.b16 %v1277, %v1269
    %v1454 = vpack.c.b16 %v1278, %v1270
    %v1455 = vpack.c.b16 %v1279, %v1271
    %v1456 = vpack.c.b16 %v1280, %v1272
    %v1457 = vpack.c.b16 %v1281, %v1273
    %v1458 = vpack.c.b16 %v1282, %v1274
    %v1459 = vpack.c.b16 %v1283, %v1275
    %v1460 = vpack.c.b16 %v1292, %v1284
    %v1461 = vpack.c.b16 %v1293, %v1285
    %v1462 = vpack.c.b16 %v1294, %v1286
    %v1463 = vpack.c.b16 %v1295, %v1287
    %v1464 = vpack.c.b16 %v1296, %v1288
    %v1465 = vpack.c.b16 %v1297, %v1289
    %v1466 = vpack.c.b16 %v1298, %v1290
    %v1467 = vpack.c.b16 %v1299, %v1291
    %v1468 = vpack.c.b16 %v1308, %v1300
    %v1469 = vpack.c.b16 %v1309, %v1301
    %v1470 = vpack.c.b16 %v1310, %v1302
    %v1471 = vpack.c.b16 %v1311, %v1303
    %v1472 = vpack.c.b16 %v1312, %v1304
    %v1473 = vpack.c.b16 %v1313, %v1305
    %v1474 = vpack.c.b16 %v1314, %v1306
    %v1475 = vpack.c.b16 %v1315, %v1307
    %v1476 = vpack.c.b16 %v1324, %v1316
    %v1477 = vpack.c.b16 %v1325, %v1317
    %v1478 = vpack.c.b16 %v1326, %v1318
    %v1479 = vpack.c.b16 %v1327, %v1319
    %v1480 = vpack.c.b16 %v1328, %v1320
    %v1481 = vpack.c.b16 %v1329, %v1321
    %v1482 = vpack.c.b16 %v1330, %v1322
    %v1483 = vpack.c.b16 %v1331, %v1323
    %v1484 = vpack.c.b16 %v1340, %v1332
    %v1485 = vpack.c.b16 %v1341, %v1333
    %v1486 = vpack.c.b16 %v1342, %v1334
    %v1487 = vpack.c.b16 %v1343, %v1335
    %v1488 = vpack.c.b16 %v1344, %v1336
    %v1489 = vpack.c.b16 %v1345, %v1337
    %v1490 = vpack.c.b16 %v1346, %v1338
    %v1491 = vpack.c.b16 %v1347, %v1339
    %v1492 = vpack.c.b16 %v1356, %v1348
    %v1493 = vpack.c.b16 %v1357, %v1349
    %v1494 = vpack.c.b16 %v1358, %v1350
    %v1495 = vpack.c.b16 %v1359, %v1351
    %v1496 = vpack.c.b16 %v1360, %v1352
    %v1497 = vpack.c.b16 %v1361, %v1353
    %v1498 = vpack.c.b16 %v1362, %v1354
    %v1499 = vpack.c.b16 %v1363, %v1355
    %v1500 = vpack.c.b16 %v1372, %v1364
    %v1501 = vpack.c.b16 %v1373, %v1365
    %v1502 = vpack.c.b16 %v1374, %v1366
    %v1503 = vpack.c.b16 %v1375, %v1367
    %v1504 = vpack.c.b16 %v1376, %v1368
    %v1505 = vpack.c.b16 %v1377, %v1369
    %v1506 = vpack.c.b16 %v1378, %v1370
    %v1507 = vpack.c.b16 %v1379, %v1371
    %1636 = vmatprep.subr.bf16.mxu0 %v1381
    %1637 = vmatpush1.bf16.msra.mxu0 %v1380
    %1638 = vmatprep.subr.bf16.mxu0 %v1389
    %1639 = vmatpush1.bf16.msra.mxu0 %v1388
    %1640 = vmatprep.subr.bf16.mxu0 %v1397
    %1641 = vmatpush1.bf16.msra.mxu0 %v1396
    %1642 = vmatprep.subr.bf16.mxu0 %v1405
    %1643 = vmatpush1.bf16.msra.mxu0 %v1404
    %1644 = vmatprep.subr.bf16.mxu0 %v1413
    %1645 = vmatpush1.bf16.msra.mxu0 %v1412
    %1646 = vmatprep.subr.bf16.mxu0 %v1421
    %1647 = vmatpush1.bf16.msra.mxu0 %v1420
    %1648 = vmatprep.subr.bf16.mxu0 %v1429
    %1649 = vmatpush1.bf16.msra.mxu0 %v1428
    %1650 = vmatprep.subr.bf16.mxu0 %v1437
    %1651 = vmatpush1.bf16.msra.mxu0 %v1436
    %1652 = vmatprep.subr.bf16.mxu0 %v1445
    %1653 = vmatpush1.bf16.msra.mxu0 %v1444
    %1654 = vmatprep.subr.bf16.mxu0 %v1453
    %1655 = vmatpush1.bf16.msra.mxu0 %v1452
    %1656 = vmatprep.subr.bf16.mxu0 %v1461
    %1657 = vmatpush1.bf16.msra.mxu0 %v1460
    %1658 = vmatprep.subr.bf16.mxu0 %v1469
    %1659 = vmatpush1.bf16.msra.mxu0 %v1468
    %1660 = vmatprep.subr.bf16.mxu0 %v1477
    %1661 = vmatpush1.bf16.msra.mxu0 %v1476
    %1662 = vmatprep.subr.bf16.mxu0 %v1485
    %1663 = vmatpush1.bf16.msra.mxu0 %v1484
    %1664 = vmatprep.subr.bf16.mxu0 %v1493
    %1665 = vmatpush1.bf16.msra.mxu0 %v1492
    %1666 = vmatprep.subr.bf16.mxu0 %v1501
    %1667 = vmatpush1.bf16.msra.mxu0 %v1500
    %1668 = vmatprep.mubr.bf16.mxu0 %v825
    %1669 = vmatmul.mubr.bf16.gmra.mrb[0].mxu0 %v824
    %v1670 = vpop.f32.mrb[0].mxu0
    %v1671 = vadd.f32 %v959, %v1670
    %v1672 = vpop.f32.mrb[0].mxu0
    %v1673 = vadd.f32 %v963, %v1672
    %v1674 = vpop.f32.mrb[0].mxu0
    %v1675 = vpop.f32.mrb[0].mxu0
    %1676 = vdwg.mxu0
    %1677 = vmatprep.subr.bf16.mxu0 %v1383
    %1678 = vmatpush1.bf16.msra.mxu0 %v1382
    %1679 = vmatprep.subr.bf16.mxu0 %v1391
    %1680 = vmatpush1.bf16.msra.mxu0 %v1390
    %1681 = vmatprep.subr.bf16.mxu0 %v1399
    %1682 = vmatpush1.bf16.msra.mxu0 %v1398
    %1683 = vmatprep.subr.bf16.mxu0 %v1407
    %1684 = vmatpush1.bf16.msra.mxu0 %v1406
    %1685 = vmatprep.subr.bf16.mxu0 %v1415
    %1686 = vmatpush1.bf16.msra.mxu0 %v1414
    %1687 = vmatprep.subr.bf16.mxu0 %v1423
    %1688 = vmatpush1.bf16.msra.mxu0 %v1422
    %1689 = vmatprep.subr.bf16.mxu0 %v1431
    %1690 = vmatpush1.bf16.msra.mxu0 %v1430
    %1691 = vmatprep.subr.bf16.mxu0 %v1439
    %1692 = vmatpush1.bf16.msra.mxu0 %v1438
    %1693 = vmatprep.subr.bf16.mxu0 %v1447
    %1694 = vmatpush1.bf16.msra.mxu0 %v1446
    %1695 = vmatprep.subr.bf16.mxu0 %v1455
    %1696 = vmatpush1.bf16.msra.mxu0 %v1454
    %1697 = vmatprep.subr.bf16.mxu0 %v1463
    %1698 = vmatpush1.bf16.msra.mxu0 %v1462
    %1699 = vmatprep.subr.bf16.mxu0 %v1471
    %1700 = vmatpush1.bf16.msra.mxu0 %v1470
    %1701 = vmatprep.subr.bf16.mxu0 %v1479
    %1702 = vmatpush1.bf16.msra.mxu0 %v1478
    %1703 = vmatprep.subr.bf16.mxu0 %v1487
    %1704 = vmatpush1.bf16.msra.mxu0 %v1486
    %1705 = vmatprep.subr.bf16.mxu0 %v1495
    %1706 = vmatpush1.bf16.msra.mxu0 %v1494
    %1707 = vmatprep.subr.bf16.mxu0 %v1503
    %1708 = vmatpush1.bf16.msra.mxu0 %v1502
    %1709 = vmatprep.mubr.bf16.mxu0 %v825
    %1710 = vmatmul.mubr.bf16.gmra.mrb[0].mxu0 %v824
    %v1711 = vpop.f32.mrb[0].mxu0
    %v1712 = vadd.f32 %v967, %v1711
    %v1713 = vpop.f32.mrb[0].mxu0
    %v1714 = vadd.f32 %v971, %v1713
    %v1715 = vpop.f32.mrb[0].mxu0
    %v1716 = vpop.f32.mrb[0].mxu0
    %1717 = vdwg.mxu0
    %1718 = vmatprep.subr.bf16.mxu0 %v1385
    %1719 = vmatpush1.bf16.msra.mxu0 %v1384
    %1720 = vmatprep.subr.bf16.mxu0 %v1393
    %1721 = vmatpush1.bf16.msra.mxu0 %v1392
    %1722 = vmatprep.subr.bf16.mxu0 %v1401
    %1723 = vmatpush1.bf16.msra.mxu0 %v1400
    %1724 = vmatprep.subr.bf16.mxu0 %v1409
    %1725 = vmatpush1.bf16.msra.mxu0 %v1408
    %1726 = vmatprep.subr.bf16.mxu0 %v1417
    %1727 = vmatpush1.bf16.msra.mxu0 %v1416
    %1728 = vmatprep.subr.bf16.mxu0 %v1425
    %1729 = vmatpush1.bf16.msra.mxu0 %v1424
    %1730 = vmatprep.subr.bf16.mxu0 %v1433
    %1731 = vmatpush1.bf16.msra.mxu0 %v1432
    %1732 = vmatprep.subr.bf16.mxu0 %v1441
    %1733 = vmatpush1.bf16.msra.mxu0 %v1440
    %1734 = vmatprep.subr.bf16.mxu0 %v1449
    %1735 = vmatpush1.bf16.msra.mxu0 %v1448
    %1736 = vmatprep.subr.bf16.mxu0 %v1457
    %1737 = vmatpush1.bf16.msra.mxu0 %v1456
    %1738 = vmatprep.subr.bf16.mxu0 %v1465
    %1739 = vmatpush1.bf16.msra.mxu0 %v1464
    %1740 = vmatprep.subr.bf16.mxu0 %v1473
    %1741 = vmatpush1.bf16.msra.mxu0 %v1472
    %1742 = vmatprep.subr.bf16.mxu0 %v1481
    %1743 = vmatpush1.bf16.msra.mxu0 %v1480
    %1744 = vmatprep.subr.bf16.mxu0 %v1489
    %1745 = vmatpush1.bf16.msra.mxu0 %v1488
    %1746 = vmatprep.subr.bf16.mxu0 %v1497
    %1747 = vmatpush1.bf16.msra.mxu0 %v1496
    %1748 = vmatprep.subr.bf16.mxu0 %v1505
    %1749 = vmatpush1.bf16.msra.mxu0 %v1504
    %1750 = vmatprep.mubr.bf16.mxu0 %v825
    %1751 = vmatmul.mubr.bf16.gmra.mrb[0].mxu0 %v824
    %v1752 = vpop.f32.mrb[0].mxu0
    %v1753 = vadd.f32 %v975, %v1752
    %v1754 = vpop.f32.mrb[0].mxu0
    %v1755 = vadd.f32 %v979, %v1754
    %v1756 = vpop.f32.mrb[0].mxu0
    %v1757 = vpop.f32.mrb[0].mxu0
    %1758 = vdwg.mxu0
    %1759 = vmatprep.subr.bf16.mxu0 %v1387
    %1760 = vmatpush1.bf16.msra.mxu0 %v1386
    %1761 = vmatprep.subr.bf16.mxu0 %v1395
    %1762 = vmatpush1.bf16.msra.mxu0 %v1394
    %1763 = vmatprep.subr.bf16.mxu0 %v1403
    %1764 = vmatpush1.bf16.msra.mxu0 %v1402
    %1765 = vmatprep.subr.bf16.mxu0 %v1411
    %1766 = vmatpush1.bf16.msra.mxu0 %v1410
    %1767 = vmatprep.subr.bf16.mxu0 %v1419
    %1768 = vmatpush1.bf16.msra.mxu0 %v1418
    %1769 = vmatprep.subr.bf16.mxu0 %v1427
    %1770 = vmatpush1.bf16.msra.mxu0 %v1426
    %1771 = vmatprep.subr.bf16.mxu0 %v1435
    %1772 = vmatpush1.bf16.msra.mxu0 %v1434
    %1773 = vmatprep.subr.bf16.mxu0 %v1443
    %1774 = vmatpush1.bf16.msra.mxu0 %v1442
    %1775 = vmatprep.subr.bf16.mxu0 %v1451
    %1776 = vmatpush1.bf16.msra.mxu0 %v1450
    %1777 = vmatprep.subr.bf16.mxu0 %v1459
    %1778 = vmatpush1.bf16.msra.mxu0 %v1458
    %1779 = vmatprep.subr.bf16.mxu0 %v1467
    %1780 = vmatpush1.bf16.msra.mxu0 %v1466
    %1781 = vmatprep.subr.bf16.mxu0 %v1475
    %1782 = vmatpush1.bf16.msra.mxu0 %v1474
    %1783 = vmatprep.subr.bf16.mxu0 %v1483
    %1784 = vmatpush1.bf16.msra.mxu0 %v1482
    %1785 = vmatprep.subr.bf16.mxu0 %v1491
    %1786 = vmatpush1.bf16.msra.mxu0 %v1490
    %1787 = vmatprep.subr.bf16.mxu0 %v1499
    %1788 = vmatpush1.bf16.msra.mxu0 %v1498
    %1789 = vmatprep.subr.bf16.mxu0 %v1507
    %1790 = vmatpush1.bf16.msra.mxu0 %v1506
    %1791 = vmatprep.mubr.bf16.mxu0 %v825
    %1792 = vmatmul.mubr.bf16.gmra.mrb[0].mxu0 %v824
    %v1793 = vpop.f32.mrb[0].mxu0
    %v1794 = vadd.f32 %v983, %v1793
    %v1795 = vpop.f32.mrb[0].mxu0
    %v1796 = vadd.f32 %v987, %v1795
    %v1797 = vpop.f32.mrb[0].mxu0
    %v1798 = vpop.f32.mrb[0].mxu0
    %1799 = vdwg.mxu0
    %v1800 = vmax.f32 %v1671, 0.0
    %v1801 = vmax.f32 %v1673, 0.0
    %v1802 = vmax.f32 %v1712, 0.0
    %v1803 = vmax.f32 %v1714, 0.0
    %v1804 = vmax.f32 %v1753, 0.0
    %v1805 = vmax.f32 %v1755, 0.0
    %v1806 = vmax.f32 %v1794, 0.0
    %v1807 = vmax.f32 %v1796, 0.0
    %v1808 = vpack.c.bf16 %v1800, %v1800
    %v1809 = vpack.c.bf16 %v1801, %v1801
    %v1810 = vpack.c.bf16 %v1802, %v1802
    %v1811 = vpack.c.bf16 %v1803, %v1803
    %v1812 = vpack.c.bf16 %v1804, %v1804
    %v1813 = vpack.c.bf16 %v1805, %v1805
    %v1814 = vpack.c.bf16 %v1806, %v1806
    %v1815 = vpack.c.bf16 %v1807, %v1807
    %v1816 = vld [vmem:[#allocation17] sm:$0xff]
    %v1817 = vld [vmem:[#allocation17 + $0x8] sm:$0xff]
    %v1818 = vld [vmem:[#allocation17 + $0x10] sm:$0xff]
    %v1819 = vld [vmem:[#allocation17 + $0x18] sm:$0xff]
    %v1820 = vld [vmem:[#allocation17 + $0x20] sm:$0xff]
    %v1821 = vld [vmem:[#allocation17 + $0x28] sm:$0xff]
    %v1822 = vld [vmem:[#allocation17 + $0x30] sm:$0xff]
    %v1823 = vld [vmem:[#allocation17 + $0x38] sm:$0xff]
    %v1824 = vld [vmem:[#allocation17 + $0x40] sm:$0xff]
    %v1825 = vld [vmem:[#allocation17 + $0x48] sm:$0xff]
    %v1826 = vld [vmem:[#allocation17 + $0x50] sm:$0xff]
    %v1827 = vld [vmem:[#allocation17 + $0x58] sm:$0xff]
    %v1828 = vld [vmem:[#allocation17 + $0x60] sm:$0xff]
    %v1829 = vld [vmem:[#allocation17 + $0x68] sm:$0xff]
    %v1830 = vld [vmem:[#allocation17 + $0x70] sm:$0xff]
    %v1831 = vld [vmem:[#allocation17 + $0x78] sm:$0xff]
    %v1832 = vld [vmem:[#allocation17 + $0x80] sm:$0xff]
    %v1833 = vld [vmem:[#allocation17 + $0x88] sm:$0xff]
    %v1834 = vld [vmem:[#allocation17 + $0x90] sm:$0xff]
    %v1835 = vld [vmem:[#allocation17 + $0x98] sm:$0xff]
    %v1836 = vld [vmem:[#allocation17 + $0xa0] sm:$0xff]
    %v1837 = vld [vmem:[#allocation17 + $0xa8] sm:$0xff]
    %v1838 = vld [vmem:[#allocation17 + $0xb0] sm:$0xff]
    %v1839 = vld [vmem:[#allocation17 + $0xb8] sm:$0xff]
    %v1840 = vld [vmem:[#allocation17 + $0xc0] sm:$0xff]
    %v1841 = vld [vmem:[#allocation17 + $0xc8] sm:$0xff]
    %v1842 = vld [vmem:[#allocation17 + $0xd0] sm:$0xff]
    %v1843 = vld [vmem:[#allocation17 + $0xd8] sm:$0xff]
    %v1844 = vld [vmem:[#allocation17 + $0xe0] sm:$0xff]
    %v1845 = vld [vmem:[#allocation17 + $0xe8] sm:$0xff]
    %v1846 = vld [vmem:[#allocation17 + $0xf0] sm:$0xff]
    %v1847 = vld [vmem:[#allocation17 + $0xf8] sm:$0xff]
    %v1848 = vld [vmem:[#allocation17 + $0x100] sm:$0xff]
    %v1849 = vld [vmem:[#allocation17 + $0x108] sm:$0xff]
    %v1850 = vld [vmem:[#allocation17 + $0x110] sm:$0xff]
    %v1851 = vld [vmem:[#allocation17 + $0x118] sm:$0xff]
    %v1852 = vld [vmem:[#allocation17 + $0x120] sm:$0xff]
    %v1853 = vld [vmem:[#allocation17 + $0x128] sm:$0xff]
    %v1854 = vld [vmem:[#allocation17 + $0x130] sm:$0xff]
    %v1855 = vld [vmem:[#allocation17 + $0x138] sm:$0xff]
    %v1856 = vld [vmem:[#allocation17 + $0x140] sm:$0xff]
    %v1857 = vld [vmem:[#allocation17 + $0x148] sm:$0xff]
    %v1858 = vld [vmem:[#allocation17 + $0x150] sm:$0xff]
    %v1859 = vld [vmem:[#allocation17 + $0x158] sm:$0xff]
    %v1860 = vld [vmem:[#allocation17 + $0x160] sm:$0xff]
    %v1861 = vld [vmem:[#allocation17 + $0x168] sm:$0xff]
    %v1862 = vld [vmem:[#allocation17 + $0x170] sm:$0xff]
    %v1863 = vld [vmem:[#allocation17 + $0x178] sm:$0xff]
    %v1864 = vld [vmem:[#allocation17 + $0x180] sm:$0xff]
    %v1865 = vld [vmem:[#allocation17 + $0x188] sm:$0xff]
    %v1866 = vld [vmem:[#allocation17 + $0x190] sm:$0xff]
    %v1867 = vld [vmem:[#allocation17 + $0x198] sm:$0xff]
    %v1868 = vld [vmem:[#allocation17 + $0x1a0] sm:$0xff]
    %v1869 = vld [vmem:[#allocation17 + $0x1a8] sm:$0xff]
    %v1870 = vld [vmem:[#allocation17 + $0x1b0] sm:$0xff]
    %v1871 = vld [vmem:[#allocation17 + $0x1b8] sm:$0xff]
    %v1872 = vld [vmem:[#allocation17 + $0x1c0] sm:$0xff]
    %v1873 = vld [vmem:[#allocation17 + $0x1c8] sm:$0xff]
    %v1874 = vld [vmem:[#allocation17 + $0x1d0] sm:$0xff]
    %v1875 = vld [vmem:[#allocation17 + $0x1d8] sm:$0xff]
    %v1876 = vld [vmem:[#allocation17 + $0x1e0] sm:$0xff]
    %v1877 = vld [vmem:[#allocation17 + $0x1e8] sm:$0xff]
    %v1878 = vld [vmem:[#allocation17 + $0x1f0] sm:$0xff]
    %v1879 = vld [vmem:[#allocation17 + $0x1f8] sm:$0xff]
    %v1880 = vld [vmem:[#allocation17 + $0x200] sm:$0xff]
    %v1881 = vld [vmem:[#allocation17 + $0x208] sm:$0xff]
    %v1882 = vld [vmem:[#allocation17 + $0x210] sm:$0xff]
    %v1883 = vld [vmem:[#allocation17 + $0x218] sm:$0xff]
    %v1884 = vld [vmem:[#allocation17 + $0x220] sm:$0xff]
    %v1885 = vld [vmem:[#allocation17 + $0x228] sm:$0xff]
    %v1886 = vld [vmem:[#allocation17 + $0x230] sm:$0xff]
    %v1887 = vld [vmem:[#allocation17 + $0x238] sm:$0xff]
    %v1888 = vld [vmem:[#allocation17 + $0x240] sm:$0xff]
    %v1889 = vld [vmem:[#allocation17 + $0x248] sm:$0xff]
    %v1890 = vld [vmem:[#allocation17 + $0x250] sm:$0xff]
    %v1891 = vld [vmem:[#allocation17 + $0x258] sm:$0xff]
    %v1892 = vld [vmem:[#allocation17 + $0x260] sm:$0xff]
    %v1893 = vld [vmem:[#allocation17 + $0x268] sm:$0xff]
    %v1894 = vld [vmem:[#allocation17 + $0x270] sm:$0xff]
    %v1895 = vld [vmem:[#allocation17 + $0x278] sm:$0xff]
    %v1896 = vld [vmem:[#allocation17 + $0x280] sm:$0xff]
    %v1897 = vld [vmem:[#allocation17 + $0x288] sm:$0xff]
    %v1898 = vld [vmem:[#allocation17 + $0x290] sm:$0xff]
    %v1899 = vld [vmem:[#allocation17 + $0x298] sm:$0xff]
    %v1900 = vld [vmem:[#allocation17 + $0x2a0] sm:$0xff]
    %v1901 = vld [vmem:[#allocation17 + $0x2a8] sm:$0xff]
    %v1902 = vld [vmem:[#allocation17 + $0x2b0] sm:$0xff]
    %v1903 = vld [vmem:[#allocation17 + $0x2b8] sm:$0xff]
    %v1904 = vld [vmem:[#allocation17 + $0x2c0] sm:$0xff]
    %v1905 = vld [vmem:[#allocation17 + $0x2c8] sm:$0xff]
    %v1906 = vld [vmem:[#allocation17 + $0x2d0] sm:$0xff]
    %v1907 = vld [vmem:[#allocation17 + $0x2d8] sm:$0xff]
    %v1908 = vld [vmem:[#allocation17 + $0x2e0] sm:$0xff]
    %v1909 = vld [vmem:[#allocation17 + $0x2e8] sm:$0xff]
    %v1910 = vld [vmem:[#allocation17 + $0x2f0] sm:$0xff]
    %v1911 = vld [vmem:[#allocation17 + $0x2f8] sm:$0xff]
    %v1912 = vld [vmem:[#allocation17 + $0x300] sm:$0xff]
    %v1913 = vld [vmem:[#allocation17 + $0x308] sm:$0xff]
    %v1914 = vld [vmem:[#allocation17 + $0x310] sm:$0xff]
    %v1915 = vld [vmem:[#allocation17 + $0x318] sm:$0xff]
    %v1916 = vld [vmem:[#allocation17 + $0x320] sm:$0xff]
    %v1917 = vld [vmem:[#allocation17 + $0x328] sm:$0xff]
    %v1918 = vld [vmem:[#allocation17 + $0x330] sm:$0xff]
    %v1919 = vld [vmem:[#allocation17 + $0x338] sm:$0xff]
    %v1920 = vld [vmem:[#allocation17 + $0x340] sm:$0xff]
    %v1921 = vld [vmem:[#allocation17 + $0x348] sm:$0xff]
    %v1922 = vld [vmem:[#allocation17 + $0x350] sm:$0xff]
    %v1923 = vld [vmem:[#allocation17 + $0x358] sm:$0xff]
    %v1924 = vld [vmem:[#allocation17 + $0x360] sm:$0xff]
    %v1925 = vld [vmem:[#allocation17 + $0x368] sm:$0xff]
    %v1926 = vld [vmem:[#allocation17 + $0x370] sm:$0xff]
    %v1927 = vld [vmem:[#allocation17 + $0x378] sm:$0xff]
    %v1928 = vld [vmem:[#allocation17 + $0x380] sm:$0xff]
    %v1929 = vld [vmem:[#allocation17 + $0x388] sm:$0xff]
    %v1930 = vld [vmem:[#allocation17 + $0x390] sm:$0xff]
    %v1931 = vld [vmem:[#allocation17 + $0x398] sm:$0xff]
    %v1932 = vld [vmem:[#allocation17 + $0x3a0] sm:$0xff]
    %v1933 = vld [vmem:[#allocation17 + $0x3a8] sm:$0xff]
    %v1934 = vld [vmem:[#allocation17 + $0x3b0] sm:$0xff]
    %v1935 = vld [vmem:[#allocation17 + $0x3b8] sm:$0xff]
    %v1936 = vld [vmem:[#allocation17 + $0x3c0] sm:$0xff]
    %v1937 = vld [vmem:[#allocation17 + $0x3c8] sm:$0xff]
    %v1938 = vld [vmem:[#allocation17 + $0x3d0] sm:$0xff]
    %v1939 = vld [vmem:[#allocation17 + $0x3d8] sm:$0xff]
    %v1940 = vld [vmem:[#allocation17 + $0x3e0] sm:$0xff]
    %v1941 = vld [vmem:[#allocation17 + $0x3e8] sm:$0xff]
    %v1942 = vld [vmem:[#allocation17 + $0x3f0] sm:$0xff]
    %v1943 = vld [vmem:[#allocation17 + $0x3f8] sm:$0xff]
    %v1944 = vld [vmem:[#allocation19] sm:$0x3]
    %v1946 = vlaneseq
    %v1947 = vshrl.u32 %v1946, 7
    %v1948 = vsub.s32 0, %v1947
    %v1949 = vrot.slane %v1944, %v1948
    %v1950 = vlaneseq
    %v1951 = vshrl.u32 %v1950, 7
    %v1952 = vsub.s32 1, %v1951
    %v1953 = vrot.slane %v1944, %v1952
    %v2084 = vunpack.c.l.b16 %v1816
    %v2085 = vunpack.c.h.b16 %v1816
    %v2086 = vunpack.c.l.b16 %v1817
    %v2087 = vunpack.c.h.b16 %v1817
    %v2088 = vunpack.c.l.b16 %v1818
    %v2089 = vunpack.c.h.b16 %v1818
    %v2090 = vunpack.c.l.b16 %v1819
    %v2091 = vunpack.c.h.b16 %v1819
    %v2092 = vunpack.c.l.b16 %v1820
    %v2093 = vunpack.c.h.b16 %v1820
    %v2094 = vunpack.c.l.b16 %v1821
    %v2095 = vunpack.c.h.b16 %v1821
    %v2096 = vunpack.c.l.b16 %v1822
    %v2097 = vunpack.c.h.b16 %v1822
    %v2098 = vunpack.c.l.b16 %v1823
    %v2099 = vunpack.c.h.b16 %v1823
    %v2100 = vunpack.c.l.b16 %v1824
    %v2101 = vunpack.c.h.b16 %v1824
    %v2102 = vunpack.c.l.b16 %v1825
    %v2103 = vunpack.c.h.b16 %v1825
    %v2104 = vunpack.c.l.b16 %v1826
    %v2105 = vunpack.c.h.b16 %v1826
    %v2106 = vunpack.c.l.b16 %v1827
    %v2107 = vunpack.c.h.b16 %v1827
    %v2108 = vunpack.c.l.b16 %v1828
    %v2109 = vunpack.c.h.b16 %v1828
    %v2110 = vunpack.c.l.b16 %v1829
    %v2111 = vunpack.c.h.b16 %v1829
    %v2112 = vunpack.c.l.b16 %v1830
    %v2113 = vunpack.c.h.b16 %v1830
    %v2114 = vunpack.c.l.b16 %v1831
    %v2115 = vunpack.c.h.b16 %v1831
    %v2116 = vunpack.c.l.b16 %v1832
    %v2117 = vunpack.c.h.b16 %v1832
    %v2118 = vunpack.c.l.b16 %v1833
    %v2119 = vunpack.c.h.b16 %v1833
    %v2120 = vunpack.c.l.b16 %v1834
    %v2121 = vunpack.c.h.b16 %v1834
    %v2122 = vunpack.c.l.b16 %v1835
    %v2123 = vunpack.c.h.b16 %v1835
    %v2124 = vunpack.c.l.b16 %v1836
    %v2125 = vunpack.c.h.b16 %v1836
    %v2126 = vunpack.c.l.b16 %v1837
    %v2127 = vunpack.c.h.b16 %v1837
    %v2128 = vunpack.c.l.b16 %v1838
    %v2129 = vunpack.c.h.b16 %v1838
    %v2130 = vunpack.c.l.b16 %v1839
    %v2131 = vunpack.c.h.b16 %v1839
    %v2132 = vunpack.c.l.b16 %v1840
    %v2133 = vunpack.c.h.b16 %v1840
    %v2134 = vunpack.c.l.b16 %v1841
    %v2135 = vunpack.c.h.b16 %v1841
    %v2136 = vunpack.c.l.b16 %v1842
    %v2137 = vunpack.c.h.b16 %v1842
    %v2138 = vunpack.c.l.b16 %v1843
    %v2139 = vunpack.c.h.b16 %v1843
    %v2140 = vunpack.c.l.b16 %v1844
    %v2141 = vunpack.c.h.b16 %v1844
    %v2142 = vunpack.c.l.b16 %v1845
    %v2143 = vunpack.c.h.b16 %v1845
    %v2144 = vunpack.c.l.b16 %v1846
    %v2145 = vunpack.c.h.b16 %v1846
    %v2146 = vunpack.c.l.b16 %v1847
    %v2147 = vunpack.c.h.b16 %v1847
    %v2148 = vunpack.c.l.b16 %v1848
    %v2149 = vunpack.c.h.b16 %v1848
    %v2150 = vunpack.c.l.b16 %v1849
    %v2151 = vunpack.c.h.b16 %v1849
    %v2152 = vunpack.c.l.b16 %v1850
    %v2153 = vunpack.c.h.b16 %v1850
    %v2154 = vunpack.c.l.b16 %v1851
    %v2155 = vunpack.c.h.b16 %v1851
    %v2156 = vunpack.c.l.b16 %v1852
    %v2157 = vunpack.c.h.b16 %v1852
    %v2158 = vunpack.c.l.b16 %v1853
    %v2159 = vunpack.c.h.b16 %v1853
    %v2160 = vunpack.c.l.b16 %v1854
    %v2161 = vunpack.c.h.b16 %v1854
    %v2162 = vunpack.c.l.b16 %v1855
    %v2163 = vunpack.c.h.b16 %v1855
    %v2164 = vunpack.c.l.b16 %v1856
    %v2165 = vunpack.c.h.b16 %v1856
    %v2166 = vunpack.c.l.b16 %v1857
    %v2167 = vunpack.c.h.b16 %v1857
    %v2168 = vunpack.c.l.b16 %v1858
    %v2169 = vunpack.c.h.b16 %v1858
    %v2170 = vunpack.c.l.b16 %v1859
    %v2171 = vunpack.c.h.b16 %v1859
    %v2172 = vunpack.c.l.b16 %v1860
    %v2173 = vunpack.c.h.b16 %v1860
    %v2174 = vunpack.c.l.b16 %v1861
    %v2175 = vunpack.c.h.b16 %v1861
    %v2176 = vunpack.c.l.b16 %v1862
    %v2177 = vunpack.c.h.b16 %v1862
    %v2178 = vunpack.c.l.b16 %v1863
    %v2179 = vunpack.c.h.b16 %v1863
    %v2180 = vunpack.c.l.b16 %v1864
    %v2181 = vunpack.c.h.b16 %v1864
    %v2182 = vunpack.c.l.b16 %v1865
    %v2183 = vunpack.c.h.b16 %v1865
    %v2184 = vunpack.c.l.b16 %v1866
    %v2185 = vunpack.c.h.b16 %v1866
    %v2186 = vunpack.c.l.b16 %v1867
    %v2187 = vunpack.c.h.b16 %v1867
    %v2188 = vunpack.c.l.b16 %v1868
    %v2189 = vunpack.c.h.b16 %v1868
    %v2190 = vunpack.c.l.b16 %v1869
    %v2191 = vunpack.c.h.b16 %v1869
    %v2192 = vunpack.c.l.b16 %v1870
    %v2193 = vunpack.c.h.b16 %v1870
    %v2194 = vunpack.c.l.b16 %v1871
    %v2195 = vunpack.c.h.b16 %v1871
    %v2196 = vunpack.c.l.b16 %v1872
    %v2197 = vunpack.c.h.b16 %v1872
    %v2198 = vunpack.c.l.b16 %v1873
    %v2199 = vunpack.c.h.b16 %v1873
    %v2200 = vunpack.c.l.b16 %v1874
    %v2201 = vunpack.c.h.b16 %v1874
    %v2202 = vunpack.c.l.b16 %v1875
    %v2203 = vunpack.c.h.b16 %v1875
    %v2204 = vunpack.c.l.b16 %v1876
    %v2205 = vunpack.c.h.b16 %v1876
    %v2206 = vunpack.c.l.b16 %v1877
    %v2207 = vunpack.c.h.b16 %v1877
    %v2208 = vunpack.c.l.b16 %v1878
    %v2209 = vunpack.c.h.b16 %v1878
    %v2210 = vunpack.c.l.b16 %v1879
    %v2211 = vunpack.c.h.b16 %v1879
    %v2212 = vunpack.c.l.b16 %v1880
    %v2213 = vunpack.c.h.b16 %v1880
    %v2214 = vunpack.c.l.b16 %v1881
    %v2215 = vunpack.c.h.b16 %v1881
    %v2216 = vunpack.c.l.b16 %v1882
    %v2217 = vunpack.c.h.b16 %v1882
    %v2218 = vunpack.c.l.b16 %v1883
    %v2219 = vunpack.c.h.b16 %v1883
    %v2220 = vunpack.c.l.b16 %v1884
    %v2221 = vunpack.c.h.b16 %v1884
    %v2222 = vunpack.c.l.b16 %v1885
    %v2223 = vunpack.c.h.b16 %v1885
    %v2224 = vunpack.c.l.b16 %v1886
    %v2225 = vunpack.c.h.b16 %v1886
    %v2226 = vunpack.c.l.b16 %v1887
    %v2227 = vunpack.c.h.b16 %v1887
    %v2228 = vunpack.c.l.b16 %v1888
    %v2229 = vunpack.c.h.b16 %v1888
    %v2230 = vunpack.c.l.b16 %v1889
    %v2231 = vunpack.c.h.b16 %v1889
    %v2232 = vunpack.c.l.b16 %v1890
    %v2233 = vunpack.c.h.b16 %v1890
    %v2234 = vunpack.c.l.b16 %v1891
    %v2235 = vunpack.c.h.b16 %v1891
    %v2236 = vunpack.c.l.b16 %v1892
    %v2237 = vunpack.c.h.b16 %v1892
    %v2238 = vunpack.c.l.b16 %v1893
    %v2239 = vunpack.c.h.b16 %v1893
    %v2240 = vunpack.c.l.b16 %v1894
    %v2241 = vunpack.c.h.b16 %v1894
    %v2242 = vunpack.c.l.b16 %v1895
    %v2243 = vunpack.c.h.b16 %v1895
    %v2244 = vunpack.c.l.b16 %v1896
    %v2245 = vunpack.c.h.b16 %v1896
    %v2246 = vunpack.c.l.b16 %v1897
    %v2247 = vunpack.c.h.b16 %v1897
    %v2248 = vunpack.c.l.b16 %v1898
    %v2249 = vunpack.c.h.b16 %v1898
    %v2250 = vunpack.c.l.b16 %v1899
    %v2251 = vunpack.c.h.b16 %v1899
    %v2252 = vunpack.c.l.b16 %v1900
    %v2253 = vunpack.c.h.b16 %v1900
    %v2254 = vunpack.c.l.b16 %v1901
    %v2255 = vunpack.c.h.b16 %v1901
    %v2256 = vunpack.c.l.b16 %v1902
    %v2257 = vunpack.c.h.b16 %v1902
    %v2258 = vunpack.c.l.b16 %v1903
    %v2259 = vunpack.c.h.b16 %v1903
    %v2260 = vunpack.c.l.b16 %v1904
    %v2261 = vunpack.c.h.b16 %v1904
    %v2262 = vunpack.c.l.b16 %v1905
    %v2263 = vunpack.c.h.b16 %v1905
    %v2264 = vunpack.c.l.b16 %v1906
    %v2265 = vunpack.c.h.b16 %v1906
    %v2266 = vunpack.c.l.b16 %v1907
    %v2267 = vunpack.c.h.b16 %v1907
    %v2268 = vunpack.c.l.b16 %v1908
    %v2269 = vunpack.c.h.b16 %v1908
    %v2270 = vunpack.c.l.b16 %v1909
    %v2271 = vunpack.c.h.b16 %v1909
    %v2272 = vunpack.c.l.b16 %v1910
    %v2273 = vunpack.c.h.b16 %v1910
    %v2274 = vunpack.c.l.b16 %v1911
    %v2275 = vunpack.c.h.b16 %v1911
    %v2276 = vunpack.c.l.b16 %v1912
    %v2277 = vunpack.c.h.b16 %v1912
    %v2278 = vunpack.c.l.b16 %v1913
    %v2279 = vunpack.c.h.b16 %v1913
    %v2280 = vunpack.c.l.b16 %v1914
    %v2281 = vunpack.c.h.b16 %v1914
    %v2282 = vunpack.c.l.b16 %v1915
    %v2283 = vunpack.c.h.b16 %v1915
    %v2284 = vunpack.c.l.b16 %v1916
    %v2285 = vunpack.c.h.b16 %v1916
    %v2286 = vunpack.c.l.b16 %v1917
    %v2287 = vunpack.c.h.b16 %v1917
    %v2288 = vunpack.c.l.b16 %v1918
    %v2289 = vunpack.c.h.b16 %v1918
    %v2290 = vunpack.c.l.b16 %v1919
    %v2291 = vunpack.c.h.b16 %v1919
    %v2292 = vunpack.c.l.b16 %v1920
    %v2293 = vunpack.c.h.b16 %v1920
    %v2294 = vunpack.c.l.b16 %v1921
    %v2295 = vunpack.c.h.b16 %v1921
    %v2296 = vunpack.c.l.b16 %v1922
    %v2297 = vunpack.c.h.b16 %v1922
    %v2298 = vunpack.c.l.b16 %v1923
    %v2299 = vunpack.c.h.b16 %v1923
    %v2300 = vunpack.c.l.b16 %v1924
    %v2301 = vunpack.c.h.b16 %v1924
    %v2302 = vunpack.c.l.b16 %v1925
    %v2303 = vunpack.c.h.b16 %v1925
    %v2304 = vunpack.c.l.b16 %v1926
    %v2305 = vunpack.c.h.b16 %v1926
    %v2306 = vunpack.c.l.b16 %v1927
    %v2307 = vunpack.c.h.b16 %v1927
    %v2308 = vunpack.c.l.b16 %v1928
    %v2309 = vunpack.c.h.b16 %v1928
    %v2310 = vunpack.c.l.b16 %v1929
    %v2311 = vunpack.c.h.b16 %v1929
    %v2312 = vunpack.c.l.b16 %v1930
    %v2313 = vunpack.c.h.b16 %v1930
    %v2314 = vunpack.c.l.b16 %v1931
    %v2315 = vunpack.c.h.b16 %v1931
    %v2316 = vunpack.c.l.b16 %v1932
    %v2317 = vunpack.c.h.b16 %v1932
    %v2318 = vunpack.c.l.b16 %v1933
    %v2319 = vunpack.c.h.b16 %v1933
    %v2320 = vunpack.c.l.b16 %v1934
    %v2321 = vunpack.c.h.b16 %v1934
    %v2322 = vunpack.c.l.b16 %v1935
    %v2323 = vunpack.c.h.b16 %v1935
    %v2324 = vunpack.c.l.b16 %v1936
    %v2325 = vunpack.c.h.b16 %v1936
    %v2326 = vunpack.c.l.b16 %v1937
    %v2327 = vunpack.c.h.b16 %v1937
    %v2328 = vunpack.c.l.b16 %v1938
    %v2329 = vunpack.c.h.b16 %v1938
    %v2330 = vunpack.c.l.b16 %v1939
    %v2331 = vunpack.c.h.b16 %v1939
    %v2332 = vunpack.c.l.b16 %v1940
    %v2333 = vunpack.c.h.b16 %v1940
    %v2334 = vunpack.c.l.b16 %v1941
    %v2335 = vunpack.c.h.b16 %v1941
    %v2336 = vunpack.c.l.b16 %v1942
    %v2337 = vunpack.c.h.b16 %v1942
    %v2338 = vunpack.c.l.b16 %v1943
    %v2339 = vunpack.c.h.b16 %v1943
    %v2340 = vpack.c.b16 %v2086, %v2084
    %v2341 = vpack.c.b16 %v2087, %v2085
    %v2342 = vpack.c.b16 %v2090, %v2088
    %v2343 = vpack.c.b16 %v2091, %v2089
    %v2344 = vpack.c.b16 %v2094, %v2092
    %v2345 = vpack.c.b16 %v2095, %v2093
    %v2346 = vpack.c.b16 %v2098, %v2096
    %v2347 = vpack.c.b16 %v2099, %v2097
    %v2348 = vpack.c.b16 %v2102, %v2100
    %v2349 = vpack.c.b16 %v2103, %v2101
    %v2350 = vpack.c.b16 %v2106, %v2104
    %v2351 = vpack.c.b16 %v2107, %v2105
    %v2352 = vpack.c.b16 %v2110, %v2108
    %v2353 = vpack.c.b16 %v2111, %v2109
    %v2354 = vpack.c.b16 %v2114, %v2112
    %v2355 = vpack.c.b16 %v2115, %v2113
    %v2356 = vpack.c.b16 %v2118, %v2116
    %v2357 = vpack.c.b16 %v2119, %v2117
    %v2358 = vpack.c.b16 %v2122, %v2120
    %v2359 = vpack.c.b16 %v2123, %v2121
    %v2360 = vpack.c.b16 %v2126, %v2124
    %v2361 = vpack.c.b16 %v2127, %v2125
    %v2362 = vpack.c.b16 %v2130, %v2128
    %v2363 = vpack.c.b16 %v2131, %v2129
    %v2364 = vpack.c.b16 %v2134, %v2132
    %v2365 = vpack.c.b16 %v2135, %v2133
    %v2366 = vpack.c.b16 %v2138, %v2136
    %v2367 = vpack.c.b16 %v2139, %v2137
    %v2368 = vpack.c.b16 %v2142, %v2140
    %v2369 = vpack.c.b16 %v2143, %v2141
    %v2370 = vpack.c.b16 %v2146, %v2144
    %v2371 = vpack.c.b16 %v2147, %v2145
    %v2372 = vpack.c.b16 %v2150, %v2148
    %v2373 = vpack.c.b16 %v2151, %v2149
    %v2374 = vpack.c.b16 %v2154, %v2152
    %v2375 = vpack.c.b16 %v2155, %v2153
    %v2376 = vpack.c.b16 %v2158, %v2156
    %v2377 = vpack.c.b16 %v2159, %v2157
    %v2378 = vpack.c.b16 %v2162, %v2160
    %v2379 = vpack.c.b16 %v2163, %v2161
    %v2380 = vpack.c.b16 %v2166, %v2164
    %v2381 = vpack.c.b16 %v2167, %v2165
    %v2382 = vpack.c.b16 %v2170, %v2168
    %v2383 = vpack.c.b16 %v2171, %v2169
    %v2384 = vpack.c.b16 %v2174, %v2172
    %v2385 = vpack.c.b16 %v2175, %v2173
    %v2386 = vpack.c.b16 %v2178, %v2176
    %v2387 = vpack.c.b16 %v2179, %v2177
    %v2388 = vpack.c.b16 %v2182, %v2180
    %v2389 = vpack.c.b16 %v2183, %v2181
    %v2390 = vpack.c.b16 %v2186, %v2184
    %v2391 = vpack.c.b16 %v2187, %v2185
    %v2392 = vpack.c.b16 %v2190, %v2188
    %v2393 = vpack.c.b16 %v2191, %v2189
    %v2394 = vpack.c.b16 %v2194, %v2192
    %v2395 = vpack.c.b16 %v2195, %v2193
    %v2396 = vpack.c.b16 %v2198, %v2196
    %v2397 = vpack.c.b16 %v2199, %v2197
    %v2398 = vpack.c.b16 %v2202, %v2200
    %v2399 = vpack.c.b16 %v2203, %v2201
    %v2400 = vpack.c.b16 %v2206, %v2204
    %v2401 = vpack.c.b16 %v2207, %v2205
    %v2402 = vpack.c.b16 %v2210, %v2208
    %v2403 = vpack.c.b16 %v2211, %v2209
    %v2404 = vpack.c.b16 %v2214, %v2212
    %v2405 = vpack.c.b16 %v2215, %v2213
    %v2406 = vpack.c.b16 %v2218, %v2216
    %v2407 = vpack.c.b16 %v2219, %v2217
    %v2408 = vpack.c.b16 %v2222, %v2220
    %v2409 = vpack.c.b16 %v2223, %v2221
    %v2410 = vpack.c.b16 %v2226, %v2224
    %v2411 = vpack.c.b16 %v2227, %v2225
    %v2412 = vpack.c.b16 %v2230, %v2228
    %v2413 = vpack.c.b16 %v2231, %v2229
    %v2414 = vpack.c.b16 %v2234, %v2232
    %v2415 = vpack.c.b16 %v2235, %v2233
    %v2416 = vpack.c.b16 %v2238, %v2236
    %v2417 = vpack.c.b16 %v2239, %v2237
    %v2418 = vpack.c.b16 %v2242, %v2240
    %v2419 = vpack.c.b16 %v2243, %v2241
    %v2420 = vpack.c.b16 %v2246, %v2244
    %v2421 = vpack.c.b16 %v2247, %v2245
    %v2422 = vpack.c.b16 %v2250, %v2248
    %v2423 = vpack.c.b16 %v2251, %v2249
    %v2424 = vpack.c.b16 %v2254, %v2252
    %v2425 = vpack.c.b16 %v2255, %v2253
    %v2426 = vpack.c.b16 %v2258, %v2256
    %v2427 = vpack.c.b16 %v2259, %v2257
    %v2428 = vpack.c.b16 %v2262, %v2260
    %v2429 = vpack.c.b16 %v2263, %v2261
    %v2430 = vpack.c.b16 %v2266, %v2264
    %v2431 = vpack.c.b16 %v2267, %v2265
    %v2432 = vpack.c.b16 %v2270, %v2268
    %v2433 = vpack.c.b16 %v2271, %v2269
    %v2434 = vpack.c.b16 %v2274, %v2272
    %v2435 = vpack.c.b16 %v2275, %v2273
    %v2436 = vpack.c.b16 %v2278, %v2276
    %v2437 = vpack.c.b16 %v2279, %v2277
    %v2438 = vpack.c.b16 %v2282, %v2280
    %v2439 = vpack.c.b16 %v2283, %v2281
    %v2440 = vpack.c.b16 %v2286, %v2284
    %v2441 = vpack.c.b16 %v2287, %v2285
    %v2442 = vpack.c.b16 %v2290, %v2288
    %v2443 = vpack.c.b16 %v2291, %v2289
    %v2444 = vpack.c.b16 %v2294, %v2292
    %v2445 = vpack.c.b16 %v2295, %v2293
    %v2446 = vpack.c.b16 %v2298, %v2296
    %v2447 = vpack.c.b16 %v2299, %v2297
    %v2448 = vpack.c.b16 %v2302, %v2300
    %v2449 = vpack.c.b16 %v2303, %v2301
    %v2450 = vpack.c.b16 %v2306, %v2304
    %v2451 = vpack.c.b16 %v2307, %v2305
    %v2452 = vpack.c.b16 %v2310, %v2308
    %v2453 = vpack.c.b16 %v2311, %v2309
    %v2454 = vpack.c.b16 %v2314, %v2312
    %v2455 = vpack.c.b16 %v2315, %v2313
    %v2456 = vpack.c.b16 %v2318, %v2316
    %v2457 = vpack.c.b16 %v2319, %v2317
    %v2458 = vpack.c.b16 %v2322, %v2320
    %v2459 = vpack.c.b16 %v2323, %v2321
    %v2460 = vpack.c.b16 %v2326, %v2324
    %v2461 = vpack.c.b16 %v2327, %v2325
    %v2462 = vpack.c.b16 %v2330, %v2328
    %v2463 = vpack.c.b16 %v2331, %v2329
    %v2464 = vpack.c.b16 %v2334, %v2332
    %v2465 = vpack.c.b16 %v2335, %v2333
    %v2466 = vpack.c.b16 %v2338, %v2336
    %v2467 = vpack.c.b16 %v2339, %v2337
    %2596 = vmatprep.subr.bf16.mxu0 %v2341
    %2597 = vmatpush1.bf16.msra.mxu0 %v2340
    %2598 = vmatprep.subr.bf16.mxu0 %v2343
    %2599 = vmatpush1.bf16.msra.mxu0 %v2342
    %2600 = vmatprep.subr.bf16.mxu0 %v2345
    %2601 = vmatpush1.bf16.msra.mxu0 %v2344
    %2602 = vmatprep.subr.bf16.mxu0 %v2347
    %2603 = vmatpush1.bf16.msra.mxu0 %v2346
    %2604 = vmatprep.subr.bf16.mxu0 %v2349
    %2605 = vmatpush1.bf16.msra.mxu0 %v2348
    %2606 = vmatprep.subr.bf16.mxu0 %v2351
    %2607 = vmatpush1.bf16.msra.mxu0 %v2350
    %2608 = vmatprep.subr.bf16.mxu0 %v2353
    %2609 = vmatpush1.bf16.msra.mxu0 %v2352
    %2610 = vmatprep.subr.bf16.mxu0 %v2355
    %2611 = vmatpush1.bf16.msra.mxu0 %v2354
    %2612 = vmatprep.subr.bf16.mxu0 %v2357
    %2613 = vmatpush1.bf16.msra.mxu0 %v2356
    %2614 = vmatprep.subr.bf16.mxu0 %v2359
    %2615 = vmatpush1.bf16.msra.mxu0 %v2358
    %2616 = vmatprep.subr.bf16.mxu0 %v2361
    %2617 = vmatpush1.bf16.msra.mxu0 %v2360
    %2618 = vmatprep.subr.bf16.mxu0 %v2363
    %2619 = vmatpush1.bf16.msra.mxu0 %v2362
    %2620 = vmatprep.subr.bf16.mxu0 %v2365
    %2621 = vmatpush1.bf16.msra.mxu0 %v2364
    %2622 = vmatprep.subr.bf16.mxu0 %v2367
    %2623 = vmatpush1.bf16.msra.mxu0 %v2366
    %2624 = vmatprep.subr.bf16.mxu0 %v2369
    %2625 = vmatpush1.bf16.msra.mxu0 %v2368
    %2626 = vmatprep.subr.bf16.mxu0 %v2371
    %2627 = vmatpush1.bf16.msra.mxu0 %v2370
    %2628 = vmatprep.mubr.bf16.mxu0 %v1809
    %2629 = vmatmul.mubr.bf16.gmra.mrb[0].mxu0 %v1808
    %v2630 = vpop.f32.mrb[0].mxu0
    %v2631 = vadd.f32 %v1949, %v2630
    %v2632 = vpop.f32.mrb[0].mxu0
    %v2633 = vadd.f32 %v1953, %v2632
    %v2634 = vpop.f32.mrb[0].mxu0
    %v2635 = vpop.f32.mrb[0].mxu0
    %2636 = vdwg.mxu0
    %2637 = vmatprep.subr.bf16.mxu0 %v2373
    %2638 = vmatpush1.bf16.msra.mxu0 %v2372
    %2639 = vmatprep.subr.bf16.mxu0 %v2375
    %2640 = vmatpush1.bf16.msra.mxu0 %v2374
    %2641 = vmatprep.subr.bf16.mxu0 %v2377
    %2642 = vmatpush1.bf16.msra.mxu0 %v2376
    %2643 = vmatprep.subr.bf16.mxu0 %v2379
    %2644 = vmatpush1.bf16.msra.mxu0 %v2378
    %2645 = vmatprep.subr.bf16.mxu0 %v2381
    %2646 = vmatpush1.bf16.msra.mxu0 %v2380
    %2647 = vmatprep.subr.bf16.mxu0 %v2383
    %2648 = vmatpush1.bf16.msra.mxu0 %v2382
    %2649 = vmatprep.subr.bf16.mxu0 %v2385
    %2650 = vmatpush1.bf16.msra.mxu0 %v2384
    %2651 = vmatprep.subr.bf16.mxu0 %v2387
    %2652 = vmatpush1.bf16.msra.mxu0 %v2386
    %2653 = vmatprep.subr.bf16.mxu0 %v2389
    %2654 = vmatpush1.bf16.msra.mxu0 %v2388
    %2655 = vmatprep.subr.bf16.mxu0 %v2391
    %2656 = vmatpush1.bf16.msra.mxu0 %v2390
    %2657 = vmatprep.subr.bf16.mxu0 %v2393
    %2658 = vmatpush1.bf16.msra.mxu0 %v2392
    %2659 = vmatprep.subr.bf16.mxu0 %v2395
    %2660 = vmatpush1.bf16.msra.mxu0 %v2394
    %2661 = vmatprep.subr.bf16.mxu0 %v2397
    %2662 = vmatpush1.bf16.msra.mxu0 %v2396
    %2663 = vmatprep.subr.bf16.mxu0 %v2399
    %2664 = vmatpush1.bf16.msra.mxu0 %v2398
    %2665 = vmatprep.subr.bf16.mxu0 %v2401
    %2666 = vmatpush1.bf16.msra.mxu0 %v2400
    %2667 = vmatprep.subr.bf16.mxu0 %v2403
    %2668 = vmatpush1.bf16.msra.mxu0 %v2402
    %2669 = vmatprep.mubr.bf16.mxu0 %v1811
    %2670 = vmatmul.mubr.bf16.gmra.mrb[0].mxu0 %v1810
    %v2671 = vpop.f32.mrb[0].mxu0
    %v2672 = vadd.f32 %v2631, %v2671
    %v2673 = vpop.f32.mrb[0].mxu0
    %v2674 = vadd.f32 %v2633, %v2673
    %v2675 = vpop.f32.mrb[0].mxu0
    %v2676 = vpop.f32.mrb[0].mxu0
    %2677 = vdwg.mxu0
    %2678 = vmatprep.subr.bf16.mxu0 %v2405
    %2679 = vmatpush1.bf16.msra.mxu0 %v2404
    %2680 = vmatprep.subr.bf16.mxu0 %v2407
    %2681 = vmatpush1.bf16.msra.mxu0 %v2406
    %2682 = vmatprep.subr.bf16.mxu0 %v2409
    %2683 = vmatpush1.bf16.msra.mxu0 %v2408
    %2684 = vmatprep.subr.bf16.mxu0 %v2411
    %2685 = vmatpush1.bf16.msra.mxu0 %v2410
    %2686 = vmatprep.subr.bf16.mxu0 %v2413
    %2687 = vmatpush1.bf16.msra.mxu0 %v2412
    %2688 = vmatprep.subr.bf16.mxu0 %v2415
    %2689 = vmatpush1.bf16.msra.mxu0 %v2414
    %2690 = vmatprep.subr.bf16.mxu0 %v2417
    %2691 = vmatpush1.bf16.msra.mxu0 %v2416
    %2692 = vmatprep.subr.bf16.mxu0 %v2419
    %2693 = vmatpush1.bf16.msra.mxu0 %v2418
    %2694 = vmatprep.subr.bf16.mxu0 %v2421
    %2695 = vmatpush1.bf16.msra.mxu0 %v2420
    %2696 = vmatprep.subr.bf16.mxu0 %v2423
    %2697 = vmatpush1.bf16.msra.mxu0 %v2422
    %2698 = vmatprep.subr.bf16.mxu0 %v2425
    %2699 = vmatpush1.bf16.msra.mxu0 %v2424
    %2700 = vmatprep.subr.bf16.mxu0 %v2427
    %2701 = vmatpush1.bf16.msra.mxu0 %v2426
    %2702 = vmatprep.subr.bf16.mxu0 %v2429
    %2703 = vmatpush1.bf16.msra.mxu0 %v2428
    %2704 = vmatprep.subr.bf16.mxu0 %v2431
    %2705 = vmatpush1.bf16.msra.mxu0 %v2430
    %2706 = vmatprep.subr.bf16.mxu0 %v2433
    %2707 = vmatpush1.bf16.msra.mxu0 %v2432
    %2708 = vmatprep.subr.bf16.mxu0 %v2435
    %2709 = vmatpush1.bf16.msra.mxu0 %v2434
    %2710 = vmatprep.mubr.bf16.mxu0 %v1813
    %2711 = vmatmul.mubr.bf16.gmra.mrb[0].mxu0 %v1812
    %v2712 = vpop.f32.mrb[0].mxu0
    %v2713 = vadd.f32 %v2672, %v2712
    %v2714 = vpop.f32.mrb[0].mxu0
    %v2715 = vadd.f32 %v2674, %v2714
    %v2716 = vpop.f32.mrb[0].mxu0
    %v2717 = vpop.f32.mrb[0].mxu0
    %2718 = vdwg.mxu0
    %2719 = vmatprep.subr.bf16.mxu0 %v2437
    %2720 = vmatpush1.bf16.msra.mxu0 %v2436
    %2721 = vmatprep.subr.bf16.mxu0 %v2439
    %2722 = vmatpush1.bf16.msra.mxu0 %v2438
    %2723 = vmatprep.subr.bf16.mxu0 %v2441
    %2724 = vmatpush1.bf16.msra.mxu0 %v2440
    %2725 = vmatprep.subr.bf16.mxu0 %v2443
    %2726 = vmatpush1.bf16.msra.mxu0 %v2442
    %2727 = vmatprep.subr.bf16.mxu0 %v2445
    %2728 = vmatpush1.bf16.msra.mxu0 %v2444
    %2729 = vmatprep.subr.bf16.mxu0 %v2447
    %2730 = vmatpush1.bf16.msra.mxu0 %v2446
    %2731 = vmatprep.subr.bf16.mxu0 %v2449
    %2732 = vmatpush1.bf16.msra.mxu0 %v2448
    %2733 = vmatprep.subr.bf16.mxu0 %v2451
    %2734 = vmatpush1.bf16.msra.mxu0 %v2450
    %2735 = vmatprep.subr.bf16.mxu0 %v2453
    %2736 = vmatpush1.bf16.msra.mxu0 %v2452
    %2737 = vmatprep.subr.bf16.mxu0 %v2455
    %2738 = vmatpush1.bf16.msra.mxu0 %v2454
    %2739 = vmatprep.subr.bf16.mxu0 %v2457
    %2740 = vmatpush1.bf16.msra.mxu0 %v2456
    %2741 = vmatprep.subr.bf16.mxu0 %v2459
    %2742 = vmatpush1.bf16.msra.mxu0 %v2458
    %2743 = vmatprep.subr.bf16.mxu0 %v2461
    %2744 = vmatpush1.bf16.msra.mxu0 %v2460
    %2745 = vmatprep.subr.bf16.mxu0 %v2463
    %2746 = vmatpush1.bf16.msra.mxu0 %v2462
    %2747 = vmatprep.subr.bf16.mxu0 %v2465
    %2748 = vmatpush1.bf16.msra.mxu0 %v2464
    %2749 = vmatprep.subr.bf16.mxu0 %v2467
    %2750 = vmatpush1.bf16.msra.mxu0 %v2466
    %2751 = vmatprep.mubr.bf16.mxu0 %v1815
    %2752 = vmatmul.mubr.bf16.gmra.mrb[0].mxu0 %v1814
    %v2753 = vpop.f32.mrb[0].mxu0
    %v2754 = vadd.f32 %v2713, %v2753
    %v2755 = vpop.f32.mrb[0].mxu0
    %v2756 = vadd.f32 %v2715, %v2755
    %v2757 = vpop.f32.mrb[0].mxu0
    %v2758 = vpop.f32.mrb[0].mxu0
    %2759 = vdwg.mxu0
    %v2760 = vadd.f32 %v822, %v2754
    %v2761 = vadd.f32 %v823, %v2756
    %v2762 = vld [vmem:[#allocation20] sm:$0x3]
    %v2763 = vld [vmem:[#allocation22] sm:$0x3]
    %v2764 = vadd.f32 %v2760, %v2761
    %2765 = vadd.xlane.f32.xlu0 %v2764
    %v2766 = vpop.xlane.xlu0 %2765
    %v2767 = vmul.f32 %v2766, %v784
    %v2768 = vsub.f32 %v2760, %v2767
    %v2769 = vsub.f32 %v2761, %v2767
    %v2770 = vmul.f32 %v2768, %v2768
    %v2771 = vmul.f32 %v2769, %v2769
    %v2772 = vadd.f32 %v2770, %v2771
    %2773 = vadd.xlane.f32.xlu0 %v2772
    %v2774 = vpop.xlane.xlu0 %2773
    %v2775 = vmul.f32 %v2774, %v784
    %v2776 = vadd.f32 %v2775, 1e-05
    %v2777 = vrsqrt.pop %v2776
    %v2778 = vmul.f32 %v2768, %v2777
    %v2779 = vmul.f32 %v2769, %v2777
    %v2781 = vlaneseq
    %v2782 = vshrl.u32 %v2781, 7
    %v2783 = vsub.s32 0, %v2782
    %v2784 = vrot.slane %v2762, %v2783
    %v2785 = vlaneseq
    %v2786 = vshrl.u32 %v2785, 7
    %v2787 = vsub.s32 1, %v2786
    %v2788 = vrot.slane %v2762, %v2787
    %v2791 = vmul.f32 %v2778, %v2784
    %v2792 = vmul.f32 %v2779, %v2788
    %v2794 = vlaneseq
    %v2795 = vshrl.u32 %v2794, 7
    %v2796 = vsub.s32 0, %v2795
    %v2797 = vrot.slane %v2763, %v2796
    %v2798 = vlaneseq
    %v2799 = vshrl.u32 %v2798, 7
    %v2800 = vsub.s32 1, %v2799
    %v2801 = vrot.slane %v2763, %v2800
    %v2804 = vadd.f32 %v2791, %v2797
    %v2805 = vadd.f32 %v2792, %v2801
    %v2806 = vpack.c.bf16 %v2804, %v2804
    %v2807 = vpack.c.bf16 %v2805, %v2805
    %s2808 = scalar_lea.vmem [#allocation5], 256
    %v2809 = vld [vmem:[%s2808] sm:$0xff]
    %v2810 = vld [vmem:[%s2808 + $0x8] sm:$0xff]
    %v2811 = vld [vmem:[%s2808 + $0x10] sm:$0xff]
    %v2812 = vld [vmem:[%s2808 + $0x18] sm:$0xff]
    %v2813 = vld [vmem:[%s2808 + $0x20] sm:$0xff]
    %v2814 = vld [vmem:[%s2808 + $0x28] sm:$0xff]
    %v2815 = vld [vmem:[%s2808 + $0x30] sm:$0xff]
    %v2816 = vld [vmem:[%s2808 + $0x38] sm:$0xff]
    %v2817 = vld [vmem:[%s2808 + $0x40] sm:$0xff]
    %v2818 = vld [vmem:[%s2808 + $0x48] sm:$0xff]
    %v2819 = vld [vmem:[%s2808 + $0x50] sm:$0xff]
    %v2820 = vld [vmem:[%s2808 + $0x58] sm:$0xff]
    %v2821 = vld [vmem:[%s2808 + $0x60] sm:$0xff]
    %v2822 = vld [vmem:[%s2808 + $0x68] sm:$0xff]
    %v2823 = vld [vmem:[%s2808 + $0x70] sm:$0xff]
    %v2824 = vld [vmem:[%s2808 + $0x78] sm:$0xff]
    %v2825 = vld [vmem:[%s2808 + $0x80] sm:$0xff]
    %v2826 = vld [vmem:[%s2808 + $0x88] sm:$0xff]
    %v2827 = vld [vmem:[%s2808 + $0x90] sm:$0xff]
    %v2828 = vld [vmem:[%s2808 + $0x98] sm:$0xff]
    %v2829 = vld [vmem:[%s2808 + $0xa0] sm:$0xff]
    %v2830 = vld [vmem:[%s2808 + $0xa8] sm:$0xff]
    %v2831 = vld [vmem:[%s2808 + $0xb0] sm:$0xff]
    %v2832 = vld [vmem:[%s2808 + $0xb8] sm:$0xff]
    %v2833 = vld [vmem:[%s2808 + $0xc0] sm:$0xff]
    %v2834 = vld [vmem:[%s2808 + $0xc8] sm:$0xff]
    %v2835 = vld [vmem:[%s2808 + $0xd0] sm:$0xff]
    %v2836 = vld [vmem:[%s2808 + $0xd8] sm:$0xff]
    %v2837 = vld [vmem:[%s2808 + $0xe0] sm:$0xff]
    %v2838 = vld [vmem:[%s2808 + $0xe8] sm:$0xff]
    %v2839 = vld [vmem:[%s2808 + $0xf0] sm:$0xff]
    %v2840 = vld [vmem:[%s2808 + $0xf8] sm:$0xff]
    %s2841 = scalar_lea.vmem [#allocation7], 2
    %v2842 = vld [vmem:[%s2841] sm:$0x3]
    %v2844 = vlaneseq
    %v2845 = vshrl.u32 %v2844, 7
    %v2846 = vsub.s32 0, %v2845
    %v2847 = vrot.slane %v2842, %v2846
    %v2848 = vlaneseq
    %v2849 = vshrl.u32 %v2848, 7
    %v2850 = vsub.s32 1, %v2849
    %v2851 = vrot.slane %v2842, %v2850
    %v2886 = vunpack.c.l.b16 %v2809
    %v2887 = vunpack.c.h.b16 %v2809
    %v2888 = vunpack.c.l.b16 %v2810
    %v2889 = vunpack.c.h.b16 %v2810
    %v2890 = vunpack.c.l.b16 %v2811
    %v2891 = vunpack.c.h.b16 %v2811
    %v2892 = vunpack.c.l.b16 %v2812
    %v2893 = vunpack.c.h.b16 %v2812
    %v2894 = vunpack.c.l.b16 %v2813
    %v2895 = vunpack.c.h.b16 %v2813
    %v2896 = vunpack.c.l.b16 %v2814
    %v2897 = vunpack.c.h.b16 %v2814
    %v2898 = vunpack.c.l.b16 %v2815
    %v2899 = vunpack.c.h.b16 %v2815
    %v2900 = vunpack.c.l.b16 %v2816
    %v2901 = vunpack.c.h.b16 %v2816
    %v2902 = vunpack.c.l.b16 %v2817
    %v2903 = vunpack.c.h.b16 %v2817
    %v2904 = vunpack.c.l.b16 %v2818
    %v2905 = vunpack.c.h.b16 %v2818
    %v2906 = vunpack.c.l.b16 %v2819
    %v2907 = vunpack.c.h.b16 %v2819
    %v2908 = vunpack.c.l.b16 %v2820
    %v2909 = vunpack.c.h.b16 %v2820
    %v2910 = vunpack.c.l.b16 %v2821
    %v2911 = vunpack.c.h.b16 %v2821
    %v2912 = vunpack.c.l.b16 %v2822
    %v2913 = vunpack.c.h.b16 %v2822
    %v2914 = vunpack.c.l.b16 %v2823
    %v2915 = vunpack.c.h.b16 %v2823
    %v2916 = vunpack.c.l.b16 %v2824
    %v2917 = vunpack.c.h.b16 %v2824
    %v2918 = vunpack.c.l.b16 %v2825
    %v2919 = vunpack.c.h.b16 %v2825
    %v2920 = vunpack.c.l.b16 %v2826
    %v2921 = vunpack.c.h.b16 %v2826
    %v2922 = vunpack.c.l.b16 %v2827
    %v2923 = vunpack.c.h.b16 %v2827
    %v2924 = vunpack.c.l.b16 %v2828
    %v2925 = vunpack.c.h.b16 %v2828
    %v2926 = vunpack.c.l.b16 %v2829
    %v2927 = vunpack.c.h.b16 %v2829
    %v2928 = vunpack.c.l.b16 %v2830
    %v2929 = vunpack.c.h.b16 %v2830
    %v2930 = vunpack.c.l.b16 %v2831
    %v2931 = vunpack.c.h.b16 %v2831
    %v2932 = vunpack.c.l.b16 %v2832
    %v2933 = vunpack.c.h.b16 %v2832
    %v2934 = vunpack.c.l.b16 %v2833
    %v2935 = vunpack.c.h.b16 %v2833
    %v2936 = vunpack.c.l.b16 %v2834
    %v2937 = vunpack.c.h.b16 %v2834
    %v2938 = vunpack.c.l.b16 %v2835
    %v2939 = vunpack.c.h.b16 %v2835
    %v2940 = vunpack.c.l.b16 %v2836
    %v2941 = vunpack.c.h.b16 %v2836
    %v2942 = vunpack.c.l.b16 %v2837
    %v2943 = vunpack.c.h.b16 %v2837
    %v2944 = vunpack.c.l.b16 %v2838
    %v2945 = vunpack.c.h.b16 %v2838
    %v2946 = vunpack.c.l.b16 %v2839
    %v2947 = vunpack.c.h.b16 %v2839
    %v2948 = vunpack.c.l.b16 %v2840
    %v2949 = vunpack.c.h.b16 %v2840
    %v2950 = vpack.c.b16 %v2888, %v2886
    %v2951 = vpack.c.b16 %v2889, %v2887
    %v2952 = vpack.c.b16 %v2892, %v2890
    %v2953 = vpack.c.b16 %v2893, %v2891
    %v2954 = vpack.c.b16 %v2896, %v2894
    %v2955 = vpack.c.b16 %v2897, %v2895
    %v2956 = vpack.c.b16 %v2900, %v2898
    %v2957 = vpack.c.b16 %v2901, %v2899
    %v2958 = vpack.c.b16 %v2904, %v2902
    %v2959 = vpack.c.b16 %v2905, %v2903
    %v2960 = vpack.c.b16 %v2908, %v2906
    %v2961 = vpack.c.b16 %v2909, %v2907
    %v2962 = vpack.c.b16 %v2912, %v2910
    %v2963 = vpack.c.b16 %v2913, %v2911
    %v2964 = vpack.c.b16 %v2916, %v2914
    %v2965 = vpack.c.b16 %v2917, %v2915
    %v2966 = vpack.c.b16 %v2920, %v2918
    %v2967 = vpack.c.b16 %v2921, %v2919
    %v2968 = vpack.c.b16 %v2924, %v2922
    %v2969 = vpack.c.b16 %v2925, %v2923
    %v2970 = vpack.c.b16 %v2928, %v2926
    %v2971 = vpack.c.b16 %v2929, %v2927
    %v2972 = vpack.c.b16 %v2932, %v2930
    %v2973 = vpack.c.b16 %v2933, %v2931
    %v2974 = vpack.c.b16 %v2936, %v2934
    %v2975 = vpack.c.b16 %v2937, %v2935
    %v2976 = vpack.c.b16 %v2940, %v2938
    %v2977 = vpack.c.b16 %v2941, %v2939
    %v2978 = vpack.c.b16 %v2944, %v2942
    %v2979 = vpack.c.b16 %v2945, %v2943
    %v2980 = vpack.c.b16 %v2948, %v2946
    %v2981 = vpack.c.b16 %v2949, %v2947
    %3014 = vmatprep.subr.bf16.mxu0 %v2951
    %3015 = vmatpush1.bf16.msra.mxu0 %v2950
    %3016 = vmatprep.subr.bf16.mxu0 %v2953
    %3017 = vmatpush1.bf16.msra.mxu0 %v2952
    %3018 = vmatprep.subr.bf16.mxu0 %v2955
    %3019 = vmatpush1.bf16.msra.mxu0 %v2954
    %3020 = vmatprep.subr.bf16.mxu0 %v2957
    %3021 = vmatpush1.bf16.msra.mxu0 %v2956
    %3022 = vmatprep.subr.bf16.mxu0 %v2959
    %3023 = vmatpush1.bf16.msra.mxu0 %v2958
    %3024 = vmatprep.subr.bf16.mxu0 %v2961
    %3025 = vmatpush1.bf16.msra.mxu0 %v2960
    %3026 = vmatprep.subr.bf16.mxu0 %v2963
    %3027 = vmatpush1.bf16.msra.mxu0 %v2962
    %3028 = vmatprep.subr.bf16.mxu0 %v2965
    %3029 = vmatpush1.bf16.msra.mxu0 %v2964
    %3030 = vmatprep.subr.bf16.mxu0 %v2967
    %3031 = vmatpush1.bf16.msra.mxu0 %v2966
    %3032 = vmatprep.subr.bf16.mxu0 %v2969
    %3033 = vmatpush1.bf16.msra.mxu0 %v2968
    %3034 = vmatprep.subr.bf16.mxu0 %v2971
    %3035 = vmatpush1.bf16.msra.mxu0 %v2970
    %3036 = vmatprep.subr.bf16.mxu0 %v2973
    %3037 = vmatpush1.bf16.msra.mxu0 %v2972
    %3038 = vmatprep.subr.bf16.mxu0 %v2975
    %3039 = vmatpush1.bf16.msra.mxu0 %v2974
    %3040 = vmatprep.subr.bf16.mxu0 %v2977
    %3041 = vmatpush1.bf16.msra.mxu0 %v2976
    %3042 = vmatprep.subr.bf16.mxu0 %v2979
    %3043 = vmatpush1.bf16.msra.mxu0 %v2978
    %3044 = vmatprep.subr.bf16.mxu0 %v2981
    %3045 = vmatpush1.bf16.msra.mxu0 %v2980
    %3046 = vmatprep.mubr.bf16.mxu0 %v2807
    %3047 = vmatmul.mubr.bf16.gmra.mrb[0].mxu0 %v2806
    %v3048 = vpop.f32.mrb[0].mxu0
    %v3049 = vadd.f32 %v2847, %v3048
    %v3050 = vpop.f32.mrb[0].mxu0
    %v3051 = vadd.f32 %v2851, %v3050
    %v3052 = vpop.f32.mrb[0].mxu0
    %v3053 = vpop.f32.mrb[0].mxu0
    %3054 = vdwg.mxu0
    %v3055 = vpack.c.bf16 %v3049, %v3049
    %v3056 = vpack.c.bf16 %v3051, %v3051
    %s3057 = scalar_lea.vmem [#allocation8], 256
    %v3058 = vld [vmem:[%s3057] sm:$0xff]
    %v3059 = vld [vmem:[%s3057 + $0x8] sm:$0xff]
    %v3060 = vld [vmem:[%s3057 + $0x10] sm:$0xff]
    %v3061 = vld [vmem:[%s3057 + $0x18] sm:$0xff]
    %v3062 = vld [vmem:[%s3057 + $0x20] sm:$0xff]
    %v3063 = vld [vmem:[%s3057 + $0x28] sm:$0xff]
    %v3064 = vld [vmem:[%s3057 + $0x30] sm:$0xff]
    %v3065 = vld [vmem:[%s3057 + $0x38] sm:$0xff]
    %v3066 = vld [vmem:[%s3057 + $0x40] sm:$0xff]
    %v3067 = vld [vmem:[%s3057 + $0x48] sm:$0xff]
    %v3068 = vld [vmem:[%s3057 + $0x50] sm:$0xff]
    %v3069 = vld [vmem:[%s3057 + $0x58] sm:$0xff]
    %v3070 = vld [vmem:[%s3057 + $0x60] sm:$0xff]
    %v3071 = vld [vmem:[%s3057 + $0x68] sm:$0xff]
    %v3072 = vld [vmem:[%s3057 + $0x70] sm:$0xff]
    %v3073 = vld [vmem:[%s3057 + $0x78] sm:$0xff]
    %v3074 = vld [vmem:[%s3057 + $0x80] sm:$0xff]
    %v3075 = vld [vmem:[%s3057 + $0x88] sm:$0xff]
    %v3076 = vld [vmem:[%s3057 + $0x90] sm:$0xff]
    %v3077 = vld [vmem:[%s3057 + $0x98] sm:$0xff]
    %v3078 = vld [vmem:[%s3057 + $0xa0] sm:$0xff]
    %v3079 = vld [vmem:[%s3057 + $0xa8] sm:$0xff]
    %v3080 = vld [vmem:[%s3057 + $0xb0] sm:$0xff]
    %v3081 = vld [vmem:[%s3057 + $0xb8] sm:$0xff]
    %v3082 = vld [vmem:[%s3057 + $0xc0] sm:$0xff]
    %v3083 = vld [vmem:[%s3057 + $0xc8] sm:$0xff]
    %v3084 = vld [vmem:[%s3057 + $0xd0] sm:$0xff]
    %v3085 = vld [vmem:[%s3057 + $0xd8] sm:$0xff]
    %v3086 = vld [vmem:[%s3057 + $0xe0] sm:$0xff]
    %v3087 = vld [vmem:[%s3057 + $0xe8] sm:$0xff]
    %v3088 = vld [vmem:[%s3057 + $0xf0] sm:$0xff]
    %v3089 = vld [vmem:[%s3057 + $0xf8] sm:$0xff]
    %s3090 = scalar_lea.vmem [#allocation10], 2
    %v3091 = vld [vmem:[%s3090] sm:$0x3]
    %v3093 = vlaneseq
    %v3094 = vshrl.u32 %v3093, 7
    %v3095 = vsub.s32 0, %v3094
    %v3096 = vrot.slane %v3091, %v3095
    %v3097 = vlaneseq
    %v3098 = vshrl.u32 %v3097, 7
    %v3099 = vsub.s32 1, %v3098
    %v3100 = vrot.slane %v3091, %v3099
    %v3135 = vunpack.c.l.b16 %v3058
    %v3136 = vunpack.c.h.b16 %v3058
    %v3137 = vunpack.c.l.b16 %v3059
    %v3138 = vunpack.c.h.b16 %v3059
    %v3139 = vunpack.c.l.b16 %v3060
    %v3140 = vunpack.c.h.b16 %v3060
    %v3141 = vunpack.c.l.b16 %v3061
    %v3142 = vunpack.c.h.b16 %v3061
    %v3143 = vunpack.c.l.b16 %v3062
    %v3144 = vunpack.c.h.b16 %v3062
    %v3145 = vunpack.c.l.b16 %v3063
    %v3146 = vunpack.c.h.b16 %v3063
    %v3147 = vunpack.c.l.b16 %v3064
    %v3148 = vunpack.c.h.b16 %v3064
    %v3149 = vunpack.c.l.b16 %v3065
    %v3150 = vunpack.c.h.b16 %v3065
    %v3151 = vunpack.c.l.b16 %v3066
    %v3152 = vunpack.c.h.b16 %v3066
    %v3153 = vunpack.c.l.b16 %v3067
    %v3154 = vunpack.c.h.b16 %v3067
    %v3155 = vunpack.c.l.b16 %v3068
    %v3156 = vunpack.c.h.b16 %v3068
    %v3157 = vunpack.c.l.b16 %v3069
    %v3158 = vunpack.c.h.b16 %v3069
    %v3159 = vunpack.c.l.b16 %v3070
    %v3160 = vunpack.c.h.b16 %v3070
    %v3161 = vunpack.c.l.b16 %v3071
    %v3162 = vunpack.c.h.b16 %v3071
    %v3163 = vunpack.c.l.b16 %v3072
    %v3164 = vunpack.c.h.b16 %v3072
    %v3165 = vunpack.c.l.b16 %v3073
    %v3166 = vunpack.c.h.b16 %v3073
    %v3167 = vunpack.c.l.b16 %v3074
    %v3168 = vunpack.c.h.b16 %v3074
    %v3169 = vunpack.c.l.b16 %v3075
    %v3170 = vunpack.c.h.b16 %v3075
    %v3171 = vunpack.c.l.b16 %v3076
    %v3172 = vunpack.c.h.b16 %v3076
    %v3173 = vunpack.c.l.b16 %v3077
    %v3174 = vunpack.c.h.b16 %v3077
    %v3175 = vunpack.c.l.b16 %v3078
    %v3176 = vunpack.c.h.b16 %v3078
    %v3177 = vunpack.c.l.b16 %v3079
    %v3178 = vunpack.c.h.b16 %v3079
    %v3179 = vunpack.c.l.b16 %v3080
    %v3180 = vunpack.c.h.b16 %v3080
    %v3181 = vunpack.c.l.b16 %v3081
    %v3182 = vunpack.c.h.b16 %v3081
    %v3183 = vunpack.c.l.b16 %v3082
    %v3184 = vunpack.c.h.b16 %v3082
    %v3185 = vunpack.c.l.b16 %v3083
    %v3186 = vunpack.c.h.b16 %v3083
    %v3187 = vunpack.c.l.b16 %v3084
    %v3188 = vunpack.c.h.b16 %v3084
    %v3189 = vunpack.c.l.b16 %v3085
    %v3190 = vunpack.c.h.b16 %v3085
    %v3191 = vunpack.c.l.b16 %v3086
    %v3192 = vunpack.c.h.b16 %v3086
    %v3193 = vunpack.c.l.b16 %v3087
    %v3194 = vunpack.c.h.b16 %v3087
    %v3195 = vunpack.c.l.b16 %v3088
    %v3196 = vunpack.c.h.b16 %v3088
    %v3197 = vunpack.c.l.b16 %v3089
    %v3198 = vunpack.c.h.b16 %v3089
    %v3199 = vpack.c.b16 %v3137, %v3135
    %v3200 = vpack.c.b16 %v3138, %v3136
    %v3201 = vpack.c.b16 %v3141, %v3139
    %v3202 = vpack.c.b16 %v3142, %v3140
    %v3203 = vpack.c.b16 %v3145, %v3143
    %v3204 = vpack.c.b16 %v3146, %v3144
    %v3205 = vpack.c.b16 %v3149, %v3147
    %v3206 = vpack.c.b16 %v3150, %v3148
    %v3207 = vpack.c.b16 %v3153, %v3151
    %v3208 = vpack.c.b16 %v3154, %v3152
    %v3209 = vpack.c.b16 %v3157, %v3155
    %v3210 = vpack.c.b16 %v3158, %v3156
    %v3211 = vpack.c.b16 %v3161, %v3159
    %v3212 = vpack.c.b16 %v3162, %v3160
    %v3213 = vpack.c.b16 %v3165, %v3163
    %v3214 = vpack.c.b16 %v3166, %v3164
    %v3215 = vpack.c.b16 %v3169, %v3167
    %v3216 = vpack.c.b16 %v3170, %v3168
    %v3217 = vpack.c.b16 %v3173, %v3171
    %v3218 = vpack.c.b16 %v3174, %v3172
    %v3219 = vpack.c.b16 %v3177, %v3175
    %v3220 = vpack.c.b16 %v3178, %v3176
    %v3221 = vpack.c.b16 %v3181, %v3179
    %v3222 = vpack.c.b16 %v3182, %v3180
    %v3223 = vpack.c.b16 %v3185, %v3183
    %v3224 = vpack.c.b16 %v3186, %v3184
    %v3225 = vpack.c.b16 %v3189, %v3187
    %v3226 = vpack.c.b16 %v3190, %v3188
    %v3227 = vpack.c.b16 %v3193, %v3191
    %v3228 = vpack.c.b16 %v3194, %v3192
    %v3229 = vpack.c.b16 %v3197, %v3195
    %v3230 = vpack.c.b16 %v3198, %v3196
    %3263 = vmatprep.subr.bf16.mxu0 %v3200
    %3264 = vmatpush1.bf16.msra.mxu0 %v3199
    %3265 = vmatprep.subr.bf16.mxu0 %v3202
    %3266 = vmatpush1.bf16.msra.mxu0 %v3201
    %3267 = vmatprep.subr.bf16.mxu0 %v3204
    %3268 = vmatpush1.bf16.msra.mxu0 %v3203
    %3269 = vmatprep.subr.bf16.mxu0 %v3206
    %3270 = vmatpush1.bf16.msra.mxu0 %v3205
    %3271 = vmatprep.subr.bf16.mxu0 %v3208
    %3272 = vmatpush1.bf16.msra.mxu0 %v3207
    %3273 = vmatprep.subr.bf16.mxu0 %v3210
    %3274 = vmatpush1.bf16.msra.mxu0 %v3209
    %3275 = vmatprep.subr.bf16.mxu0 %v3212
    %3276 = vmatpush1.bf16.msra.mxu0 %v3211
    %3277 = vmatprep.subr.bf16.mxu0 %v3214
    %3278 = vmatpush1.bf16.msra.mxu0 %v3213
    %3279 = vmatprep.subr.bf16.mxu0 %v3216
    %3280 = vmatpush1.bf16.msra.mxu0 %v3215
    %3281 = vmatprep.subr.bf16.mxu0 %v3218
    %3282 = vmatpush1.bf16.msra.mxu0 %v3217
    %3283 = vmatprep.subr.bf16.mxu0 %v3220
    %3284 = vmatpush1.bf16.msra.mxu0 %v3219
    %3285 = vmatprep.subr.bf16.mxu0 %v3222
    %3286 = vmatpush1.bf16.msra.mxu0 %v3221
    %3287 = vmatprep.subr.bf16.mxu0 %v3224
    %3288 = vmatpush1.bf16.msra.mxu0 %v3223
    %3289 = vmatprep.subr.bf16.mxu0 %v3226
    %3290 = vmatpush1.bf16.msra.mxu0 %v3225
    %3291 = vmatprep.subr.bf16.mxu0 %v3228
    %3292 = vmatpush1.bf16.msra.mxu0 %v3227
    %3293 = vmatprep.subr.bf16.mxu0 %v3230
    %3294 = vmatpush1.bf16.msra.mxu0 %v3229
    %3295 = vmatprep.mubr.bf16.mxu0 %v3056
    %3296 = vmatmul.mubr.bf16.gmra.mrb[0].mxu0 %v3055
    %v3297 = vpop.f32.mrb[0].mxu0
    %v3298 = vadd.f32 %v3096, %v3297
    %v3299 = vpop.f32.mrb[0].mxu0
    %v3300 = vadd.f32 %v3100, %v3299
    %v3301 = vpop.f32.mrb[0].mxu0
    %v3302 = vpop.f32.mrb[0].mxu0
    %3303 = vdwg.mxu0
    %v3304 = vadd.f32 %v2804, %v3298
    %v3305 = vadd.f32 %v2805, %v3300
    %s3306 = scalar_lea.vmem [#allocation11], 2
    %v3307 = vld [vmem:[%s3306] sm:$0x3]
    %s3308 = scalar_lea.vmem [#allocation13], 2
    %v3309 = vld [vmem:[%s3308] sm:$0x3]
    %v3310 = vadd.f32 %v3304, %v3305
    %3311 = vadd.xlane.f32.xlu0 %v3310
    %v3312 = vpop.xlane.xlu0 %3311
    %v3313 = vmul.f32 %v3312, %v784
    %v3314 = vsub.f32 %v3304, %v3313
    %v3315 = vsub.f32 %v3305, %v3313
    %v3316 = vmul.f32 %v3314, %v3314
    %v3317 = vmul.f32 %v3315, %v3315
    %v3318 = vadd.f32 %v3316, %v3317
    %3319 = vadd.xlane.f32.xlu0 %v3318
    %v3320 = vpop.xlane.xlu0 %3319
    %v3321 = vmul.f32 %v3320, %v784
    %v3322 = vadd.f32 %v3321, 1e-05
    %v3323 = vrsqrt.pop %v3322
    %v3324 = vmul.f32 %v3314, %v3323
    %v3325 = vmul.f32 %v3315, %v3323
    %v3327 = vlaneseq
    %v3328 = vshrl.u32 %v3327, 7
    %v3329 = vsub.s32 0, %v3328
    %v3330 = vrot.slane %v3307, %v3329
    %v3331 = vlaneseq
    %v3332 = vshrl.u32 %v3331, 7
    %v3333 = vsub.s32 1, %v3332
    %v3334 = vrot.slane %v3307, %v3333
    %v3337 = vmul.f32 %v3324, %v3330
    %v3338 = vmul.f32 %v3325, %v3334
    %v3340 = vlaneseq
    %v3341 = vshrl.u32 %v3340, 7
    %v3342 = vsub.s32 0, %v3341
    %v3343 = vrot.slane %v3309, %v3342
    %v3344 = vlaneseq
    %v3345 = vshrl.u32 %v3344, 7
    %v3346 = vsub.s32 1, %v3345
    %v3347 = vrot.slane %v3309, %v3346
    %v3350 = vadd.f32 %v3337, %v3343
    %v3351 = vadd.f32 %v3338, %v3347
    %v3352 = vpack.c.bf16 %v3350, %v3350
    %v3353 = vpack.c.bf16 %v3351, %v3351
    %s3354 = scalar_lea.vmem [#allocation14], 1024
    %v3355 = vld [vmem:[%s3354] sm:$0xff]
    %v3356 = vld [vmem:[%s3354 + $0x8] sm:$0xff]
    %v3357 = vld [vmem:[%s3354 + $0x10] sm:$0xff]
    %v3358 = vld [vmem:[%s3354 + $0x18] sm:$0xff]
    %v3359 = vld [vmem:[%s3354 + $0x20] sm:$0xff]
    %v3360 = vld [vmem:[%s3354 + $0x28] sm:$0xff]
    %v3361 = vld [vmem:[%s3354 + $0x30] sm:$0xff]
    %v3362 = vld [vmem:[%s3354 + $0x38] sm:$0xff]
    %v3363 = vld [vmem:[%s3354 + $0x40] sm:$0xff]
    %v3364 = vld [vmem:[%s3354 + $0x48] sm:$0xff]
    %v3365 = vld [vmem:[%s3354 + $0x50] sm:$0xff]
    %v3366 = vld [vmem:[%s3354 + $0x58] sm:$0xff]
    %v3367 = vld [vmem:[%s3354 + $0x60] sm:$0xff]
    %v3368 = vld [vmem:[%s3354 + $0x68] sm:$0xff]
    %v3369 = vld [vmem:[%s3354 + $0x70] sm:$0xff]
    %v3370 = vld [vmem:[%s3354 + $0x78] sm:$0xff]
    %v3371 = vld [vmem:[%s3354 + $0x80] sm:$0xff]
    %v3372 = vld [vmem:[%s3354 + $0x88] sm:$0xff]
    %v3373 = vld [vmem:[%s3354 + $0x90] sm:$0xff]
    %v3374 = vld [vmem:[%s3354 + $0x98] sm:$0xff]
    %v3375 = vld [vmem:[%s3354 + $0xa0] sm:$0xff]
    %v3376 = vld [vmem:[%s3354 + $0xa8] sm:$0xff]
    %v3377 = vld [vmem:[%s3354 + $0xb0] sm:$0xff]
    %v3378 = vld [vmem:[%s3354 + $0xb8] sm:$0xff]
    %v3379 = vld [vmem:[%s3354 + $0xc0] sm:$0xff]
    %v3380 = vld [vmem:[%s3354 + $0xc8] sm:$0xff]
    %v3381 = vld [vmem:[%s3354 + $0xd0] sm:$0xff]
    %v3382 = vld [vmem:[%s3354 + $0xd8] sm:$0xff]
    %v3383 = vld [vmem:[%s3354 + $0xe0] sm:$0xff]
    %v3384 = vld [vmem:[%s3354 + $0xe8] sm:$0xff]
    %v3385 = vld [vmem:[%s3354 + $0xf0] sm:$0xff]
    %v3386 = vld [vmem:[%s3354 + $0xf8] sm:$0xff]
    %v3387 = vld [vmem:[%s3354 + $0x100] sm:$0xff]
    %v3388 = vld [vmem:[%s3354 + $0x108] sm:$0xff]
    %v3389 = vld [vmem:[%s3354 + $0x110] sm:$0xff]
    %v3390 = vld [vmem:[%s3354 + $0x118] sm:$0xff]
    %v3391 = vld [vmem:[%s3354 + $0x120] sm:$0xff]
    %v3392 = vld [vmem:[%s3354 + $0x128] sm:$0xff]
    %v3393 = vld [vmem:[%s3354 + $0x130] sm:$0xff]
    %v3394 = vld [vmem:[%s3354 + $0x138] sm:$0xff]
    %v3395 = vld [vmem:[%s3354 + $0x140] sm:$0xff]
    %v3396 = vld [vmem:[%s3354 + $0x148] sm:$0xff]
    %v3397 = vld [vmem:[%s3354 + $0x150] sm:$0xff]
    %v3398 = vld [vmem:[%s3354 + $0x158] sm:$0xff]
    %v3399 = vld [vmem:[%s3354 + $0x160] sm:$0xff]
    %v3400 = vld [vmem:[%s3354 + $0x168] sm:$0xff]
    %v3401 = vld [vmem:[%s3354 + $0x170] sm:$0xff]
    %v3402 = vld [vmem:[%s3354 + $0x178] sm:$0xff]
    %v3403 = vld [vmem:[%s3354 + $0x180] sm:$0xff]
    %v3404 = vld [vmem:[%s3354 + $0x188] sm:$0xff]
    %v3405 = vld [vmem:[%s3354 + $0x190] sm:$0xff]
    %v3406 = vld [vmem:[%s3354 + $0x198] sm:$0xff]
    %v3407 = vld [vmem:[%s3354 + $0x1a0] sm:$0xff]
    %v3408 = vld [vmem:[%s3354 + $0x1a8] sm:$0xff]
    %v3409 = vld [vmem:[%s3354 + $0x1b0] sm:$0xff]
    %v3410 = vld [vmem:[%s3354 + $0x1b8] sm:$0xff]
    %v3411 = vld [vmem:[%s3354 + $0x1c0] sm:$0xff]
    %v3412 = vld [vmem:[%s3354 + $0x1c8] sm:$0xff]
    %v3413 = vld [vmem:[%s3354 + $0x1d0] sm:$0xff]
    %v3414 = vld [vmem:[%s3354 + $0x1d8] sm:$0xff]
    %v3415 = vld [vmem:[%s3354 + $0x1e0] sm:$0xff]
    %v3416 = vld [vmem:[%s3354 + $0x1e8] sm:$0xff]
    %v3417 = vld [vmem:[%s3354 + $0x1f0] sm:$0xff]
    %v3418 = vld [vmem:[%s3354 + $0x1f8] sm:$0xff]
    %v3419 = vld [vmem:[%s3354 + $0x200] sm:$0xff]
    %v3420 = vld [vmem:[%s3354 + $0x208] sm:$0xff]
    %v3421 = vld [vmem:[%s3354 + $0x210] sm:$0xff]
    %v3422 = vld [vmem:[%s3354 + $0x218] sm:$0xff]
    %v3423 = vld [vmem:[%s3354 + $0x220] sm:$0xff]
    %v3424 = vld [vmem:[%s3354 + $0x228] sm:$0xff]
    %v3425 = vld [vmem:[%s3354 + $0x230] sm:$0xff]
    %v3426 = vld [vmem:[%s3354 + $0x238] sm:$0xff]
    %v3427 = vld [vmem:[%s3354 + $0x240] sm:$0xff]
    %v3428 = vld [vmem:[%s3354 + $0x248] sm:$0xff]
    %v3429 = vld [vmem:[%s3354 + $0x250] sm:$0xff]
    %v3430 = vld [vmem:[%s3354 + $0x258] sm:$0xff]
    %v3431 = vld [vmem:[%s3354 + $0x260] sm:$0xff]
    %v3432 = vld [vmem:[%s3354 + $0x268] sm:$0xff]
    %v3433 = vld [vmem:[%s3354 + $0x270] sm:$0xff]
    %v3434 = vld [vmem:[%s3354 + $0x278] sm:$0xff]
    %v3435 = vld [vmem:[%s3354 + $0x280] sm:$0xff]
    %v3436 = vld [vmem:[%s3354 + $0x288] sm:$0xff]
    %v3437 = vld [vmem:[%s3354 + $0x290] sm:$0xff]
    %v3438 = vld [vmem:[%s3354 + $0x298] sm:$0xff]
    %v3439 = vld [vmem:[%s3354 + $0x2a0] sm:$0xff]
    %v3440 = vld [vmem:[%s3354 + $0x2a8] sm:$0xff]
    %v3441 = vld [vmem:[%s3354 + $0x2b0] sm:$0xff]
    %v3442 = vld [vmem:[%s3354 + $0x2b8] sm:$0xff]
    %v3443 = vld [vmem:[%s3354 + $0x2c0] sm:$0xff]
    %v3444 = vld [vmem:[%s3354 + $0x2c8] sm:$0xff]
    %v3445 = vld [vmem:[%s3354 + $0x2d0] sm:$0xff]
    %v3446 = vld [vmem:[%s3354 + $0x2d8] sm:$0xff]
    %v3447 = vld [vmem:[%s3354 + $0x2e0] sm:$0xff]
    %v3448 = vld [vmem:[%s3354 + $0x2e8] sm:$0xff]
    %v3449 = vld [vmem:[%s3354 + $0x2f0] sm:$0xff]
    %v3450 = vld [vmem:[%s3354 + $0x2f8] sm:$0xff]
    %v3451 = vld [vmem:[%s3354 + $0x300] sm:$0xff]
    %v3452 = vld [vmem:[%s3354 + $0x308] sm:$0xff]
    %v3453 = vld [vmem:[%s3354 + $0x310] sm:$0xff]
    %v3454 = vld [vmem:[%s3354 + $0x318] sm:$0xff]
    %v3455 = vld [vmem:[%s3354 + $0x320] sm:$0xff]
    %v3456 = vld [vmem:[%s3354 + $0x328] sm:$0xff]
    %v3457 = vld [vmem:[%s3354 + $0x330] sm:$0xff]
    %v3458 = vld [vmem:[%s3354 + $0x338] sm:$0xff]
    %v3459 = vld [vmem:[%s3354 + $0x340] sm:$0xff]
    %v3460 = vld [vmem:[%s3354 + $0x348] sm:$0xff]
    %v3461 = vld [vmem:[%s3354 + $0x350] sm:$0xff]
    %v3462 = vld [vmem:[%s3354 + $0x358] sm:$0xff]
    %v3463 = vld [vmem:[%s3354 + $0x360] sm:$0xff]
    %v3464 = vld [vmem:[%s3354 + $0x368] sm:$0xff]
    %v3465 = vld [vmem:[%s3354 + $0x370] sm:$0xff]
    %v3466 = vld [vmem:[%s3354 + $0x378] sm:$0xff]
    %v3467 = vld [vmem:[%s3354 + $0x380] sm:$0xff]
    %v3468 = vld [vmem:[%s3354 + $0x388] sm:$0xff]
    %v3469 = vld [vmem:[%s3354 + $0x390] sm:$0xff]
    %v3470 = vld [vmem:[%s3354 + $0x398] sm:$0xff]
    %v3471 = vld [vmem:[%s3354 + $0x3a0] sm:$0xff]
    %v3472 = vld [vmem:[%s3354 + $0x3a8] sm:$0xff]
    %v3473 = vld [vmem:[%s3354 + $0x3b0] sm:$0xff]
    %v3474 = vld [vmem:[%s3354 + $0x3b8] sm:$0xff]
    %v3475 = vld [vmem:[%s3354 + $0x3c0] sm:$0xff]
    %v3476 = vld [vmem:[%s3354 + $0x3c8] sm:$0xff]
    %v3477 = vld [vmem:[%s3354 + $0x3d0] sm:$0xff]
    %v3478 = vld [vmem:[%s3354 + $0x3d8] sm:$0xff]
    %v3479 = vld [vmem:[%s3354 + $0x3e0] sm:$0xff]
    %v3480 = vld [vmem:[%s3354 + $0x3e8] sm:$0xff]
    %v3481 = vld [vmem:[%s3354 + $0x3f0] sm:$0xff]
    %v3482 = vld [vmem:[%s3354 + $0x3f8] sm:$0xff]
    %s3483 = scalar_lea.vmem [#allocation16], 8
    %v3484 = vld [vmem:[%s3483] sm:$0xff]
    %v3486 = vlaneseq
    %v3487 = vshrl.u32 %v3486, 7
    %v3488 = vsub.s32 0, %v3487
    %v3489 = vrot.slane %v3484, %v3488
    %v3490 = vlaneseq
    %v3491 = vshrl.u32 %v3490, 7
    %v3492 = vsub.s32 1, %v3491
    %v3493 = vrot.slane %v3484, %v3492
    %v3494 = vlaneseq
    %v3495 = vshrl.u32 %v3494, 7
    %v3496 = vsub.s32 2, %v3495
    %v3497 = vrot.slane %v3484, %v3496
    %v3498 = vlaneseq
    %v3499 = vshrl.u32 %v3498, 7
    %v3500 = vsub.s32 3, %v3499
    %v3501 = vrot.slane %v3484, %v3500
    %v3502 = vlaneseq
    %v3503 = vshrl.u32 %v3502, 7
    %v3504 = vsub.s32 4, %v3503
    %v3505 = vrot.slane %v3484, %v3504
    %v3506 = vlaneseq
    %v3507 = vshrl.u32 %v3506, 7
    %v3508 = vsub.s32 5, %v3507
    %v3509 = vrot.slane %v3484, %v3508
    %v3510 = vlaneseq
    %v3511 = vshrl.u32 %v3510, 7
    %v3512 = vsub.s32 6, %v3511
    %v3513 = vrot.slane %v3484, %v3512
    %v3514 = vlaneseq
    %v3515 = vshrl.u32 %v3514, 7
    %v3516 = vsub.s32 7, %v3515
    %v3517 = vrot.slane %v3484, %v3516
    %v3654 = vunpack.c.l.b16 %v3355
    %v3655 = vunpack.c.h.b16 %v3355
    %v3656 = vunpack.c.l.b16 %v3356
    %v3657 = vunpack.c.h.b16 %v3356
    %v3658 = vunpack.c.l.b16 %v3357
    %v3659 = vunpack.c.h.b16 %v3357
    %v3660 = vunpack.c.l.b16 %v3358
    %v3661 = vunpack.c.h.b16 %v3358
    %v3662 = vunpack.c.l.b16 %v3359
    %v3663 = vunpack.c.h.b16 %v3359
    %v3664 = vunpack.c.l.b16 %v3360
    %v3665 = vunpack.c.h.b16 %v3360
    %v3666 = vunpack.c.l.b16 %v3361
    %v3667 = vunpack.c.h.b16 %v3361
    %v3668 = vunpack.c.l.b16 %v3362
    %v3669 = vunpack.c.h.b16 %v3362
    %v3670 = vunpack.c.l.b16 %v3363
    %v3671 = vunpack.c.h.b16 %v3363
    %v3672 = vunpack.c.l.b16 %v3364
    %v3673 = vunpack.c.h.b16 %v3364
    %v3674 = vunpack.c.l.b16 %v3365
    %v3675 = vunpack.c.h.b16 %v3365
    %v3676 = vunpack.c.l.b16 %v3366
    %v3677 = vunpack.c.h.b16 %v3366
    %v3678 = vunpack.c.l.b16 %v3367
    %v3679 = vunpack.c.h.b16 %v3367
    %v3680 = vunpack.c.l.b16 %v3368
    %v3681 = vunpack.c.h.b16 %v3368
    %v3682 = vunpack.c.l.b16 %v3369
    %v3683 = vunpack.c.h.b16 %v3369
    %v3684 = vunpack.c.l.b16 %v3370
    %v3685 = vunpack.c.h.b16 %v3370
    %v3686 = vunpack.c.l.b16 %v3371
    %v3687 = vunpack.c.h.b16 %v3371
    %v3688 = vunpack.c.l.b16 %v3372
    %v3689 = vunpack.c.h.b16 %v3372
    %v3690 = vunpack.c.l.b16 %v3373
    %v3691 = vunpack.c.h.b16 %v3373
    %v3692 = vunpack.c.l.b16 %v3374
    %v3693 = vunpack.c.h.b16 %v3374
    %v3694 = vunpack.c.l.b16 %v3375
    %v3695 = vunpack.c.h.b16 %v3375
    %v3696 = vunpack.c.l.b16 %v3376
    %v3697 = vunpack.c.h.b16 %v3376
    %v3698 = vunpack.c.l.b16 %v3377
    %v3699 = vunpack.c.h.b16 %v3377
    %v3700 = vunpack.c.l.b16 %v3378
    %v3701 = vunpack.c.h.b16 %v3378
    %v3702 = vunpack.c.l.b16 %v3379
    %v3703 = vunpack.c.h.b16 %v3379
    %v3704 = vunpack.c.l.b16 %v3380
    %v3705 = vunpack.c.h.b16 %v3380
    %v3706 = vunpack.c.l.b16 %v3381
    %v3707 = vunpack.c.h.b16 %v3381
    %v3708 = vunpack.c.l.b16 %v3382
    %v3709 = vunpack.c.h.b16 %v3382
    %v3710 = vunpack.c.l.b16 %v3383
    %v3711 = vunpack.c.h.b16 %v3383
    %v3712 = vunpack.c.l.b16 %v3384
    %v3713 = vunpack.c.h.b16 %v3384
    %v3714 = vunpack.c.l.b16 %v3385
    %v3715 = vunpack.c.h.b16 %v3385
    %v3716 = vunpack.c.l.b16 %v3386
    %v3717 = vunpack.c.h.b16 %v3386
    %v3718 = vunpack.c.l.b16 %v3387
    %v3719 = vunpack.c.h.b16 %v3387
    %v3720 = vunpack.c.l.b16 %v3388
    %v3721 = vunpack.c.h.b16 %v3388
    %v3722 = vunpack.c.l.b16 %v3389
    %v3723 = vunpack.c.h.b16 %v3389
    %v3724 = vunpack.c.l.b16 %v3390
    %v3725 = vunpack.c.h.b16 %v3390
    %v3726 = vunpack.c.l.b16 %v3391
    %v3727 = vunpack.c.h.b16 %v3391
    %v3728 = vunpack.c.l.b16 %v3392
    %v3729 = vunpack.c.h.b16 %v3392
    %v3730 = vunpack.c.l.b16 %v3393
    %v3731 = vunpack.c.h.b16 %v3393
    %v3732 = vunpack.c.l.b16 %v3394
    %v3733 = vunpack.c.h.b16 %v3394
    %v3734 = vunpack.c.l.b16 %v3395
    %v3735 = vunpack.c.h.b16 %v3395
    %v3736 = vunpack.c.l.b16 %v3396
    %v3737 = vunpack.c.h.b16 %v3396
    %v3738 = vunpack.c.l.b16 %v3397
    %v3739 = vunpack.c.h.b16 %v3397
    %v3740 = vunpack.c.l.b16 %v3398
    %v3741 = vunpack.c.h.b16 %v3398
    %v3742 = vunpack.c.l.b16 %v3399
    %v3743 = vunpack.c.h.b16 %v3399
    %v3744 = vunpack.c.l.b16 %v3400
    %v3745 = vunpack.c.h.b16 %v3400
    %v3746 = vunpack.c.l.b16 %v3401
    %v3747 = vunpack.c.h.b16 %v3401
    %v3748 = vunpack.c.l.b16 %v3402
    %v3749 = vunpack.c.h.b16 %v3402
    %v3750 = vunpack.c.l.b16 %v3403
    %v3751 = vunpack.c.h.b16 %v3403
    %v3752 = vunpack.c.l.b16 %v3404
    %v3753 = vunpack.c.h.b16 %v3404
    %v3754 = vunpack.c.l.b16 %v3405
    %v3755 = vunpack.c.h.b16 %v3405
    %v3756 = vunpack.c.l.b16 %v3406
    %v3757 = vunpack.c.h.b16 %v3406
    %v3758 = vunpack.c.l.b16 %v3407
    %v3759 = vunpack.c.h.b16 %v3407
    %v3760 = vunpack.c.l.b16 %v3408
    %v3761 = vunpack.c.h.b16 %v3408
    %v3762 = vunpack.c.l.b16 %v3409
    %v3763 = vunpack.c.h.b16 %v3409
    %v3764 = vunpack.c.l.b16 %v3410
    %v3765 = vunpack.c.h.b16 %v3410
    %v3766 = vunpack.c.l.b16 %v3411
    %v3767 = vunpack.c.h.b16 %v3411
    %v3768 = vunpack.c.l.b16 %v3412
    %v3769 = vunpack.c.h.b16 %v3412
    %v3770 = vunpack.c.l.b16 %v3413
    %v3771 = vunpack.c.h.b16 %v3413
    %v3772 = vunpack.c.l.b16 %v3414
    %v3773 = vunpack.c.h.b16 %v3414
    %v3774 = vunpack.c.l.b16 %v3415
    %v3775 = vunpack.c.h.b16 %v3415
    %v3776 = vunpack.c.l.b16 %v3416
    %v3777 = vunpack.c.h.b16 %v3416
    %v3778 = vunpack.c.l.b16 %v3417
    %v3779 = vunpack.c.h.b16 %v3417
    %v3780 = vunpack.c.l.b16 %v3418
    %v3781 = vunpack.c.h.b16 %v3418
    %v3782 = vunpack.c.l.b16 %v3419
    %v3783 = vunpack.c.h.b16 %v3419
    %v3784 = vunpack.c.l.b16 %v3420
    %v3785 = vunpack.c.h.b16 %v3420
    %v3786 = vunpack.c.l.b16 %v3421
    %v3787 = vunpack.c.h.b16 %v3421
    %v3788 = vunpack.c.l.b16 %v3422
    %v3789 = vunpack.c.h.b16 %v3422
    %v3790 = vunpack.c.l.b16 %v3423
    %v3791 = vunpack.c.h.b16 %v3423
    %v3792 = vunpack.c.l.b16 %v3424
    %v3793 = vunpack.c.h.b16 %v3424
    %v3794 = vunpack.c.l.b16 %v3425
    %v3795 = vunpack.c.h.b16 %v3425
    %v3796 = vunpack.c.l.b16 %v3426
    %v3797 = vunpack.c.h.b16 %v3426
    %v3798 = vunpack.c.l.b16 %v3427
    %v3799 = vunpack.c.h.b16 %v3427
    %v3800 = vunpack.c.l.b16 %v3428
    %v3801 = vunpack.c.h.b16 %v3428
    %v3802 = vunpack.c.l.b16 %v3429
    %v3803 = vunpack.c.h.b16 %v3429
    %v3804 = vunpack.c.l.b16 %v3430
    %v3805 = vunpack.c.h.b16 %v3430
    %v3806 = vunpack.c.l.b16 %v3431
    %v3807 = vunpack.c.h.b16 %v3431
    %v3808 = vunpack.c.l.b16 %v3432
    %v3809 = vunpack.c.h.b16 %v3432
    %v3810 = vunpack.c.l.b16 %v3433
    %v3811 = vunpack.c.h.b16 %v3433
    %v3812 = vunpack.c.l.b16 %v3434
    %v3813 = vunpack.c.h.b16 %v3434
    %v3814 = vunpack.c.l.b16 %v3435
    %v3815 = vunpack.c.h.b16 %v3435
    %v3816 = vunpack.c.l.b16 %v3436
    %v3817 = vunpack.c.h.b16 %v3436
    %v3818 = vunpack.c.l.b16 %v3437
    %v3819 = vunpack.c.h.b16 %v3437
    %v3820 = vunpack.c.l.b16 %v3438
    %v3821 = vunpack.c.h.b16 %v3438
    %v3822 = vunpack.c.l.b16 %v3439
    %v3823 = vunpack.c.h.b16 %v3439
    %v3824 = vunpack.c.l.b16 %v3440
    %v3825 = vunpack.c.h.b16 %v3440
    %v3826 = vunpack.c.l.b16 %v3441
    %v3827 = vunpack.c.h.b16 %v3441
    %v3828 = vunpack.c.l.b16 %v3442
    %v3829 = vunpack.c.h.b16 %v3442
    %v3830 = vunpack.c.l.b16 %v3443
    %v3831 = vunpack.c.h.b16 %v3443
    %v3832 = vunpack.c.l.b16 %v3444
    %v3833 = vunpack.c.h.b16 %v3444
    %v3834 = vunpack.c.l.b16 %v3445
    %v3835 = vunpack.c.h.b16 %v3445
    %v3836 = vunpack.c.l.b16 %v3446
    %v3837 = vunpack.c.h.b16 %v3446
    %v3838 = vunpack.c.l.b16 %v3447
    %v3839 = vunpack.c.h.b16 %v3447
    %v3840 = vunpack.c.l.b16 %v3448
    %v3841 = vunpack.c.h.b16 %v3448
    %v3842 = vunpack.c.l.b16 %v3449
    %v3843 = vunpack.c.h.b16 %v3449
    %v3844 = vunpack.c.l.b16 %v3450
    %v3845 = vunpack.c.h.b16 %v3450
    %v3846 = vunpack.c.l.b16 %v3451
    %v3847 = vunpack.c.h.b16 %v3451
    %v3848 = vunpack.c.l.b16 %v3452
    %v3849 = vunpack.c.h.b16 %v3452
    %v3850 = vunpack.c.l.b16 %v3453
    %v3851 = vunpack.c.h.b16 %v3453
    %v3852 = vunpack.c.l.b16 %v3454
    %v3853 = vunpack.c.h.b16 %v3454
    %v3854 = vunpack.c.l.b16 %v3455
    %v3855 = vunpack.c.h.b16 %v3455
    %v3856 = vunpack.c.l.b16 %v3456
    %v3857 = vunpack.c.h.b16 %v3456
    %v3858 = vunpack.c.l.b16 %v3457
    %v3859 = vunpack.c.h.b16 %v3457
    %v3860 = vunpack.c.l.b16 %v3458
    %v3861 = vunpack.c.h.b16 %v3458
    %v3862 = vunpack.c.l.b16 %v3459
    %v3863 = vunpack.c.h.b16 %v3459
    %v3864 = vunpack.c.l.b16 %v3460
    %v3865 = vunpack.c.h.b16 %v3460
    %v3866 = vunpack.c.l.b16 %v3461
    %v3867 = vunpack.c.h.b16 %v3461
    %v3868 = vunpack.c.l.b16 %v3462
    %v3869 = vunpack.c.h.b16 %v3462
    %v3870 = vunpack.c.l.b16 %v3463
    %v3871 = vunpack.c.h.b16 %v3463
    %v3872 = vunpack.c.l.b16 %v3464
    %v3873 = vunpack.c.h.b16 %v3464
    %v3874 = vunpack.c.l.b16 %v3465
    %v3875 = vunpack.c.h.b16 %v3465
    %v3876 = vunpack.c.l.b16 %v3466
    %v3877 = vunpack.c.h.b16 %v3466
    %v3878 = vunpack.c.l.b16 %v3467
    %v3879 = vunpack.c.h.b16 %v3467
    %v3880 = vunpack.c.l.b16 %v3468
    %v3881 = vunpack.c.h.b16 %v3468
    %v3882 = vunpack.c.l.b16 %v3469
    %v3883 = vunpack.c.h.b16 %v3469
    %v3884 = vunpack.c.l.b16 %v3470
    %v3885 = vunpack.c.h.b16 %v3470
    %v3886 = vunpack.c.l.b16 %v3471
    %v3887 = vunpack.c.h.b16 %v3471
    %v3888 = vunpack.c.l.b16 %v3472
    %v3889 = vunpack.c.h.b16 %v3472
    %v3890 = vunpack.c.l.b16 %v3473
    %v3891 = vunpack.c.h.b16 %v3473
    %v3892 = vunpack.c.l.b16 %v3474
    %v3893 = vunpack.c.h.b16 %v3474
    %v3894 = vunpack.c.l.b16 %v3475
    %v3895 = vunpack.c.h.b16 %v3475
    %v3896 = vunpack.c.l.b16 %v3476
    %v3897 = vunpack.c.h.b16 %v3476
    %v3898 = vunpack.c.l.b16 %v3477
    %v3899 = vunpack.c.h.b16 %v3477
    %v3900 = vunpack.c.l.b16 %v3478
    %v3901 = vunpack.c.h.b16 %v3478
    %v3902 = vunpack.c.l.b16 %v3479
    %v3903 = vunpack.c.h.b16 %v3479
    %v3904 = vunpack.c.l.b16 %v3480
    %v3905 = vunpack.c.h.b16 %v3480
    %v3906 = vunpack.c.l.b16 %v3481
    %v3907 = vunpack.c.h.b16 %v3481
    %v3908 = vunpack.c.l.b16 %v3482
    %v3909 = vunpack.c.h.b16 %v3482
    %v3910 = vpack.c.b16 %v3662, %v3654
    %v3911 = vpack.c.b16 %v3663, %v3655
    %v3912 = vpack.c.b16 %v3664, %v3656
    %v3913 = vpack.c.b16 %v3665, %v3657
    %v3914 = vpack.c.b16 %v3666, %v3658
    %v3915 = vpack.c.b16 %v3667, %v3659
    %v3916 = vpack.c.b16 %v3668, %v3660
    %v3917 = vpack.c.b16 %v3669, %v3661
    %v3918 = vpack.c.b16 %v3678, %v3670
    %v3919 = vpack.c.b16 %v3679, %v3671
    %v3920 = vpack.c.b16 %v3680, %v3672
    %v3921 = vpack.c.b16 %v3681, %v3673
    %v3922 = vpack.c.b16 %v3682, %v3674
    %v3923 = vpack.c.b16 %v3683, %v3675
    %v3924 = vpack.c.b16 %v3684, %v3676
    %v3925 = vpack.c.b16 %v3685, %v3677
    %v3926 = vpack.c.b16 %v3694, %v3686
    %v3927 = vpack.c.b16 %v3695, %v3687
    %v3928 = vpack.c.b16 %v3696, %v3688
    %v3929 = vpack.c.b16 %v3697, %v3689
    %v3930 = vpack.c.b16 %v3698, %v3690
    %v3931 = vpack.c.b16 %v3699, %v3691
    %v3932 = vpack.c.b16 %v3700, %v3692
    %v3933 = vpack.c.b16 %v3701, %v3693
    %v3934 = vpack.c.b16 %v3710, %v3702
    %v3935 = vpack.c.b16 %v3711, %v3703
    %v3936 = vpack.c.b16 %v3712, %v3704
    %v3937 = vpack.c.b16 %v3713, %v3705
    %v3938 = vpack.c.b16 %v3714, %v3706
    %v3939 = vpack.c.b16 %v3715, %v3707
    %v3940 = vpack.c.b16 %v3716, %v3708
    %v3941 = vpack.c.b16 %v3717, %v3709
    %v3942 = vpack.c.b16 %v3726, %v3718
    %v3943 = vpack.c.b16 %v3727, %v3719
    %v3944 = vpack.c.b16 %v3728, %v3720
    %v3945 = vpack.c.b16 %v3729, %v3721
    %v3946 = vpack.c.b16 %v3730, %v3722
    %v3947 = vpack.c.b16 %v3731, %v3723
    %v3948 = vpack.c.b16 %v3732, %v3724
    %v3949 = vpack.c.b16 %v3733, %v3725
    %v3950 = vpack.c.b16 %v3742, %v3734
    %v3951 = vpack.c.b16 %v3743, %v3735
    %v3952 = vpack.c.b16 %v3744, %v3736
    %v3953 = vpack.c.b16 %v3745, %v3737
    %v3954 = vpack.c.b16 %v3746, %v3738
    %v3955 = vpack.c.b16 %v3747, %v3739
    %v3956 = vpack.c.b16 %v3748, %v3740
    %v3957 = vpack.c.b16 %v3749, %v3741
    %v3958 = vpack.c.b16 %v3758, %v3750
    %v3959 = vpack.c.b16 %v3759, %v3751
    %v3960 = vpack.c.b16 %v3760, %v3752
    %v3961 = vpack.c.b16 %v3761, %v3753
    %v3962 = vpack.c.b16 %v3762, %v3754
    %v3963 = vpack.c.b16 %v3763, %v3755
    %v3964 = vpack.c.b16 %v3764, %v3756
    %v3965 = vpack.c.b16 %v3765, %v3757
    %v3966 = vpack.c.b16 %v3774, %v3766
    %v3967 = vpack.c.b16 %v3775, %v3767
    %v3968 = vpack.c.b16 %v3776, %v3768
    %v3969 = vpack.c.b16 %v3777, %v3769
    %v3970 = vpack.c.b16 %v3778, %v3770
    %v3971 = vpack.c.b16 %v3779, %v3771
    %v3972 = vpack.c.b16 %v3780, %v3772
    %v3973 = vpack.c.b16 %v3781, %v3773
    %v3974 = vpack.c.b16 %v3790, %v3782
    %v3975 = vpack.c.b16 %v3791, %v3783
    %v3976 = vpack.c.b16 %v3792, %v3784
    %v3977 = vpack.c.b16 %v3793, %v3785
    %v3978 = vpack.c.b16 %v3794, %v3786
    %v3979 = vpack.c.b16 %v3795, %v3787
    %v3980 = vpack.c.b16 %v3796, %v3788
    %v3981 = vpack.c.b16 %v3797, %v3789
    %v3982 = vpack.c.b16 %v3806, %v3798
    %v3983 = vpack.c.b16 %v3807, %v3799
    %v3984 = vpack.c.b16 %v3808, %v3800
    %v3985 = vpack.c.b16 %v3809, %v3801
    %v3986 = vpack.c.b16 %v3810, %v3802
    %v3987 = vpack.c.b16 %v3811, %v3803
    %v3988 = vpack.c.b16 %v3812, %v3804
    %v3989 = vpack.c.b16 %v3813, %v3805
    %v3990 = vpack.c.b16 %v3822, %v3814
    %v3991 = vpack.c.b16 %v3823, %v3815
    %v3992 = vpack.c.b16 %v3824, %v3816
    %v3993 = vpack.c.b16 %v3825, %v3817
    %v3994 = vpack.c.b16 %v3826, %v3818
    %v3995 = vpack.c.b16 %v3827, %v3819
    %v3996 = vpack.c.b16 %v3828, %v3820
    %v3997 = vpack.c.b16 %v3829, %v3821
    %v3998 = vpack.c.b16 %v3838, %v3830
    %v3999 = vpack.c.b16 %v3839, %v3831
    %v4000 = vpack.c.b16 %v3840, %v3832
    %v4001 = vpack.c.b16 %v3841, %v3833
    %v4002 = vpack.c.b16 %v3842, %v3834
    %v4003 = vpack.c.b16 %v3843, %v3835
    %v4004 = vpack.c.b16 %v3844, %v3836
    %v4005 = vpack.c.b16 %v3845, %v3837
    %v4006 = vpack.c.b16 %v3854, %v3846
    %v4007 = vpack.c.b16 %v3855, %v3847
    %v4008 = vpack.c.b16 %v3856, %v3848
    %v4009 = vpack.c.b16 %v3857, %v3849
    %v4010 = vpack.c.b16 %v3858, %v3850
    %v4011 = vpack.c.b16 %v3859, %v3851
    %v4012 = vpack.c.b16 %v3860, %v3852
    %v4013 = vpack.c.b16 %v3861, %v3853
    %v4014 = vpack.c.b16 %v3870, %v3862
    %v4015 = vpack.c.b16 %v3871, %v3863
    %v4016 = vpack.c.b16 %v3872, %v3864
    %v4017 = vpack.c.b16 %v3873, %v3865
    %v4018 = vpack.c.b16 %v3874, %v3866
    %v4019 = vpack.c.b16 %v3875, %v3867
    %v4020 = vpack.c.b16 %v3876, %v3868
    %v4021 = vpack.c.b16 %v3877, %v3869
    %v4022 = vpack.c.b16 %v3886, %v3878
    %v4023 = vpack.c.b16 %v3887, %v3879
    %v4024 = vpack.c.b16 %v3888, %v3880
    %v4025 = vpack.c.b16 %v3889, %v3881
    %v4026 = vpack.c.b16 %v3890, %v3882
    %v4027 = vpack.c.b16 %v3891, %v3883
    %v4028 = vpack.c.b16 %v3892, %v3884
    %v4029 = vpack.c.b16 %v3893, %v3885
    %v4030 = vpack.c.b16 %v3902, %v3894
    %v4031 = vpack.c.b16 %v3903, %v3895
    %v4032 = vpack.c.b16 %v3904, %v3896
    %v4033 = vpack.c.b16 %v3905, %v3897
    %v4034 = vpack.c.b16 %v3906, %v3898
    %v4035 = vpack.c.b16 %v3907, %v3899
    %v4036 = vpack.c.b16 %v3908, %v3900
    %v4037 = vpack.c.b16 %v3909, %v3901
    %4166 = vmatprep.subr.bf16.mxu0 %v3911
    %4167 = vmatpush1.bf16.msra.mxu0 %v3910
    %4168 = vmatprep.subr.bf16.mxu0 %v3919
    %4169 = vmatpush1.bf16.msra.mxu0 %v3918
    %4170 = vmatprep.subr.bf16.mxu0 %v3927
    %4171 = vmatpush1.bf16.msra.mxu0 %v3926
    %4172 = vmatprep.subr.bf16.mxu0 %v3935
    %4173 = vmatpush1.bf16.msra.mxu0 %v3934
    %4174 = vmatprep.subr.bf16.mxu0 %v3943
    %4175 = vmatpush1.bf16.msra.mxu0 %v3942
    %4176 = vmatprep.subr.bf16.mxu0 %v3951
    %4177 = vmatpush1.bf16.msra.mxu0 %v3950
    %4178 = vmatprep.subr.bf16.mxu0 %v3959
    %4179 = vmatpush1.bf16.msra.mxu0 %v3958
    %4180 = vmatprep.subr.bf16.mxu0 %v3967
    %4181 = vmatpush1.bf16.msra.mxu0 %v3966
    %4182 = vmatprep.subr.bf16.mxu0 %v3975
    %4183 = vmatpush1.bf16.msra.mxu0 %v3974
    %4184 = vmatprep.subr.bf16.mxu0 %v3983
    %4185 = vmatpush1.bf16.msra.mxu0 %v3982
    %4186 = vmatprep.subr.bf16.mxu0 %v3991
    %4187 = vmatpush1.bf16.msra.mxu0 %v3990
    %4188 = vmatprep.subr.bf16.mxu0 %v3999
    %4189 = vmatpush1.bf16.msra.mxu0 %v3998
    %4190 = vmatprep.subr.bf16.mxu0 %v4007
    %4191 = vmatpush1.bf16.msra.mxu0 %v4006
    %4192 = vmatprep.subr.bf16.mxu0 %v4015
    %4193 = vmatpush1.bf16.msra.mxu0 %v4014
    %4194 = vmatprep.subr.bf16.mxu0 %v4023
    %4195 = vmatpush1.bf16.msra.mxu0 %v4022
    %4196 = vmatprep.subr.bf16.mxu0 %v4031
    %4197 = vmatpush1.bf16.msra.mxu0 %v4030
    %4198 = vmatprep.mubr.bf16.mxu0 %v3353
    %4199 = vmatmul.mubr.bf16.gmra.mrb[0].mxu0 %v3352
    %v4200 = vpop.f32.mrb[0].mxu0
    %v4201 = vadd.f32 %v3489, %v4200
    %v4202 = vpop.f32.mrb[0].mxu0
    %v4203 = vadd.f32 %v3493, %v4202
    %v4204 = vpop.f32.mrb[0].mxu0
    %v4205 = vpop.f32.mrb[0].mxu0
    %4206 = vdwg.mxu0
    %4207 = vmatprep.subr.bf16.mxu0 %v3913
    %4208 = vmatpush1.bf16.msra.mxu0 %v3912
    %4209 = vmatprep.subr.bf16.mxu0 %v3921
    %4210 = vmatpush1.bf16.msra.mxu0 %v3920
    %4211 = vmatprep.subr.bf16.mxu0 %v3929
    %4212 = vmatpush1.bf16.msra.mxu0 %v3928
    %4213 = vmatprep.subr.bf16.mxu0 %v3937
    %4214 = vmatpush1.bf16.msra.mxu0 %v3936
    %4215 = vmatprep.subr.bf16.mxu0 %v3945
    %4216 = vmatpush1.bf16.msra.mxu0 %v3944
    %4217 = vmatprep.subr.bf16.mxu0 %v3953
    %4218 = vmatpush1.bf16.msra.mxu0 %v3952
    %4219 = vmatprep.subr.bf16.mxu0 %v3961
    %4220 = vmatpush1.bf16.msra.mxu0 %v3960
    %4221 = vmatprep.subr.bf16.mxu0 %v3969
    %4222 = vmatpush1.bf16.msra.mxu0 %v3968
    %4223 = vmatprep.subr.bf16.mxu0 %v3977
    %4224 = vmatpush1.bf16.msra.mxu0 %v3976
    %4225 = vmatprep.subr.bf16.mxu0 %v3985
    %4226 = vmatpush1.bf16.msra.mxu0 %v3984
    %4227 = vmatprep.subr.bf16.mxu0 %v3993
    %4228 = vmatpush1.bf16.msra.mxu0 %v3992
    %4229 = vmatprep.subr.bf16.mxu0 %v4001
    %4230 = vmatpush1.bf16.msra.mxu0 %v4000
    %4231 = vmatprep.subr.bf16.mxu0 %v4009
    %4232 = vmatpush1.bf16.msra.mxu0 %v4008
    %4233 = vmatprep.subr.bf16.mxu0 %v4017
    %4234 = vmatpush1.bf16.msra.mxu0 %v4016
    %4235 = vmatprep.subr.bf16.mxu0 %v4025
    %4236 = vmatpush1.bf16.msra.mxu0 %v4024
    %4237 = vmatprep.subr.bf16.mxu0 %v4033
    %4238 = vmatpush1.bf16.msra.mxu0 %v4032
    %4239 = vmatprep.mubr.bf16.mxu0 %v3353
    %4240 = vmatmul.mubr.bf16.gmra.mrb[0].mxu0 %v3352
    %v4241 = vpop.f32.mrb[0].mxu0
    %v4242 = vadd.f32 %v3497, %v4241
    %v4243 = vpop.f32.mrb[0].mxu0
    %v4244 = vadd.f32 %v3501, %v4243
    %v4245 = vpop.f32.mrb[0].mxu0
    %v4246 = vpop.f32.mrb[0].mxu0
    %4247 = vdwg.mxu0
    %4248 = vmatprep.subr.bf16.mxu0 %v3915
    %4249 = vmatpush1.bf16.msra.mxu0 %v3914
    %4250 = vmatprep.subr.bf16.mxu0 %v3923
    %4251 = vmatpush1.bf16.msra.mxu0 %v3922
    %4252 = vmatprep.subr.bf16.mxu0 %v3931
    %4253 = vmatpush1.bf16.msra.mxu0 %v3930
    %4254 = vmatprep.subr.bf16.mxu0 %v3939
    %4255 = vmatpush1.bf16.msra.mxu0 %v3938
    %4256 = vmatprep.subr.bf16.mxu0 %v3947
    %4257 = vmatpush1.bf16.msra.mxu0 %v3946
    %4258 = vmatprep.subr.bf16.mxu0 %v3955
    %4259 = vmatpush1.bf16.msra.mxu0 %v3954
    %4260 = vmatprep.subr.bf16.mxu0 %v3963
    %4261 = vmatpush1.bf16.msra.mxu0 %v3962
    %4262 = vmatprep.subr.bf16.mxu0 %v3971
    %4263 = vmatpush1.bf16.msra.mxu0 %v3970
    %4264 = vmatprep.subr.bf16.mxu0 %v3979
    %4265 = vmatpush1.bf16.msra.mxu0 %v3978
    %4266 = vmatprep.subr.bf16.mxu0 %v3987
    %4267 = vmatpush1.bf16.msra.mxu0 %v3986
    %4268 = vmatprep.subr.bf16.mxu0 %v3995
    %4269 = vmatpush1.bf16.msra.mxu0 %v3994
    %4270 = vmatprep.subr.bf16.mxu0 %v4003
    %4271 = vmatpush1.bf16.msra.mxu0 %v4002
    %4272 = vmatprep.subr.bf16.mxu0 %v4011
    %4273 = vmatpush1.bf16.msra.mxu0 %v4010
    %4274 = vmatprep.subr.bf16.mxu0 %v4019
    %4275 = vmatpush1.bf16.msra.mxu0 %v4018
    %4276 = vmatprep.subr.bf16.mxu0 %v4027
    %4277 = vmatpush1.bf16.msra.mxu0 %v4026
    %4278 = vmatprep.subr.bf16.mxu0 %v4035
    %4279 = vmatpush1.bf16.msra.mxu0 %v4034
    %4280 = vmatprep.mubr.bf16.mxu0 %v3353
    %4281 = vmatmul.mubr.bf16.gmra.mrb[0].mxu0 %v3352
    %v4282 = vpop.f32.mrb[0].mxu0
    %v4283 = vadd.f32 %v3505, %v4282
    %v4284 = vpop.f32.mrb[0].mxu0
    %v4285 = vadd.f32 %v3509, %v4284
    %v4286 = vpop.f32.mrb[0].mxu0
    %v4287 = vpop.f32.mrb[0].mxu0
    %4288 = vdwg.mxu0
    %4289 = vmatprep.subr.bf16.mxu0 %v3917
    %4290 = vmatpush1.bf16.msra.mxu0 %v3916
    %4291 = vmatprep.subr.bf16.mxu0 %v3925
    %4292 = vmatpush1.bf16.msra.mxu0 %v3924
    %4293 = vmatprep.subr.bf16.mxu0 %v3933
    %4294 = vmatpush1.bf16.msra.mxu0 %v3932
    %4295 = vmatprep.subr.bf16.mxu0 %v3941
    %4296 = vmatpush1.bf16.msra.mxu0 %v3940
    %4297 = vmatprep.subr.bf16.mxu0 %v3949
    %4298 = vmatpush1.bf16.msra.mxu0 %v3948
    %4299 = vmatprep.subr.bf16.mxu0 %v3957
    %4300 = vmatpush1.bf16.msra.mxu0 %v3956
    %4301 = vmatprep.subr.bf16.mxu0 %v3965
    %4302 = vmatpush1.bf16.msra.mxu0 %v3964
    %4303 = vmatprep.subr.bf16.mxu0 %v3973
    %4304 = vmatpush1.bf16.msra.mxu0 %v3972
    %4305 = vmatprep.subr.bf16.mxu0 %v3981
    %4306 = vmatpush1.bf16.msra.mxu0 %v3980
    %4307 = vmatprep.subr.bf16.mxu0 %v3989
    %4308 = vmatpush1.bf16.msra.mxu0 %v3988
    %4309 = vmatprep.subr.bf16.mxu0 %v3997
    %4310 = vmatpush1.bf16.msra.mxu0 %v3996
    %4311 = vmatprep.subr.bf16.mxu0 %v4005
    %4312 = vmatpush1.bf16.msra.mxu0 %v4004
    %4313 = vmatprep.subr.bf16.mxu0 %v4013
    %4314 = vmatpush1.bf16.msra.mxu0 %v4012
    %4315 = vmatprep.subr.bf16.mxu0 %v4021
    %4316 = vmatpush1.bf16.msra.mxu0 %v4020
    %4317 = vmatprep.subr.bf16.mxu0 %v4029
    %4318 = vmatpush1.bf16.msra.mxu0 %v4028
    %4319 = vmatprep.subr.bf16.mxu0 %v4037
    %4320 = vmatpush1.bf16.msra.mxu0 %v4036
    %4321 = vmatprep.mubr.bf16.mxu0 %v3353
    %4322 = vmatmul.mubr.bf16.gmra.mrb[0].mxu0 %v3352
    %v4323 = vpop.f32.mrb[0].mxu0
    %v4324 = vadd.f32 %v3513, %v4323
    %v4325 = vpop.f32.mrb[0].mxu0
    %v4326 = vadd.f32 %v3517, %v4325
    %v4327 = vpop.f32.mrb[0].mxu0
    %v4328 = vpop.f32.mrb[0].mxu0
    %4329 = vdwg.mxu0
    %v4330 = vmax.f32 %v4201, 0.0
    %v4331 = vmax.f32 %v4203, 0.0
    %v4332 = vmax.f32 %v4242, 0.0
    %v4333 = vmax.f32 %v4244, 0.0
    %v4334 = vmax.f32 %v4283, 0.0
    %v4335 = vmax.f32 %v4285, 0.0
    %v4336 = vmax.f32 %v4324, 0.0
    %v4337 = vmax.f32 %v4326, 0.0
    %v4338 = vpack.c.bf16 %v4330, %v4330
    %v4339 = vpack.c.bf16 %v4331, %v4331
    %v4340 = vpack.c.bf16 %v4332, %v4332
    %v4341 = vpack.c.bf16 %v4333, %v4333
    %v4342 = vpack.c.bf16 %v4334, %v4334
    %v4343 = vpack.c.bf16 %v4335, %v4335
    %v4344 = vpack.c.bf16 %v4336, %v4336
    %v4345 = vpack.c.bf16 %v4337, %v4337
    %s4346 = scalar_lea.vmem [#allocation17], 1024
    %v4347 = vld [vmem:[%s4346] sm:$0xff]
    %v4348 = vld [vmem:[%s4346 + $0x8] sm:$0xff]
    %v4349 = vld [vmem:[%s4346 + $0x10] sm:$0xff]
    %v4350 = vld [vmem:[%s4346 + $0x18] sm:$0xff]
    %v4351 = vld [vmem:[%s4346 + $0x20] sm:$0xff]
    %v4352 = vld [vmem:[%s4346 + $0x28] sm:$0xff]
    %v4353 = vld [vmem:[%s4346 + $0x30] sm:$0xff]
    %v4354 = vld [vmem:[%s4346 + $0x38] sm:$0xff]
    %v4355 = vld [vmem:[%s4346 + $0x40] sm:$0xff]
    %v4356 = vld [vmem:[%s4346 + $0x48] sm:$0xff]
    %v4357 = vld [vmem:[%s4346 + $0x50] sm:$0xff]
    %v4358 = vld [vmem:[%s4346 + $0x58] sm:$0xff]
    %v4359 = vld [vmem:[%s4346 + $0x60] sm:$0xff]
    %v4360 = vld [vmem:[%s4346 + $0x68] sm:$0xff]
    %v4361 = vld [vmem:[%s4346 + $0x70] sm:$0xff]
    %v4362 = vld [vmem:[%s4346 + $0x78] sm:$0xff]
    %v4363 = vld [vmem:[%s4346 + $0x80] sm:$0xff]
    %v4364 = vld [vmem:[%s4346 + $0x88] sm:$0xff]
    %v4365 = vld [vmem:[%s4346 + $0x90] sm:$0xff]
    %v4366 = vld [vmem:[%s4346 + $0x98] sm:$0xff]
    %v4367 = vld [vmem:[%s4346 + $0xa0] sm:$0xff]
    %v4368 = vld [vmem:[%s4346 + $0xa8] sm:$0xff]
    %v4369 = vld [vmem:[%s4346 + $0xb0] sm:$0xff]
    %v4370 = vld [vmem:[%s4346 + $0xb8] sm:$0xff]
    %v4371 = vld [vmem:[%s4346 + $0xc0] sm:$0xff]
    %v4372 = vld [vmem:[%s4346 + $0xc8] sm:$0xff]
    %v4373 = vld [vmem:[%s4346 + $0xd0] sm:$0xff]
    %v4374 = vld [vmem:[%s4346 + $0xd8] sm:$0xff]
    %v4375 = vld [vmem:[%s4346 + $0xe0] sm:$0xff]
    %v4376 = vld [vmem:[%s4346 + $0xe8] sm:$0xff]
    %v4377 = vld [vmem:[%s4346 + $0xf0] sm:$0xff]
    %v4378 = vld [vmem:[%s4346 + $0xf8] sm:$0xff]
    %v4379 = vld [vmem:[%s4346 + $0x100] sm:$0xff]
    %v4380 = vld [vmem:[%s4346 + $0x108] sm:$0xff]
    %v4381 = vld [vmem:[%s4346 + $0x110] sm:$0xff]
    %v4382 = vld [vmem:[%s4346 + $0x118] sm:$0xff]
    %v4383 = vld [vmem:[%s4346 + $0x120] sm:$0xff]
    %v4384 = vld [vmem:[%s4346 + $0x128] sm:$0xff]
    %v4385 = vld [vmem:[%s4346 + $0x130] sm:$0xff]
    %v4386 = vld [vmem:[%s4346 + $0x138] sm:$0xff]
    %v4387 = vld [vmem:[%s4346 + $0x140] sm:$0xff]
    %v4388 = vld [vmem:[%s4346 + $0x148] sm:$0xff]
    %v4389 = vld [vmem:[%s4346 + $0x150] sm:$0xff]
    %v4390 = vld [vmem:[%s4346 + $0x158] sm:$0xff]
    %v4391 = vld [vmem:[%s4346 + $0x160] sm:$0xff]
    %v4392 = vld [vmem:[%s4346 + $0x168] sm:$0xff]
    %v4393 = vld [vmem:[%s4346 + $0x170] sm:$0xff]
    %v4394 = vld [vmem:[%s4346 + $0x178] sm:$0xff]
    %v4395 = vld [vmem:[%s4346 + $0x180] sm:$0xff]
    %v4396 = vld [vmem:[%s4346 + $0x188] sm:$0xff]
    %v4397 = vld [vmem:[%s4346 + $0x190] sm:$0xff]
    %v4398 = vld [vmem:[%s4346 + $0x198] sm:$0xff]
    %v4399 = vld [vmem:[%s4346 + $0x1a0] sm:$0xff]
    %v4400 = vld [vmem:[%s4346 + $0x1a8] sm:$0xff]
    %v4401 = vld [vmem:[%s4346 + $0x1b0] sm:$0xff]
    %v4402 = vld [vmem:[%s4346 + $0x1b8] sm:$0xff]
    %v4403 = vld [vmem:[%s4346 + $0x1c0] sm:$0xff]
    %v4404 = vld [vmem:[%s4346 + $0x1c8] sm:$0xff]
    %v4405 = vld [vmem:[%s4346 + $0x1d0] sm:$0xff]
    %v4406 = vld [vmem:[%s4346 + $0x1d8] sm:$0xff]
    %v4407 = vld [vmem:[%s4346 + $0x1e0] sm:$0xff]
    %v4408 = vld [vmem:[%s4346 + $0x1e8] sm:$0xff]
    %v4409 = vld [vmem:[%s4346 + $0x1f0] sm:$0xff]
    %v4410 = vld [vmem:[%s4346 + $0x1f8] sm:$0xff]
    %v4411 = vld [vmem:[%s4346 + $0x200] sm:$0xff]
    %v4412 = vld [vmem:[%s4346 + $0x208] sm:$0xff]
    %v4413 = vld [vmem:[%s4346 + $0x210] sm:$0xff]
    %v4414 = vld [vmem:[%s4346 + $0x218] sm:$0xff]
    %v4415 = vld [vmem:[%s4346 + $0x220] sm:$0xff]
    %v4416 = vld [vmem:[%s4346 + $0x228] sm:$0xff]
    %v4417 = vld [vmem:[%s4346 + $0x230] sm:$0xff]
    %v4418 = vld [vmem:[%s4346 + $0x238] sm:$0xff]
    %v4419 = vld [vmem:[%s4346 + $0x240] sm:$0xff]
    %v4420 = vld [vmem:[%s4346 + $0x248] sm:$0xff]
    %v4421 = vld [vmem:[%s4346 + $0x250] sm:$0xff]
    %v4422 = vld [vmem:[%s4346 + $0x258] sm:$0xff]
    %v4423 = vld [vmem:[%s4346 + $0x260] sm:$0xff]
    %v4424 = vld [vmem:[%s4346 + $0x268] sm:$0xff]
    %v4425 = vld [vmem:[%s4346 + $0x270] sm:$0xff]
    %v4426 = vld [vmem:[%s4346 + $0x278] sm:$0xff]
    %v4427 = vld [vmem:[%s4346 + $0x280] sm:$0xff]
    %v4428 = vld [vmem:[%s4346 + $0x288] sm:$0xff]
    %v4429 = vld [vmem:[%s4346 + $0x290] sm:$0xff]
    %v4430 = vld [vmem:[%s4346 + $0x298] sm:$0xff]
    %v4431 = vld [vmem:[%s4346 + $0x2a0] sm:$0xff]
    %v4432 = vld [vmem:[%s4346 + $0x2a8] sm:$0xff]
    %v4433 = vld [vmem:[%s4346 + $0x2b0] sm:$0xff]
    %v4434 = vld [vmem:[%s4346 + $0x2b8] sm:$0xff]
    %v4435 = vld [vmem:[%s4346 + $0x2c0] sm:$0xff]
    %v4436 = vld [vmem:[%s4346 + $0x2c8] sm:$0xff]
    %v4437 = vld [vmem:[%s4346 + $0x2d0] sm:$0xff]
    %v4438 = vld [vmem:[%s4346 + $0x2d8] sm:$0xff]
    %v4439 = vld [vmem:[%s4346 + $0x2e0] sm:$0xff]
    %v4440 = vld [vmem:[%s4346 + $0x2e8] sm:$0xff]
    %v4441 = vld [vmem:[%s4346 + $0x2f0] sm:$0xff]
    %v4442 = vld [vmem:[%s4346 + $0x2f8] sm:$0xff]
    %v4443 = vld [vmem:[%s4346 + $0x300] sm:$0xff]
    %v4444 = vld [vmem:[%s4346 + $0x308] sm:$0xff]
    %v4445 = vld [vmem:[%s4346 + $0x310] sm:$0xff]
    %v4446 = vld [vmem:[%s4346 + $0x318] sm:$0xff]
    %v4447 = vld [vmem:[%s4346 + $0x320] sm:$0xff]
    %v4448 = vld [vmem:[%s4346 + $0x328] sm:$0xff]
    %v4449 = vld [vmem:[%s4346 + $0x330] sm:$0xff]
    %v4450 = vld [vmem:[%s4346 + $0x338] sm:$0xff]
    %v4451 = vld [vmem:[%s4346 + $0x340] sm:$0xff]
    %v4452 = vld [vmem:[%s4346 + $0x348] sm:$0xff]
    %v4453 = vld [vmem:[%s4346 + $0x350] sm:$0xff]
    %v4454 = vld [vmem:[%s4346 + $0x358] sm:$0xff]
    %v4455 = vld [vmem:[%s4346 + $0x360] sm:$0xff]
    %v4456 = vld [vmem:[%s4346 + $0x368] sm:$0xff]
    %v4457 = vld [vmem:[%s4346 + $0x370] sm:$0xff]
    %v4458 = vld [vmem:[%s4346 + $0x378] sm:$0xff]
    %v4459 = vld [vmem:[%s4346 + $0x380] sm:$0xff]
    %v4460 = vld [vmem:[%s4346 + $0x388] sm:$0xff]
    %v4461 = vld [vmem:[%s4346 + $0x390] sm:$0xff]
    %v4462 = vld [vmem:[%s4346 + $0x398] sm:$0xff]
    %v4463 = vld [vmem:[%s4346 + $0x3a0] sm:$0xff]
    %v4464 = vld [vmem:[%s4346 + $0x3a8] sm:$0xff]
    %v4465 = vld [vmem:[%s4346 + $0x3b0] sm:$0xff]
    %v4466 = vld [vmem:[%s4346 + $0x3b8] sm:$0xff]
    %v4467 = vld [vmem:[%s4346 + $0x3c0] sm:$0xff]
    %v4468 = vld [vmem:[%s4346 + $0x3c8] sm:$0xff]
    %v4469 = vld [vmem:[%s4346 + $0x3d0] sm:$0xff]
    %v4470 = vld [vmem:[%s4346 + $0x3d8] sm:$0xff]
    %v4471 = vld [vmem:[%s4346 + $0x3e0] sm:$0xff]
    %v4472 = vld [vmem:[%s4346 + $0x3e8] sm:$0xff]
    %v4473 = vld [vmem:[%s4346 + $0x3f0] sm:$0xff]
    %v4474 = vld [vmem:[%s4346 + $0x3f8] sm:$0xff]
    %s4475 = scalar_lea.vmem [#allocation19], 2
    %v4476 = vld [vmem:[%s4475] sm:$0x3]
    %v4478 = vlaneseq
    %v4479 = vshrl.u32 %v4478, 7
    %v4480 = vsub.s32 0, %v4479
    %v4481 = vrot.slane %v4476, %v4480
    %v4482 = vlaneseq
    %v4483 = vshrl.u32 %v4482, 7
    %v4484 = vsub.s32 1, %v4483
    %v4485 = vrot.slane %v4476, %v4484
    %v4616 = vunpack.c.l.b16 %v4347
    %v4617 = vunpack.c.h.b16 %v4347
    %v4618 = vunpack.c.l.b16 %v4348
    %v4619 = vunpack.c.h.b16 %v4348
    %v4620 = vunpack.c.l.b16 %v4349
    %v4621 = vunpack.c.h.b16 %v4349
    %v4622 = vunpack.c.l.b16 %v4350
    %v4623 = vunpack.c.h.b16 %v4350
    %v4624 = vunpack.c.l.b16 %v4351
    %v4625 = vunpack.c.h.b16 %v4351
    %v4626 = vunpack.c.l.b16 %v4352
    %v4627 = vunpack.c.h.b16 %v4352
    %v4628 = vunpack.c.l.b16 %v4353
    %v4629 = vunpack.c.h.b16 %v4353
    %v4630 = vunpack.c.l.b16 %v4354
    %v4631 = vunpack.c.h.b16 %v4354
    %v4632 = vunpack.c.l.b16 %v4355
    %v4633 = vunpack.c.h.b16 %v4355
    %v4634 = vunpack.c.l.b16 %v4356
    %v4635 = vunpack.c.h.b16 %v4356
    %v4636 = vunpack.c.l.b16 %v4357
    %v4637 = vunpack.c.h.b16 %v4357
    %v4638 = vunpack.c.l.b16 %v4358
    %v4639 = vunpack.c.h.b16 %v4358
    %v4640 = vunpack.c.l.b16 %v4359
    %v4641 = vunpack.c.h.b16 %v4359
    %v4642 = vunpack.c.l.b16 %v4360
    %v4643 = vunpack.c.h.b16 %v4360
    %v4644 = vunpack.c.l.b16 %v4361
    %v4645 = vunpack.c.h.b16 %v4361
    %v4646 = vunpack.c.l.b16 %v4362
    %v4647 = vunpack.c.h.b16 %v4362
    %v4648 = vunpack.c.l.b16 %v4363
    %v4649 = vunpack.c.h.b16 %v4363
    %v4650 = vunpack.c.l.b16 %v4364
    %v4651 = vunpack.c.h.b16 %v4364
    %v4652 = vunpack.c.l.b16 %v4365
    %v4653 = vunpack.c.h.b16 %v4365
    %v4654 = vunpack.c.l.b16 %v4366
    %v4655 = vunpack.c.h.b16 %v4366
    %v4656 = vunpack.c.l.b16 %v4367
    %v4657 = vunpack.c.h.b16 %v4367
    %v4658 = vunpack.c.l.b16 %v4368
    %v4659 = vunpack.c.h.b16 %v4368
    %v4660 = vunpack.c.l.b16 %v4369
    %v4661 = vunpack.c.h.b16 %v4369
    %v4662 = vunpack.c.l.b16 %v4370
    %v4663 = vunpack.c.h.b16 %v4370
    %v4664 = vunpack.c.l.b16 %v4371
    %v4665 = vunpack.c.h.b16 %v4371
    %v4666 = vunpack.c.l.b16 %v4372
    %v4667 = vunpack.c.h.b16 %v4372
    %v4668 = vunpack.c.l.b16 %v4373
    %v4669 = vunpack.c.h.b16 %v4373
    %v4670 = vunpack.c.l.b16 %v4374
    %v4671 = vunpack.c.h.b16 %v4374
    %v4672 = vunpack.c.l.b16 %v4375
    %v4673 = vunpack.c.h.b16 %v4375
    %v4674 = vunpack.c.l.b16 %v4376
    %v4675 = vunpack.c.h.b16 %v4376
    %v4676 = vunpack.c.l.b16 %v4377
    %v4677 = vunpack.c.h.b16 %v4377
    %v4678 = vunpack.c.l.b16 %v4378
    %v4679 = vunpack.c.h.b16 %v4378
    %v4680 = vunpack.c.l.b16 %v4379
    %v4681 = vunpack.c.h.b16 %v4379
    %v4682 = vunpack.c.l.b16 %v4380
    %v4683 = vunpack.c.h.b16 %v4380
    %v4684 = vunpack.c.l.b16 %v4381
    %v4685 = vunpack.c.h.b16 %v4381
    %v4686 = vunpack.c.l.b16 %v4382
    %v4687 = vunpack.c.h.b16 %v4382
    %v4688 = vunpack.c.l.b16 %v4383
    %v4689 = vunpack.c.h.b16 %v4383
    %v4690 = vunpack.c.l.b16 %v4384
    %v4691 = vunpack.c.h.b16 %v4384
    %v4692 = vunpack.c.l.b16 %v4385
    %v4693 = vunpack.c.h.b16 %v4385
    %v4694 = vunpack.c.l.b16 %v4386
    %v4695 = vunpack.c.h.b16 %v4386
    %v4696 = vunpack.c.l.b16 %v4387
    %v4697 = vunpack.c.h.b16 %v4387
    %v4698 = vunpack.c.l.b16 %v4388
    %v4699 = vunpack.c.h.b16 %v4388
    %v4700 = vunpack.c.l.b16 %v4389
    %v4701 = vunpack.c.h.b16 %v4389
    %v4702 = vunpack.c.l.b16 %v4390
    %v4703 = vunpack.c.h.b16 %v4390
    %v4704 = vunpack.c.l.b16 %v4391
    %v4705 = vunpack.c.h.b16 %v4391
    %v4706 = vunpack.c.l.b16 %v4392
    %v4707 = vunpack.c.h.b16 %v4392
    %v4708 = vunpack.c.l.b16 %v4393
    %v4709 = vunpack.c.h.b16 %v4393
    %v4710 = vunpack.c.l.b16 %v4394
    %v4711 = vunpack.c.h.b16 %v4394
    %v4712 = vunpack.c.l.b16 %v4395
    %v4713 = vunpack.c.h.b16 %v4395
    %v4714 = vunpack.c.l.b16 %v4396
    %v4715 = vunpack.c.h.b16 %v4396
    %v4716 = vunpack.c.l.b16 %v4397
    %v4717 = vunpack.c.h.b16 %v4397
    %v4718 = vunpack.c.l.b16 %v4398
    %v4719 = vunpack.c.h.b16 %v4398
    %v4720 = vunpack.c.l.b16 %v4399
    %v4721 = vunpack.c.h.b16 %v4399
    %v4722 = vunpack.c.l.b16 %v4400
    %v4723 = vunpack.c.h.b16 %v4400
    %v4724 = vunpack.c.l.b16 %v4401
    %v4725 = vunpack.c.h.b16 %v4401
    %v4726 = vunpack.c.l.b16 %v4402
    %v4727 = vunpack.c.h.b16 %v4402
    %v4728 = vunpack.c.l.b16 %v4403
    %v4729 = vunpack.c.h.b16 %v4403
    %v4730 = vunpack.c.l.b16 %v4404
    %v4731 = vunpack.c.h.b16 %v4404
    %v4732 = vunpack.c.l.b16 %v4405
    %v4733 = vunpack.c.h.b16 %v4405
    %v4734 = vunpack.c.l.b16 %v4406
    %v4735 = vunpack.c.h.b16 %v4406
    %v4736 = vunpack.c.l.b16 %v4407
    %v4737 = vunpack.c.h.b16 %v4407
    %v4738 = vunpack.c.l.b16 %v4408
    %v4739 = vunpack.c.h.b16 %v4408
    %v4740 = vunpack.c.l.b16 %v4409
    %v4741 = vunpack.c.h.b16 %v4409
    %v4742 = vunpack.c.l.b16 %v4410
    %v4743 = vunpack.c.h.b16 %v4410
    %v4744 = vunpack.c.l.b16 %v4411
    %v4745 = vunpack.c.h.b16 %v4411
    %v4746 = vunpack.c.l.b16 %v4412
    %v4747 = vunpack.c.h.b16 %v4412
    %v4748 = vunpack.c.l.b16 %v4413
    %v4749 = vunpack.c.h.b16 %v4413
    %v4750 = vunpack.c.l.b16 %v4414
    %v4751 = vunpack.c.h.b16 %v4414
    %v4752 = vunpack.c.l.b16 %v4415
    %v4753 = vunpack.c.h.b16 %v4415
    %v4754 = vunpack.c.l.b16 %v4416
    %v4755 = vunpack.c.h.b16 %v4416
    %v4756 = vunpack.c.l.b16 %v4417
    %v4757 = vunpack.c.h.b16 %v4417
    %v4758 = vunpack.c.l.b16 %v4418
    %v4759 = vunpack.c.h.b16 %v4418
    %v4760 = vunpack.c.l.b16 %v4419
    %v4761 = vunpack.c.h.b16 %v4419
    %v4762 = vunpack.c.l.b16 %v4420
    %v4763 = vunpack.c.h.b16 %v4420
    %v4764 = vunpack.c.l.b16 %v4421
    %v4765 = vunpack.c.h.b16 %v4421
    %v4766 = vunpack.c.l.b16 %v4422
    %v4767 = vunpack.c.h.b16 %v4422
    %v4768 = vunpack.c.l.b16 %v4423
    %v4769 = vunpack.c.h.b16 %v4423
    %v4770 = vunpack.c.l.b16 %v4424
    %v4771 = vunpack.c.h.b16 %v4424
    %v4772 = vunpack.c.l.b16 %v4425
    %v4773 = vunpack.c.h.b16 %v4425
    %v4774 = vunpack.c.l.b16 %v4426
    %v4775 = vunpack.c.h.b16 %v4426
    %v4776 = vunpack.c.l.b16 %v4427
    %v4777 = vunpack.c.h.b16 %v4427
    %v4778 = vunpack.c.l.b16 %v4428
    %v4779 = vunpack.c.h.b16 %v4428
    %v4780 = vunpack.c.l.b16 %v4429
    %v4781 = vunpack.c.h.b16 %v4429
    %v4782 = vunpack.c.l.b16 %v4430
    %v4783 = vunpack.c.h.b16 %v4430
    %v4784 = vunpack.c.l.b16 %v4431
    %v4785 = vunpack.c.h.b16 %v4431
    %v4786 = vunpack.c.l.b16 %v4432
    %v4787 = vunpack.c.h.b16 %v4432
    %v4788 = vunpack.c.l.b16 %v4433
    %v4789 = vunpack.c.h.b16 %v4433
    %v4790 = vunpack.c.l.b16 %v4434
    %v4791 = vunpack.c.h.b16 %v4434
    %v4792 = vunpack.c.l.b16 %v4435
    %v4793 = vunpack.c.h.b16 %v4435
    %v4794 = vunpack.c.l.b16 %v4436
    %v4795 = vunpack.c.h.b16 %v4436
    %v4796 = vunpack.c.l.b16 %v4437
    %v4797 = vunpack.c.h.b16 %v4437
    %v4798 = vunpack.c.l.b16 %v4438
    %v4799 = vunpack.c.h.b16 %v4438
    %v4800 = vunpack.c.l.b16 %v4439
    %v4801 = vunpack.c.h.b16 %v4439
    %v4802 = vunpack.c.l.b16 %v4440
    %v4803 = vunpack.c.h.b16 %v4440
    %v4804 = vunpack.c.l.b16 %v4441
    %v4805 = vunpack.c.h.b16 %v4441
    %v4806 = vunpack.c.l.b16 %v4442
    %v4807 = vunpack.c.h.b16 %v4442
    %v4808 = vunpack.c.l.b16 %v4443
    %v4809 = vunpack.c.h.b16 %v4443
    %v4810 = vunpack.c.l.b16 %v4444
    %v4811 = vunpack.c.h.b16 %v4444
    %v4812 = vunpack.c.l.b16 %v4445
    %v4813 = vunpack.c.h.b16 %v4445
    %v4814 = vunpack.c.l.b16 %v4446
    %v4815 = vunpack.c.h.b16 %v4446
    %v4816 = vunpack.c.l.b16 %v4447
    %v4817 = vunpack.c.h.b16 %v4447
    %v4818 = vunpack.c.l.b16 %v4448
    %v4819 = vunpack.c.h.b16 %v4448
    %v4820 = vunpack.c.l.b16 %v4449
    %v4821 = vunpack.c.h.b16 %v4449
    %v4822 = vunpack.c.l.b16 %v4450
    %v4823 = vunpack.c.h.b16 %v4450
    %v4824 = vunpack.c.l.b16 %v4451
    %v4825 = vunpack.c.h.b16 %v4451
    %v4826 = vunpack.c.l.b16 %v4452
    %v4827 = vunpack.c.h.b16 %v4452
    %v4828 = vunpack.c.l.b16 %v4453
    %v4829 = vunpack.c.h.b16 %v4453
    %v4830 = vunpack.c.l.b16 %v4454
    %v4831 = vunpack.c.h.b16 %v4454
    %v4832 = vunpack.c.l.b16 %v4455
    %v4833 = vunpack.c.h.b16 %v4455
    %v4834 = vunpack.c.l.b16 %v4456
    %v4835 = vunpack.c.h.b16 %v4456
    %v4836 = vunpack.c.l.b16 %v4457
    %v4837 = vunpack.c.h.b16 %v4457
    %v4838 = vunpack.c.l.b16 %v4458
    %v4839 = vunpack.c.h.b16 %v4458
    %v4840 = vunpack.c.l.b16 %v4459
    %v4841 = vunpack.c.h.b16 %v4459
    %v4842 = vunpack.c.l.b16 %v4460
    %v4843 = vunpack.c.h.b16 %v4460
    %v4844 = vunpack.c.l.b16 %v4461
    %v4845 = vunpack.c.h.b16 %v4461
    %v4846 = vunpack.c.l.b16 %v4462
    %v4847 = vunpack.c.h.b16 %v4462
    %v4848 = vunpack.c.l.b16 %v4463
    %v4849 = vunpack.c.h.b16 %v4463
    %v4850 = vunpack.c.l.b16 %v4464
    %v4851 = vunpack.c.h.b16 %v4464
    %v4852 = vunpack.c.l.b16 %v4465
    %v4853 = vunpack.c.h.b16 %v4465
    %v4854 = vunpack.c.l.b16 %v4466
    %v4855 = vunpack.c.h.b16 %v4466
    %v4856 = vunpack.c.l.b16 %v4467
    %v4857 = vunpack.c.h.b16 %v4467
    %v4858 = vunpack.c.l.b16 %v4468
    %v4859 = vunpack.c.h.b16 %v4468
    %v4860 = vunpack.c.l.b16 %v4469
    %v4861 = vunpack.c.h.b16 %v4469
    %v4862 = vunpack.c.l.b16 %v4470
    %v4863 = vunpack.c.h.b16 %v4470
    %v4864 = vunpack.c.l.b16 %v4471
    %v4865 = vunpack.c.h.b16 %v4471
    %v4866 = vunpack.c.l.b16 %v4472
    %v4867 = vunpack.c.h.b16 %v4472
    %v4868 = vunpack.c.l.b16 %v4473
    %v4869 = vunpack.c.h.b16 %v4473
    %v4870 = vunpack.c.l.b16 %v4474
    %v4871 = vunpack.c.h.b16 %v4474
    %v4872 = vpack.c.b16 %v4618, %v4616
    %v4873 = vpack.c.b16 %v4619, %v4617
    %v4874 = vpack.c.b16 %v4622, %v4620
    %v4875 = vpack.c.b16 %v4623, %v4621
    %v4876 = vpack.c.b16 %v4626, %v4624
    %v4877 = vpack.c.b16 %v4627, %v4625
    %v4878 = vpack.c.b16 %v4630, %v4628
    %v4879 = vpack.c.b16 %v4631, %v4629
    %v4880 = vpack.c.b16 %v4634, %v4632
    %v4881 = vpack.c.b16 %v4635, %v4633
    %v4882 = vpack.c.b16 %v4638, %v4636
    %v4883 = vpack.c.b16 %v4639, %v4637
    %v4884 = vpack.c.b16 %v4642, %v4640
    %v4885 = vpack.c.b16 %v4643, %v4641
    %v4886 = vpack.c.b16 %v4646, %v4644
    %v4887 = vpack.c.b16 %v4647, %v4645
    %v4888 = vpack.c.b16 %v4650, %v4648
    %v4889 = vpack.c.b16 %v4651, %v4649
    %v4890 = vpack.c.b16 %v4654, %v4652
    %v4891 = vpack.c.b16 %v4655, %v4653
    %v4892 = vpack.c.b16 %v4658, %v4656
    %v4893 = vpack.c.b16 %v4659, %v4657
    %v4894 = vpack.c.b16 %v4662, %v4660
    %v4895 = vpack.c.b16 %v4663, %v4661
    %v4896 = vpack.c.b16 %v4666, %v4664
    %v4897 = vpack.c.b16 %v4667, %v4665
    %v4898 = vpack.c.b16 %v4670, %v4668
    %v4899 = vpack.c.b16 %v4671, %v4669
    %v4900 = vpack.c.b16 %v4674, %v4672
    %v4901 = vpack.c.b16 %v4675, %v4673
    %v4902 = vpack.c.b16 %v4678, %v4676
    %v4903 = vpack.c.b16 %v4679, %v4677
    %v4904 = vpack.c.b16 %v4682, %v4680
    %v4905 = vpack.c.b16 %v4683, %v4681
    %v4906 = vpack.c.b16 %v4686, %v4684
    %v4907 = vpack.c.b16 %v4687, %v4685
    %v4908 = vpack.c.b16 %v4690, %v4688
    %v4909 = vpack.c.b16 %v4691, %v4689
    %v4910 = vpack.c.b16 %v4694, %v4692
    %v4911 = vpack.c.b16 %v4695, %v4693
    %v4912 = vpack.c.b16 %v4698, %v4696
    %v4913 = vpack.c.b16 %v4699, %v4697
    %v4914 = vpack.c.b16 %v4702, %v4700
    %v4915 = vpack.c.b16 %v4703, %v4701
    %v4916 = vpack.c.b16 %v4706, %v4704
    %v4917 = vpack.c.b16 %v4707, %v4705
    %v4918 = vpack.c.b16 %v4710, %v4708
    %v4919 = vpack.c.b16 %v4711, %v4709
    %v4920 = vpack.c.b16 %v4714, %v4712
    %v4921 = vpack.c.b16 %v4715, %v4713
    %v4922 = vpack.c.b16 %v4718, %v4716
    %v4923 = vpack.c.b16 %v4719, %v4717
    %v4924 = vpack.c.b16 %v4722, %v4720
    %v4925 = vpack.c.b16 %v4723, %v4721
    %v4926 = vpack.c.b16 %v4726, %v4724
    %v4927 = vpack.c.b16 %v4727, %v4725
    %v4928 = vpack.c.b16 %v4730, %v4728
    %v4929 = vpack.c.b16 %v4731, %v4729
    %v4930 = vpack.c.b16 %v4734, %v4732
    %v4931 = vpack.c.b16 %v4735, %v4733
    %v4932 = vpack.c.b16 %v4738, %v4736
    %v4933 = vpack.c.b16 %v4739, %v4737
    %v4934 = vpack.c.b16 %v4742, %v4740
    %v4935 = vpack.c.b16 %v4743, %v4741
    %v4936 = vpack.c.b16 %v4746, %v4744
    %v4937 = vpack.c.b16 %v4747, %v4745
    %v4938 = vpack.c.b16 %v4750, %v4748
    %v4939 = vpack.c.b16 %v4751, %v4749
    %v4940 = vpack.c.b16 %v4754, %v4752
    %v4941 = vpack.c.b16 %v4755, %v4753
    %v4942 = vpack.c.b16 %v4758, %v4756
    %v4943 = vpack.c.b16 %v4759, %v4757
    %v4944 = vpack.c.b16 %v4762, %v4760
    %v4945 = vpack.c.b16 %v4763, %v4761
    %v4946 = vpack.c.b16 %v4766, %v4764
    %v4947 = vpack.c.b16 %v4767, %v4765
    %v4948 = vpack.c.b16 %v4770, %v4768
    %v4949 = vpack.c.b16 %v4771, %v4769
    %v4950 = vpack.c.b16 %v4774, %v4772
    %v4951 = vpack.c.b16 %v4775, %v4773
    %v4952 = vpack.c.b16 %v4778, %v4776
    %v4953 = vpack.c.b16 %v4779, %v4777
    %v4954 = vpack.c.b16 %v4782, %v4780
    %v4955 = vpack.c.b16 %v4783, %v4781
    %v4956 = vpack.c.b16 %v4786, %v4784
    %v4957 = vpack.c.b16 %v4787, %v4785
    %v4958 = vpack.c.b16 %v4790, %v4788
    %v4959 = vpack.c.b16 %v4791, %v4789
    %v4960 = vpack.c.b16 %v4794, %v4792
    %v4961 = vpack.c.b16 %v4795, %v4793
    %v4962 = vpack.c.b16 %v4798, %v4796
    %v4963 = vpack.c.b16 %v4799, %v4797
    %v4964 = vpack.c.b16 %v4802, %v4800
    %v4965 = vpack.c.b16 %v4803, %v4801
    %v4966 = vpack.c.b16 %v4806, %v4804
    %v4967 = vpack.c.b16 %v4807, %v4805
    %v4968 = vpack.c.b16 %v4810, %v4808
    %v4969 = vpack.c.b16 %v4811, %v4809
    %v4970 = vpack.c.b16 %v4814, %v4812
    %v4971 = vpack.c.b16 %v4815, %v4813
    %v4972 = vpack.c.b16 %v4818, %v4816
    %v4973 = vpack.c.b16 %v4819, %v4817
    %v4974 = vpack.c.b16 %v4822, %v4820
    %v4975 = vpack.c.b16 %v4823, %v4821
    %v4976 = vpack.c.b16 %v4826, %v4824
    %v4977 = vpack.c.b16 %v4827, %v4825
    %v4978 = vpack.c.b16 %v4830, %v4828
    %v4979 = vpack.c.b16 %v4831, %v4829
    %v4980 = vpack.c.b16 %v4834, %v4832
    %v4981 = vpack.c.b16 %v4835, %v4833
    %v4982 = vpack.c.b16 %v4838, %v4836
    %v4983 = vpack.c.b16 %v4839, %v4837
    %v4984 = vpack.c.b16 %v4842, %v4840
    %v4985 = vpack.c.b16 %v4843, %v4841
    %v4986 = vpack.c.b16 %v4846, %v4844
    %v4987 = vpack.c.b16 %v4847, %v4845
    %v4988 = vpack.c.b16 %v4850, %v4848
    %v4989 = vpack.c.b16 %v4851, %v4849
    %v4990 = vpack.c.b16 %v4854, %v4852
    %v4991 = vpack.c.b16 %v4855, %v4853
    %v4992 = vpack.c.b16 %v4858, %v4856
    %v4993 = vpack.c.b16 %v4859, %v4857
    %v4994 = vpack.c.b16 %v4862, %v4860
    %v4995 = vpack.c.b16 %v4863, %v4861
    %v4996 = vpack.c.b16 %v4866, %v4864
    %v4997 = vpack.c.b16 %v4867, %v4865
    %v4998 = vpack.c.b16 %v4870, %v4868
    %v4999 = vpack.c.b16 %v4871, %v4869
    %5128 = vmatprep.subr.bf16.mxu0 %v4873
    %5129 = vmatpush1.bf16.msra.mxu0 %v4872
    %5130 = vmatprep.subr.bf16.mxu0 %v4875
    %5131 = vmatpush1.bf16.msra.mxu0 %v4874
    %5132 = vmatprep.subr.bf16.mxu0 %v4877
    %5133 = vmatpush1.bf16.msra.mxu0 %v4876
    %5134 = vmatprep.subr.bf16.mxu0 %v4879
    %5135 = vmatpush1.bf16.msra.mxu0 %v4878
    %5136 = vmatprep.subr.bf16.mxu0 %v4881
    %5137 = vmatpush1.bf16.msra.mxu0 %v4880
    %5138 = vmatprep.subr.bf16.mxu0 %v4883
    %5139 = vmatpush1.bf16.msra.mxu0 %v4882
    %5140 = vmatprep.subr.bf16.mxu0 %v4885
    %5141 = vmatpush1.bf16.msra.mxu0 %v4884
    %5142 = vmatprep.subr.bf16.mxu0 %v4887
    %5143 = vmatpush1.bf16.msra.mxu0 %v4886
    %5144 = vmatprep.subr.bf16.mxu0 %v4889
    %5145 = vmatpush1.bf16.msra.mxu0 %v4888
    %5146 = vmatprep.subr.bf16.mxu0 %v4891
    %5147 = vmatpush1.bf16.msra.mxu0 %v4890
    %5148 = vmatprep.subr.bf16.mxu0 %v4893
    %5149 = vmatpush1.bf16.msra.mxu0 %v4892
    %5150 = vmatprep.subr.bf16.mxu0 %v4895
    %5151 = vmatpush1.bf16.msra.mxu0 %v4894
    %5152 = vmatprep.subr.bf16.mxu0 %v4897
    %5153 = vmatpush1.bf16.msra.mxu0 %v4896
    %5154 = vmatprep.subr.bf16.mxu0 %v4899
    %5155 = vmatpush1.bf16.msra.mxu0 %v4898
    %5156 = vmatprep.subr.bf16.mxu0 %v4901
    %5157 = vmatpush1.bf16.msra.mxu0 %v4900
    %5158 = vmatprep.subr.bf16.mxu0 %v4903
    %5159 = vmatpush1.bf16.msra.mxu0 %v4902
    %5160 = vmatprep.mubr.bf16.mxu0 %v4339
    %5161 = vmatmul.mubr.bf16.gmra.mrb[0].mxu0 %v4338
    %v5162 = vpop.f32.mrb[0].mxu0
    %v5163 = vadd.f32 %v4481, %v5162
    %v5164 = vpop.f32.mrb[0].mxu0
    %v5165 = vadd.f32 %v4485, %v5164
    %v5166 = vpop.f32.mrb[0].mxu0
    %v5167 = vpop.f32.mrb[0].mxu0
    %5168 = vdwg.mxu0
    %5169 = vmatprep.subr.bf16.mxu0 %v4905
    %5170 = vmatpush1.bf16.msra.mxu0 %v4904
    %5171 = vmatprep.subr.bf16.mxu0 %v4907
    %5172 = vmatpush1.bf16.msra.mxu0 %v4906
    %5173 = vmatprep.subr.bf16.mxu0 %v4909
    %5174 = vmatpush1.bf16.msra.mxu0 %v4908
    %5175 = vmatprep.subr.bf16.mxu0 %v4911
    %5176 = vmatpush1.bf16.msra.mxu0 %v4910
    %5177 = vmatprep.subr.bf16.mxu0 %v4913
    %5178 = vmatpush1.bf16.msra.mxu0 %v4912
    %5179 = vmatprep.subr.bf16.mxu0 %v4915
    %5180 = vmatpush1.bf16.msra.mxu0 %v4914
    %5181 = vmatprep.subr.bf16.mxu0 %v4917
    %5182 = vmatpush1.bf16.msra.mxu0 %v4916
    %5183 = vmatprep.subr.bf16.mxu0 %v4919
    %5184 = vmatpush1.bf16.msra.mxu0 %v4918
    %5185 = vmatprep.subr.bf16.mxu0 %v4921
    %5186 = vmatpush1.bf16.msra.mxu0 %v4920
    %5187 = vmatprep.subr.bf16.mxu0 %v4923
    %5188 = vmatpush1.bf16.msra.mxu0 %v4922
    %5189 = vmatprep.subr.bf16.mxu0 %v4925
    %5190 = vmatpush1.bf16.msra.mxu0 %v4924
    %5191 = vmatprep.subr.bf16.mxu0 %v4927
    %5192 = vmatpush1.bf16.msra.mxu0 %v4926
    %5193 = vmatprep.subr.bf16.mxu0 %v4929
    %5194 = vmatpush1.bf16.msra.mxu0 %v4928
    %5195 = vmatprep.subr.bf16.mxu0 %v4931
    %5196 = vmatpush1.bf16.msra.mxu0 %v4930
    %5197 = vmatprep.subr.bf16.mxu0 %v4933
    %5198 = vmatpush1.bf16.msra.mxu0 %v4932
    %5199 = vmatprep.subr.bf16.mxu0 %v4935
    %5200 = vmatpush1.bf16.msra.mxu0 %v4934
    %5201 = vmatprep.mubr.bf16.mxu0 %v4341
    %5202 = vmatmul.mubr.bf16.gmra.mrb[0].mxu0 %v4340
    %v5203 = vpop.f32.mrb[0].mxu0
    %v5204 = vadd.f32 %v5163, %v5203
    %v5205 = vpop.f32.mrb[0].mxu0
    %v5206 = vadd.f32 %v5165, %v5205
    %v5207 = vpop.f32.mrb[0].mxu0
    %v5208 = vpop.f32.mrb[0].mxu0
    %5209 = vdwg.mxu0
    %5210 = vmatprep.subr.bf16.mxu0 %v4937
    %5211 = vmatpush1.bf16.msra.mxu0 %v4936
    %5212 = vmatprep.subr.bf16.mxu0 %v4939
    %5213 = vmatpush1.bf16.msra.mxu0 %v4938
    %5214 = vmatprep.subr.bf16.mxu0 %v4941
    %5215 = vmatpush1.bf16.msra.mxu0 %v4940
    %5216 = vmatprep.subr.bf16.mxu0 %v4943
    %5217 = vmatpush1.bf16.msra.mxu0 %v4942
    %5218 = vmatprep.subr.bf16.mxu0 %v4945
    %5219 = vmatpush1.bf16.msra.mxu0 %v4944
    %5220 = vmatprep.subr.bf16.mxu0 %v4947
    %5221 = vmatpush1.bf16.msra.mxu0 %v4946
    %5222 = vmatprep.subr.bf16.mxu0 %v4949
    %5223 = vmatpush1.bf16.msra.mxu0 %v4948
    %5224 = vmatprep.subr.bf16.mxu0 %v4951
    %5225 = vmatpush1.bf16.msra.mxu0 %v4950
    %5226 = vmatprep.subr.bf16.mxu0 %v4953
    %5227 = vmatpush1.bf16.msra.mxu0 %v4952
    %5228 = vmatprep.subr.bf16.mxu0 %v4955
    %5229 = vmatpush1.bf16.msra.mxu0 %v4954
    %5230 = vmatprep.subr.bf16.mxu0 %v4957
    %5231 = vmatpush1.bf16.msra.mxu0 %v4956
    %5232 = vmatprep.subr.bf16.mxu0 %v4959
    %5233 = vmatpush1.bf16.msra.mxu0 %v4958
    %5234 = vmatprep.subr.bf16.mxu0 %v4961
    %5235 = vmatpush1.bf16.msra.mxu0 %v4960
    %5236 = vmatprep.subr.bf16.mxu0 %v4963
    %5237 = vmatpush1.bf16.msra.mxu0 %v4962
    %5238 = vmatprep.subr.bf16.mxu0 %v4965
    %5239 = vmatpush1.bf16.msra.mxu0 %v4964
    %5240 = vmatprep.subr.bf16.mxu0 %v4967
    %5241 = vmatpush1.bf16.msra.mxu0 %v4966
    %5242 = vmatprep.mubr.bf16.mxu0 %v4343
    %5243 = vmatmul.mubr.bf16.gmra.mrb[0].mxu0 %v4342
    %v5244 = vpop.f32.mrb[0].mxu0
    %v5245 = vadd.f32 %v5204, %v5244
    %v5246 = vpop.f32.mrb[0].mxu0
    %v5247 = vadd.f32 %v5206, %v5246
    %v5248 = vpop.f32.mrb[0].mxu0
    %v5249 = vpop.f32.mrb[0].mxu0
    %5250 = vdwg.mxu0
    %5251 = vmatprep.subr.bf16.mxu0 %v4969
    %5252 = vmatpush1.bf16.msra.mxu0 %v4968
    %5253 = vmatprep.subr.bf16.mxu0 %v4971
    %5254 = vmatpush1.bf16.msra.mxu0 %v4970
    %5255 = vmatprep.subr.bf16.mxu0 %v4973
    %5256 = vmatpush1.bf16.msra.mxu0 %v4972
    %5257 = vmatprep.subr.bf16.mxu0 %v4975
    %5258 = vmatpush1.bf16.msra.mxu0 %v4974
    %5259 = vmatprep.subr.bf16.mxu0 %v4977
    %5260 = vmatpush1.bf16.msra.mxu0 %v4976
    %5261 = vmatprep.subr.bf16.mxu0 %v4979
    %5262 = vmatpush1.bf16.msra.mxu0 %v4978
    %5263 = vmatprep.subr.bf16.mxu0 %v4981
    %5264 = vmatpush1.bf16.msra.mxu0 %v4980
    %5265 = vmatprep.subr.bf16.mxu0 %v4983
    %5266 = vmatpush1.bf16.msra.mxu0 %v4982
    %5267 = vmatprep.subr.bf16.mxu0 %v4985
    %5268 = vmatpush1.bf16.msra.mxu0 %v4984
    %5269 = vmatprep.subr.bf16.mxu0 %v4987
    %5270 = vmatpush1.bf16.msra.mxu0 %v4986
    %5271 = vmatprep.subr.bf16.mxu0 %v4989
    %5272 = vmatpush1.bf16.msra.mxu0 %v4988
    %5273 = vmatprep.subr.bf16.mxu0 %v4991
    %5274 = vmatpush1.bf16.msra.mxu0 %v4990
    %5275 = vmatprep.subr.bf16.mxu0 %v4993
    %5276 = vmatpush1.bf16.msra.mxu0 %v4992
    %5277 = vmatprep.subr.bf16.mxu0 %v4995
    %5278 = vmatpush1.bf16.msra.mxu0 %v4994
    %5279 = vmatprep.subr.bf16.mxu0 %v4997
    %5280 = vmatpush1.bf16.msra.mxu0 %v4996
    %5281 = vmatprep.subr.bf16.mxu0 %v4999
    %5282 = vmatpush1.bf16.msra.mxu0 %v4998
    %5283 = vmatprep.mubr.bf16.mxu0 %v4345
    %5284 = vmatmul.mubr.bf16.gmra.mrb[0].mxu0 %v4344
    %v5285 = vpop.f32.mrb[0].mxu0
    %v5286 = vadd.f32 %v5245, %v5285
    %v5287 = vpop.f32.mrb[0].mxu0
    %v5288 = vadd.f32 %v5247, %v5287
    %v5289 = vpop.f32.mrb[0].mxu0
    %v5290 = vpop.f32.mrb[0].mxu0
    %5291 = vdwg.mxu0
    %v5292 = vadd.f32 %v3350, %v5286
    %v5293 = vadd.f32 %v3351, %v5288
    %s5294 = scalar_lea.vmem [#allocation20], 2
    %v5295 = vld [vmem:[%s5294] sm:$0x3]
    %s5296 = scalar_lea.vmem [#allocation22], 2
    %v5297 = vld [vmem:[%s5296] sm:$0x3]
    %v5298 = vadd.f32 %v5292, %v5293
    %5299 = vadd.xlane.f32.xlu0 %v5298
    %v5300 = vpop.xlane.xlu0 %5299
    %v5301 = vmul.f32 %v5300, %v784
    %v5302 = vsub.f32 %v5292, %v5301
    %v5303 = vsub.f32 %v5293, %v5301
    %v5304 = vmul.f32 %v5302, %v5302
    %v5305 = vmul.f32 %v5303, %v5303
    %v5306 = vadd.f32 %v5304, %v5305
    %5307 = vadd.xlane.f32.xlu0 %v5306
    %v5308 = vpop.xlane.xlu0 %5307
    %v5309 = vmul.f32 %v5308, %v784
    %v5310 = vadd.f32 %v5309, 1e-05
    %v5311 = vrsqrt.pop %v5310
    %v5312 = vmul.f32 %v5302, %v5311
    %v5313 = vmul.f32 %v5303, %v5311
    %v5315 = vlaneseq
    %v5316 = vshrl.u32 %v5315, 7
    %v5317 = vsub.s32 0, %v5316
    %v5318 = vrot.slane %v5295, %v5317
    %v5319 = vlaneseq
    %v5320 = vshrl.u32 %v5319, 7
    %v5321 = vsub.s32 1, %v5320
    %v5322 = vrot.slane %v5295, %v5321
    %v5325 = vmul.f32 %v5312, %v5318
    %v5326 = vmul.f32 %v5313, %v5322
    %v5328 = vlaneseq
    %v5329 = vshrl.u32 %v5328, 7
    %v5330 = vsub.s32 0, %v5329
    %v5331 = vrot.slane %v5297, %v5330
    %v5332 = vlaneseq
    %v5333 = vshrl.u32 %v5332, 7
    %v5334 = vsub.s32 1, %v5333
    %v5335 = vrot.slane %v5297, %v5334
    %v5338 = vadd.f32 %v5325, %v5331
    %v5339 = vadd.f32 %v5326, %v5335
    %v5340 = vpack.c.bf16 %v5338, %v5338
    %v5341 = vpack.c.bf16 %v5339, %v5339
    %s5342 = scalar_lea.vmem [#allocation5], 512
    %v5343 = vld [vmem:[%s5342] sm:$0xff]
    %v5344 = vld [vmem:[%s5342 + $0x8] sm:$0xff]
    %v5345 = vld [vmem:[%s5342 + $0x10] sm:$0xff]
    %v5346 = vld [vmem:[%s5342 + $0x18] sm:$0xff]
    %v5347 = vld [vmem:[%s5342 + $0x20] sm:$0xff]
    %v5348 = vld [vmem:[%s5342 + $0x28] sm:$0xff]
    %v5349 = vld [vmem:[%s5342 + $0x30] sm:$0xff]
    %v5350 = vld [vmem:[%s5342 + $0x38] sm:$0xff]
    %v5351 = vld [vmem:[%s5342 + $0x40] sm:$0xff]
    %v5352 = vld [vmem:[%s5342 + $0x48] sm:$0xff]
    %v5353 = vld [vmem:[%s5342 + $0x50] sm:$0xff]
    %v5354 = vld [vmem:[%s5342 + $0x58] sm:$0xff]
    %v5355 = vld [vmem:[%s5342 + $0x60] sm:$0xff]
    %v5356 = vld [vmem:[%s5342 + $0x68] sm:$0xff]
    %v5357 = vld [vmem:[%s5342 + $0x70] sm:$0xff]
    %v5358 = vld [vmem:[%s5342 + $0x78] sm:$0xff]
    %v5359 = vld [vmem:[%s5342 + $0x80] sm:$0xff]
    %v5360 = vld [vmem:[%s5342 + $0x88] sm:$0xff]
    %v5361 = vld [vmem:[%s5342 + $0x90] sm:$0xff]
    %v5362 = vld [vmem:[%s5342 + $0x98] sm:$0xff]
    %v5363 = vld [vmem:[%s5342 + $0xa0] sm:$0xff]
    %v5364 = vld [vmem:[%s5342 + $0xa8] sm:$0xff]
    %v5365 = vld [vmem:[%s5342 + $0xb0] sm:$0xff]
    %v5366 = vld [vmem:[%s5342 + $0xb8] sm:$0xff]
    %v5367 = vld [vmem:[%s5342 + $0xc0] sm:$0xff]
    %v5368 = vld [vmem:[%s5342 + $0xc8] sm:$0xff]
    %v5369 = vld [vmem:[%s5342 + $0xd0] sm:$0xff]
    %v5370 = vld [vmem:[%s5342 + $0xd8] sm:$0xff]
    %v5371 = vld [vmem:[%s5342 + $0xe0] sm:$0xff]
    %v5372 = vld [vmem:[%s5342 + $0xe8] sm:$0xff]
    %v5373 = vld [vmem:[%s5342 + $0xf0] sm:$0xff]
    %v5374 = vld [vmem:[%s5342 + $0xf8] sm:$0xff]
    %s5375 = scalar_lea.vmem [#allocation7], 4
    %v5376 = vld [vmem:[%s5375] sm:$0x3]
    %v5378 = vlaneseq
    %v5379 = vshrl.u32 %v5378, 7
    %v5380 = vsub.s32 0, %v5379
    %v5381 = vrot.slane %v5376, %v5380
    %v5382 = vlaneseq
    %v5383 = vshrl.u32 %v5382, 7
    %v5384 = vsub.s32 1, %v5383
    %v5385 = vrot.slane %v5376, %v5384
    %v5420 = vunpack.c.l.b16 %v5343
    %v5421 = vunpack.c.h.b16 %v5343
    %v5422 = vunpack.c.l.b16 %v5344
    %v5423 = vunpack.c.h.b16 %v5344
    %v5424 = vunpack.c.l.b16 %v5345
    %v5425 = vunpack.c.h.b16 %v5345
    %v5426 = vunpack.c.l.b16 %v5346
    %v5427 = vunpack.c.h.b16 %v5346
    %v5428 = vunpack.c.l.b16 %v5347
    %v5429 = vunpack.c.h.b16 %v5347
    %v5430 = vunpack.c.l.b16 %v5348
    %v5431 = vunpack.c.h.b16 %v5348
    %v5432 = vunpack.c.l.b16 %v5349
    %v5433 = vunpack.c.h.b16 %v5349
    %v5434 = vunpack.c.l.b16 %v5350
    %v5435 = vunpack.c.h.b16 %v5350
    %v5436 = vunpack.c.l.b16 %v5351
    %v5437 = vunpack.c.h.b16 %v5351
    %v5438 = vunpack.c.l.b16 %v5352
    %v5439 = vunpack.c.h.b16 %v5352
    %v5440 = vunpack.c.l.b16 %v5353
    %v5441 = vunpack.c.h.b16 %v5353
    %v5442 = vunpack.c.l.b16 %v5354
    %v5443 = vunpack.c.h.b16 %v5354
    %v5444 = vunpack.c.l.b16 %v5355
    %v5445 = vunpack.c.h.b16 %v5355
    %v5446 = vunpack.c.l.b16 %v5356
    %v5447 = vunpack.c.h.b16 %v5356
    %v5448 = vunpack.c.l.b16 %v5357
    %v5449 = vunpack.c.h.b16 %v5357
    %v5450 = vunpack.c.l.b16 %v5358
    %v5451 = vunpack.c.h.b16 %v5358
    %v5452 = vunpack.c.l.b16 %v5359
    %v5453 = vunpack.c.h.b16 %v5359
    %v5454 = vunpack.c.l.b16 %v5360
    %v5455 = vunpack.c.h.b16 %v5360
    %v5456 = vunpack.c.l.b16 %v5361
    %v5457 = vunpack.c.h.b16 %v5361
    %v5458 = vunpack.c.l.b16 %v5362
    %v5459 = vunpack.c.h.b16 %v5362
    %v5460 = vunpack.c.l.b16 %v5363
    %v5461 = vunpack.c.h.b16 %v5363
    %v5462 = vunpack.c.l.b16 %v5364
    %v5463 = vunpack.c.h.b16 %v5364
    %v5464 = vunpack.c.l.b16 %v5365
    %v5465 = vunpack.c.h.b16 %v5365
    %v5466 = vunpack.c.l.b16 %v5366
    %v5467 = vunpack.c.h.b16 %v5366
    %v5468 = vunpack.c.l.b16 %v5367
    %v5469 = vunpack.c.h.b16 %v5367
    %v5470 = vunpack.c.l.b16 %v5368
    %v5471 = vunpack.c.h.b16 %v5368
    %v5472 = vunpack.c.l.b16 %v5369
    %v5473 = vunpack.c.h.b16 %v5369
    %v5474 = vunpack.c.l.b16 %v5370
    %v5475 = vunpack.c.h.b16 %v5370
    %v5476 = vunpack.c.l.b16 %v5371
    %v5477 = vunpack.c.h.b16 %v5371
    %v5478 = vunpack.c.l.b16 %v5372
    %v5479 = vunpack.c.h.b16 %v5372
    %v5480 = vunpack.c.l.b16 %v5373
    %v5481 = vunpack.c.h.b16 %v5373
    %v5482 = vunpack.c.l.b16 %v5374
    %v5483 = vunpack.c.h.b16 %v5374
    %v5484 = vpack.c.b16 %v5422, %v5420
    %v5485 = vpack.c.b16 %v5423, %v5421
    %v5486 = vpack.c.b16 %v5426, %v5424
    %v5487 = vpack.c.b16 %v5427, %v5425
    %v5488 = vpack.c.b16 %v5430, %v5428
    %v5489 = vpack.c.b16 %v5431, %v5429
    %v5490 = vpack.c.b16 %v5434, %v5432
    %v5491 = vpack.c.b16 %v5435, %v5433
    %v5492 = vpack.c.b16 %v5438, %v5436
    %v5493 = vpack.c.b16 %v5439, %v5437
    %v5494 = vpack.c.b16 %v5442, %v5440
    %v5495 = vpack.c.b16 %v5443, %v5441
    %v5496 = vpack.c.b16 %v5446, %v5444
    %v5497 = vpack.c.b16 %v5447, %v5445
    %v5498 = vpack.c.b16 %v5450, %v5448
    %v5499 = vpack.c.b16 %v5451, %v5449
    %v5500 = vpack.c.b16 %v5454, %v5452
    %v5501 = vpack.c.b16 %v5455, %v5453
    %v5502 = vpack.c.b16 %v5458, %v5456
    %v5503 = vpack.c.b16 %v5459, %v5457
    %v5504 = vpack.c.b16 %v5462, %v5460
    %v5505 = vpack.c.b16 %v5463, %v5461
    %v5506 = vpack.c.b16 %v5466, %v5464
    %v5507 = vpack.c.b16 %v5467, %v5465
    %v5508 = vpack.c.b16 %v5470, %v5468
    %v5509 = vpack.c.b16 %v5471, %v5469
    %v5510 = vpack.c.b16 %v5474, %v5472
    %v5511 = vpack.c.b16 %v5475, %v5473
    %v5512 = vpack.c.b16 %v5478, %v5476
    %v5513 = vpack.c.b16 %v5479, %v5477
    %v5514 = vpack.c.b16 %v5482, %v5480
    %v5515 = vpack.c.b16 %v5483, %v5481
    %5548 = vmatprep.subr.bf16.mxu0 %v5485
    %5549 = vmatpush1.bf16.msra.mxu0 %v5484
    %5550 = vmatprep.subr.bf16.mxu0 %v5487
    %5551 = vmatpush1.bf16.msra.mxu0 %v5486
    %5552 = vmatprep.subr.bf16.mxu0 %v5489
    %5553 = vmatpush1.bf16.msra.mxu0 %v5488
    %5554 = vmatprep.subr.bf16.mxu0 %v5491
    %5555 = vmatpush1.bf16.msra.mxu0 %v5490
    %5556 = vmatprep.subr.bf16.mxu0 %v5493
    %5557 = vmatpush1.bf16.msra.mxu0 %v5492
    %5558 = vmatprep.subr.bf16.mxu0 %v5495
    %5559 = vmatpush1.bf16.msra.mxu0 %v5494
    %5560 = vmatprep.subr.bf16.mxu0 %v5497
    %5561 = vmatpush1.bf16.msra.mxu0 %v5496
    %5562 = vmatprep.subr.bf16.mxu0 %v5499
    %5563 = vmatpush1.bf16.msra.mxu0 %v5498
    %5564 = vmatprep.subr.bf16.mxu0 %v5501
    %5565 = vmatpush1.bf16.msra.mxu0 %v5500
    %5566 = vmatprep.subr.bf16.mxu0 %v5503
    %5567 = vmatpush1.bf16.msra.mxu0 %v5502
    %5568 = vmatprep.subr.bf16.mxu0 %v5505
    %5569 = vmatpush1.bf16.msra.mxu0 %v5504
    %5570 = vmatprep.subr.bf16.mxu0 %v5507
    %5571 = vmatpush1.bf16.msra.mxu0 %v5506
    %5572 = vmatprep.subr.bf16.mxu0 %v5509
    %5573 = vmatpush1.bf16.msra.mxu0 %v5508
    %5574 = vmatprep.subr.bf16.mxu0 %v5511
    %5575 = vmatpush1.bf16.msra.mxu0 %v5510
    %5576 = vmatprep.subr.bf16.mxu0 %v5513
    %5577 = vmatpush1.bf16.msra.mxu0 %v5512
    %5578 = vmatprep.subr.bf16.mxu0 %v5515
    %5579 = vmatpush1.bf16.msra.mxu0 %v5514
    %5580 = vmatprep.mubr.bf16.mxu0 %v5341
    %5581 = vmatmul.mubr.bf16.gmra.mrb[0].mxu0 %v5340
    %v5582 = vpop.f32.mrb[0].mxu0
    %v5583 = vadd.f32 %v5381, %v5582
    %v5584 = vpop.f32.mrb[0].mxu0
    %v5585 = vadd.f32 %v5385, %v5584
    %v5586 = vpop.f32.mrb[0].mxu0
    %v5587 = vpop.f32.mrb[0].mxu0
    %5588 = vdwg.mxu0
    %v5589 = vpack.c.bf16 %v5583, %v5583
    %v5590 = vpack.c.bf16 %v5585, %v5585
    %s5591 = scalar_lea.vmem [#allocation8], 512
    %v5592 = vld [vmem:[%s5591] sm:$0xff]
    %v5593 = vld [vmem:[%s5591 + $0x8] sm:$0xff]
    %v5594 = vld [vmem:[%s5591 + $0x10] sm:$0xff]
    %v5595 = vld [vmem:[%s5591 + $0x18] sm:$0xff]
    %v5596 = vld [vmem:[%s5591 + $0x20] sm:$0xff]
    %v5597 = vld [vmem:[%s5591 + $0x28] sm:$0xff]
    %v5598 = vld [vmem:[%s5591 + $0x30] sm:$0xff]
    %v5599 = vld [vmem:[%s5591 + $0x38] sm:$0xff]
    %v5600 = vld [vmem:[%s5591 + $0x40] sm:$0xff]
    %v5601 = vld [vmem:[%s5591 + $0x48] sm:$0xff]
    %v5602 = vld [vmem:[%s5591 + $0x50] sm:$0xff]
    %v5603 = vld [vmem:[%s5591 + $0x58] sm:$0xff]
    %v5604 = vld [vmem:[%s5591 + $0x60] sm:$0xff]
    %v5605 = vld [vmem:[%s5591 + $0x68] sm:$0xff]
    %v5606 = vld [vmem:[%s5591 + $0x70] sm:$0xff]
    %v5607 = vld [vmem:[%s5591 + $0x78] sm:$0xff]
    %v5608 = vld [vmem:[%s5591 + $0x80] sm:$0xff]
    %v5609 = vld [vmem:[%s5591 + $0x88] sm:$0xff]
    %v5610 = vld [vmem:[%s5591 + $0x90] sm:$0xff]
    %v5611 = vld [vmem:[%s5591 + $0x98] sm:$0xff]
    %v5612 = vld [vmem:[%s5591 + $0xa0] sm:$0xff]
    %v5613 = vld [vmem:[%s5591 + $0xa8] sm:$0xff]
    %v5614 = vld [vmem:[%s5591 + $0xb0] sm:$0xff]
    %v5615 = vld [vmem:[%s5591 + $0xb8] sm:$0xff]
    %v5616 = vld [vmem:[%s5591 + $0xc0] sm:$0xff]
    %v5617 = vld [vmem:[%s5591 + $0xc8] sm:$0xff]
    %v5618 = vld [vmem:[%s5591 + $0xd0] sm:$0xff]
    %v5619 = vld [vmem:[%s5591 + $0xd8] sm:$0xff]
    %v5620 = vld [vmem:[%s5591 + $0xe0] sm:$0xff]
    %v5621 = vld [vmem:[%s5591 + $0xe8] sm:$0xff]
    %v5622 = vld [vmem:[%s5591 + $0xf0] sm:$0xff]
    %v5623 = vld [vmem:[%s5591 + $0xf8] sm:$0xff]
    %s5624 = scalar_lea.vmem [#allocation10], 4
    %v5625 = vld [vmem:[%s5624] sm:$0x3]
    %v5627 = vlaneseq
    %v5628 = vshrl.u32 %v5627, 7
    %v5629 = vsub.s32 0, %v5628
    %v5630 = vrot.slane %v5625, %v5629
    %v5631 = vlaneseq
    %v5632 = vshrl.u32 %v5631, 7
    %v5633 = vsub.s32 1, %v5632
    %v5634 = vrot.slane %v5625, %v5633
    %v5669 = vunpack.c.l.b16 %v5592
    %v5670 = vunpack.c.h.b16 %v5592
    %v5671 = vunpack.c.l.b16 %v5593
    %v5672 = vunpack.c.h.b16 %v5593
    %v5673 = vunpack.c.l.b16 %v5594
    %v5674 = vunpack.c.h.b16 %v5594
    %v5675 = vunpack.c.l.b16 %v5595
    %v5676 = vunpack.c.h.b16 %v5595
    %v5677 = vunpack.c.l.b16 %v5596
    %v5678 = vunpack.c.h.b16 %v5596
    %v5679 = vunpack.c.l.b16 %v5597
    %v5680 = vunpack.c.h.b16 %v5597
    %v5681 = vunpack.c.l.b16 %v5598
    %v5682 = vunpack.c.h.b16 %v5598
    %v5683 = vunpack.c.l.b16 %v5599
    %v5684 = vunpack.c.h.b16 %v5599
    %v5685 = vunpack.c.l.b16 %v5600
    %v5686 = vunpack.c.h.b16 %v5600
    %v5687 = vunpack.c.l.b16 %v5601
    %v5688 = vunpack.c.h.b16 %v5601
    %v5689 = vunpack.c.l.b16 %v5602
    %v5690 = vunpack.c.h.b16 %v5602
    %v5691 = vunpack.c.l.b16 %v5603
    %v5692 = vunpack.c.h.b16 %v5603
    %v5693 = vunpack.c.l.b16 %v5604
    %v5694 = vunpack.c.h.b16 %v5604
    %v5695 = vunpack.c.l.b16 %v5605
    %v5696 = vunpack.c.h.b16 %v5605
    %v5697 = vunpack.c.l.b16 %v5606
    %v5698 = vunpack.c.h.b16 %v5606
    %v5699 = vunpack.c.l.b16 %v5607
    %v5700 = vunpack.c.h.b16 %v5607
    %v5701 = vunpack.c.l.b16 %v5608
    %v5702 = vunpack.c.h.b16 %v5608
    %v5703 = vunpack.c.l.b16 %v5609
    %v5704 = vunpack.c.h.b16 %v5609
    %v5705 = vunpack.c.l.b16 %v5610
    %v5706 = vunpack.c.h.b16 %v5610
    %v5707 = vunpack.c.l.b16 %v5611
    %v5708 = vunpack.c.h.b16 %v5611
    %v5709 = vunpack.c.l.b16 %v5612
    %v5710 = vunpack.c.h.b16 %v5612
    %v5711 = vunpack.c.l.b16 %v5613
    %v5712 = vunpack.c.h.b16 %v5613
    %v5713 = vunpack.c.l.b16 %v5614
    %v5714 = vunpack.c.h.b16 %v5614
    %v5715 = vunpack.c.l.b16 %v5615
    %v5716 = vunpack.c.h.b16 %v5615
    %v5717 = vunpack.c.l.b16 %v5616
    %v5718 = vunpack.c.h.b16 %v5616
    %v5719 = vunpack.c.l.b16 %v5617
    %v5720 = vunpack.c.h.b16 %v5617
    %v5721 = vunpack.c.l.b16 %v5618
    %v5722 = vunpack.c.h.b16 %v5618
    %v5723 = vunpack.c.l.b16 %v5619
    %v5724 = vunpack.c.h.b16 %v5619
    %v5725 = vunpack.c.l.b16 %v5620
    %v5726 = vunpack.c.h.b16 %v5620
    %v5727 = vunpack.c.l.b16 %v5621
    %v5728 = vunpack.c.h.b16 %v5621
    %v5729 = vunpack.c.l.b16 %v5622
    %v5730 = vunpack.c.h.b16 %v5622
    %v5731 = vunpack.c.l.b16 %v5623
    %v5732 = vunpack.c.h.b16 %v5623
    %v5733 = vpack.c.b16 %v5671, %v5669
    %v5734 = vpack.c.b16 %v5672, %v5670
    %v5735 = vpack.c.b16 %v5675, %v5673
    %v5736 = vpack.c.b16 %v5676, %v5674
    %v5737 = vpack.c.b16 %v5679, %v5677
    %v5738 = vpack.c.b16 %v5680, %v5678
    %v5739 = vpack.c.b16 %v5683, %v5681
    %v5740 = vpack.c.b16 %v5684, %v5682
    %v5741 = vpack.c.b16 %v5687, %v5685
    %v5742 = vpack.c.b16 %v5688, %v5686
    %v5743 = vpack.c.b16 %v5691, %v5689
    %v5744 = vpack.c.b16 %v5692, %v5690
    %v5745 = vpack.c.b16 %v5695, %v5693
    %v5746 = vpack.c.b16 %v5696, %v5694
    %v5747 = vpack.c.b16 %v5699, %v5697
    %v5748 = vpack.c.b16 %v5700, %v5698
    %v5749 = vpack.c.b16 %v5703, %v5701
    %v5750 = vpack.c.b16 %v5704, %v5702
    %v5751 = vpack.c.b16 %v5707, %v5705
    %v5752 = vpack.c.b16 %v5708, %v5706
    %v5753 = vpack.c.b16 %v5711, %v5709
    %v5754 = vpack.c.b16 %v5712, %v5710
    %v5755 = vpack.c.b16 %v5715, %v5713
    %v5756 = vpack.c.b16 %v5716, %v5714
    %v5757 = vpack.c.b16 %v5719, %v5717
    %v5758 = vpack.c.b16 %v5720, %v5718
    %v5759 = vpack.c.b16 %v5723, %v5721
    %v5760 = vpack.c.b16 %v5724, %v5722
    %v5761 = vpack.c.b16 %v5727, %v5725
    %v5762 = vpack.c.b16 %v5728, %v5726
    %v5763 = vpack.c.b16 %v5731, %v5729
    %v5764 = vpack.c.b16 %v5732, %v5730
    %5797 = vmatprep.subr.bf16.mxu0 %v5734
    %5798 = vmatpush1.bf16.msra.mxu0 %v5733
    %5799 = vmatprep.subr.bf16.mxu0 %v5736
    %5800 = vmatpush1.bf16.msra.mxu0 %v5735
    %5801 = vmatprep.subr.bf16.mxu0 %v5738
    %5802 = vmatpush1.bf16.msra.mxu0 %v5737
    %5803 = vmatprep.subr.bf16.mxu0 %v5740
    %5804 = vmatpush1.bf16.msra.mxu0 %v5739
    %5805 = vmatprep.subr.bf16.mxu0 %v5742
    %5806 = vmatpush1.bf16.msra.mxu0 %v5741
    %5807 = vmatprep.subr.bf16.mxu0 %v5744
    %5808 = vmatpush1.bf16.msra.mxu0 %v5743
    %5809 = vmatprep.subr.bf16.mxu0 %v5746
    %5810 = vmatpush1.bf16.msra.mxu0 %v5745
    %5811 = vmatprep.subr.bf16.mxu0 %v5748
    %5812 = vmatpush1.bf16.msra.mxu0 %v5747
    %5813 = vmatprep.subr.bf16.mxu0 %v5750
    %5814 = vmatpush1.bf16.msra.mxu0 %v5749
    %5815 = vmatprep.subr.bf16.mxu0 %v5752
    %5816 = vmatpush1.bf16.msra.mxu0 %v5751
    %5817 = vmatprep.subr.bf16.mxu0 %v5754
    %5818 = vmatpush1.bf16.msra.mxu0 %v5753
    %5819 = vmatprep.subr.bf16.mxu0 %v5756
    %5820 = vmatpush1.bf16.msra.mxu0 %v5755
    %5821 = vmatprep.subr.bf16.mxu0 %v5758
    %5822 = vmatpush1.bf16.msra.mxu0 %v5757
    %5823 = vmatprep.subr.bf16.mxu0 %v5760
    %5824 = vmatpush1.bf16.msra.mxu0 %v5759
    %5825 = vmatprep.subr.bf16.mxu0 %v5762
    %5826 = vmatpush1.bf16.msra.mxu0 %v5761
    %5827 = vmatprep.subr.bf16.mxu0 %v5764
    %5828 = vmatpush1.bf16.msra.mxu0 %v5763
    %5829 = vmatprep.mubr.bf16.mxu0 %v5590
    %5830 = vmatmul.mubr.bf16.gmra.mrb[0].mxu0 %v5589
    %v5831 = vpop.f32.mrb[0].mxu0
    %v5832 = vadd.f32 %v5630, %v5831
    %v5833 = vpop.f32.mrb[0].mxu0
    %v5834 = vadd.f32 %v5634, %v5833
    %v5835 = vpop.f32.mrb[0].mxu0
    %v5836 = vpop.f32.mrb[0].mxu0
    %5837 = vdwg.mxu0
    %v5838 = vadd.f32 %v5338, %v5832
    %v5839 = vadd.f32 %v5339, %v5834
    %s5840 = scalar_lea.vmem [#allocation11], 4
    %v5841 = vld [vmem:[%s5840] sm:$0x3]
    %s5842 = scalar_lea.vmem [#allocation13], 4
    %v5843 = vld [vmem:[%s5842] sm:$0x3]
    %v5844 = vadd.f32 %v5838, %v5839
    %5845 = vadd.xlane.f32.xlu0 %v5844
    %v5846 = vpop.xlane.xlu0 %5845
    %v5847 = vmul.f32 %v5846, %v784
    %v5848 = vsub.f32 %v5838, %v5847
    %v5849 = vsub.f32 %v5839, %v5847
    %v5850 = vmul.f32 %v5848, %v5848
    %v5851 = vmul.f32 %v5849, %v5849
    %v5852 = vadd.f32 %v5850, %v5851
    %5853 = vadd.xlane.f32.xlu0 %v5852
    %v5854 = vpop.xlane.xlu0 %5853
    %v5855 = vmul.f32 %v5854, %v784
    %v5856 = vadd.f32 %v5855, 1e-05
    %v5857 = vrsqrt.pop %v5856
    %v5858 = vmul.f32 %v5848, %v5857
    %v5859 = vmul.f32 %v5849, %v5857
    %v5861 = vlaneseq
    %v5862 = vshrl.u32 %v5861, 7
    %v5863 = vsub.s32 0, %v5862
    %v5864 = vrot.slane %v5841, %v5863
    %v5865 = vlaneseq
    %v5866 = vshrl.u32 %v5865, 7
    %v5867 = vsub.s32 1, %v5866
    %v5868 = vrot.slane %v5841, %v5867
    %v5871 = vmul.f32 %v5858, %v5864
    %v5872 = vmul.f32 %v5859, %v5868
    %v5874 = vlaneseq
    %v5875 = vshrl.u32 %v5874, 7
    %v5876 = vsub.s32 0, %v5875
    %v5877 = vrot.slane %v5843, %v5876
    %v5878 = vlaneseq
    %v5879 = vshrl.u32 %v5878, 7
    %v5880 = vsub.s32 1, %v5879
    %v5881 = vrot.slane %v5843, %v5880
    %v5884 = vadd.f32 %v5871, %v5877
    %v5885 = vadd.f32 %v5872, %v5881
    %v5886 = vpack.c.bf16 %v5884, %v5884
    %v5887 = vpack.c.bf16 %v5885, %v5885
    %s5888 = scalar_lea.vmem [#allocation14], 2048
    %v5889 = vld [vmem:[%s5888] sm:$0xff]
    %v5890 = vld [vmem:[%s5888 + $0x8] sm:$0xff]
    %v5891 = vld [vmem:[%s5888 + $0x10] sm:$0xff]
    %v5892 = vld [vmem:[%s5888 + $0x18] sm:$0xff]
    %v5893 = vld [vmem:[%s5888 + $0x20] sm:$0xff]
    %v5894 = vld [vmem:[%s5888 + $0x28] sm:$0xff]
    %v5895 = vld [vmem:[%s5888 + $0x30] sm:$0xff]
    %v5896 = vld [vmem:[%s5888 + $0x38] sm:$0xff]
    %v5897 = vld [vmem:[%s5888 + $0x40] sm:$0xff]
    %v5898 = vld [vmem:[%s5888 + $0x48] sm:$0xff]
    %v5899 = vld [vmem:[%s5888 + $0x50] sm:$0xff]
    %v5900 = vld [vmem:[%s5888 + $0x58] sm:$0xff]
    %v5901 = vld [vmem:[%s5888 + $0x60] sm:$0xff]
    %v5902 = vld [vmem:[%s5888 + $0x68] sm:$0xff]
    %v5903 = vld [vmem:[%s5888 + $0x70] sm:$0xff]
    %v5904 = vld [vmem:[%s5888 + $0x78] sm:$0xff]
    %v5905 = vld [vmem:[%s5888 + $0x80] sm:$0xff]
    %v5906 = vld [vmem:[%s5888 + $0x88] sm:$0xff]
    %v5907 = vld [vmem:[%s5888 + $0x90] sm:$0xff]
    %v5908 = vld [vmem:[%s5888 + $0x98] sm:$0xff]
    %v5909 = vld [vmem:[%s5888 + $0xa0] sm:$0xff]
    %v5910 = vld [vmem:[%s5888 + $0xa8] sm:$0xff]
    %v5911 = vld [vmem:[%s5888 + $0xb0] sm:$0xff]
    %v5912 = vld [vmem:[%s5888 + $0xb8] sm:$0xff]
    %v5913 = vld [vmem:[%s5888 + $0xc0] sm:$0xff]
    %v5914 = vld [vmem:[%s5888 + $0xc8] sm:$0xff]
    %v5915 = vld [vmem:[%s5888 + $0xd0] sm:$0xff]
    %v5916 = vld [vmem:[%s5888 + $0xd8] sm:$0xff]
    %v5917 = vld [vmem:[%s5888 + $0xe0] sm:$0xff]
    %v5918 = vld [vmem:[%s5888 + $0xe8] sm:$0xff]
    %v5919 = vld [vmem:[%s5888 + $0xf0] sm:$0xff]
    %v5920 = vld [vmem:[%s5888 + $0xf8] sm:$0xff]
    %v5921 = vld [vmem:[%s5888 + $0x100] sm:$0xff]
    %v5922 = vld [vmem:[%s5888 + $0x108] sm:$0xff]
    %v5923 = vld [vmem:[%s5888 + $0x110] sm:$0xff]
    %v5924 = vld [vmem:[%s5888 + $0x118] sm:$0xff]
    %v5925 = vld [vmem:[%s5888 + $0x120] sm:$0xff]
    %v5926 = vld [vmem:[%s5888 + $0x128] sm:$0xff]
    %v5927 = vld [vmem:[%s5888 + $0x130] sm:$0xff]
    %v5928 = vld [vmem:[%s5888 + $0x138] sm:$0xff]
    %v5929 = vld [vmem:[%s5888 + $0x140] sm:$0xff]
    %v5930 = vld [vmem:[%s5888 + $0x148] sm:$0xff]
    %v5931 = vld [vmem:[%s5888 + $0x150] sm:$0xff]
    %v5932 = vld [vmem:[%s5888 + $0x158] sm:$0xff]
    %v5933 = vld [vmem:[%s5888 + $0x160] sm:$0xff]
    %v5934 = vld [vmem:[%s5888 + $0x168] sm:$0xff]
    %v5935 = vld [vmem:[%s5888 + $0x170] sm:$0xff]
    %v5936 = vld [vmem:[%s5888 + $0x178] sm:$0xff]
    %v5937 = vld [vmem:[%s5888 + $0x180] sm:$0xff]
    %v5938 = vld [vmem:[%s5888 + $0x188] sm:$0xff]
    %v5939 = vld [vmem:[%s5888 + $0x190] sm:$0xff]
    %v5940 = vld [vmem:[%s5888 + $0x198] sm:$0xff]
    %v5941 = vld [vmem:[%s5888 + $0x1a0] sm:$0xff]
    %v5942 = vld [vmem:[%s5888 + $0x1a8] sm:$0xff]
    %v5943 = vld [vmem:[%s5888 + $0x1b0] sm:$0xff]
    %v5944 = vld [vmem:[%s5888 + $0x1b8] sm:$0xff]
    %v5945 = vld [vmem:[%s5888 + $0x1c0] sm:$0xff]
    %v5946 = vld [vmem:[%s5888 + $0x1c8] sm:$0xff]
    %v5947 = vld [vmem:[%s5888 + $0x1d0] sm:$0xff]
    %v5948 = vld [vmem:[%s5888 + $0x1d8] sm:$0xff]
    %v5949 = vld [vmem:[%s5888 + $0x1e0] sm:$0xff]
    %v5950 = vld [vmem:[%s5888 + $0x1e8] sm:$0xff]
    %v5951 = vld [vmem:[%s5888 + $0x1f0] sm:$0xff]
    %v5952 = vld [vmem:[%s5888 + $0x1f8] sm:$0xff]
    %v5953 = vld [vmem:[%s5888 + $0x200] sm:$0xff]
    %v5954 = vld [vmem:[%s5888 + $0x208] sm:$0xff]
    %v5955 = vld [vmem:[%s5888 + $0x210] sm:$0xff]
    %v5956 = vld [vmem:[%s5888 + $0x218] sm:$0xff]
    %v5957 = vld [vmem:[%s5888 + $0x220] sm:$0xff]
    %v5958 = vld [vmem:[%s5888 + $0x228] sm:$0xff]
    %v5959 = vld [vmem:[%s5888 + $0x230] sm:$0xff]
    %v5960 = vld [vmem:[%s5888 + $0x238] sm:$0xff]
    %v5961 = vld [vmem:[%s5888 + $0x240] sm:$0xff]
    %v5962 = vld [vmem:[%s5888 + $0x248] sm:$0xff]
    %v5963 = vld [vmem:[%s5888 + $0x250] sm:$0xff]
    %v5964 = vld [vmem:[%s5888 + $0x258] sm:$0xff]
    %v5965 = vld [vmem:[%s5888 + $0x260] sm:$0xff]
    %v5966 = vld [vmem:[%s5888 + $0x268] sm:$0xff]
    %v5967 = vld [vmem:[%s5888 + $0x270] sm:$0xff]
    %v5968 = vld [vmem:[%s5888 + $0x278] sm:$0xff]
    %v5969 = vld [vmem:[%s5888 + $0x280] sm:$0xff]
    %v5970 = vld [vmem:[%s5888 + $0x288] sm:$0xff]
    %v5971 = vld [vmem:[%s5888 + $0x290] sm:$0xff]
    %v5972 = vld [vmem:[%s5888 + $0x298] sm:$0xff]
    %v5973 = vld [vmem:[%s5888 + $0x2a0] sm:$0xff]
    %v5974 = vld [vmem:[%s5888 + $0x2a8] sm:$0xff]
    %v5975 = vld [vmem:[%s5888 + $0x2b0] sm:$0xff]
    %v5976 = vld [vmem:[%s5888 + $0x2b8] sm:$0xff]
    %v5977 = vld [vmem:[%s5888 + $0x2c0] sm:$0xff]
    %v5978 = vld [vmem:[%s5888 + $0x2c8] sm:$0xff]
    %v5979 = vld [vmem:[%s5888 + $0x2d0] sm:$0xff]
    %v5980 = vld [vmem:[%s5888 + $0x2d8] sm:$0xff]
    %v5981 = vld [vmem:[%s5888 + $0x2e0] sm:$0xff]
    %v5982 = vld [vmem:[%s5888 + $0x2e8] sm:$0xff]
    %v5983 = vld [vmem:[%s5888 + $0x2f0] sm:$0xff]
    %v5984 = vld [vmem:[%s5888 + $0x2f8] sm:$0xff]
    %v5985 = vld [vmem:[%s5888 + $0x300] sm:$0xff]
    %v5986 = vld [vmem:[%s5888 + $0x308] sm:$0xff]
    %v5987 = vld [vmem:[%s5888 + $0x310] sm:$0xff]
    %v5988 = vld [vmem:[%s5888 + $0x318] sm:$0xff]
    %v5989 = vld [vmem:[%s5888 + $0x320] sm:$0xff]
    %v5990 = vld [vmem:[%s5888 + $0x328] sm:$0xff]
    %v5991 = vld [vmem:[%s5888 + $0x330] sm:$0xff]
    %v5992 = vld [vmem:[%s5888 + $0x338] sm:$0xff]
    %v5993 = vld [vmem:[%s5888 + $0x340] sm:$0xff]
    %v5994 = vld [vmem:[%s5888 + $0x348] sm:$0xff]
    %v5995 = vld [vmem:[%s5888 + $0x350] sm:$0xff]
    %v5996 = vld [vmem:[%s5888 + $0x358] sm:$0xff]
    %v5997 = vld [vmem:[%s5888 + $0x360] sm:$0xff]
    %v5998 = vld [vmem:[%s5888 + $0x368] sm:$0xff]
    %v5999 = vld [vmem:[%s5888 + $0x370] sm:$0xff]
    %v6000 = vld [vmem:[%s5888 + $0x378] sm:$0xff]
    %v6001 = vld [vmem:[%s5888 + $0x380] sm:$0xff]
    %v6002 = vld [vmem:[%s5888 + $0x388] sm:$0xff]
    %v6003 = vld [vmem:[%s5888 + $0x390] sm:$0xff]
    %v6004 = vld [vmem:[%s5888 + $0x398] sm:$0xff]
    %v6005 = vld [vmem:[%s5888 + $0x3a0] sm:$0xff]
    %v6006 = vld [vmem:[%s5888 + $0x3a8] sm:$0xff]
    %v6007 = vld [vmem:[%s5888 + $0x3b0] sm:$0xff]
    %v6008 = vld [vmem:[%s5888 + $0x3b8] sm:$0xff]
    %v6009 = vld [vmem:[%s5888 + $0x3c0] sm:$0xff]
    %v6010 = vld [vmem:[%s5888 + $0x3c8] sm:$0xff]
    %v6011 = vld [vmem:[%s5888 + $0x3d0] sm:$0xff]
    %v6012 = vld [vmem:[%s5888 + $0x3d8] sm:$0xff]
    %v6013 = vld [vmem:[%s5888 + $0x3e0] sm:$0xff]
    %v6014 = vld [vmem:[%s5888 + $0x3e8] sm:$0xff]
    %v6015 = vld [vmem:[%s5888 + $0x3f0] sm:$0xff]
    %v6016 = vld [vmem:[%s5888 + $0x3f8] sm:$0xff]
    %s6017 = scalar_lea.vmem [#allocation16], 16
    %v6018 = vld [vmem:[%s6017] sm:$0xff]
    %v6020 = vlaneseq
    %v6021 = vshrl.u32 %v6020, 7
    %v6022 = vsub.s32 0, %v6021
    %v6023 = vrot.slane %v6018, %v6022
    %v6024 = vlaneseq
    %v6025 = vshrl.u32 %v6024, 7
    %v6026 = vsub.s32 1, %v6025
    %v6027 = vrot.slane %v6018, %v6026
    %v6028 = vlaneseq
    %v6029 = vshrl.u32 %v6028, 7
    %v6030 = vsub.s32 2, %v6029
    %v6031 = vrot.slane %v6018, %v6030
    %v6032 = vlaneseq
    %v6033 = vshrl.u32 %v6032, 7
    %v6034 = vsub.s32 3, %v6033
    %v6035 = vrot.slane %v6018, %v6034
    %v6036 = vlaneseq
    %v6037 = vshrl.u32 %v6036, 7
    %v6038 = vsub.s32 4, %v6037
    %v6039 = vrot.slane %v6018, %v6038
    %v6040 = vlaneseq
    %v6041 = vshrl.u32 %v6040, 7
    %v6042 = vsub.s32 5, %v6041
    %v6043 = vrot.slane %v6018, %v6042
    %v6044 = vlaneseq
    %v6045 = vshrl.u32 %v6044, 7
    %v6046 = vsub.s32 6, %v6045
    %v6047 = vrot.slane %v6018, %v6046
    %v6048 = vlaneseq
    %v6049 = vshrl.u32 %v6048, 7
    %v6050 = vsub.s32 7, %v6049
    %v6051 = vrot.slane %v6018, %v6050
    %v6188 = vunpack.c.l.b16 %v5889
    %v6189 = vunpack.c.h.b16 %v5889
    %v6190 = vunpack.c.l.b16 %v5890
    %v6191 = vunpack.c.h.b16 %v5890
    %v6192 = vunpack.c.l.b16 %v5891
    %v6193 = vunpack.c.h.b16 %v5891
    %v6194 = vunpack.c.l.b16 %v5892
    %v6195 = vunpack.c.h.b16 %v5892
    %v6196 = vunpack.c.l.b16 %v5893
    %v6197 = vunpack.c.h.b16 %v5893
    %v6198 = vunpack.c.l.b16 %v5894
    %v6199 = vunpack.c.h.b16 %v5894
    %v6200 = vunpack.c.l.b16 %v5895
    %v6201 = vunpack.c.h.b16 %v5895
    %v6202 = vunpack.c.l.b16 %v5896
    %v6203 = vunpack.c.h.b16 %v5896
    %v6204 = vunpack.c.l.b16 %v5897
    %v6205 = vunpack.c.h.b16 %v5897
    %v6206 = vunpack.c.l.b16 %v5898
    %v6207 = vunpack.c.h.b16 %v5898
    %v6208 = vunpack.c.l.b16 %v5899
    %v6209 = vunpack.c.h.b16 %v5899
    %v6210 = vunpack.c.l.b16 %v5900
    %v6211 = vunpack.c.h.b16 %v5900
    %v6212 = vunpack.c.l.b16 %v5901
    %v6213 = vunpack.c.h.b16 %v5901
    %v6214 = vunpack.c.l.b16 %v5902
    %v6215 = vunpack.c.h.b16 %v5902
    %v6216 = vunpack.c.l.b16 %v5903
    %v6217 = vunpack.c.h.b16 %v5903
    %v6218 = vunpack.c.l.b16 %v5904
    %v6219 = vunpack.c.h.b16 %v5904
    %v6220 = vunpack.c.l.b16 %v5905
    %v6221 = vunpack.c.h.b16 %v5905
    %v6222 = vunpack.c.l.b16 %v5906
    %v6223 = vunpack.c.h.b16 %v5906
    %v6224 = vunpack.c.l.b16 %v5907
    %v6225 = vunpack.c.h.b16 %v5907
    %v6226 = vunpack.c.l.b16 %v5908
    %v6227 = vunpack.c.h.b16 %v5908
    %v6228 = vunpack.c.l.b16 %v5909
    %v6229 = vunpack.c.h.b16 %v5909
    %v6230 = vunpack.c.l.b16 %v5910
    %v6231 = vunpack.c.h.b16 %v5910
    %v6232 = vunpack.c.l.b16 %v5911
    %v6233 = vunpack.c.h.b16 %v5911
    %v6234 = vunpack.c.l.b16 %v5912
    %v6235 = vunpack.c.h.b16 %v5912
    %v6236 = vunpack.c.l.b16 %v5913
    %v6237 = vunpack.c.h.b16 %v5913
    %v6238 = vunpack.c.l.b16 %v5914
    %v6239 = vunpack.c.h.b16 %v5914
    %v6240 = vunpack.c.l.b16 %v5915
    %v6241 = vunpack.c.h.b16 %v5915
    %v6242 = vunpack.c.l.b16 %v5916
    %v6243 = vunpack.c.h.b16 %v5916
    %v6244 = vunpack.c.l.b16 %v5917
    %v6245 = vunpack.c.h.b16 %v5917
    %v6246 = vunpack.c.l.b16 %v5918
    %v6247 = vunpack.c.h.b16 %v5918
    %v6248 = vunpack.c.l.b16 %v5919
    %v6249 = vunpack.c.h.b16 %v5919
    %v6250 = vunpack.c.l.b16 %v5920
    %v6251 = vunpack.c.h.b16 %v5920
    %v6252 = vunpack.c.l.b16 %v5921
    %v6253 = vunpack.c.h.b16 %v5921
    %v6254 = vunpack.c.l.b16 %v5922
    %v6255 = vunpack.c.h.b16 %v5922
    %v6256 = vunpack.c.l.b16 %v5923
    %v6257 = vunpack.c.h.b16 %v5923
    %v6258 = vunpack.c.l.b16 %v5924
    %v6259 = vunpack.c.h.b16 %v5924
    %v6260 = vunpack.c.l.b16 %v5925
    %v6261 = vunpack.c.h.b16 %v5925
    %v6262 = vunpack.c.l.b16 %v5926
    %v6263 = vunpack.c.h.b16 %v5926
    %v6264 = vunpack.c.l.b16 %v5927
    %v6265 = vunpack.c.h.b16 %v5927
    %v6266 = vunpack.c.l.b16 %v5928
    %v6267 = vunpack.c.h.b16 %v5928
    %v6268 = vunpack.c.l.b16 %v5929
    %v6269 = vunpack.c.h.b16 %v5929
    %v6270 = vunpack.c.l.b16 %v5930
    %v6271 = vunpack.c.h.b16 %v5930
    %v6272 = vunpack.c.l.b16 %v5931
    %v6273 = vunpack.c.h.b16 %v5931
    %v6274 = vunpack.c.l.b16 %v5932
    %v6275 = vunpack.c.h.b16 %v5932
    %v6276 = vunpack.c.l.b16 %v5933
    %v6277 = vunpack.c.h.b16 %v5933
    %v6278 = vunpack.c.l.b16 %v5934
    %v6279 = vunpack.c.h.b16 %v5934
    %v6280 = vunpack.c.l.b16 %v5935
    %v6281 = vunpack.c.h.b16 %v5935
    %v6282 = vunpack.c.l.b16 %v5936
    %v6283 = vunpack.c.h.b16 %v5936
    %v6284 = vunpack.c.l.b16 %v5937
    %v6285 = vunpack.c.h.b16 %v5937
    %v6286 = vunpack.c.l.b16 %v5938
    %v6287 = vunpack.c.h.b16 %v5938
    %v6288 = vunpack.c.l.b16 %v5939
    %v6289 = vunpack.c.h.b16 %v5939
    %v6290 = vunpack.c.l.b16 %v5940
    %v6291 = vunpack.c.h.b16 %v5940
    %v6292 = vunpack.c.l.b16 %v5941
    %v6293 = vunpack.c.h.b16 %v5941
    %v6294 = vunpack.c.l.b16 %v5942
    %v6295 = vunpack.c.h.b16 %v5942
    %v6296 = vunpack.c.l.b16 %v5943
    %v6297 = vunpack.c.h.b16 %v5943
    %v6298 = vunpack.c.l.b16 %v5944
    %v6299 = vunpack.c.h.b16 %v5944
    %v6300 = vunpack.c.l.b16 %v5945
    %v6301 = vunpack.c.h.b16 %v5945
    %v6302 = vunpack.c.l.b16 %v5946
    %v6303 = vunpack.c.h.b16 %v5946
    %v6304 = vunpack.c.l.b16 %v5947
    %v6305 = vunpack.c.h.b16 %v5947
    %v6306 = vunpack.c.l.b16 %v5948
    %v6307 = vunpack.c.h.b16 %v5948
    %v6308 = vunpack.c.l.b16 %v5949
    %v6309 = vunpack.c.h.b16 %v5949
    %v6310 = vunpack.c.l.b16 %v5950
    %v6311 = vunpack.c.h.b16 %v5950
    %v6312 = vunpack.c.l.b16 %v5951
    %v6313 = vunpack.c.h.b16 %v5951
    %v6314 = vunpack.c.l.b16 %v5952
    %v6315 = vunpack.c.h.b16 %v5952
    %v6316 = vunpack.c.l.b16 %v5953
    %v6317 = vunpack.c.h.b16 %v5953
    %v6318 = vunpack.c.l.b16 %v5954
    %v6319 = vunpack.c.h.b16 %v5954
    %v6320 = vunpack.c.l.b16 %v5955
    %v6321 = vunpack.c.h.b16 %v5955
    %v6322 = vunpack.c.l.b16 %v5956
    %v6323 = vunpack.c.h.b16 %v5956
    %v6324 = vunpack.c.l.b16 %v5957
    %v6325 = vunpack.c.h.b16 %v5957
    %v6326 = vunpack.c.l.b16 %v5958
    %v6327 = vunpack.c.h.b16 %v5958
    %v6328 = vunpack.c.l.b16 %v5959
    %v6329 = vunpack.c.h.b16 %v5959
    %v6330 = vunpack.c.l.b16 %v5960
    %v6331 = vunpack.c.h.b16 %v5960
    %v6332 = vunpack.c.l.b16 %v5961
    %v6333 = vunpack.c.h.b16 %v5961
    %v6334 = vunpack.c.l.b16 %v5962
    %v6335 = vunpack.c.h.b16 %v5962
    %v6336 = vunpack.c.l.b16 %v5963
    %v6337 = vunpack.c.h.b16 %v5963
    %v6338 = vunpack.c.l.b16 %v5964
    %v6339 = vunpack.c.h.b16 %v5964
    %v6340 = vunpack.c.l.b16 %v5965
    %v6341 = vunpack.c.h.b16 %v5965
    %v6342 = vunpack.c.l.b16 %v5966
    %v6343 = vunpack.c.h.b16 %v5966
    %v6344 = vunpack.c.l.b16 %v5967
    %v6345 = vunpack.c.h.b16 %v5967
    %v6346 = vunpack.c.l.b16 %v5968
    %v6347 = vunpack.c.h.b16 %v5968
    %v6348 = vunpack.c.l.b16 %v5969
    %v6349 = vunpack.c.h.b16 %v5969
    %v6350 = vunpack.c.l.b16 %v5970
    %v6351 = vunpack.c.h.b16 %v5970
    %v6352 = vunpack.c.l.b16 %v5971
    %v6353 = vunpack.c.h.b16 %v5971
    %v6354 = vunpack.c.l.b16 %v5972
    %v6355 = vunpack.c.h.b16 %v5972
    %v6356 = vunpack.c.l.b16 %v5973
    %v6357 = vunpack.c.h.b16 %v5973
    %v6358 = vunpack.c.l.b16 %v5974
    %v6359 = vunpack.c.h.b16 %v5974
    %v6360 = vunpack.c.l.b16 %v5975
    %v6361 = vunpack.c.h.b16 %v5975
    %v6362 = vunpack.c.l.b16 %v5976
    %v6363 = vunpack.c.h.b16 %v5976
    %v6364 = vunpack.c.l.b16 %v5977
    %v6365 = vunpack.c.h.b16 %v5977
    %v6366 = vunpack.c.l.b16 %v5978
    %v6367 = vunpack.c.h.b16 %v5978
    %v6368 = vunpack.c.l.b16 %v5979
    %v6369 = vunpack.c.h.b16 %v5979
    %v6370 = vunpack.c.l.b16 %v5980
    %v6371 = vunpack.c.h.b16 %v5980
    %v6372 = vunpack.c.l.b16 %v5981
    %v6373 = vunpack.c.h.b16 %v5981
    %v6374 = vunpack.c.l.b16 %v5982
    %v6375 = vunpack.c.h.b16 %v5982
    %v6376 = vunpack.c.l.b16 %v5983
    %v6377 = vunpack.c.h.b16 %v5983
    %v6378 = vunpack.c.l.b16 %v5984
    %v6379 = vunpack.c.h.b16 %v5984
    %v6380 = vunpack.c.l.b16 %v5985
    %v6381 = vunpack.c.h.b16 %v5985
    %v6382 = vunpack.c.l.b16 %v5986
    %v6383 = vunpack.c.h.b16 %v5986
    %v6384 = vunpack.c.l.b16 %v5987
    %v6385 = vunpack.c.h.b16 %v5987
    %v6386 = vunpack.c.l.b16 %v5988
    %v6387 = vunpack.c.h.b16 %v5988
    %v6388 = vunpack.c.l.b16 %v5989
    %v6389 = vunpack.c.h.b16 %v5989
    %v6390 = vunpack.c.l.b16 %v5990
    %v6391 = vunpack.c.h.b16 %v5990
    %v6392 = vunpack.c.l.b16 %v5991
    %v6393 = vunpack.c.h.b16 %v5991
    %v6394 = vunpack.c.l.b16 %v5992
    %v6395 = vunpack.c.h.b16 %v5992
    %v6396 = vunpack.c.l.b16 %v5993
    %v6397 = vunpack.c.h.b16 %v5993
    %v6398 = vunpack.c.l.b16 %v5994
    %v6399 = vunpack.c.h.b16 %v5994
    %v6400 = vunpack.c.l.b16 %v5995
    %v6401 = vunpack.c.h.b16 %v5995
    %v6402 = vunpack.c.l.b16 %v5996
    %v6403 = vunpack.c.h.b16 %v5996
    %v6404 = vunpack.c.l.b16 %v5997
    %v6405 = vunpack.c.h.b16 %v5997
    %v6406 = vunpack.c.l.b16 %v5998
    %v6407 = vunpack.c.h.b16 %v5998
    %v6408 = vunpack.c.l.b16 %v5999
    %v6409 = vunpack.c.h.b16 %v5999
    %v6410 = vunpack.c.l.b16 %v6000
    %v6411 = vunpack.c.h.b16 %v6000
    %v6412 = vunpack.c.l.b16 %v6001
    %v6413 = vunpack.c.h.b16 %v6001
    %v6414 = vunpack.c.l.b16 %v6002
    %v6415 = vunpack.c.h.b16 %v6002
    %v6416 = vunpack.c.l.b16 %v6003
    %v6417 = vunpack.c.h.b16 %v6003
    %v6418 = vunpack.c.l.b16 %v6004
    %v6419 = vunpack.c.h.b16 %v6004
    %v6420 = vunpack.c.l.b16 %v6005
    %v6421 = vunpack.c.h.b16 %v6005
    %v6422 = vunpack.c.l.b16 %v6006
    %v6423 = vunpack.c.h.b16 %v6006
    %v6424 = vunpack.c.l.b16 %v6007
    %v6425 = vunpack.c.h.b16 %v6007
    %v6426 = vunpack.c.l.b16 %v6008
    %v6427 = vunpack.c.h.b16 %v6008
    %v6428 = vunpack.c.l.b16 %v6009
    %v6429 = vunpack.c.h.b16 %v6009
    %v6430 = vunpack.c.l.b16 %v6010
    %v6431 = vunpack.c.h.b16 %v6010
    %v6432 = vunpack.c.l.b16 %v6011
    %v6433 = vunpack.c.h.b16 %v6011
    %v6434 = vunpack.c.l.b16 %v6012
    %v6435 = vunpack.c.h.b16 %v6012
    %v6436 = vunpack.c.l.b16 %v6013
    %v6437 = vunpack.c.h.b16 %v6013
    %v6438 = vunpack.c.l.b16 %v6014
    %v6439 = vunpack.c.h.b16 %v6014
    %v6440 = vunpack.c.l.b16 %v6015
    %v6441 = vunpack.c.h.b16 %v6015
    %v6442 = vunpack.c.l.b16 %v6016
    %v6443 = vunpack.c.h.b16 %v6016
    %v6444 = vpack.c.b16 %v6196, %v6188
    %v6445 = vpack.c.b16 %v6197, %v6189
    %v6446 = vpack.c.b16 %v6198, %v6190
    %v6447 = vpack.c.b16 %v6199, %v6191
    %v6448 = vpack.c.b16 %v6200, %v6192
    %v6449 = vpack.c.b16 %v6201, %v6193
    %v6450 = vpack.c.b16 %v6202, %v6194
    %v6451 = vpack.c.b16 %v6203, %v6195
    %v6452 = vpack.c.b16 %v6212, %v6204
    %v6453 = vpack.c.b16 %v6213, %v6205
    %v6454 = vpack.c.b16 %v6214, %v6206
    %v6455 = vpack.c.b16 %v6215, %v6207
    %v6456 = vpack.c.b16 %v6216, %v6208
    %v6457 = vpack.c.b16 %v6217, %v6209
    %v6458 = vpack.c.b16 %v6218, %v6210
    %v6459 = vpack.c.b16 %v6219, %v6211
    %v6460 = vpack.c.b16 %v6228, %v6220
    %v6461 = vpack.c.b16 %v6229, %v6221
    %v6462 = vpack.c.b16 %v6230, %v6222
    %v6463 = vpack.c.b16 %v6231, %v6223
    %v6464 = vpack.c.b16 %v6232, %v6224
    %v6465 = vpack.c.b16 %v6233, %v6225
    %v6466 = vpack.c.b16 %v6234, %v6226
    %v6467 = vpack.c.b16 %v6235, %v6227
    %v6468 = vpack.c.b16 %v6244, %v6236
    %v6469 = vpack.c.b16 %v6245, %v6237
    %v6470 = vpack.c.b16 %v6246, %v6238
    %v6471 = vpack.c.b16 %v6247, %v6239
    %v6472 = vpack.c.b16 %v6248, %v6240
    %v6473 = vpack.c.b16 %v6249, %v6241
    %v6474 = vpack.c.b16 %v6250, %v6242
    %v6475 = vpack.c.b16 %v6251, %v6243
    %v6476 = vpack.c.b16 %v6260, %v6252
    %v6477 = vpack.c.b16 %v6261, %v6253
    %v6478 = vpack.c.b16 %v6262, %v6254
    %v6479 = vpack.c.b16 %v6263, %v6255
    %v6480 = vpack.c.b16 %v6264, %v6256
    %v6481 = vpack.c.b16 %v6265, %v6257
    %v6482 = vpack.c.b16 %v6266, %v6258
    %v6483 = vpack.c.b16 %v6267, %v6259
    %v6484 = vpack.c.b16 %v6276, %v6268
    %v6485 = vpack.c.b16 %v6277, %v6269
    %v6486 = vpack.c.b16 %v6278, %v6270
    %v6487 = vpack.c.b16 %v6279, %v6271
    %v6488 = vpack.c.b16 %v6280, %v6272
    %v6489 = vpack.c.b16 %v6281, %v6273
    %v6490 = vpack.c.b16 %v6282, %v6274
    %v6491 = vpack.c.b16 %v6283, %v6275
    %v6492 = vpack.c.b16 %v6292, %v6284
    %v6493 = vpack.c.b16 %v6293, %v6285
    %v6494 = vpack.c.b16 %v6294, %v6286
    %v6495 = vpack.c.b16 %v6295, %v6287
    %v6496 = vpack.c.b16 %v6296, %v6288
    %v6497 = vpack.c.b16 %v6297, %v6289
    %v6498 = vpack.c.b16 %v6298, %v6290
    %v6499 = vpack.c.b16 %v6299, %v6291
    %v6500 = vpack.c.b16 %v6308, %v6300
    %v6501 = vpack.c.b16 %v6309, %v6301
    %v6502 = vpack.c.b16 %v6310, %v6302
    %v6503 = vpack.c.b16 %v6311, %v6303
    %v6504 = vpack.c.b16 %v6312, %v6304
    %v6505 = vpack.c.b16 %v6313, %v6305
    %v6506 = vpack.c.b16 %v6314, %v6306
    %v6507 = vpack.c.b16 %v6315, %v6307
    %v6508 = vpack.c.b16 %v6324, %v6316
    %v6509 = vpack.c.b16 %v6325, %v6317
    %v6510 = vpack.c.b16 %v6326, %v6318
    %v6511 = vpack.c.b16 %v6327, %v6319
    %v6512 = vpack.c.b16 %v6328, %v6320
    %v6513 = vpack.c.b16 %v6329, %v6321
    %v6514 = vpack.c.b16 %v6330, %v6322
    %v6515 = vpack.c.b16 %v6331, %v6323
    %v6516 = vpack.c.b16 %v6340, %v6332
    %v6517 = vpack.c.b16 %v6341, %v6333
    %v6518 = vpack.c.b16 %v6342, %v6334
    %v6519 = vpack.c.b16 %v6343, %v6335
    %v6520 = vpack.c.b16 %v6344, %v6336
    %v6521 = vpack.c.b16 %v6345, %v6337
    %v6522 = vpack.c.b16 %v6346, %v6338
    %v6523 = vpack.c.b16 %v6347, %v6339
    %v6524 = vpack.c.b16 %v6356, %v6348
    %v6525 = vpack.c.b16 %v6357, %v6349
    %v6526 = vpack.c.b16 %v6358, %v6350
    %v6527 = vpack.c.b16 %v6359, %v6351
    %v6528 = vpack.c.b16 %v6360, %v6352
    %v6529 = vpack.c.b16 %v6361, %v6353
    %v6530 = vpack.c.b16 %v6362, %v6354
    %v6531 = vpack.c.b16 %v6363, %v6355
    %v6532 = vpack.c.b16 %v6372, %v6364
    %v6533 = vpack.c.b16 %v6373, %v6365
    %v6534 = vpack.c.b16 %v6374, %v6366
    %v6535 = vpack.c.b16 %v6375, %v6367
    %v6536 = vpack.c.b16 %v6376, %v6368
    %v6537 = vpack.c.b16 %v6377, %v6369
    %v6538 = vpack.c.b16 %v6378, %v6370
    %v6539 = vpack.c.b16 %v6379, %v6371
    %v6540 = vpack.c.b16 %v6388, %v6380
    %v6541 = vpack.c.b16 %v6389, %v6381
    %v6542 = vpack.c.b16 %v6390, %v6382
    %v6543 = vpack.c.b16 %v6391, %v6383
    %v6544 = vpack.c.b16 %v6392, %v6384
    %v6545 = vpack.c.b16 %v6393, %v6385
    %v6546 = vpack.c.b16 %v6394, %v6386
    %v6547 = vpack.c.b16 %v6395, %v6387
    %v6548 = vpack.c.b16 %v6404, %v6396
    %v6549 = vpack.c.b16 %v6405, %v6397
    %v6550 = vpack.c.b16 %v6406, %v6398
    %v6551 = vpack.c.b16 %v6407, %v6399
    %v6552 = vpack.c.b16 %v6408, %v6400
    %v6553 = vpack.c.b16 %v6409, %v6401
    %v6554 = vpack.c.b16 %v6410, %v6402
    %v6555 = vpack.c.b16 %v6411, %v6403
    %v6556 = vpack.c.b16 %v6420, %v6412
    %v6557 = vpack.c.b16 %v6421, %v6413
    %v6558 = vpack.c.b16 %v6422, %v6414
    %v6559 = vpack.c.b16 %v6423, %v6415
    %v6560 = vpack.c.b16 %v6424, %v6416
    %v6561 = vpack.c.b16 %v6425, %v6417
    %v6562 = vpack.c.b16 %v6426, %v6418
    %v6563 = vpack.c.b16 %v6427, %v6419
    %v6564 = vpack.c.b16 %v6436, %v6428
    %v6565 = vpack.c.b16 %v6437, %v6429
    %v6566 = vpack.c.b16 %v6438, %v6430
    %v6567 = vpack.c.b16 %v6439, %v6431
    %v6568 = vpack.c.b16 %v6440, %v6432
    %v6569 = vpack.c.b16 %v6441, %v6433
    %v6570 = vpack.c.b16 %v6442, %v6434
    %v6571 = vpack.c.b16 %v6443, %v6435
    %6700 = vmatprep.subr.bf16.mxu0 %v6445
    %6701 = vmatpush1.bf16.msra.mxu0 %v6444
    %6702 = vmatprep.subr.bf16.mxu0 %v6453
    %6703 = vmatpush1.bf16.msra.mxu0 %v6452
    %6704 = vmatprep.subr.bf16.mxu0 %v6461
    %6705 = vmatpush1.bf16.msra.mxu0 %v6460
    %6706 = vmatprep.subr.bf16.mxu0 %v6469
    %6707 = vmatpush1.bf16.msra.mxu0 %v6468
    %6708 = vmatprep.subr.bf16.mxu0 %v6477
    %6709 = vmatpush1.bf16.msra.mxu0 %v6476
    %6710 = vmatprep.subr.bf16.mxu0 %v6485
    %6711 = vmatpush1.bf16.msra.mxu0 %v6484
    %6712 = vmatprep.subr.bf16.mxu0 %v6493
    %6713 = vmatpush1.bf16.msra.mxu0 %v6492
    %6714 = vmatprep.subr.bf16.mxu0 %v6501
    %6715 = vmatpush1.bf16.msra.mxu0 %v6500
    %6716 = vmatprep.subr.bf16.mxu0 %v6509
    %6717 = vmatpush1.bf16.msra.mxu0 %v6508
    %6718 = vmatprep.subr.bf16.mxu0 %v6517
    %6719 = vmatpush1.bf16.msra.mxu0 %v6516
    %6720 = vmatprep.subr.bf16.mxu0 %v6525
    %6721 = vmatpush1.bf16.msra.mxu0 %v6524
    %6722 = vmatprep.subr.bf16.mxu0 %v6533
    %6723 = vmatpush1.bf16.msra.mxu0 %v6532
    %6724 = vmatprep.subr.bf16.mxu0 %v6541
    %6725 = vmatpush1.bf16.msra.mxu0 %v6540
    %6726 = vmatprep.subr.bf16.mxu0 %v6549
    %6727 = vmatpush1.bf16.msra.mxu0 %v6548
    %6728 = vmatprep.subr.bf16.mxu0 %v6557
    %6729 = vmatpush1.bf16.msra.mxu0 %v6556
    %6730 = vmatprep.subr.bf16.mxu0 %v6565
    %6731 = vmatpush1.bf16.msra.mxu0 %v6564
    %6732 = vmatprep.mubr.bf16.mxu0 %v5887
    %6733 = vmatmul.mubr.bf16.gmra.mrb[0].mxu0 %v5886
    %v6734 = vpop.f32.mrb[0].mxu0
    %v6735 = vadd.f32 %v6023, %v6734
    %v6736 = vpop.f32.mrb[0].mxu0
    %v6737 = vadd.f32 %v6027, %v6736
    %v6738 = vpop.f32.mrb[0].mxu0
    %v6739 = vpop.f32.mrb[0].mxu0
    %6740 = vdwg.mxu0
    %6741 = vmatprep.subr.bf16.mxu0 %v6447
    %6742 = vmatpush1.bf16.msra.mxu0 %v6446
    %6743 = vmatprep.subr.bf16.mxu0 %v6455
    %6744 = vmatpush1.bf16.msra.mxu0 %v6454
    %6745 = vmatprep.subr.bf16.mxu0 %v6463
    %6746 = vmatpush1.bf16.msra.mxu0 %v6462
    %6747 = vmatprep.subr.bf16.mxu0 %v6471
    %6748 = vmatpush1.bf16.msra.mxu0 %v6470
    %6749 = vmatprep.subr.bf16.mxu0 %v6479
    %6750 = vmatpush1.bf16.msra.mxu0 %v6478
    %6751 = vmatprep.subr.bf16.mxu0 %v6487
    %6752 = vmatpush1.bf16.msra.mxu0 %v6486
    %6753 = vmatprep.subr.bf16.mxu0 %v6495
    %6754 = vmatpush1.bf16.msra.mxu0 %v6494
    %6755 = vmatprep.subr.bf16.mxu0 %v6503
    %6756 = vmatpush1.bf16.msra.mxu0 %v6502
    %6757 = vmatprep.subr.bf16.mxu0 %v6511
    %6758 = vmatpush1.bf16.msra.mxu0 %v6510
    %6759 = vmatprep.subr.bf16.mxu0 %v6519
    %6760 = vmatpush1.bf16.msra.mxu0 %v6518
    %6761 = vmatprep.subr.bf16.mxu0 %v6527
    %6762 = vmatpush1.bf16.msra.mxu0 %v6526
    %6763 = vmatprep.subr.bf16.mxu0 %v6535
    %6764 = vmatpush1.bf16.msra.mxu0 %v6534
    %6765 = vmatprep.subr.bf16.mxu0 %v6543
    %6766 = vmatpush1.bf16.msra.mxu0 %v6542
    %6767 = vmatprep.subr.bf16.mxu0 %v6551
    %6768 = vmatpush1.bf16.msra.mxu0 %v6550
    %6769 = vmatprep.subr.bf16.mxu0 %v6559
    %6770 = vmatpush1.bf16.msra.mxu0 %v6558
    %6771 = vmatprep.subr.bf16.mxu0 %v6567
    %6772 = vmatpush1.bf16.msra.mxu0 %v6566
    %6773 = vmatprep.mubr.bf16.mxu0 %v5887
    %6774 = vmatmul.mubr.bf16.gmra.mrb[0].mxu0 %v5886
    %v6775 = vpop.f32.mrb[0].mxu0
    %v6776 = vadd.f32 %v6031, %v6775
    %v6777 = vpop.f32.mrb[0].mxu0
    %v6778 = vadd.f32 %v6035, %v6777
    %v6779 = vpop.f32.mrb[0].mxu0
    %v6780 = vpop.f32.mrb[0].mxu0
    %6781 = vdwg.mxu0
    %6782 = vmatprep.subr.bf16.mxu0 %v6449
    %6783 = vmatpush1.bf16.msra.mxu0 %v6448
    %6784 = vmatprep.subr.bf16.mxu0 %v6457
    %6785 = vmatpush1.bf16.msra.mxu0 %v6456
    %6786 = vmatprep.subr.bf16.mxu0 %v6465
    %6787 = vmatpush1.bf16.msra.mxu0 %v6464
    %6788 = vmatprep.subr.bf16.mxu0 %v6473
    %6789 = vmatpush1.bf16.msra.mxu0 %v6472
    %6790 = vmatprep.subr.bf16.mxu0 %v6481
    %6791 = vmatpush1.bf16.msra.mxu0 %v6480
    %6792 = vmatprep.subr.bf16.mxu0 %v6489
    %6793 = vmatpush1.bf16.msra.mxu0 %v6488
    %6794 = vmatprep.subr.bf16.mxu0 %v6497
    %6795 = vmatpush1.bf16.msra.mxu0 %v6496
    %6796 = vmatprep.subr.bf16.mxu0 %v6505
    %6797 = vmatpush1.bf16.msra.mxu0 %v6504
    %6798 = vmatprep.subr.bf16.mxu0 %v6513
    %6799 = vmatpush1.bf16.msra.mxu0 %v6512
    %6800 = vmatprep.subr.bf16.mxu0 %v6521
    %6801 = vmatpush1.bf16.msra.mxu0 %v6520
    %6802 = vmatprep.subr.bf16.mxu0 %v6529
    %6803 = vmatpush1.bf16.msra.mxu0 %v6528
    %6804 = vmatprep.subr.bf16.mxu0 %v6537
    %6805 = vmatpush1.bf16.msra.mxu0 %v6536
    %6806 = vmatprep.subr.bf16.mxu0 %v6545
    %6807 = vmatpush1.bf16.msra.mxu0 %v6544
    %6808 = vmatprep.subr.bf16.mxu0 %v6553
    %6809 = vmatpush1.bf16.msra.mxu0 %v6552
    %6810 = vmatprep.subr.bf16.mxu0 %v6561
    %6811 = vmatpush1.bf16.msra.mxu0 %v6560
    %6812 = vmatprep.subr.bf16.mxu0 %v6569
    %6813 = vmatpush1.bf16.msra.mxu0 %v6568
    %6814 = vmatprep.mubr.bf16.mxu0 %v5887
    %6815 = vmatmul.mubr.bf16.gmra.mrb[0].mxu0 %v5886
    %v6816 = vpop.f32.mrb[0].mxu0
    %v6817 = vadd.f32 %v6039, %v6816
    %v6818 = vpop.f32.mrb[0].mxu0
    %v6819 = vadd.f32 %v6043, %v6818
    %v6820 = vpop.f32.mrb[0].mxu0
    %v6821 = vpop.f32.mrb[0].mxu0
    %6822 = vdwg.mxu0
    %6823 = vmatprep.subr.bf16.mxu0 %v6451
    %6824 = vmatpush1.bf16.msra.mxu0 %v6450
    %6825 = vmatprep.subr.bf16.mxu0 %v6459
    %6826 = vmatpush1.bf16.msra.mxu0 %v6458
    %6827 = vmatprep.subr.bf16.mxu0 %v6467
    %6828 = vmatpush1.bf16.msra.mxu0 %v6466
    %6829 = vmatprep.subr.bf16.mxu0 %v6475
    %6830 = vmatpush1.bf16.msra.mxu0 %v6474
    %6831 = vmatprep.subr.bf16.mxu0 %v6483
    %6832 = vmatpush1.bf16.msra.mxu0 %v6482
    %6833 = vmatprep.subr.bf16.mxu0 %v6491
    %6834 = vmatpush1.bf16.msra.mxu0 %v6490
    %6835 = vmatprep.subr.bf16.mxu0 %v6499
    %6836 = vmatpush1.bf16.msra.mxu0 %v6498
    %6837 = vmatprep.subr.bf16.mxu0 %v6507
    %6838 = vmatpush1.bf16.msra.mxu0 %v6506
    %6839 = vmatprep.subr.bf16.mxu0 %v6515
    %6840 = vmatpush1.bf16.msra.mxu0 %v6514
    %6841 = vmatprep.subr.bf16.mxu0 %v6523
    %6842 = vmatpush1.bf16.msra.mxu0 %v6522
    %6843 = vmatprep.subr.bf16.mxu0 %v6531
    %6844 = vmatpush1.bf16.msra.mxu0 %v6530
    %6845 = vmatprep.subr.bf16.mxu0 %v6539
    %6846 = vmatpush1.bf16.msra.mxu0 %v6538
    %6847 = vmatprep.subr.bf16.mxu0 %v6547
    %6848 = vmatpush1.bf16.msra.mxu0 %v6546
    %6849 = vmatprep.subr.bf16.mxu0 %v6555
    %6850 = vmatpush1.bf16.msra.mxu0 %v6554
    %6851 = vmatprep.subr.bf16.mxu0 %v6563
    %6852 = vmatpush1.bf16.msra.mxu0 %v6562
    %6853 = vmatprep.subr.bf16.mxu0 %v6571
    %6854 = vmatpush1.bf16.msra.mxu0 %v6570
    %6855 = vmatprep.mubr.bf16.mxu0 %v5887
    %6856 = vmatmul.mubr.bf16.gmra.mrb[0].mxu0 %v5886
    %v6857 = vpop.f32.mrb[0].mxu0
    %v6858 = vadd.f32 %v6047, %v6857
    %v6859 = vpop.f32.mrb[0].mxu0
    %v6860 = vadd.f32 %v6051, %v6859
    %v6861 = vpop.f32.mrb[0].mxu0
    %v6862 = vpop.f32.mrb[0].mxu0
    %6863 = vdwg.mxu0
    %v6864 = vmax.f32 %v6735, 0.0
    %v6865 = vmax.f32 %v6737, 0.0
    %v6866 = vmax.f32 %v6776, 0.0
    %v6867 = vmax.f32 %v6778, 0.0
    %v6868 = vmax.f32 %v6817, 0.0
    %v6869 = vmax.f32 %v6819, 0.0
    %v6870 = vmax.f32 %v6858, 0.0
    %v6871 = vmax.f32 %v6860, 0.0
    %v6872 = vpack.c.bf16 %v6864, %v6864
    %v6873 = vpack.c.bf16 %v6865, %v6865
    %v6874 = vpack.c.bf16 %v6866, %v6866
    %v6875 = vpack.c.bf16 %v6867, %v6867
    %v6876 = vpack.c.bf16 %v6868, %v6868
    %v6877 = vpack.c.bf16 %v6869, %v6869
    %v6878 = vpack.c.bf16 %v6870, %v6870
    %v6879 = vpack.c.bf16 %v6871, %v6871
    %s6880 = scalar_lea.vmem [#allocation17], 2048
    %v6881 = vld [vmem:[%s6880] sm:$0xff]
    %v6882 = vld [vmem:[%s6880 + $0x8] sm:$0xff]
    %v6883 = vld [vmem:[%s6880 + $0x10] sm:$0xff]
    %v6884 = vld [vmem:[%s6880 + $0x18] sm:$0xff]
    %v6885 = vld [vmem:[%s6880 + $0x20] sm:$0xff]
    %v6886 = vld [vmem:[%s6880 + $0x28] sm:$0xff]
    %v6887 = vld [vmem:[%s6880 + $0x30] sm:$0xff]
    %v6888 = vld [vmem:[%s6880 + $0x38] sm:$0xff]
    %v6889 = vld [vmem:[%s6880 + $0x40] sm:$0xff]
    %v6890 = vld [vmem:[%s6880 + $0x48] sm:$0xff]
    %v6891 = vld [vmem:[%s6880 + $0x50] sm:$0xff]
    %v6892 = vld [vmem:[%s6880 + $0x58] sm:$0xff]
    %v6893 = vld [vmem:[%s6880 + $0x60] sm:$0xff]
    %v6894 = vld [vmem:[%s6880 + $0x68] sm:$0xff]
    %v6895 = vld [vmem:[%s6880 + $0x70] sm:$0xff]
    %v6896 = vld [vmem:[%s6880 + $0x78] sm:$0xff]
    %v6897 = vld [vmem:[%s6880 + $0x80] sm:$0xff]
    %v6898 = vld [vmem:[%s6880 + $0x88] sm:$0xff]
    %v6899 = vld [vmem:[%s6880 + $0x90] sm:$0xff]
    %v6900 = vld [vmem:[%s6880 + $0x98] sm:$0xff]
    %v6901 = vld [vmem:[%s6880 + $0xa0] sm:$0xff]
    %v6902 = vld [vmem:[%s6880 + $0xa8] sm:$0xff]
    %v6903 = vld [vmem:[%s6880 + $0xb0] sm:$0xff]
    %v6904 = vld [vmem:[%s6880 + $0xb8] sm:$0xff]
    %v6905 = vld [vmem:[%s6880 + $0xc0] sm:$0xff]
    %v6906 = vld [vmem:[%s6880 + $0xc8] sm:$0xff]
    %v6907 = vld [vmem:[%s6880 + $0xd0] sm:$0xff]
    %v6908 = vld [vmem:[%s6880 + $0xd8] sm:$0xff]
    %v6909 = vld [vmem:[%s6880 + $0xe0] sm:$0xff]
    %v6910 = vld [vmem:[%s6880 + $0xe8] sm:$0xff]
    %v6911 = vld [vmem:[%s6880 + $0xf0] sm:$0xff]
    %v6912 = vld [vmem:[%s6880 + $0xf8] sm:$0xff]
    %v6913 = vld [vmem:[%s6880 + $0x100] sm:$0xff]
    %v6914 = vld [vmem:[%s6880 + $0x108] sm:$0xff]
    %v6915 = vld [vmem:[%s6880 + $0x110] sm:$0xff]
    %v6916 = vld [vmem:[%s6880 + $0x118] sm:$0xff]
    %v6917 = vld [vmem:[%s6880 + $0x120] sm:$0xff]
    %v6918 = vld [vmem:[%s6880 + $0x128] sm:$0xff]
    %v6919 = vld [vmem:[%s6880 + $0x130] sm:$0xff]
    %v6920 = vld [vmem:[%s6880 + $0x138] sm:$0xff]
    %v6921 = vld [vmem:[%s6880 + $0x140] sm:$0xff]
    %v6922 = vld [vmem:[%s6880 + $0x148] sm:$0xff]
    %v6923 = vld [vmem:[%s6880 + $0x150] sm:$0xff]
    %v6924 = vld [vmem:[%s6880 + $0x158] sm:$0xff]
    %v6925 = vld [vmem:[%s6880 + $0x160] sm:$0xff]
    %v6926 = vld [vmem:[%s6880 + $0x168] sm:$0xff]
    %v6927 = vld [vmem:[%s6880 + $0x170] sm:$0xff]
    %v6928 = vld [vmem:[%s6880 + $0x178] sm:$0xff]
    %v6929 = vld [vmem:[%s6880 + $0x180] sm:$0xff]
    %v6930 = vld [vmem:[%s6880 + $0x188] sm:$0xff]
    %v6931 = vld [vmem:[%s6880 + $0x190] sm:$0xff]
    %v6932 = vld [vmem:[%s6880 + $0x198] sm:$0xff]
    %v6933 = vld [vmem:[%s6880 + $0x1a0] sm:$0xff]
    %v6934 = vld [vmem:[%s6880 + $0x1a8] sm:$0xff]
    %v6935 = vld [vmem:[%s6880 + $0x1b0] sm:$0xff]
    %v6936 = vld [vmem:[%s6880 + $0x1b8] sm:$0xff]
    %v6937 = vld [vmem:[%s6880 + $0x1c0] sm:$0xff]
    %v6938 = vld [vmem:[%s6880 + $0x1c8] sm:$0xff]
    %v6939 = vld [vmem:[%s6880 + $0x1d0] sm:$0xff]
    %v6940 = vld [vmem:[%s6880 + $0x1d8] sm:$0xff]
    %v6941 = vld [vmem:[%s6880 + $0x1e0] sm:$0xff]
    %v6942 = vld [vmem:[%s6880 + $0x1e8] sm:$0xff]
    %v6943 = vld [vmem:[%s6880 + $0x1f0] sm:$0xff]
    %v6944 = vld [vmem:[%s6880 + $0x1f8] sm:$0xff]
    %v6945 = vld [vmem:[%s6880 + $0x200] sm:$0xff]
    %v6946 = vld [vmem:[%s6880 + $0x208] sm:$0xff]
    %v6947 = vld [vmem:[%s6880 + $0x210] sm:$0xff]
    %v6948 = vld [vmem:[%s6880 + $0x218] sm:$0xff]
    %v6949 = vld [vmem:[%s6880 + $0x220] sm:$0xff]
    %v6950 = vld [vmem:[%s6880 + $0x228] sm:$0xff]
    %v6951 = vld [vmem:[%s6880 + $0x230] sm:$0xff]
    %v6952 = vld [vmem:[%s6880 + $0x238] sm:$0xff]
    %v6953 = vld [vmem:[%s6880 + $0x240] sm:$0xff]
    %v6954 = vld [vmem:[%s6880 + $0x248] sm:$0xff]
    %v6955 = vld [vmem:[%s6880 + $0x250] sm:$0xff]
    %v6956 = vld [vmem:[%s6880 + $0x258] sm:$0xff]
    %v6957 = vld [vmem:[%s6880 + $0x260] sm:$0xff]
    %v6958 = vld [vmem:[%s6880 + $0x268] sm:$0xff]
    %v6959 = vld [vmem:[%s6880 + $0x270] sm:$0xff]
    %v6960 = vld [vmem:[%s6880 + $0x278] sm:$0xff]
    %v6961 = vld [vmem:[%s6880 + $0x280] sm:$0xff]
    %v6962 = vld [vmem:[%s6880 + $0x288] sm:$0xff]
    %v6963 = vld [vmem:[%s6880 + $0x290] sm:$0xff]
    %v6964 = vld [vmem:[%s6880 + $0x298] sm:$0xff]
    %v6965 = vld [vmem:[%s6880 + $0x2a0] sm:$0xff]
    %v6966 = vld [vmem:[%s6880 + $0x2a8] sm:$0xff]
    %v6967 = vld [vmem:[%s6880 + $0x2b0] sm:$0xff]
    %v6968 = vld [vmem:[%s6880 + $0x2b8] sm:$0xff]
    %v6969 = vld [vmem:[%s6880 + $0x2c0] sm:$0xff]
    %v6970 = vld [vmem:[%s6880 + $0x2c8] sm:$0xff]
    %v6971 = vld [vmem:[%s6880 + $0x2d0] sm:$0xff]
    %v6972 = vld [vmem:[%s6880 + $0x2d8] sm:$0xff]
    %v6973 = vld [vmem:[%s6880 + $0x2e0] sm:$0xff]
    %v6974 = vld [vmem:[%s6880 + $0x2e8] sm:$0xff]
    %v6975 = vld [vmem:[%s6880 + $0x2f0] sm:$0xff]
    %v6976 = vld [vmem:[%s6880 + $0x2f8] sm:$0xff]
    %v6977 = vld [vmem:[%s6880 + $0x300] sm:$0xff]
    %v6978 = vld [vmem:[%s6880 + $0x308] sm:$0xff]
    %v6979 = vld [vmem:[%s6880 + $0x310] sm:$0xff]
    %v6980 = vld [vmem:[%s6880 + $0x318] sm:$0xff]
    %v6981 = vld [vmem:[%s6880 + $0x320] sm:$0xff]
    %v6982 = vld [vmem:[%s6880 + $0x328] sm:$0xff]
    %v6983 = vld [vmem:[%s6880 + $0x330] sm:$0xff]
    %v6984 = vld [vmem:[%s6880 + $0x338] sm:$0xff]
    %v6985 = vld [vmem:[%s6880 + $0x340] sm:$0xff]
    %v6986 = vld [vmem:[%s6880 + $0x348] sm:$0xff]
    %v6987 = vld [vmem:[%s6880 + $0x350] sm:$0xff]
    %v6988 = vld [vmem:[%s6880 + $0x358] sm:$0xff]
    %v6989 = vld [vmem:[%s6880 + $0x360] sm:$0xff]
    %v6990 = vld [vmem:[%s6880 + $0x368] sm:$0xff]
    %v6991 = vld [vmem:[%s6880 + $0x370] sm:$0xff]
    %v6992 = vld [vmem:[%s6880 + $0x378] sm:$0xff]
    %v6993 = vld [vmem:[%s6880 + $0x380] sm:$0xff]
    %v6994 = vld [vmem:[%s6880 + $0x388] sm:$0xff]
    %v6995 = vld [vmem:[%s6880 + $0x390] sm:$0xff]
    %v6996 = vld [vmem:[%s6880 + $0x398] sm:$0xff]
    %v6997 = vld [vmem:[%s6880 + $0x3a0] sm:$0xff]
    %v6998 = vld [vmem:[%s6880 + $0x3a8] sm:$0xff]
    %v6999 = vld [vmem:[%s6880 + $0x3b0] sm:$0xff]
    %v7000 = vld [vmem:[%s6880 + $0x3b8] sm:$0xff]
    %v7001 = vld [vmem:[%s6880 + $0x3c0] sm:$0xff]
    %v7002 = vld [vmem:[%s6880 + $0x3c8] sm:$0xff]
    %v7003 = vld [vmem:[%s6880 + $0x3d0] sm:$0xff]
    %v7004 = vld [vmem:[%s6880 + $0x3d8] sm:$0xff]
    %v7005 = vld [vmem:[%s6880 + $0x3e0] sm:$0xff]
    %v7006 = vld [vmem:[%s6880 + $0x3e8] sm:$0xff]
    %v7007 = vld [vmem:[%s6880 + $0x3f0] sm:$0xff]
    %v7008 = vld [vmem:[%s6880 + $0x3f8] sm:$0xff]
    %s7009 = scalar_lea.vmem [#allocation19], 4
    %v7010 = vld [vmem:[%s7009] sm:$0x3]
    %v7012 = vlaneseq
    %v7013 = vshrl.u32 %v7012, 7
    %v7014 = vsub.s32 0, %v7013
    %v7015 = vrot.slane %v7010, %v7014
    %v7016 = vlaneseq
    %v7017 = vshrl.u32 %v7016, 7
    %v7018 = vsub.s32 1, %v7017
    %v7019 = vrot.slane %v7010, %v7018
    %v7150 = vunpack.c.l.b16 %v6881
    %v7151 = vunpack.c.h.b16 %v6881
    %v7152 = vunpack.c.l.b16 %v6882
    %v7153 = vunpack.c.h.b16 %v6882
    %v7154 = vunpack.c.l.b16 %v6883
    %v7155 = vunpack.c.h.b16 %v6883
    %v7156 = vunpack.c.l.b16 %v6884
    %v7157 = vunpack.c.h.b16 %v6884
    %v7158 = vunpack.c.l.b16 %v6885
    %v7159 = vunpack.c.h.b16 %v6885
    %v7160 = vunpack.c.l.b16 %v6886
    %v7161 = vunpack.c.h.b16 %v6886
    %v7162 = vunpack.c.l.b16 %v6887
    %v7163 = vunpack.c.h.b16 %v6887
    %v7164 = vunpack.c.l.b16 %v6888
    %v7165 = vunpack.c.h.b16 %v6888
    %v7166 = vunpack.c.l.b16 %v6889
    %v7167 = vunpack.c.h.b16 %v6889
    %v7168 = vunpack.c.l.b16 %v6890
    %v7169 = vunpack.c.h.b16 %v6890
    %v7170 = vunpack.c.l.b16 %v6891
    %v7171 = vunpack.c.h.b16 %v6891
    %v7172 = vunpack.c.l.b16 %v6892
    %v7173 = vunpack.c.h.b16 %v6892
    %v7174 = vunpack.c.l.b16 %v6893
    %v7175 = vunpack.c.h.b16 %v6893
    %v7176 = vunpack.c.l.b16 %v6894
    %v7177 = vunpack.c.h.b16 %v6894
    %v7178 = vunpack.c.l.b16 %v6895
    %v7179 = vunpack.c.h.b16 %v6895
    %v7180 = vunpack.c.l.b16 %v6896
    %v7181 = vunpack.c.h.b16 %v6896
    %v7182 = vunpack.c.l.b16 %v6897
    %v7183 = vunpack.c.h.b16 %v6897
    %v7184 = vunpack.c.l.b16 %v6898
    %v7185 = vunpack.c.h.b16 %v6898
    %v7186 = vunpack.c.l.b16 %v6899
    %v7187 = vunpack.c.h.b16 %v6899
    %v7188 = vunpack.c.l.b16 %v6900
    %v7189 = vunpack.c.h.b16 %v6900
    %v7190 = vunpack.c.l.b16 %v6901
    %v7191 = vunpack.c.h.b16 %v6901
    %v7192 = vunpack.c.l.b16 %v6902
    %v7193 = vunpack.c.h.b16 %v6902
    %v7194 = vunpack.c.l.b16 %v6903
    %v7195 = vunpack.c.h.b16 %v6903
    %v7196 = vunpack.c.l.b16 %v6904
    %v7197 = vunpack.c.h.b16 %v6904
    %v7198 = vunpack.c.l.b16 %v6905
    %v7199 = vunpack.c.h.b16 %v6905
    %v7200 = vunpack.c.l.b16 %v6906
    %v7201 = vunpack.c.h.b16 %v6906
    %v7202 = vunpack.c.l.b16 %v6907
    %v7203 = vunpack.c.h.b16 %v6907
    %v7204 = vunpack.c.l.b16 %v6908
    %v7205 = vunpack.c.h.b16 %v6908
    %v7206 = vunpack.c.l.b16 %v6909
    %v7207 = vunpack.c.h.b16 %v6909
    %v7208 = vunpack.c.l.b16 %v6910
    %v7209 = vunpack.c.h.b16 %v6910
    %v7210 = vunpack.c.l.b16 %v6911
    %v7211 = vunpack.c.h.b16 %v6911
    %v7212 = vunpack.c.l.b16 %v6912
    %v7213 = vunpack.c.h.b16 %v6912
    %v7214 = vunpack.c.l.b16 %v6913
    %v7215 = vunpack.c.h.b16 %v6913
    %v7216 = vunpack.c.l.b16 %v6914
    %v7217 = vunpack.c.h.b16 %v6914
    %v7218 = vunpack.c.l.b16 %v6915
    %v7219 = vunpack.c.h.b16 %v6915
    %v7220 = vunpack.c.l.b16 %v6916
    %v7221 = vunpack.c.h.b16 %v6916
    %v7222 = vunpack.c.l.b16 %v6917
    %v7223 = vunpack.c.h.b16 %v6917
    %v7224 = vunpack.c.l.b16 %v6918
    %v7225 = vunpack.c.h.b16 %v6918
    %v7226 = vunpack.c.l.b16 %v6919
    %v7227 = vunpack.c.h.b16 %v6919
    %v7228 = vunpack.c.l.b16 %v6920
    %v7229 = vunpack.c.h.b16 %v6920
    %v7230 = vunpack.c.l.b16 %v6921
    %v7231 = vunpack.c.h.b16 %v6921
    %v7232 = vunpack.c.l.b16 %v6922
    %v7233 = vunpack.c.h.b16 %v6922
    %v7234 = vunpack.c.l.b16 %v6923
    %v7235 = vunpack.c.h.b16 %v6923
    %v7236 = vunpack.c.l.b16 %v6924
    %v7237 = vunpack.c.h.b16 %v6924
    %v7238 = vunpack.c.l.b16 %v6925
    %v7239 = vunpack.c.h.b16 %v6925
    %v7240 = vunpack.c.l.b16 %v6926
    %v7241 = vunpack.c.h.b16 %v6926
    %v7242 = vunpack.c.l.b16 %v6927
    %v7243 = vunpack.c.h.b16 %v6927
    %v7244 = vunpack.c.l.b16 %v6928
    %v7245 = vunpack.c.h.b16 %v6928
    %v7246 = vunpack.c.l.b16 %v6929
    %v7247 = vunpack.c.h.b16 %v6929
    %v7248 = vunpack.c.l.b16 %v6930
    %v7249 = vunpack.c.h.b16 %v6930
    %v7250 = vunpack.c.l.b16 %v6931
    %v7251 = vunpack.c.h.b16 %v6931
    %v7252 = vunpack.c.l.b16 %v6932
    %v7253 = vunpack.c.h.b16 %v6932
    %v7254 = vunpack.c.l.b16 %v6933
    %v7255 = vunpack.c.h.b16 %v6933
    %v7256 = vunpack.c.l.b16 %v6934
    %v7257 = vunpack.c.h.b16 %v6934
    %v7258 = vunpack.c.l.b16 %v6935
    %v7259 = vunpack.c.h.b16 %v6935
    %v7260 = vunpack.c.l.b16 %v6936
    %v7261 = vunpack.c.h.b16 %v6936
    %v7262 = vunpack.c.l.b16 %v6937
    %v7263 = vunpack.c.h.b16 %v6937
    %v7264 = vunpack.c.l.b16 %v6938
    %v7265 = vunpack.c.h.b16 %v6938
    %v7266 = vunpack.c.l.b16 %v6939
    %v7267 = vunpack.c.h.b16 %v6939
    %v7268 = vunpack.c.l.b16 %v6940
    %v7269 = vunpack.c.h.b16 %v6940
    %v7270 = vunpack.c.l.b16 %v6941
    %v7271 = vunpack.c.h.b16 %v6941
    %v7272 = vunpack.c.l.b16 %v6942
    %v7273 = vunpack.c.h.b16 %v6942
    %v7274 = vunpack.c.l.b16 %v6943
    %v7275 = vunpack.c.h.b16 %v6943
    %v7276 = vunpack.c.l.b16 %v6944
    %v7277 = vunpack.c.h.b16 %v6944
    %v7278 = vunpack.c.l.b16 %v6945
    %v7279 = vunpack.c.h.b16 %v6945
    %v7280 = vunpack.c.l.b16 %v6946
    %v7281 = vunpack.c.h.b16 %v6946
    %v7282 = vunpack.c.l.b16 %v6947
    %v7283 = vunpack.c.h.b16 %v6947
    %v7284 = vunpack.c.l.b16 %v6948
    %v7285 = vunpack.c.h.b16 %v6948
    %v7286 = vunpack.c.l.b16 %v6949
    %v7287 = vunpack.c.h.b16 %v6949
    %v7288 = vunpack.c.l.b16 %v6950
    %v7289 = vunpack.c.h.b16 %v6950
    %v7290 = vunpack.c.l.b16 %v6951
    %v7291 = vunpack.c.h.b16 %v6951
    %v7292 = vunpack.c.l.b16 %v6952
    %v7293 = vunpack.c.h.b16 %v6952
    %v7294 = vunpack.c.l.b16 %v6953
    %v7295 = vunpack.c.h.b16 %v6953
    %v7296 = vunpack.c.l.b16 %v6954
    %v7297 = vunpack.c.h.b16 %v6954
    %v7298 = vunpack.c.l.b16 %v6955
    %v7299 = vunpack.c.h.b16 %v6955
    %v7300 = vunpack.c.l.b16 %v6956
    %v7301 = vunpack.c.h.b16 %v6956
    %v7302 = vunpack.c.l.b16 %v6957
    %v7303 = vunpack.c.h.b16 %v6957
    %v7304 = vunpack.c.l.b16 %v6958
    %v7305 = vunpack.c.h.b16 %v6958
    %v7306 = vunpack.c.l.b16 %v6959
    %v7307 = vunpack.c.h.b16 %v6959
    %v7308 = vunpack.c.l.b16 %v6960
    %v7309 = vunpack.c.h.b16 %v6960
    %v7310 = vunpack.c.l.b16 %v6961
    %v7311 = vunpack.c.h.b16 %v6961
    %v7312 = vunpack.c.l.b16 %v6962
    %v7313 = vunpack.c.h.b16 %v6962
    %v7314 = vunpack.c.l.b16 %v6963
    %v7315 = vunpack.c.h.b16 %v6963
    %v7316 = vunpack.c.l.b16 %v6964
    %v7317 = vunpack.c.h.b16 %v6964
    %v7318 = vunpack.c.l.b16 %v6965
    %v7319 = vunpack.c.h.b16 %v6965
    %v7320 = vunpack.c.l.b16 %v6966
    %v7321 = vunpack.c.h.b16 %v6966
    %v7322 = vunpack.c.l.b16 %v6967
    %v7323 = vunpack.c.h.b16 %v6967
    %v7324 = vunpack.c.l.b16 %v6968
    %v7325 = vunpack.c.h.b16 %v6968
    %v7326 = vunpack.c.l.b16 %v6969
    %v7327 = vunpack.c.h.b16 %v6969
    %v7328 = vunpack.c.l.b16 %v6970
    %v7329 = vunpack.c.h.b16 %v6970
    %v7330 = vunpack.c.l.b16 %v6971
    %v7331 = vunpack.c.h.b16 %v6971
    %v7332 = vunpack.c.l.b16 %v6972
    %v7333 = vunpack.c.h.b16 %v6972
    %v7334 = vunpack.c.l.b16 %v6973
    %v7335 = vunpack.c.h.b16 %v6973
    %v7336 = vunpack.c.l.b16 %v6974
    %v7337 = vunpack.c.h.b16 %v6974
    %v7338 = vunpack.c.l.b16 %v6975
    %v7339 = vunpack.c.h.b16 %v6975
    %v7340 = vunpack.c.l.b16 %v6976
    %v7341 = vunpack.c.h.b16 %v6976
    %v7342 = vunpack.c.l.b16 %v6977
    %v7343 = vunpack.c.h.b16 %v6977
    %v7344 = vunpack.c.l.b16 %v6978
    %v7345 = vunpack.c.h.b16 %v6978
    %v7346 = vunpack.c.l.b16 %v6979
    %v7347 = vunpack.c.h.b16 %v6979
    %v7348 = vunpack.c.l.b16 %v6980
    %v7349 = vunpack.c.h.b16 %v6980
    %v7350 = vunpack.c.l.b16 %v6981
    %v7351 = vunpack.c.h.b16 %v6981
    %v7352 = vunpack.c.l.b16 %v6982
    %v7353 = vunpack.c.h.b16 %v6982
    %v7354 = vunpack.c.l.b16 %v6983
    %v7355 = vunpack.c.h.b16 %v6983
    %v7356 = vunpack.c.l.b16 %v6984
    %v7357 = vunpack.c.h.b16 %v6984
    %v7358 = vunpack.c.l.b16 %v6985
    %v7359 = vunpack.c.h.b16 %v6985
    %v7360 = vunpack.c.l.b16 %v6986
    %v7361 = vunpack.c.h.b16 %v6986
    %v7362 = vunpack.c.l.b16 %v6987
    %v7363 = vunpack.c.h.b16 %v6987
    %v7364 = vunpack.c.l.b16 %v6988
    %v7365 = vunpack.c.h.b16 %v6988
    %v7366 = vunpack.c.l.b16 %v6989
    %v7367 = vunpack.c.h.b16 %v6989
    %v7368 = vunpack.c.l.b16 %v6990
    %v7369 = vunpack.c.h.b16 %v6990
    %v7370 = vunpack.c.l.b16 %v6991
    %v7371 = vunpack.c.h.b16 %v6991
    %v7372 = vunpack.c.l.b16 %v6992
    %v7373 = vunpack.c.h.b16 %v6992
    %v7374 = vunpack.c.l.b16 %v6993
    %v7375 = vunpack.c.h.b16 %v6993
    %v7376 = vunpack.c.l.b16 %v6994
    %v7377 = vunpack.c.h.b16 %v6994
    %v7378 = vunpack.c.l.b16 %v6995
    %v7379 = vunpack.c.h.b16 %v6995
    %v7380 = vunpack.c.l.b16 %v6996
    %v7381 = vunpack.c.h.b16 %v6996
    %v7382 = vunpack.c.l.b16 %v6997
    %v7383 = vunpack.c.h.b16 %v6997
    %v7384 = vunpack.c.l.b16 %v6998
    %v7385 = vunpack.c.h.b16 %v6998
    %v7386 = vunpack.c.l.b16 %v6999
    %v7387 = vunpack.c.h.b16 %v6999
    %v7388 = vunpack.c.l.b16 %v7000
    %v7389 = vunpack.c.h.b16 %v7000
    %v7390 = vunpack.c.l.b16 %v7001
    %v7391 = vunpack.c.h.b16 %v7001
    %v7392 = vunpack.c.l.b16 %v7002
    %v7393 = vunpack.c.h.b16 %v7002
    %v7394 = vunpack.c.l.b16 %v7003
    %v7395 = vunpack.c.h.b16 %v7003
    %v7396 = vunpack.c.l.b16 %v7004
    %v7397 = vunpack.c.h.b16 %v7004
    %v7398 = vunpack.c.l.b16 %v7005
    %v7399 = vunpack.c.h.b16 %v7005
    %v7400 = vunpack.c.l.b16 %v7006
    %v7401 = vunpack.c.h.b16 %v7006
    %v7402 = vunpack.c.l.b16 %v7007
    %v7403 = vunpack.c.h.b16 %v7007
    %v7404 = vunpack.c.l.b16 %v7008
    %v7405 = vunpack.c.h.b16 %v7008
    %v7406 = vpack.c.b16 %v7152, %v7150
    %v7407 = vpack.c.b16 %v7153, %v7151
    %v7408 = vpack.c.b16 %v7156, %v7154
    %v7409 = vpack.c.b16 %v7157, %v7155
    %v7410 = vpack.c.b16 %v7160, %v7158
    %v7411 = vpack.c.b16 %v7161, %v7159
    %v7412 = vpack.c.b16 %v7164, %v7162
    %v7413 = vpack.c.b16 %v7165, %v7163
    %v7414 = vpack.c.b16 %v7168, %v7166
    %v7415 = vpack.c.b16 %v7169, %v7167
    %v7416 = vpack.c.b16 %v7172, %v7170
    %v7417 = vpack.c.b16 %v7173, %v7171
    %v7418 = vpack.c.b16 %v7176, %v7174
    %v7419 = vpack.c.b16 %v7177, %v7175
    %v7420 = vpack.c.b16 %v7180, %v7178
    %v7421 = vpack.c.b16 %v7181, %v7179
    %v7422 = vpack.c.b16 %v7184, %v7182
    %v7423 = vpack.c.b16 %v7185, %v7183
    %v7424 = vpack.c.b16 %v7188, %v7186
    %v7425 = vpack.c.b16 %v7189, %v7187
    %v7426 = vpack.c.b16 %v7192, %v7190
    %v7427 = vpack.c.b16 %v7193, %v7191
    %v7428 = vpack.c.b16 %v7196, %v7194
    %v7429 = vpack.c.b16 %v7197, %v7195
    %v7430 = vpack.c.b16 %v7200, %v7198
    %v7431 = vpack.c.b16 %v7201, %v7199
    %v7432 = vpack.c.b16 %v7204, %v7202
    %v7433 = vpack.c.b16 %v7205, %v7203
    %v7434 = vpack.c.b16 %v7208, %v7206
    %v7435 = vpack.c.b16 %v7209, %v7207
    %v7436 = vpack.c.b16 %v7212, %v7210
    %v7437 = vpack.c.b16 %v7213, %v7211
    %v7438 = vpack.c.b16 %v7216, %v7214
    %v7439 = vpack.c.b16 %v7217, %v7215
    %v7440 = vpack.c.b16 %v7220, %v7218
    %v7441 = vpack.c.b16 %v7221, %v7219
    %v7442 = vpack.c.b16 %v7224, %v7222
    %v7443 = vpack.c.b16 %v7225, %v7223
    %v7444 = vpack.c.b16 %v7228, %v7226
    %v7445 = vpack.c.b16 %v7229, %v7227
    %v7446 = vpack.c.b16 %v7232, %v7230
    %v7447 = vpack.c.b16 %v7233, %v7231
    %v7448 = vpack.c.b16 %v7236, %v7234
    %v7449 = vpack.c.b16 %v7237, %v7235
    %v7450 = vpack.c.b16 %v7240, %v7238
    %v7451 = vpack.c.b16 %v7241, %v7239
    %v7452 = vpack.c.b16 %v7244, %v7242
    %v7453 = vpack.c.b16 %v7245, %v7243
    %v7454 = vpack.c.b16 %v7248, %v7246
    %v7455 = vpack.c.b16 %v7249, %v7247
    %v7456 = vpack.c.b16 %v7252, %v7250
    %v7457 = vpack.c.b16 %v7253, %v7251
    %v7458 = vpack.c.b16 %v7256, %v7254
    %v7459 = vpack.c.b16 %v7257, %v7255
    %v7460 = vpack.c.b16 %v7260, %v7258
    %v7461 = vpack.c.b16 %v7261, %v7259
    %v7462 = vpack.c.b16 %v7264, %v7262
    %v7463 = vpack.c.b16 %v7265, %v7263
    %v7464 = vpack.c.b16 %v7268, %v7266
    %v7465 = vpack.c.b16 %v7269, %v7267
    %v7466 = vpack.c.b16 %v7272, %v7270
    %v7467 = vpack.c.b16 %v7273, %v7271
    %v7468 = vpack.c.b16 %v7276, %v7274
    %v7469 = vpack.c.b16 %v7277, %v7275
    %v7470 = vpack.c.b16 %v7280, %v7278
    %v7471 = vpack.c.b16 %v7281, %v7279
    %v7472 = vpack.c.b16 %v7284, %v7282
    %v7473 = vpack.c.b16 %v7285, %v7283
    %v7474 = vpack.c.b16 %v7288, %v7286
    %v7475 = vpack.c.b16 %v7289, %v7287
    %v7476 = vpack.c.b16 %v7292, %v7290
    %v7477 = vpack.c.b16 %v7293, %v7291
    %v7478 = vpack.c.b16 %v7296, %v7294
    %v7479 = vpack.c.b16 %v7297, %v7295
    %v7480 = vpack.c.b16 %v7300, %v7298
    %v7481 = vpack.c.b16 %v7301, %v7299
    %v7482 = vpack.c.b16 %v7304, %v7302
    %v7483 = vpack.c.b16 %v7305, %v7303
    %v7484 = vpack.c.b16 %v7308, %v7306
    %v7485 = vpack.c.b16 %v7309, %v7307
    %v7486 = vpack.c.b16 %v7312, %v7310
    %v7487 = vpack.c.b16 %v7313, %v7311
    %v7488 = vpack.c.b16 %v7316, %v7314
    %v7489 = vpack.c.b16 %v7317, %v7315
    %v7490 = vpack.c.b16 %v7320, %v7318
    %v7491 = vpack.c.b16 %v7321, %v7319
    %v7492 = vpack.c.b16 %v7324, %v7322
    %v7493 = vpack.c.b16 %v7325, %v7323
    %v7494 = vpack.c.b16 %v7328, %v7326
    %v7495 = vpack.c.b16 %v7329, %v7327
    %v7496 = vpack.c.b16 %v7332, %v7330
    %v7497 = vpack.c.b16 %v7333, %v7331
    %v7498 = vpack.c.b16 %v7336, %v7334
    %v7499 = vpack.c.b16 %v7337, %v7335
    %v7500 = vpack.c.b16 %v7340, %v7338
    %v7501 = vpack.c.b16 %v7341, %v7339
    %v7502 = vpack.c.b16 %v7344, %v7342
    %v7503 = vpack.c.b16 %v7345, %v7343
    %v7504 = vpack.c.b16 %v7348, %v7346
    %v7505 = vpack.c.b16 %v7349, %v7347
    %v7506 = vpack.c.b16 %v7352, %v7350
    %v7507 = vpack.c.b16 %v7353, %v7351
    %v7508 = vpack.c.b16 %v7356, %v7354
    %v7509 = vpack.c.b16 %v7357, %v7355
    %v7510 = vpack.c.b16 %v7360, %v7358
    %v7511 = vpack.c.b16 %v7361, %v7359
    %v7512 = vpack.c.b16 %v7364, %v7362
    %v7513 = vpack.c.b16 %v7365, %v7363
    %v7514 = vpack.c.b16 %v7368, %v7366
    %v7515 = vpack.c.b16 %v7369, %v7367
    %v7516 = vpack.c.b16 %v7372, %v7370
    %v7517 = vpack.c.b16 %v7373, %v7371
    %v7518 = vpack.c.b16 %v7376, %v7374
    %v7519 = vpack.c.b16 %v7377, %v7375
    %v7520 = vpack.c.b16 %v7380, %v7378
    %v7521 = vpack.c.b16 %v7381, %v7379
    %v7522 = vpack.c.b16 %v7384, %v7382
    %v7523 = vpack.c.b16 %v7385, %v7383
    %v7524 = vpack.c.b16 %v7388, %v7386
    %v7525 = vpack.c.b16 %v7389, %v7387
    %v7526 = vpack.c.b16 %v7392, %v7390
    %v7527 = vpack.c.b16 %v7393, %v7391
    %v7528 = vpack.c.b16 %v7396, %v7394
    %v7529 = vpack.c.b16 %v7397, %v7395
    %v7530 = vpack.c.b16 %v7400, %v7398
    %v7531 = vpack.c.b16 %v7401, %v7399
    %v7532 = vpack.c.b16 %v7404, %v7402
    %v7533 = vpack.c.b16 %v7405, %v7403
    %7662 = vmatprep.subr.bf16.mxu0 %v7407
    %7663 = vmatpush1.bf16.msra.mxu0 %v7406
    %7664 = vmatprep.subr.bf16.mxu0 %v7409
    %7665 = vmatpush1.bf16.msra.mxu0 %v7408
    %7666 = vmatprep.subr.bf16.mxu0 %v7411
    %7667 = vmatpush1.bf16.msra.mxu0 %v7410
    %7668 = vmatprep.subr.bf16.mxu0 %v7413
    %7669 = vmatpush1.bf16.msra.mxu0 %v7412
    %7670 = vmatprep.subr.bf16.mxu0 %v7415
    %7671 = vmatpush1.bf16.msra.mxu0 %v7414
    %7672 = vmatprep.subr.bf16.mxu0 %v7417
    %7673 = vmatpush1.bf16.msra.mxu0 %v7416
    %7674 = vmatprep.subr.bf16.mxu0 %v7419
    %7675 = vmatpush1.bf16.msra.mxu0 %v7418
    %7676 = vmatprep.subr.bf16.mxu0 %v7421
    %7677 = vmatpush1.bf16.msra.mxu0 %v7420
    %7678 = vmatprep.subr.bf16.mxu0 %v7423
    %7679 = vmatpush1.bf16.msra.mxu0 %v7422
    %7680 = vmatprep.subr.bf16.mxu0 %v7425
    %7681 = vmatpush1.bf16.msra.mxu0 %v7424
    %7682 = vmatprep.subr.bf16.mxu0 %v7427
    %7683 = vmatpush1.bf16.msra.mxu0 %v7426
    %7684 = vmatprep.subr.bf16.mxu0 %v7429
    %7685 = vmatpush1.bf16.msra.mxu0 %v7428
    %7686 = vmatprep.subr.bf16.mxu0 %v7431
    %7687 = vmatpush1.bf16.msra.mxu0 %v7430
    %7688 = vmatprep.subr.bf16.mxu0 %v7433
    %7689 = vmatpush1.bf16.msra.mxu0 %v7432
    %7690 = vmatprep.subr.bf16.mxu0 %v7435
    %7691 = vmatpush1.bf16.msra.mxu0 %v7434
    %7692 = vmatprep.subr.bf16.mxu0 %v7437
    %7693 = vmatpush1.bf16.msra.mxu0 %v7436
    %7694 = vmatprep.mubr.bf16.mxu0 %v6873
    %7695 = vmatmul.mubr.bf16.gmra.mrb[0].mxu0 %v6872
    %v7696 = vpop.f32.mrb[0].mxu0
    %v7697 = vadd.f32 %v7015, %v7696
    %v7698 = vpop.f32.mrb[0].mxu0
    %v7699 = vadd.f32 %v7019, %v7698
    %v7700 = vpop.f32.mrb[0].mxu0
    %v7701 = vpop.f32.mrb[0].mxu0
    %7702 = vdwg.mxu0
    %7703 = vmatprep.subr.bf16.mxu0 %v7439
    %7704 = vmatpush1.bf16.msra.mxu0 %v7438
    %7705 = vmatprep.subr.bf16.mxu0 %v7441
    %7706 = vmatpush1.bf16.msra.mxu0 %v7440
    %7707 = vmatprep.subr.bf16.mxu0 %v7443
    %7708 = vmatpush1.bf16.msra.mxu0 %v7442
    %7709 = vmatprep.subr.bf16.mxu0 %v7445
    %7710 = vmatpush1.bf16.msra.mxu0 %v7444
    %7711 = vmatprep.subr.bf16.mxu0 %v7447
    %7712 = vmatpush1.bf16.msra.mxu0 %v7446
    %7713 = vmatprep.subr.bf16.mxu0 %v7449
    %7714 = vmatpush1.bf16.msra.mxu0 %v7448
    %7715 = vmatprep.subr.bf16.mxu0 %v7451
    %7716 = vmatpush1.bf16.msra.mxu0 %v7450
    %7717 = vmatprep.subr.bf16.mxu0 %v7453
    %7718 = vmatpush1.bf16.msra.mxu0 %v7452
    %7719 = vmatprep.subr.bf16.mxu0 %v7455
    %7720 = vmatpush1.bf16.msra.mxu0 %v7454
    %7721 = vmatprep.subr.bf16.mxu0 %v7457
    %7722 = vmatpush1.bf16.msra.mxu0 %v7456
    %7723 = vmatprep.subr.bf16.mxu0 %v7459
    %7724 = vmatpush1.bf16.msra.mxu0 %v7458
    %7725 = vmatprep.subr.bf16.mxu0 %v7461
    %7726 = vmatpush1.bf16.msra.mxu0 %v7460
    %7727 = vmatprep.subr.bf16.mxu0 %v7463
    %7728 = vmatpush1.bf16.msra.mxu0 %v7462
    %7729 = vmatprep.subr.bf16.mxu0 %v7465
    %7730 = vmatpush1.bf16.msra.mxu0 %v7464
    %7731 = vmatprep.subr.bf16.mxu0 %v7467
    %7732 = vmatpush1.bf16.msra.mxu0 %v7466
    %7733 = vmatprep.subr.bf16.mxu0 %v7469
    %7734 = vmatpush1.bf16.msra.mxu0 %v7468
    %7735 = vmatprep.mubr.bf16.mxu0 %v6875
    %7736 = vmatmul.mubr.bf16.gmra.mrb[0].mxu0 %v6874
    %v7737 = vpop.f32.mrb[0].mxu0
    %v7738 = vadd.f32 %v7697, %v7737
    %v7739 = vpop.f32.mrb[0].mxu0
    %v7740 = vadd.f32 %v7699, %v7739
    %v7741 = vpop.f32.mrb[0].mxu0
    %v7742 = vpop.f32.mrb[0].mxu0
    %7743 = vdwg.mxu0
    %7744 = vmatprep.subr.bf16.mxu0 %v7471
    %7745 = vmatpush1.bf16.msra.mxu0 %v7470
    %7746 = vmatprep.subr.bf16.mxu0 %v7473
    %7747 = vmatpush1.bf16.msra.mxu0 %v7472
    %7748 = vmatprep.subr.bf16.mxu0 %v7475
    %7749 = vmatpush1.bf16.msra.mxu0 %v7474
    %7750 = vmatprep.subr.bf16.mxu0 %v7477
    %7751 = vmatpush1.bf16.msra.mxu0 %v7476
    %7752 = vmatprep.subr.bf16.mxu0 %v7479
    %7753 = vmatpush1.bf16.msra.mxu0 %v7478
    %7754 = vmatprep.subr.bf16.mxu0 %v7481
    %7755 = vmatpush1.bf16.msra.mxu0 %v7480
    %7756 = vmatprep.subr.bf16.mxu0 %v7483
    %7757 = vmatpush1.bf16.msra.mxu0 %v7482
    %7758 = vmatprep.subr.bf16.mxu0 %v7485
    %7759 = vmatpush1.bf16.msra.mxu0 %v7484
    %7760 = vmatprep.subr.bf16.mxu0 %v7487
    %7761 = vmatpush1.bf16.msra.mxu0 %v7486
    %7762 = vmatprep.subr.bf16.mxu0 %v7489
    %7763 = vmatpush1.bf16.msra.mxu0 %v7488
    %7764 = vmatprep.subr.bf16.mxu0 %v7491
    %7765 = vmatpush1.bf16.msra.mxu0 %v7490
    %7766 = vmatprep.subr.bf16.mxu0 %v7493
    %7767 = vmatpush1.bf16.msra.mxu0 %v7492
    %7768 = vmatprep.subr.bf16.mxu0 %v7495
    %7769 = vmatpush1.bf16.msra.mxu0 %v7494
    %7770 = vmatprep.subr.bf16.mxu0 %v7497
    %7771 = vmatpush1.bf16.msra.mxu0 %v7496
    %7772 = vmatprep.subr.bf16.mxu0 %v7499
    %7773 = vmatpush1.bf16.msra.mxu0 %v7498
    %7774 = vmatprep.subr.bf16.mxu0 %v7501
    %7775 = vmatpush1.bf16.msra.mxu0 %v7500
    %7776 = vmatprep.mubr.bf16.mxu0 %v6877
    %7777 = vmatmul.mubr.bf16.gmra.mrb[0].mxu0 %v6876
    %v7778 = vpop.f32.mrb[0].mxu0
    %v7779 = vadd.f32 %v7738, %v7778
    %v7780 = vpop.f32.mrb[0].mxu0
    %v7781 = vadd.f32 %v7740, %v7780
    %v7782 = vpop.f32.mrb[0].mxu0
    %v7783 = vpop.f32.mrb[0].mxu0
    %7784 = vdwg.mxu0
    %7785 = vmatprep.subr.bf16.mxu0 %v7503
    %7786 = vmatpush1.bf16.msra.mxu0 %v7502
    %7787 = vmatprep.subr.bf16.mxu0 %v7505
    %7788 = vmatpush1.bf16.msra.mxu0 %v7504
    %7789 = vmatprep.subr.bf16.mxu0 %v7507
    %7790 = vmatpush1.bf16.msra.mxu0 %v7506
    %7791 = vmatprep.subr.bf16.mxu0 %v7509
    %7792 = vmatpush1.bf16.msra.mxu0 %v7508
    %7793 = vmatprep.subr.bf16.mxu0 %v7511
    %7794 = vmatpush1.bf16.msra.mxu0 %v7510
    %7795 = vmatprep.subr.bf16.mxu0 %v7513
    %7796 = vmatpush1.bf16.msra.mxu0 %v7512
    %7797 = vmatprep.subr.bf16.mxu0 %v7515
    %7798 = vmatpush1.bf16.msra.mxu0 %v7514
    %7799 = vmatprep.subr.bf16.mxu0 %v7517
    %7800 = vmatpush1.bf16.msra.mxu0 %v7516
    %7801 = vmatprep.subr.bf16.mxu0 %v7519
    %7802 = vmatpush1.bf16.msra.mxu0 %v7518
    %7803 = vmatprep.subr.bf16.mxu0 %v7521
    %7804 = vmatpush1.bf16.msra.mxu0 %v7520
    %7805 = vmatprep.subr.bf16.mxu0 %v7523
    %7806 = vmatpush1.bf16.msra.mxu0 %v7522
    %7807 = vmatprep.subr.bf16.mxu0 %v7525
    %7808 = vmatpush1.bf16.msra.mxu0 %v7524
    %7809 = vmatprep.subr.bf16.mxu0 %v7527
    %7810 = vmatpush1.bf16.msra.mxu0 %v7526
    %7811 = vmatprep.subr.bf16.mxu0 %v7529
    %7812 = vmatpush1.bf16.msra.mxu0 %v7528
    %7813 = vmatprep.subr.bf16.mxu0 %v7531
    %7814 = vmatpush1.bf16.msra.mxu0 %v7530
    %7815 = vmatprep.subr.bf16.mxu0 %v7533
    %7816 = vmatpush1.bf16.msra.mxu0 %v7532
    %7817 = vmatprep.mubr.bf16.mxu0 %v6879
    %7818 = vmatmul.mubr.bf16.gmra.mrb[0].mxu0 %v6878
    %v7819 = vpop.f32.mrb[0].mxu0
    %v7820 = vadd.f32 %v7779, %v7819
    %v7821 = vpop.f32.mrb[0].mxu0
    %v7822 = vadd.f32 %v7781, %v7821
    %v7823 = vpop.f32.mrb[0].mxu0
    %v7824 = vpop.f32.mrb[0].mxu0
    %7825 = vdwg.mxu0
    %v7826 = vadd.f32 %v5884, %v7820
    %v7827 = vadd.f32 %v5885, %v7822
    %s7828 = scalar_lea.vmem [#allocation20], 4
    %v7829 = vld [vmem:[%s7828] sm:$0x3]
    %s7830 = scalar_lea.vmem [#allocation22], 4
    %v7831 = vld [vmem:[%s7830] sm:$0x3]
    %v7832 = vadd.f32 %v7826, %v7827
    %7833 = vadd.xlane.f32.xlu0 %v7832
    %v7834 = vpop.xlane.xlu0 %7833
    %v7835 = vmul.f32 %v7834, %v784
    %v7836 = vsub.f32 %v7826, %v7835
    %v7837 = vsub.f32 %v7827, %v7835
    %v7838 = vmul.f32 %v7836, %v7836
    %v7839 = vmul.f32 %v7837, %v7837
    %v7840 = vadd.f32 %v7838, %v7839
    %7841 = vadd.xlane.f32.xlu0 %v7840
    %v7842 = vpop.xlane.xlu0 %7841
    %v7843 = vmul.f32 %v7842, %v784
    %v7844 = vadd.f32 %v7843, 1e-05
    %v7845 = vrsqrt.pop %v7844
    %v7846 = vmul.f32 %v7836, %v7845
    %v7847 = vmul.f32 %v7837, %v7845
    %v7849 = vlaneseq
    %v7850 = vshrl.u32 %v7849, 7
    %v7851 = vsub.s32 0, %v7850
    %v7852 = vrot.slane %v7829, %v7851
    %v7853 = vlaneseq
    %v7854 = vshrl.u32 %v7853, 7
    %v7855 = vsub.s32 1, %v7854
    %v7856 = vrot.slane %v7829, %v7855
    %v7859 = vmul.f32 %v7846, %v7852
    %v7860 = vmul.f32 %v7847, %v7856
    %v7862 = vlaneseq
    %v7863 = vshrl.u32 %v7862, 7
    %v7864 = vsub.s32 0, %v7863
    %v7865 = vrot.slane %v7831, %v7864
    %v7866 = vlaneseq
    %v7867 = vshrl.u32 %v7866, 7
    %v7868 = vsub.s32 1, %v7867
    %v7869 = vrot.slane %v7831, %v7868
    %v7872 = vadd.f32 %v7859, %v7865
    %v7873 = vadd.f32 %v7860, %v7869
    %v7874 = vpack.c.bf16 %v7872, %v7872
    %v7875 = vpack.c.bf16 %v7873, %v7873
    %s7876 = scalar_lea.vmem [#allocation5], 768
    %v7877 = vld [vmem:[%s7876] sm:$0xff]
    %v7878 = vld [vmem:[%s7876 + $0x8] sm:$0xff]
    %v7879 = vld [vmem:[%s7876 + $0x10] sm:$0xff]
    %v7880 = vld [vmem:[%s7876 + $0x18] sm:$0xff]
    %v7881 = vld [vmem:[%s7876 + $0x20] sm:$0xff]
    %v7882 = vld [vmem:[%s7876 + $0x28] sm:$0xff]
    %v7883 = vld [vmem:[%s7876 + $0x30] sm:$0xff]
    %v7884 = vld [vmem:[%s7876 + $0x38] sm:$0xff]
    %v7885 = vld [vmem:[%s7876 + $0x40] sm:$0xff]
    %v7886 = vld [vmem:[%s7876 + $0x48] sm:$0xff]
    %v7887 = vld [vmem:[%s7876 + $0x50] sm:$0xff]
    %v7888 = vld [vmem:[%s7876 + $0x58] sm:$0xff]
    %v7889 = vld [vmem:[%s7876 + $0x60] sm:$0xff]
    %v7890 = vld [vmem:[%s7876 + $0x68] sm:$0xff]
    %v7891 = vld [vmem:[%s7876 + $0x70] sm:$0xff]
    %v7892 = vld [vmem:[%s7876 + $0x78] sm:$0xff]
    %v7893 = vld [vmem:[%s7876 + $0x80] sm:$0xff]
    %v7894 = vld [vmem:[%s7876 + $0x88] sm:$0xff]
    %v7895 = vld [vmem:[%s7876 + $0x90] sm:$0xff]
    %v7896 = vld [vmem:[%s7876 + $0x98] sm:$0xff]
    %v7897 = vld [vmem:[%s7876 + $0xa0] sm:$0xff]
    %v7898 = vld [vmem:[%s7876 + $0xa8] sm:$0xff]
    %v7899 = vld [vmem:[%s7876 + $0xb0] sm:$0xff]
    %v7900 = vld [vmem:[%s7876 + $0xb8] sm:$0xff]
    %v7901 = vld [vmem:[%s7876 + $0xc0] sm:$0xff]
    %v7902 = vld [vmem:[%s7876 + $0xc8] sm:$0xff]
    %v7903 = vld [vmem:[%s7876 + $0xd0] sm:$0xff]
    %v7904 = vld [vmem:[%s7876 + $0xd8] sm:$0xff]
    %v7905 = vld [vmem:[%s7876 + $0xe0] sm:$0xff]
    %v7906 = vld [vmem:[%s7876 + $0xe8] sm:$0xff]
    %v7907 = vld [vmem:[%s7876 + $0xf0] sm:$0xff]
    %v7908 = vld [vmem:[%s7876 + $0xf8] sm:$0xff]
    %s7909 = scalar_lea.vmem [#allocation7], 6
    %v7910 = vld [vmem:[%s7909] sm:$0x3]
    %v7912 = vlaneseq
    %v7913 = vshrl.u32 %v7912, 7
    %v7914 = vsub.s32 0, %v7913
    %v7915 = vrot.slane %v7910, %v7914
    %v7916 = vlaneseq
    %v7917 = vshrl.u32 %v7916, 7
    %v7918 = vsub.s32 1, %v7917
    %v7919 = vrot.slane %v7910, %v7918
    %v7954 = vunpack.c.l.b16 %v7877
    %v7955 = vunpack.c.h.b16 %v7877
    %v7956 = vunpack.c.l.b16 %v7878
    %v7957 = vunpack.c.h.b16 %v7878
    %v7958 = vunpack.c.l.b16 %v7879
    %v7959 = vunpack.c.h.b16 %v7879
    %v7960 = vunpack.c.l.b16 %v7880
    %v7961 = vunpack.c.h.b16 %v7880
    %v7962 = vunpack.c.l.b16 %v7881
    %v7963 = vunpack.c.h.b16 %v7881
    %v7964 = vunpack.c.l.b16 %v7882
    %v7965 = vunpack.c.h.b16 %v7882
    %v7966 = vunpack.c.l.b16 %v7883
    %v7967 = vunpack.c.h.b16 %v7883
    %v7968 = vunpack.c.l.b16 %v7884
    %v7969 = vunpack.c.h.b16 %v7884
    %v7970 = vunpack.c.l.b16 %v7885
    %v7971 = vunpack.c.h.b16 %v7885
    %v7972 = vunpack.c.l.b16 %v7886
    %v7973 = vunpack.c.h.b16 %v7886
    %v7974 = vunpack.c.l.b16 %v7887
    %v7975 = vunpack.c.h.b16 %v7887
    %v7976 = vunpack.c.l.b16 %v7888
    %v7977 = vunpack.c.h.b16 %v7888
    %v7978 = vunpack.c.l.b16 %v7889
    %v7979 = vunpack.c.h.b16 %v7889
    %v7980 = vunpack.c.l.b16 %v7890
    %v7981 = vunpack.c.h.b16 %v7890
    %v7982 = vunpack.c.l.b16 %v7891
    %v7983 = vunpack.c.h.b16 %v7891
    %v7984 = vunpack.c.l.b16 %v7892
    %v7985 = vunpack.c.h.b16 %v7892
    %v7986 = vunpack.c.l.b16 %v7893
    %v7987 = vunpack.c.h.b16 %v7893
    %v7988 = vunpack.c.l.b16 %v7894
    %v7989 = vunpack.c.h.b16 %v7894
    %v7990 = vunpack.c.l.b16 %v7895
    %v7991 = vunpack.c.h.b16 %v7895
    %v7992 = vunpack.c.l.b16 %v7896
    %v7993 = vunpack.c.h.b16 %v7896
    %v7994 = vunpack.c.l.b16 %v7897
    %v7995 = vunpack.c.h.b16 %v7897
    %v7996 = vunpack.c.l.b16 %v7898
    %v7997 = vunpack.c.h.b16 %v7898
    %v7998 = vunpack.c.l.b16 %v7899
    %v7999 = vunpack.c.h.b16 %v7899
    %v8000 = vunpack.c.l.b16 %v7900
    %v8001 = vunpack.c.h.b16 %v7900
    %v8002 = vunpack.c.l.b16 %v7901
    %v8003 = vunpack.c.h.b16 %v7901
    %v8004 = vunpack.c.l.b16 %v7902
    %v8005 = vunpack.c.h.b16 %v7902
    %v8006 = vunpack.c.l.b16 %v7903
    %v8007 = vunpack.c.h.b16 %v7903
    %v8008 = vunpack.c.l.b16 %v7904
    %v8009 = vunpack.c.h.b16 %v7904
    %v8010 = vunpack.c.l.b16 %v7905
    %v8011 = vunpack.c.h.b16 %v7905
    %v8012 = vunpack.c.l.b16 %v7906
    %v8013 = vunpack.c.h.b16 %v7906
    %v8014 = vunpack.c.l.b16 %v7907
    %v8015 = vunpack.c.h.b16 %v7907
    %v8016 = vunpack.c.l.b16 %v7908
    %v8017 = vunpack.c.h.b16 %v7908
    %v8018 = vpack.c.b16 %v7956, %v7954
    %v8019 = vpack.c.b16 %v7957, %v7955
    %v8020 = vpack.c.b16 %v7960, %v7958
    %v8021 = vpack.c.b16 %v7961, %v7959
    %v8022 = vpack.c.b16 %v7964, %v7962
    %v8023 = vpack.c.b16 %v7965, %v7963
    %v8024 = vpack.c.b16 %v7968, %v7966
    %v8025 = vpack.c.b16 %v7969, %v7967
    %v8026 = vpack.c.b16 %v7972, %v7970
    %v8027 = vpack.c.b16 %v7973, %v7971
    %v8028 = vpack.c.b16 %v7976, %v7974
    %v8029 = vpack.c.b16 %v7977, %v7975
    %v8030 = vpack.c.b16 %v7980, %v7978
    %v8031 = vpack.c.b16 %v7981, %v7979
    %v8032 = vpack.c.b16 %v7984, %v7982
    %v8033 = vpack.c.b16 %v7985, %v7983
    %v8034 = vpack.c.b16 %v7988, %v7986
    %v8035 = vpack.c.b16 %v7989, %v7987
    %v8036 = vpack.c.b16 %v7992, %v7990
    %v8037 = vpack.c.b16 %v7993, %v7991
    %v8038 = vpack.c.b16 %v7996, %v7994
    %v8039 = vpack.c.b16 %v7997, %v7995
    %v8040 = vpack.c.b16 %v8000, %v7998
    %v8041 = vpack.c.b16 %v8001, %v7999
    %v8042 = vpack.c.b16 %v8004, %v8002
    %v8043 = vpack.c.b16 %v8005, %v8003
    %v8044 = vpack.c.b16 %v8008, %v8006
    %v8045 = vpack.c.b16 %v8009, %v8007
    %v8046 = vpack.c.b16 %v8012, %v8010
    %v8047 = vpack.c.b16 %v8013, %v8011
    %v8048 = vpack.c.b16 %v8016, %v8014
    %v8049 = vpack.c.b16 %v8017, %v8015
    %8082 = vmatprep.subr.bf16.mxu0 %v8019
    %8083 = vmatpush1.bf16.msra.mxu0 %v8018
    %8084 = vmatprep.subr.bf16.mxu0 %v8021
    %8085 = vmatpush1.bf16.msra.mxu0 %v8020
    %8086 = vmatprep.subr.bf16.mxu0 %v8023
    %8087 = vmatpush1.bf16.msra.mxu0 %v8022
    %8088 = vmatprep.subr.bf16.mxu0 %v8025
    %8089 = vmatpush1.bf16.msra.mxu0 %v8024
    %8090 = vmatprep.subr.bf16.mxu0 %v8027
    %8091 = vmatpush1.bf16.msra.mxu0 %v8026
    %8092 = vmatprep.subr.bf16.mxu0 %v8029
    %8093 = vmatpush1.bf16.msra.mxu0 %v8028
    %8094 = vmatprep.subr.bf16.mxu0 %v8031
    %8095 = vmatpush1.bf16.msra.mxu0 %v8030
    %8096 = vmatprep.subr.bf16.mxu0 %v8033
    %8097 = vmatpush1.bf16.msra.mxu0 %v8032
    %8098 = vmatprep.subr.bf16.mxu0 %v8035
    %8099 = vmatpush1.bf16.msra.mxu0 %v8034
    %8100 = vmatprep.subr.bf16.mxu0 %v8037
    %8101 = vmatpush1.bf16.msra.mxu0 %v8036
    %8102 = vmatprep.subr.bf16.mxu0 %v8039
    %8103 = vmatpush1.bf16.msra.mxu0 %v8038
    %8104 = vmatprep.subr.bf16.mxu0 %v8041
    %8105 = vmatpush1.bf16.msra.mxu0 %v8040
    %8106 = vmatprep.subr.bf16.mxu0 %v8043
    %8107 = vmatpush1.bf16.msra.mxu0 %v8042
    %8108 = vmatprep.subr.bf16.mxu0 %v8045
    %8109 = vmatpush1.bf16.msra.mxu0 %v8044
    %8110 = vmatprep.subr.bf16.mxu0 %v8047
    %8111 = vmatpush1.bf16.msra.mxu0 %v8046
    %8112 = vmatprep.subr.bf16.mxu0 %v8049
    %8113 = vmatpush1.bf16.msra.mxu0 %v8048
    %8114 = vmatprep.mubr.bf16.mxu0 %v7875
    %8115 = vmatmul.mubr.bf16.gmra.mrb[0].mxu0 %v7874
    %v8116 = vpop.f32.mrb[0].mxu0
    %v8117 = vadd.f32 %v7915, %v8116
    %v8118 = vpop.f32.mrb[0].mxu0
    %v8119 = vadd.f32 %v7919, %v8118
    %v8120 = vpop.f32.mrb[0].mxu0
    %v8121 = vpop.f32.mrb[0].mxu0
    %8122 = vdwg.mxu0
    %v8123 = vpack.c.bf16 %v8117, %v8117
    %v8124 = vpack.c.bf16 %v8119, %v8119
    %s8125 = scalar_lea.vmem [#allocation8], 768
    %v8126 = vld [vmem:[%s8125] sm:$0xff]
    %v8127 = vld [vmem:[%s8125 + $0x8] sm:$0xff]
    %v8128 = vld [vmem:[%s8125 + $0x10] sm:$0xff]
    %v8129 = vld [vmem:[%s8125 + $0x18] sm:$0xff]
    %v8130 = vld [vmem:[%s8125 + $0x20] sm:$0xff]
    %v8131 = vld [vmem:[%s8125 + $0x28] sm:$0xff]
    %v8132 = vld [vmem:[%s8125 + $0x30] sm:$0xff]
    %v8133 = vld [vmem:[%s8125 + $0x38] sm:$0xff]
    %v8134 = vld [vmem:[%s8125 + $0x40] sm:$0xff]
    %v8135 = vld [vmem:[%s8125 + $0x48] sm:$0xff]
    %v8136 = vld [vmem:[%s8125 + $0x50] sm:$0xff]
    %v8137 = vld [vmem:[%s8125 + $0x58] sm:$0xff]
    %v8138 = vld [vmem:[%s8125 + $0x60] sm:$0xff]
    %v8139 = vld [vmem:[%s8125 + $0x68] sm:$0xff]
    %v8140 = vld [vmem:[%s8125 + $0x70] sm:$0xff]
    %v8141 = vld [vmem:[%s8125 + $0x78] sm:$0xff]
    %v8142 = vld [vmem:[%s8125 + $0x80] sm:$0xff]
    %v8143 = vld [vmem:[%s8125 + $0x88] sm:$0xff]
    %v8144 = vld [vmem:[%s8125 + $0x90] sm:$0xff]
    %v8145 = vld [vmem:[%s8125 + $0x98] sm:$0xff]
    %v8146 = vld [vmem:[%s8125 + $0xa0] sm:$0xff]
    %v8147 = vld [vmem:[%s8125 + $0xa8] sm:$0xff]
    %v8148 = vld [vmem:[%s8125 + $0xb0] sm:$0xff]
    %v8149 = vld [vmem:[%s8125 + $0xb8] sm:$0xff]
    %v8150 = vld [vmem:[%s8125 + $0xc0] sm:$0xff]
    %v8151 = vld [vmem:[%s8125 + $0xc8] sm:$0xff]
    %v8152 = vld [vmem:[%s8125 + $0xd0] sm:$0xff]
    %v8153 = vld [vmem:[%s8125 + $0xd8] sm:$0xff]
    %v8154 = vld [vmem:[%s8125 + $0xe0] sm:$0xff]
    %v8155 = vld [vmem:[%s8125 + $0xe8] sm:$0xff]
    %v8156 = vld [vmem:[%s8125 + $0xf0] sm:$0xff]
    %v8157 = vld [vmem:[%s8125 + $0xf8] sm:$0xff]
    %s8158 = scalar_lea.vmem [#allocation10], 6
    %v8159 = vld [vmem:[%s8158] sm:$0x3]
    %v8161 = vlaneseq
    %v8162 = vshrl.u32 %v8161, 7
    %v8163 = vsub.s32 0, %v8162
    %v8164 = vrot.slane %v8159, %v8163
    %v8165 = vlaneseq
    %v8166 = vshrl.u32 %v8165, 7
    %v8167 = vsub.s32 1, %v8166
    %v8168 = vrot.slane %v8159, %v8167
    %v8203 = vunpack.c.l.b16 %v8126
    %v8204 = vunpack.c.h.b16 %v8126
    %v8205 = vunpack.c.l.b16 %v8127
    %v8206 = vunpack.c.h.b16 %v8127
    %v8207 = vunpack.c.l.b16 %v8128
    %v8208 = vunpack.c.h.b16 %v8128
    %v8209 = vunpack.c.l.b16 %v8129
    %v8210 = vunpack.c.h.b16 %v8129
    %v8211 = vunpack.c.l.b16 %v8130
    %v8212 = vunpack.c.h.b16 %v8130
    %v8213 = vunpack.c.l.b16 %v8131
    %v8214 = vunpack.c.h.b16 %v8131
    %v8215 = vunpack.c.l.b16 %v8132
    %v8216 = vunpack.c.h.b16 %v8132
    %v8217 = vunpack.c.l.b16 %v8133
    %v8218 = vunpack.c.h.b16 %v8133
    %v8219 = vunpack.c.l.b16 %v8134
    %v8220 = vunpack.c.h.b16 %v8134
    %v8221 = vunpack.c.l.b16 %v8135
    %v8222 = vunpack.c.h.b16 %v8135
    %v8223 = vunpack.c.l.b16 %v8136
    %v8224 = vunpack.c.h.b16 %v8136
    %v8225 = vunpack.c.l.b16 %v8137
    %v8226 = vunpack.c.h.b16 %v8137
    %v8227 = vunpack.c.l.b16 %v8138
    %v8228 = vunpack.c.h.b16 %v8138
    %v8229 = vunpack.c.l.b16 %v8139
    %v8230 = vunpack.c.h.b16 %v8139
    %v8231 = vunpack.c.l.b16 %v8140
    %v8232 = vunpack.c.h.b16 %v8140
    %v8233 = vunpack.c.l.b16 %v8141
    %v8234 = vunpack.c.h.b16 %v8141
    %v8235 = vunpack.c.l.b16 %v8142
    %v8236 = vunpack.c.h.b16 %v8142
    %v8237 = vunpack.c.l.b16 %v8143
    %v8238 = vunpack.c.h.b16 %v8143
    %v8239 = vunpack.c.l.b16 %v8144
    %v8240 = vunpack.c.h.b16 %v8144
    %v8241 = vunpack.c.l.b16 %v8145
    %v8242 = vunpack.c.h.b16 %v8145
    %v8243 = vunpack.c.l.b16 %v8146
    %v8244 = vunpack.c.h.b16 %v8146
    %v8245 = vunpack.c.l.b16 %v8147
    %v8246 = vunpack.c.h.b16 %v8147
    %v8247 = vunpack.c.l.b16 %v8148
    %v8248 = vunpack.c.h.b16 %v8148
    %v8249 = vunpack.c.l.b16 %v8149
    %v8250 = vunpack.c.h.b16 %v8149
    %v8251 = vunpack.c.l.b16 %v8150
    %v8252 = vunpack.c.h.b16 %v8150
    %v8253 = vunpack.c.l.b16 %v8151
    %v8254 = vunpack.c.h.b16 %v8151
    %v8255 = vunpack.c.l.b16 %v8152
    %v8256 = vunpack.c.h.b16 %v8152
    %v8257 = vunpack.c.l.b16 %v8153
    %v8258 = vunpack.c.h.b16 %v8153
    %v8259 = vunpack.c.l.b16 %v8154
    %v8260 = vunpack.c.h.b16 %v8154
    %v8261 = vunpack.c.l.b16 %v8155
    %v8262 = vunpack.c.h.b16 %v8155
    %v8263 = vunpack.c.l.b16 %v8156
    %v8264 = vunpack.c.h.b16 %v8156
    %v8265 = vunpack.c.l.b16 %v8157
    %v8266 = vunpack.c.h.b16 %v8157
    %v8267 = vpack.c.b16 %v8205, %v8203
    %v8268 = vpack.c.b16 %v8206, %v8204
    %v8269 = vpack.c.b16 %v8209, %v8207
    %v8270 = vpack.c.b16 %v8210, %v8208
    %v8271 = vpack.c.b16 %v8213, %v8211
    %v8272 = vpack.c.b16 %v8214, %v8212
    %v8273 = vpack.c.b16 %v8217, %v8215
    %v8274 = vpack.c.b16 %v8218, %v8216
    %v8275 = vpack.c.b16 %v8221, %v8219
    %v8276 = vpack.c.b16 %v8222, %v8220
    %v8277 = vpack.c.b16 %v8225, %v8223
    %v8278 = vpack.c.b16 %v8226, %v8224
    %v8279 = vpack.c.b16 %v8229, %v8227
    %v8280 = vpack.c.b16 %v8230, %v8228
    %v8281 = vpack.c.b16 %v8233, %v8231
    %v8282 = vpack.c.b16 %v8234, %v8232
    %v8283 = vpack.c.b16 %v8237, %v8235
    %v8284 = vpack.c.b16 %v8238, %v8236
    %v8285 = vpack.c.b16 %v8241, %v8239
    %v8286 = vpack.c.b16 %v8242, %v8240
    %v8287 = vpack.c.b16 %v8245, %v8243
    %v8288 = vpack.c.b16 %v8246, %v8244
    %v8289 = vpack.c.b16 %v8249, %v8247
    %v8290 = vpack.c.b16 %v8250, %v8248
    %v8291 = vpack.c.b16 %v8253, %v8251
    %v8292 = vpack.c.b16 %v8254, %v8252
    %v8293 = vpack.c.b16 %v8257, %v8255
    %v8294 = vpack.c.b16 %v8258, %v8256
    %v8295 = vpack.c.b16 %v8261, %v8259
    %v8296 = vpack.c.b16 %v8262, %v8260
    %v8297 = vpack.c.b16 %v8265, %v8263
    %v8298 = vpack.c.b16 %v8266, %v8264
    %8331 = vmatprep.subr.bf16.mxu0 %v8268
    %8332 = vmatpush1.bf16.msra.mxu0 %v8267
    %8333 = vmatprep.subr.bf16.mxu0 %v8270
    %8334 = vmatpush1.bf16.msra.mxu0 %v8269
    %8335 = vmatprep.subr.bf16.mxu0 %v8272
    %8336 = vmatpush1.bf16.msra.mxu0 %v8271
    %8337 = vmatprep.subr.bf16.mxu0 %v8274
    %8338 = vmatpush1.bf16.msra.mxu0 %v8273
    %8339 = vmatprep.subr.bf16.mxu0 %v8276
    %8340 = vmatpush1.bf16.msra.mxu0 %v8275
    %8341 = vmatprep.subr.bf16.mxu0 %v8278
    %8342 = vmatpush1.bf16.msra.mxu0 %v8277
    %8343 = vmatprep.subr.bf16.mxu0 %v8280
    %8344 = vmatpush1.bf16.msra.mxu0 %v8279
    %8345 = vmatprep.subr.bf16.mxu0 %v8282
    %8346 = vmatpush1.bf16.msra.mxu0 %v8281
    %8347 = vmatprep.subr.bf16.mxu0 %v8284
    %8348 = vmatpush1.bf16.msra.mxu0 %v8283
    %8349 = vmatprep.subr.bf16.mxu0 %v8286
    %8350 = vmatpush1.bf16.msra.mxu0 %v8285
    %8351 = vmatprep.subr.bf16.mxu0 %v8288
    %8352 = vmatpush1.bf16.msra.mxu0 %v8287
    %8353 = vmatprep.subr.bf16.mxu0 %v8290
    %8354 = vmatpush1.bf16.msra.mxu0 %v8289
    %8355 = vmatprep.subr.bf16.mxu0 %v8292
    %8356 = vmatpush1.bf16.msra.mxu0 %v8291
    %8357 = vmatprep.subr.bf16.mxu0 %v8294
    %8358 = vmatpush1.bf16.msra.mxu0 %v8293
    %8359 = vmatprep.subr.bf16.mxu0 %v8296
    %8360 = vmatpush1.bf16.msra.mxu0 %v8295
    %8361 = vmatprep.subr.bf16.mxu0 %v8298
    %8362 = vmatpush1.bf16.msra.mxu0 %v8297
    %8363 = vmatprep.mubr.bf16.mxu0 %v8124
    %8364 = vmatmul.mubr.bf16.gmra.mrb[0].mxu0 %v8123
    %v8365 = vpop.f32.mrb[0].mxu0
    %v8366 = vadd.f32 %v8164, %v8365
    %v8367 = vpop.f32.mrb[0].mxu0
    %v8368 = vadd.f32 %v8168, %v8367
    %v8369 = vpop.f32.mrb[0].mxu0
    %v8370 = vpop.f32.mrb[0].mxu0
    %8371 = vdwg.mxu0
    %v8372 = vadd.f32 %v7872, %v8366
    %v8373 = vadd.f32 %v7873, %v8368
    %s8374 = scalar_lea.vmem [#allocation11], 6
    %v8375 = vld [vmem:[%s8374] sm:$0x3]
    %s8376 = scalar_lea.vmem [#allocation13], 6
    %v8377 = vld [vmem:[%s8376] sm:$0x3]
    %v8378 = vadd.f32 %v8372, %v8373
    %8379 = vadd.xlane.f32.xlu0 %v8378
    %v8380 = vpop.xlane.xlu0 %8379
    %v8381 = vmul.f32 %v8380, %v784
    %v8382 = vsub.f32 %v8372, %v8381
    %v8383 = vsub.f32 %v8373, %v8381
    %v8384 = vmul.f32 %v8382, %v8382
    %v8385 = vmul.f32 %v8383, %v8383
    %v8386 = vadd.f32 %v8384, %v8385
    %8387 = vadd.xlane.f32.xlu0 %v8386
    %v8388 = vpop.xlane.xlu0 %8387
    %v8389 = vmul.f32 %v8388, %v784
    %v8390 = vadd.f32 %v8389, 1e-05
    %v8391 = vrsqrt.pop %v8390
    %v8392 = vmul.f32 %v8382, %v8391
    %v8393 = vmul.f32 %v8383, %v8391
    %v8395 = vlaneseq
    %v8396 = vshrl.u32 %v8395, 7
    %v8397 = vsub.s32 0, %v8396
    %v8398 = vrot.slane %v8375, %v8397
    %v8399 = vlaneseq
    %v8400 = vshrl.u32 %v8399, 7
    %v8401 = vsub.s32 1, %v8400
    %v8402 = vrot.slane %v8375, %v8401
    %v8405 = vmul.f32 %v8392, %v8398
    %v8406 = vmul.f32 %v8393, %v8402
    %v8408 = vlaneseq
    %v8409 = vshrl.u32 %v8408, 7
    %v8410 = vsub.s32 0, %v8409
    %v8411 = vrot.slane %v8377, %v8410
    %v8412 = vlaneseq
    %v8413 = vshrl.u32 %v8412, 7
    %v8414 = vsub.s32 1, %v8413
    %v8415 = vrot.slane %v8377, %v8414
    %v8418 = vadd.f32 %v8405, %v8411
    %v8419 = vadd.f32 %v8406, %v8415
    %v8420 = vpack.c.bf16 %v8418, %v8418
    %v8421 = vpack.c.bf16 %v8419, %v8419
    %s8422 = scalar_lea.vmem [#allocation14], 3072
    %v8423 = vld [vmem:[%s8422] sm:$0xff]
    %v8424 = vld [vmem:[%s8422 + $0x8] sm:$0xff]
    %v8425 = vld [vmem:[%s8422 + $0x10] sm:$0xff]
    %v8426 = vld [vmem:[%s8422 + $0x18] sm:$0xff]
    %v8427 = vld [vmem:[%s8422 + $0x20] sm:$0xff]
    %v8428 = vld [vmem:[%s8422 + $0x28] sm:$0xff]
    %v8429 = vld [vmem:[%s8422 + $0x30] sm:$0xff]
    %v8430 = vld [vmem:[%s8422 + $0x38] sm:$0xff]
    %v8431 = vld [vmem:[%s8422 + $0x40] sm:$0xff]
    %v8432 = vld [vmem:[%s8422 + $0x48] sm:$0xff]
    %v8433 = vld [vmem:[%s8422 + $0x50] sm:$0xff]
    %v8434 = vld [vmem:[%s8422 + $0x58] sm:$0xff]
    %v8435 = vld [vmem:[%s8422 + $0x60] sm:$0xff]
    %v8436 = vld [vmem:[%s8422 + $0x68] sm:$0xff]
    %v8437 = vld [vmem:[%s8422 + $0x70] sm:$0xff]
    %v8438 = vld [vmem:[%s8422 + $0x78] sm:$0xff]
    %v8439 = vld [vmem:[%s8422 + $0x80] sm:$0xff]
    %v8440 = vld [vmem:[%s8422 + $0x88] sm:$0xff]
    %v8441 = vld [vmem:[%s8422 + $0x90] sm:$0xff]
    %v8442 = vld [vmem:[%s8422 + $0x98] sm:$0xff]
    %v8443 = vld [vmem:[%s8422 + $0xa0] sm:$0xff]
    %v8444 = vld [vmem:[%s8422 + $0xa8] sm:$0xff]
    %v8445 = vld [vmem:[%s8422 + $0xb0] sm:$0xff]
    %v8446 = vld [vmem:[%s8422 + $0xb8] sm:$0xff]
    %v8447 = vld [vmem:[%s8422 + $0xc0] sm:$0xff]
    %v8448 = vld [vmem:[%s8422 + $0xc8] sm:$0xff]
    %v8449 = vld [vmem:[%s8422 + $0xd0] sm:$0xff]
    %v8450 = vld [vmem:[%s8422 + $0xd8] sm:$0xff]
    %v8451 = vld [vmem:[%s8422 + $0xe0] sm:$0xff]
    %v8452 = vld [vmem:[%s8422 + $0xe8] sm:$0xff]
    %v8453 = vld [vmem:[%s8422 + $0xf0] sm:$0xff]
    %v8454 = vld [vmem:[%s8422 + $0xf8] sm:$0xff]
    %v8455 = vld [vmem:[%s8422 + $0x100] sm:$0xff]
    %v8456 = vld [vmem:[%s8422 + $0x108] sm:$0xff]
    %v8457 = vld [vmem:[%s8422 + $0x110] sm:$0xff]
    %v8458 = vld [vmem:[%s8422 + $0x118] sm:$0xff]
    %v8459 = vld [vmem:[%s8422 + $0x120] sm:$0xff]
    %v8460 = vld [vmem:[%s8422 + $0x128] sm:$0xff]
    %v8461 = vld [vmem:[%s8422 + $0x130] sm:$0xff]
    %v8462 = vld [vmem:[%s8422 + $0x138] sm:$0xff]
    %v8463 = vld [vmem:[%s8422 + $0x140] sm:$0xff]
    %v8464 = vld [vmem:[%s8422 + $0x148] sm:$0xff]
    %v8465 = vld [vmem:[%s8422 + $0x150] sm:$0xff]
    %v8466 = vld [vmem:[%s8422 + $0x158] sm:$0xff]
    %v8467 = vld [vmem:[%s8422 + $0x160] sm:$0xff]
    %v8468 = vld [vmem:[%s8422 + $0x168] sm:$0xff]
    %v8469 = vld [vmem:[%s8422 + $0x170] sm:$0xff]
    %v8470 = vld [vmem:[%s8422 + $0x178] sm:$0xff]
    %v8471 = vld [vmem:[%s8422 + $0x180] sm:$0xff]
    %v8472 = vld [vmem:[%s8422 + $0x188] sm:$0xff]
    %v8473 = vld [vmem:[%s8422 + $0x190] sm:$0xff]
    %v8474 = vld [vmem:[%s8422 + $0x198] sm:$0xff]
    %v8475 = vld [vmem:[%s8422 + $0x1a0] sm:$0xff]
    %v8476 = vld [vmem:[%s8422 + $0x1a8] sm:$0xff]
    %v8477 = vld [vmem:[%s8422 + $0x1b0] sm:$0xff]
    %v8478 = vld [vmem:[%s8422 + $0x1b8] sm:$0xff]
    %v8479 = vld [vmem:[%s8422 + $0x1c0] sm:$0xff]
    %v8480 = vld [vmem:[%s8422 + $0x1c8] sm:$0xff]
    %v8481 = vld [vmem:[%s8422 + $0x1d0] sm:$0xff]
    %v8482 = vld [vmem:[%s8422 + $0x1d8] sm:$0xff]
    %v8483 = vld [vmem:[%s8422 + $0x1e0] sm:$0xff]
    %v8484 = vld [vmem:[%s8422 + $0x1e8] sm:$0xff]
    %v8485 = vld [vmem:[%s8422 + $0x1f0] sm:$0xff]
    %v8486 = vld [vmem:[%s8422 + $0x1f8] sm:$0xff]
    %v8487 = vld [vmem:[%s8422 + $0x200] sm:$0xff]
    %v8488 = vld [vmem:[%s8422 + $0x208] sm:$0xff]
    %v8489 = vld [vmem:[%s8422 + $0x210] sm:$0xff]
    %v8490 = vld [vmem:[%s8422 + $0x218] sm:$0xff]
    %v8491 = vld [vmem:[%s8422 + $0x220] sm:$0xff]
    %v8492 = vld [vmem:[%s8422 + $0x228] sm:$0xff]
    %v8493 = vld [vmem:[%s8422 + $0x230] sm:$0xff]
    %v8494 = vld [vmem:[%s8422 + $0x238] sm:$0xff]
    %v8495 = vld [vmem:[%s8422 + $0x240] sm:$0xff]
    %v8496 = vld [vmem:[%s8422 + $0x248] sm:$0xff]
    %v8497 = vld [vmem:[%s8422 + $0x250] sm:$0xff]
    %v8498 = vld [vmem:[%s8422 + $0x258] sm:$0xff]
    %v8499 = vld [vmem:[%s8422 + $0x260] sm:$0xff]
    %v8500 = vld [vmem:[%s8422 + $0x268] sm:$0xff]
    %v8501 = vld [vmem:[%s8422 + $0x270] sm:$0xff]
    %v8502 = vld [vmem:[%s8422 + $0x278] sm:$0xff]
    %v8503 = vld [vmem:[%s8422 + $0x280] sm:$0xff]
    %v8504 = vld [vmem:[%s8422 + $0x288] sm:$0xff]
    %v8505 = vld [vmem:[%s8422 + $0x290] sm:$0xff]
    %v8506 = vld [vmem:[%s8422 + $0x298] sm:$0xff]
    %v8507 = vld [vmem:[%s8422 + $0x2a0] sm:$0xff]
    %v8508 = vld [vmem:[%s8422 + $0x2a8] sm:$0xff]
    %v8509 = vld [vmem:[%s8422 + $0x2b0] sm:$0xff]
    %v8510 = vld [vmem:[%s8422 + $0x2b8] sm:$0xff]
    %v8511 = vld [vmem:[%s8422 + $0x2c0] sm:$0xff]
    %v8512 = vld [vmem:[%s8422 + $0x2c8] sm:$0xff]
    %v8513 = vld [vmem:[%s8422 + $0x2d0] sm:$0xff]
    %v8514 = vld [vmem:[%s8422 + $0x2d8] sm:$0xff]
    %v8515 = vld [vmem:[%s8422 + $0x2e0] sm:$0xff]
    %v8516 = vld [vmem:[%s8422 + $0x2e8] sm:$0xff]
    %v8517 = vld [vmem:[%s8422 + $0x2f0] sm:$0xff]
    %v8518 = vld [vmem:[%s8422 + $0x2f8] sm:$0xff]
    %v8519 = vld [vmem:[%s8422 + $0x300] sm:$0xff]
    %v8520 = vld [vmem:[%s8422 + $0x308] sm:$0xff]
    %v8521 = vld [vmem:[%s8422 + $0x310] sm:$0xff]
    %v8522 = vld [vmem:[%s8422 + $0x318] sm:$0xff]
    %v8523 = vld [vmem:[%s8422 + $0x320] sm:$0xff]
    %v8524 = vld [vmem:[%s8422 + $0x328] sm:$0xff]
    %v8525 = vld [vmem:[%s8422 + $0x330] sm:$0xff]
    %v8526 = vld [vmem:[%s8422 + $0x338] sm:$0xff]
    %v8527 = vld [vmem:[%s8422 + $0x340] sm:$0xff]
    %v8528 = vld [vmem:[%s8422 + $0x348] sm:$0xff]
    %v8529 = vld [vmem:[%s8422 + $0x350] sm:$0xff]
    %v8530 = vld [vmem:[%s8422 + $0x358] sm:$0xff]
    %v8531 = vld [vmem:[%s8422 + $0x360] sm:$0xff]
    %v8532 = vld [vmem:[%s8422 + $0x368] sm:$0xff]
    %v8533 = vld [vmem:[%s8422 + $0x370] sm:$0xff]
    %v8534 = vld [vmem:[%s8422 + $0x378] sm:$0xff]
    %v8535 = vld [vmem:[%s8422 + $0x380] sm:$0xff]
    %v8536 = vld [vmem:[%s8422 + $0x388] sm:$0xff]
    %v8537 = vld [vmem:[%s8422 + $0x390] sm:$0xff]
    %v8538 = vld [vmem:[%s8422 + $0x398] sm:$0xff]
    %v8539 = vld [vmem:[%s8422 + $0x3a0] sm:$0xff]
    %v8540 = vld [vmem:[%s8422 + $0x3a8] sm:$0xff]
    %v8541 = vld [vmem:[%s8422 + $0x3b0] sm:$0xff]
    %v8542 = vld [vmem:[%s8422 + $0x3b8] sm:$0xff]
    %v8543 = vld [vmem:[%s8422 + $0x3c0] sm:$0xff]
    %v8544 = vld [vmem:[%s8422 + $0x3c8] sm:$0xff]
    %v8545 = vld [vmem:[%s8422 + $0x3d0] sm:$0xff]
    %v8546 = vld [vmem:[%s8422 + $0x3d8] sm:$0xff]
    %v8547 = vld [vmem:[%s8422 + $0x3e0] sm:$0xff]
    %v8548 = vld [vmem:[%s8422 + $0x3e8] sm:$0xff]
    %v8549 = vld [vmem:[%s8422 + $0x3f0] sm:$0xff]
    %v8550 = vld [vmem:[%s8422 + $0x3f8] sm:$0xff]
    %s8551 = scalar_lea.vmem [#allocation16], 24
    %v8552 = vld [vmem:[%s8551] sm:$0xff]
    %v8554 = vlaneseq
    %v8555 = vshrl.u32 %v8554, 7
    %v8556 = vsub.s32 0, %v8555
    %v8557 = vrot.slane %v8552, %v8556
    %v8558 = vlaneseq
    %v8559 = vshrl.u32 %v8558, 7
    %v8560 = vsub.s32 1, %v8559
    %v8561 = vrot.slane %v8552, %v8560
    %v8562 = vlaneseq
    %v8563 = vshrl.u32 %v8562, 7
    %v8564 = vsub.s32 2, %v8563
    %v8565 = vrot.slane %v8552, %v8564
    %v8566 = vlaneseq
    %v8567 = vshrl.u32 %v8566, 7
    %v8568 = vsub.s32 3, %v8567
    %v8569 = vrot.slane %v8552, %v8568
    %v8570 = vlaneseq
    %v8571 = vshrl.u32 %v8570, 7
    %v8572 = vsub.s32 4, %v8571
    %v8573 = vrot.slane %v8552, %v8572
    %v8574 = vlaneseq
    %v8575 = vshrl.u32 %v8574, 7
    %v8576 = vsub.s32 5, %v8575
    %v8577 = vrot.slane %v8552, %v8576
    %v8578 = vlaneseq
    %v8579 = vshrl.u32 %v8578, 7
    %v8580 = vsub.s32 6, %v8579
    %v8581 = vrot.slane %v8552, %v8580
    %v8582 = vlaneseq
    %v8583 = vshrl.u32 %v8582, 7
    %v8584 = vsub.s32 7, %v8583
    %v8585 = vrot.slane %v8552, %v8584
    %v8722 = vunpack.c.l.b16 %v8423
    %v8723 = vunpack.c.h.b16 %v8423
    %v8724 = vunpack.c.l.b16 %v8424
    %v8725 = vunpack.c.h.b16 %v8424
    %v8726 = vunpack.c.l.b16 %v8425
    %v8727 = vunpack.c.h.b16 %v8425
    %v8728 = vunpack.c.l.b16 %v8426
    %v8729 = vunpack.c.h.b16 %v8426
    %v8730 = vunpack.c.l.b16 %v8427
    %v8731 = vunpack.c.h.b16 %v8427
    %v8732 = vunpack.c.l.b16 %v8428
    %v8733 = vunpack.c.h.b16 %v8428
    %v8734 = vunpack.c.l.b16 %v8429
    %v8735 = vunpack.c.h.b16 %v8429
    %v8736 = vunpack.c.l.b16 %v8430
    %v8737 = vunpack.c.h.b16 %v8430
    %v8738 = vunpack.c.l.b16 %v8431
    %v8739 = vunpack.c.h.b16 %v8431
    %v8740 = vunpack.c.l.b16 %v8432
    %v8741 = vunpack.c.h.b16 %v8432
    %v8742 = vunpack.c.l.b16 %v8433
    %v8743 = vunpack.c.h.b16 %v8433
    %v8744 = vunpack.c.l.b16 %v8434
    %v8745 = vunpack.c.h.b16 %v8434
    %v8746 = vunpack.c.l.b16 %v8435
    %v8747 = vunpack.c.h.b16 %v8435
    %v8748 = vunpack.c.l.b16 %v8436
    %v8749 = vunpack.c.h.b16 %v8436
    %v8750 = vunpack.c.l.b16 %v8437
    %v8751 = vunpack.c.h.b16 %v8437
    %v8752 = vunpack.c.l.b16 %v8438
    %v8753 = vunpack.c.h.b16 %v8438
    %v8754 = vunpack.c.l.b16 %v8439
    %v8755 = vunpack.c.h.b16 %v8439
    %v8756 = vunpack.c.l.b16 %v8440
    %v8757 = vunpack.c.h.b16 %v8440
    %v8758 = vunpack.c.l.b16 %v8441
    %v8759 = vunpack.c.h.b16 %v8441
    %v8760 = vunpack.c.l.b16 %v8442
    %v8761 = vunpack.c.h.b16 %v8442
    %v8762 = vunpack.c.l.b16 %v8443
    %v8763 = vunpack.c.h.b16 %v8443
    %v8764 = vunpack.c.l.b16 %v8444
    %v8765 = vunpack.c.h.b16 %v8444
    %v8766 = vunpack.c.l.b16 %v8445
    %v8767 = vunpack.c.h.b16 %v8445
    %v8768 = vunpack.c.l.b16 %v8446
    %v8769 = vunpack.c.h.b16 %v8446
    %v8770 = vunpack.c.l.b16 %v8447
    %v8771 = vunpack.c.h.b16 %v8447
    %v8772 = vunpack.c.l.b16 %v8448
    %v8773 = vunpack.c.h.b16 %v8448
    %v8774 = vunpack.c.l.b16 %v8449
    %v8775 = vunpack.c.h.b16 %v8449
    %v8776 = vunpack.c.l.b16 %v8450
    %v8777 = vunpack.c.h.b16 %v8450
    %v8778 = vunpack.c.l.b16 %v8451
    %v8779 = vunpack.c.h.b16 %v8451
    %v8780 = vunpack.c.l.b16 %v8452
    %v8781 = vunpack.c.h.b16 %v8452
    %v8782 = vunpack.c.l.b16 %v8453
    %v8783 = vunpack.c.h.b16 %v8453
    %v8784 = vunpack.c.l.b16 %v8454
    %v8785 = vunpack.c.h.b16 %v8454
    %v8786 = vunpack.c.l.b16 %v8455
    %v8787 = vunpack.c.h.b16 %v8455
    %v8788 = vunpack.c.l.b16 %v8456
    %v8789 = vunpack.c.h.b16 %v8456
    %v8790 = vunpack.c.l.b16 %v8457
    %v8791 = vunpack.c.h.b16 %v8457
    %v8792 = vunpack.c.l.b16 %v8458
    %v8793 = vunpack.c.h.b16 %v8458
    %v8794 = vunpack.c.l.b16 %v8459
    %v8795 = vunpack.c.h.b16 %v8459
    %v8796 = vunpack.c.l.b16 %v8460
    %v8797 = vunpack.c.h.b16 %v8460
    %v8798 = vunpack.c.l.b16 %v8461
    %v8799 = vunpack.c.h.b16 %v8461
    %v8800 = vunpack.c.l.b16 %v8462
    %v8801 = vunpack.c.h.b16 %v8462
    %v8802 = vunpack.c.l.b16 %v8463
    %v8803 = vunpack.c.h.b16 %v8463
    %v8804 = vunpack.c.l.b16 %v8464
    %v8805 = vunpack.c.h.b16 %v8464
    %v8806 = vunpack.c.l.b16 %v8465
    %v8807 = vunpack.c.h.b16 %v8465
    %v8808 = vunpack.c.l.b16 %v8466
    %v8809 = vunpack.c.h.b16 %v8466
    %v8810 = vunpack.c.l.b16 %v8467
    %v8811 = vunpack.c.h.b16 %v8467
    %v8812 = vunpack.c.l.b16 %v8468
    %v8813 = vunpack.c.h.b16 %v8468
    %v8814 = vunpack.c.l.b16 %v8469
    %v8815 = vunpack.c.h.b16 %v8469
    %v8816 = vunpack.c.l.b16 %v8470
    %v8817 = vunpack.c.h.b16 %v8470
    %v8818 = vunpack.c.l.b16 %v8471
    %v8819 = vunpack.c.h.b16 %v8471
    %v8820 = vunpack.c.l.b16 %v8472
    %v8821 = vunpack.c.h.b16 %v8472
    %v8822 = vunpack.c.l.b16 %v8473
    %v8823 = vunpack.c.h.b16 %v8473
    %v8824 = vunpack.c.l.b16 %v8474
    %v8825 = vunpack.c.h.b16 %v8474
    %v8826 = vunpack.c.l.b16 %v8475
    %v8827 = vunpack.c.h.b16 %v8475
    %v8828 = vunpack.c.l.b16 %v8476
    %v8829 = vunpack.c.h.b16 %v8476
    %v8830 = vunpack.c.l.b16 %v8477
    %v8831 = vunpack.c.h.b16 %v8477
    %v8832 = vunpack.c.l.b16 %v8478
    %v8833 = vunpack.c.h.b16 %v8478
    %v8834 = vunpack.c.l.b16 %v8479
    %v8835 = vunpack.c.h.b16 %v8479
    %v8836 = vunpack.c.l.b16 %v8480
    %v8837 = vunpack.c.h.b16 %v8480
    %v8838 = vunpack.c.l.b16 %v8481
    %v8839 = vunpack.c.h.b16 %v8481
    %v8840 = vunpack.c.l.b16 %v8482
    %v8841 = vunpack.c.h.b16 %v8482
    %v8842 = vunpack.c.l.b16 %v8483
    %v8843 = vunpack.c.h.b16 %v8483
    %v8844 = vunpack.c.l.b16 %v8484
    %v8845 = vunpack.c.h.b16 %v8484
    %v8846 = vunpack.c.l.b16 %v8485
    %v8847 = vunpack.c.h.b16 %v8485
    %v8848 = vunpack.c.l.b16 %v8486
    %v8849 = vunpack.c.h.b16 %v8486
    %v8850 = vunpack.c.l.b16 %v8487
    %v8851 = vunpack.c.h.b16 %v8487
    %v8852 = vunpack.c.l.b16 %v8488
    %v8853 = vunpack.c.h.b16 %v8488
    %v8854 = vunpack.c.l.b16 %v8489
    %v8855 = vunpack.c.h.b16 %v8489
    %v8856 = vunpack.c.l.b16 %v8490
    %v8857 = vunpack.c.h.b16 %v8490
    %v8858 = vunpack.c.l.b16 %v8491
    %v8859 = vunpack.c.h.b16 %v8491
    %v8860 = vunpack.c.l.b16 %v8492
    %v8861 = vunpack.c.h.b16 %v8492
    %v8862 = vunpack.c.l.b16 %v8493
    %v8863 = vunpack.c.h.b16 %v8493
    %v8864 = vunpack.c.l.b16 %v8494
    %v8865 = vunpack.c.h.b16 %v8494
    %v8866 = vunpack.c.l.b16 %v8495
    %v8867 = vunpack.c.h.b16 %v8495
    %v8868 = vunpack.c.l.b16 %v8496
    %v8869 = vunpack.c.h.b16 %v8496
    %v8870 = vunpack.c.l.b16 %v8497
    %v8871 = vunpack.c.h.b16 %v8497
    %v8872 = vunpack.c.l.b16 %v8498
    %v8873 = vunpack.c.h.b16 %v8498
    %v8874 = vunpack.c.l.b16 %v8499
    %v8875 = vunpack.c.h.b16 %v8499
    %v8876 = vunpack.c.l.b16 %v8500
    %v8877 = vunpack.c.h.b16 %v8500
    %v8878 = vunpack.c.l.b16 %v8501
    %v8879 = vunpack.c.h.b16 %v8501
    %v8880 = vunpack.c.l.b16 %v8502
    %v8881 = vunpack.c.h.b16 %v8502
    %v8882 = vunpack.c.l.b16 %v8503
    %v8883 = vunpack.c.h.b16 %v8503
    %v8884 = vunpack.c.l.b16 %v8504
    %v8885 = vunpack.c.h.b16 %v8504
    %v8886 = vunpack.c.l.b16 %v8505
    %v8887 = vunpack.c.h.b16 %v8505
    %v8888 = vunpack.c.l.b16 %v8506
    %v8889 = vunpack.c.h.b16 %v8506
    %v8890 = vunpack.c.l.b16 %v8507
    %v8891 = vunpack.c.h.b16 %v8507
    %v8892 = vunpack.c.l.b16 %v8508
    %v8893 = vunpack.c.h.b16 %v8508
    %v8894 = vunpack.c.l.b16 %v8509
    %v8895 = vunpack.c.h.b16 %v8509
    %v8896 = vunpack.c.l.b16 %v8510
    %v8897 = vunpack.c.h.b16 %v8510
    %v8898 = vunpack.c.l.b16 %v8511
    %v8899 = vunpack.c.h.b16 %v8511
    %v8900 = vunpack.c.l.b16 %v8512
    %v8901 = vunpack.c.h.b16 %v8512
    %v8902 = vunpack.c.l.b16 %v8513
    %v8903 = vunpack.c.h.b16 %v8513
    %v8904 = vunpack.c.l.b16 %v8514
    %v8905 = vunpack.c.h.b16 %v8514
    %v8906 = vunpack.c.l.b16 %v8515
    %v8907 = vunpack.c.h.b16 %v8515
    %v8908 = vunpack.c.l.b16 %v8516
    %v8909 = vunpack.c.h.b16 %v8516
    %v8910 = vunpack.c.l.b16 %v8517
    %v8911 = vunpack.c.h.b16 %v8517
    %v8912 = vunpack.c.l.b16 %v8518
    %v8913 = vunpack.c.h.b16 %v8518
    %v8914 = vunpack.c.l.b16 %v8519
    %v8915 = vunpack.c.h.b16 %v8519
    %v8916 = vunpack.c.l.b16 %v8520
    %v8917 = vunpack.c.h.b16 %v8520
    %v8918 = vunpack.c.l.b16 %v8521
    %v8919 = vunpack.c.h.b16 %v8521
    %v8920 = vunpack.c.l.b16 %v8522
    %v8921 = vunpack.c.h.b16 %v8522
    %v8922 = vunpack.c.l.b16 %v8523
    %v8923 = vunpack.c.h.b16 %v8523
    %v8924 = vunpack.c.l.b16 %v8524
    %v8925 = vunpack.c.h.b16 %v8524
    %v8926 = vunpack.c.l.b16 %v8525
    %v8927 = vunpack.c.h.b16 %v8525
    %v8928 = vunpack.c.l.b16 %v8526
    %v8929 = vunpack.c.h.b16 %v8526
    %v8930 = vunpack.c.l.b16 %v8527
    %v8931 = vunpack.c.h.b16 %v8527
    %v8932 = vunpack.c.l.b16 %v8528
    %v8933 = vunpack.c.h.b16 %v8528
    %v8934 = vunpack.c.l.b16 %v8529
    %v8935 = vunpack.c.h.b16 %v8529
    %v8936 = vunpack.c.l.b16 %v8530
    %v8937 = vunpack.c.h.b16 %v8530
    %v8938 = vunpack.c.l.b16 %v8531
    %v8939 = vunpack.c.h.b16 %v8531
    %v8940 = vunpack.c.l.b16 %v8532
    %v8941 = vunpack.c.h.b16 %v8532
    %v8942 = vunpack.c.l.b16 %v8533
    %v8943 = vunpack.c.h.b16 %v8533
    %v8944 = vunpack.c.l.b16 %v8534
    %v8945 = vunpack.c.h.b16 %v8534
    %v8946 = vunpack.c.l.b16 %v8535
    %v8947 = vunpack.c.h.b16 %v8535
    %v8948 = vunpack.c.l.b16 %v8536
    %v8949 = vunpack.c.h.b16 %v8536
    %v8950 = vunpack.c.l.b16 %v8537
    %v8951 = vunpack.c.h.b16 %v8537
    %v8952 = vunpack.c.l.b16 %v8538
    %v8953 = vunpack.c.h.b16 %v8538
    %v8954 = vunpack.c.l.b16 %v8539
    %v8955 = vunpack.c.h.b16 %v8539
    %v8956 = vunpack.c.l.b16 %v8540
    %v8957 = vunpack.c.h.b16 %v8540
    %v8958 = vunpack.c.l.b16 %v8541
    %v8959 = vunpack.c.h.b16 %v8541
    %v8960 = vunpack.c.l.b16 %v8542
    %v8961 = vunpack.c.h.b16 %v8542
    %v8962 = vunpack.c.l.b16 %v8543
    %v8963 = vunpack.c.h.b16 %v8543
    %v8964 = vunpack.c.l.b16 %v8544
    %v8965 = vunpack.c.h.b16 %v8544
    %v8966 = vunpack.c.l.b16 %v8545
    %v8967 = vunpack.c.h.b16 %v8545
    %v8968 = vunpack.c.l.b16 %v8546
    %v8969 = vunpack.c.h.b16 %v8546
    %v8970 = vunpack.c.l.b16 %v8547
    %v8971 = vunpack.c.h.b16 %v8547
    %v8972 = vunpack.c.l.b16 %v8548
    %v8973 = vunpack.c.h.b16 %v8548
    %v8974 = vunpack.c.l.b16 %v8549
    %v8975 = vunpack.c.h.b16 %v8549
    %v8976 = vunpack.c.l.b16 %v8550
    %v8977 = vunpack.c.h.b16 %v8550
    %v8978 = vpack.c.b16 %v8730, %v8722
    %v8979 = vpack.c.b16 %v8731, %v8723
    %v8980 = vpack.c.b16 %v8732, %v8724
    %v8981 = vpack.c.b16 %v8733, %v8725
    %v8982 = vpack.c.b16 %v8734, %v8726
    %v8983 = vpack.c.b16 %v8735, %v8727
    %v8984 = vpack.c.b16 %v8736, %v8728
    %v8985 = vpack.c.b16 %v8737, %v8729
    %v8986 = vpack.c.b16 %v8746, %v8738
    %v8987 = vpack.c.b16 %v8747, %v8739
    %v8988 = vpack.c.b16 %v8748, %v8740
    %v8989 = vpack.c.b16 %v8749, %v8741
    %v8990 = vpack.c.b16 %v8750, %v8742
    %v8991 = vpack.c.b16 %v8751, %v8743
    %v8992 = vpack.c.b16 %v8752, %v8744
    %v8993 = vpack.c.b16 %v8753, %v8745
    %v8994 = vpack.c.b16 %v8762, %v8754
    %v8995 = vpack.c.b16 %v8763, %v8755
    %v8996 = vpack.c.b16 %v8764, %v8756
    %v8997 = vpack.c.b16 %v8765, %v8757
    %v8998 = vpack.c.b16 %v8766, %v8758
    %v8999 = vpack.c.b16 %v8767, %v8759
    %v9000 = vpack.c.b16 %v8768, %v8760
    %v9001 = vpack.c.b16 %v8769, %v8761
    %v9002 = vpack.c.b16 %v8778, %v8770
    %v9003 = vpack.c.b16 %v8779, %v8771
    %v9004 = vpack.c.b16 %v8780, %v8772
    %v9005 = vpack.c.b16 %v8781, %v8773
    %v9006 = vpack.c.b16 %v8782, %v8774
    %v9007 = vpack.c.b16 %v8783, %v8775
    %v9008 = vpack.c.b16 %v8784, %v8776
    %v9009 = vpack.c.b16 %v8785, %v8777
    %v9010 = vpack.c.b16 %v8794, %v8786
    %v9011 = vpack.c.b16 %v8795, %v8787
    %v9012 = vpack.c.b16 %v8796, %v8788
    %v9013 = vpack.c.b16 %v8797, %v8789
    %v9014 = vpack.c.b16 %v8798, %v8790
    %v9015 = vpack.c.b16 %v8799, %v8791
    %v9016 = vpack.c.b16 %v8800, %v8792
    %v9017 = vpack.c.b16 %v8801, %v8793
    %v9018 = vpack.c.b16 %v8810, %v8802
    %v9019 = vpack.c.b16 %v8811, %v8803
    %v9020 = vpack.c.b16 %v8812, %v8804
    %v9021 = vpack.c.b16 %v8813, %v8805
    %v9022 = vpack.c.b16 %v8814, %v8806
    %v9023 = vpack.c.b16 %v8815, %v8807
    %v9024 = vpack.c.b16 %v8816, %v8808
    %v9025 = vpack.c.b16 %v8817, %v8809
    %v9026 = vpack.c.b16 %v8826, %v8818
    %v9027 = vpack.c.b16 %v8827, %v8819
    %v9028 = vpack.c.b16 %v8828, %v8820
    %v9029 = vpack.c.b16 %v8829, %v8821
    %v9030 = vpack.c.b16 %v8830, %v8822
    %v9031 = vpack.c.b16 %v8831, %v8823
    %v9032 = vpack.c.b16 %v8832, %v8824
    %v9033 = vpack.c.b16 %v8833, %v8825
    %v9034 = vpack.c.b16 %v8842, %v8834
    %v9035 = vpack.c.b16 %v8843, %v8835
    %v9036 = vpack.c.b16 %v8844, %v8836
    %v9037 = vpack.c.b16 %v8845, %v8837
    %v9038 = vpack.c.b16 %v8846, %v8838
    %v9039 = vpack.c.b16 %v8847, %v8839
    %v9040 = vpack.c.b16 %v8848, %v8840
    %v9041 = vpack.c.b16 %v8849, %v8841
    %v9042 = vpack.c.b16 %v8858, %v8850
    %v9043 = vpack.c.b16 %v8859, %v8851
    %v9044 = vpack.c.b16 %v8860, %v8852
    %v9045 = vpack.c.b16 %v8861, %v8853
    %v9046 = vpack.c.b16 %v8862, %v8854
    %v9047 = vpack.c.b16 %v8863, %v8855
    %v9048 = vpack.c.b16 %v8864, %v8856
    %v9049 = vpack.c.b16 %v8865, %v8857
    %v9050 = vpack.c.b16 %v8874, %v8866
    %v9051 = vpack.c.b16 %v8875, %v8867
    %v9052 = vpack.c.b16 %v8876, %v8868
    %v9053 = vpack.c.b16 %v8877, %v8869
    %v9054 = vpack.c.b16 %v8878, %v8870
    %v9055 = vpack.c.b16 %v8879, %v8871
    %v9056 = vpack.c.b16 %v8880, %v8872
    %v9057 = vpack.c.b16 %v8881, %v8873
    %v9058 = vpack.c.b16 %v8890, %v8882
    %v9059 = vpack.c.b16 %v8891, %v8883
    %v9060 = vpack.c.b16 %v8892, %v8884
    %v9061 = vpack.c.b16 %v8893, %v8885
    %v9062 = vpack.c.b16 %v8894, %v8886
    %v9063 = vpack.c.b16 %v8895, %v8887
    %v9064 = vpack.c.b16 %v8896, %v8888
    %v9065 = vpack.c.b16 %v8897, %v8889
    %v9066 = vpack.c.b16 %v8906, %v8898
    %v9067 = vpack.c.b16 %v8907, %v8899
    %v9068 = vpack.c.b16 %v8908, %v8900
    %v9069 = vpack.c.b16 %v8909, %v8901
    %v9070 = vpack.c.b16 %v8910, %v8902
    %v9071 = vpack.c.b16 %v8911, %v8903
    %v9072 = vpack.c.b16 %v8912, %v8904
    %v9073 = vpack.c.b16 %v8913, %v8905
    %v9074 = vpack.c.b16 %v8922, %v8914
    %v9075 = vpack.c.b16 %v8923, %v8915
    %v9076 = vpack.c.b16 %v8924, %v8916
    %v9077 = vpack.c.b16 %v8925, %v8917
    %v9078 = vpack.c.b16 %v8926, %v8918
    %v9079 = vpack.c.b16 %v8927, %v8919
    %v9080 = vpack.c.b16 %v8928, %v8920
    %v9081 = vpack.c.b16 %v8929, %v8921
    %v9082 = vpack.c.b16 %v8938, %v8930
    %v9083 = vpack.c.b16 %v8939, %v8931
    %v9084 = vpack.c.b16 %v8940, %v8932
    %v9085 = vpack.c.b16 %v8941, %v8933
    %v9086 = vpack.c.b16 %v8942, %v8934
    %v9087 = vpack.c.b16 %v8943, %v8935
    %v9088 = vpack.c.b16 %v8944, %v8936
    %v9089 = vpack.c.b16 %v8945, %v8937
    %v9090 = vpack.c.b16 %v8954, %v8946
    %v9091 = vpack.c.b16 %v8955, %v8947
    %v9092 = vpack.c.b16 %v8956, %v8948
    %v9093 = vpack.c.b16 %v8957, %v8949
    %v9094 = vpack.c.b16 %v8958, %v8950
    %v9095 = vpack.c.b16 %v8959, %v8951
    %v9096 = vpack.c.b16 %v8960, %v8952
    %v9097 = vpack.c.b16 %v8961, %v8953
    %v9098 = vpack.c.b16 %v8970, %v8962
    %v9099 = vpack.c.b16 %v8971, %v8963
    %v9100 = vpack.c.b16 %v8972, %v8964
    %v9101 = vpack.c.b16 %v8973, %v8965
    %v9102 = vpack.c.b16 %v8974, %v8966
    %v9103 = vpack.c.b16 %v8975, %v8967
    %v9104 = vpack.c.b16 %v8976, %v8968
    %v9105 = vpack.c.b16 %v8977, %v8969
    %9234 = vmatprep.subr.bf16.mxu0 %v8979
    %9235 = vmatpush1.bf16.msra.mxu0 %v8978
    %9236 = vmatprep.subr.bf16.mxu0 %v8987
    %9237 = vmatpush1.bf16.msra.mxu0 %v8986
    %9238 = vmatprep.subr.bf16.mxu0 %v8995
    %9239 = vmatpush1.bf16.msra.mxu0 %v8994
    %9240 = vmatprep.subr.bf16.mxu0 %v9003
    %9241 = vmatpush1.bf16.msra.mxu0 %v9002
    %9242 = vmatprep.subr.bf16.mxu0 %v9011
    %9243 = vmatpush1.bf16.msra.mxu0 %v9010
    %9244 = vmatprep.subr.bf16.mxu0 %v9019
    %9245 = vmatpush1.bf16.msra.mxu0 %v9018
    %9246 = vmatprep.subr.bf16.mxu0 %v9027
    %9247 = vmatpush1.bf16.msra.mxu0 %v9026
    %9248 = vmatprep.subr.bf16.mxu0 %v9035
    %9249 = vmatpush1.bf16.msra.mxu0 %v9034
    %9250 = vmatprep.subr.bf16.mxu0 %v9043
    %9251 = vmatpush1.bf16.msra.mxu0 %v9042
    %9252 = vmatprep.subr.bf16.mxu0 %v9051
    %9253 = vmatpush1.bf16.msra.mxu0 %v9050
    %9254 = vmatprep.subr.bf16.mxu0 %v9059
    %9255 = vmatpush1.bf16.msra.mxu0 %v9058
    %9256 = vmatprep.subr.bf16.mxu0 %v9067
    %9257 = vmatpush1.bf16.msra.mxu0 %v9066
    %9258 = vmatprep.subr.bf16.mxu0 %v9075
    %9259 = vmatpush1.bf16.msra.mxu0 %v9074
    %9260 = vmatprep.subr.bf16.mxu0 %v9083
    %9261 = vmatpush1.bf16.msra.mxu0 %v9082
    %9262 = vmatprep.subr.bf16.mxu0 %v9091
    %9263 = vmatpush1.bf16.msra.mxu0 %v9090
    %9264 = vmatprep.subr.bf16.mxu0 %v9099
    %9265 = vmatpush1.bf16.msra.mxu0 %v9098
    %9266 = vmatprep.mubr.bf16.mxu0 %v8421
    %9267 = vmatmul.mubr.bf16.gmra.mrb[0].mxu0 %v8420
    %v9268 = vpop.f32.mrb[0].mxu0
    %v9269 = vadd.f32 %v8557, %v9268
    %v9270 = vpop.f32.mrb[0].mxu0
    %v9271 = vadd.f32 %v8561, %v9270
    %v9272 = vpop.f32.mrb[0].mxu0
    %v9273 = vpop.f32.mrb[0].mxu0
    %9274 = vdwg.mxu0
    %9275 = vmatprep.subr.bf16.mxu0 %v8981
    %9276 = vmatpush1.bf16.msra.mxu0 %v8980
    %9277 = vmatprep.subr.bf16.mxu0 %v8989
    %9278 = vmatpush1.bf16.msra.mxu0 %v8988
    %9279 = vmatprep.subr.bf16.mxu0 %v8997
    %9280 = vmatpush1.bf16.msra.mxu0 %v8996
    %9281 = vmatprep.subr.bf16.mxu0 %v9005
    %9282 = vmatpush1.bf16.msra.mxu0 %v9004
    %9283 = vmatprep.subr.bf16.mxu0 %v9013
    %9284 = vmatpush1.bf16.msra.mxu0 %v9012
    %9285 = vmatprep.subr.bf16.mxu0 %v9021
    %9286 = vmatpush1.bf16.msra.mxu0 %v9020
    %9287 = vmatprep.subr.bf16.mxu0 %v9029
    %9288 = vmatpush1.bf16.msra.mxu0 %v9028
    %9289 = vmatprep.subr.bf16.mxu0 %v9037
    %9290 = vmatpush1.bf16.msra.mxu0 %v9036
    %9291 = vmatprep.subr.bf16.mxu0 %v9045
    %9292 = vmatpush1.bf16.msra.mxu0 %v9044
    %9293 = vmatprep.subr.bf16.mxu0 %v9053
    %9294 = vmatpush1.bf16.msra.mxu0 %v9052
    %9295 = vmatprep.subr.bf16.mxu0 %v9061
    %9296 = vmatpush1.bf16.msra.mxu0 %v9060
    %9297 = vmatprep.subr.bf16.mxu0 %v9069
    %9298 = vmatpush1.bf16.msra.mxu0 %v9068
    %9299 = vmatprep.subr.bf16.mxu0 %v9077
    %9300 = vmatpush1.bf16.msra.mxu0 %v9076
    %9301 = vmatprep.subr.bf16.mxu0 %v9085
    %9302 = vmatpush1.bf16.msra.mxu0 %v9084
    %9303 = vmatprep.subr.bf16.mxu0 %v9093
    %9304 = vmatpush1.bf16.msra.mxu0 %v9092
    %9305 = vmatprep.subr.bf16.mxu0 %v9101
    %9306 = vmatpush1.bf16.msra.mxu0 %v9100
    %9307 = vmatprep.mubr.bf16.mxu0 %v8421
    %9308 = vmatmul.mubr.bf16.gmra.mrb[0].mxu0 %v8420
    %v9309 = vpop.f32.mrb[0].mxu0
    %v9310 = vadd.f32 %v8565, %v9309
    %v9311 = vpop.f32.mrb[0].mxu0
    %v9312 = vadd.f32 %v8569, %v9311
    %v9313 = vpop.f32.mrb[0].mxu0
    %v9314 = vpop.f32.mrb[0].mxu0
    %9315 = vdwg.mxu0
    %9316 = vmatprep.subr.bf16.mxu0 %v8983
    %9317 = vmatpush1.bf16.msra.mxu0 %v8982
    %9318 = vmatprep.subr.bf16.mxu0 %v8991
    %9319 = vmatpush1.bf16.msra.mxu0 %v8990
    %9320 = vmatprep.subr.bf16.mxu0 %v8999
    %9321 = vmatpush1.bf16.msra.mxu0 %v8998
    %9322 = vmatprep.subr.bf16.mxu0 %v9007
    %9323 = vmatpush1.bf16.msra.mxu0 %v9006
    %9324 = vmatprep.subr.bf16.mxu0 %v9015
    %9325 = vmatpush1.bf16.msra.mxu0 %v9014
    %9326 = vmatprep.subr.bf16.mxu0 %v9023
    %9327 = vmatpush1.bf16.msra.mxu0 %v9022
    %9328 = vmatprep.subr.bf16.mxu0 %v9031
    %9329 = vmatpush1.bf16.msra.mxu0 %v9030
    %9330 = vmatprep.subr.bf16.mxu0 %v9039
    %9331 = vmatpush1.bf16.msra.mxu0 %v9038
    %9332 = vmatprep.subr.bf16.mxu0 %v9047
    %9333 = vmatpush1.bf16.msra.mxu0 %v9046
    %9334 = vmatprep.subr.bf16.mxu0 %v9055
    %9335 = vmatpush1.bf16.msra.mxu0 %v9054
    %9336 = vmatprep.subr.bf16.mxu0 %v9063
    %9337 = vmatpush1.bf16.msra.mxu0 %v9062
    %9338 = vmatprep.subr.bf16.mxu0 %v9071
    %9339 = vmatpush1.bf16.msra.mxu0 %v9070
    %9340 = vmatprep.subr.bf16.mxu0 %v9079
    %9341 = vmatpush1.bf16.msra.mxu0 %v9078
    %9342 = vmatprep.subr.bf16.mxu0 %v9087
    %9343 = vmatpush1.bf16.msra.mxu0 %v9086
    %9344 = vmatprep.subr.bf16.mxu0 %v9095
    %9345 = vmatpush1.bf16.msra.mxu0 %v9094
    %9346 = vmatprep.subr.bf16.mxu0 %v9103
    %9347 = vmatpush1.bf16.msra.mxu0 %v9102
    %9348 = vmatprep.mubr.bf16.mxu0 %v8421
    %9349 = vmatmul.mubr.bf16.gmra.mrb[0].mxu0 %v8420
    %v9350 = vpop.f32.mrb[0].mxu0
    %v9351 = vadd.f32 %v8573, %v9350
    %v9352 = vpop.f32.mrb[0].mxu0
    %v9353 = vadd.f32 %v8577, %v9352
    %v9354 = vpop.f32.mrb[0].mxu0
    %v9355 = vpop.f32.mrb[0].mxu0
    %9356 = vdwg.mxu0
    %9357 = vmatprep.subr.bf16.mxu0 %v8985
    %9358 = vmatpush1.bf16.msra.mxu0 %v8984
    %9359 = vmatprep.subr.bf16.mxu0 %v8993
    %9360 = vmatpush1.bf16.msra.mxu0 %v8992
    %9361 = vmatprep.subr.bf16.mxu0 %v9001
    %9362 = vmatpush1.bf16.msra.mxu0 %v9000
    %9363 = vmatprep.subr.bf16.mxu0 %v9009
    %9364 = vmatpush1.bf16.msra.mxu0 %v9008
    %9365 = vmatprep.subr.bf16.mxu0 %v9017
    %9366 = vmatpush1.bf16.msra.mxu0 %v9016
    %9367 = vmatprep.subr.bf16.mxu0 %v9025
    %9368 = vmatpush1.bf16.msra.mxu0 %v9024
    %9369 = vmatprep.subr.bf16.mxu0 %v9033
    %9370 = vmatpush1.bf16.msra.mxu0 %v9032
    %9371 = vmatprep.subr.bf16.mxu0 %v9041
    %9372 = vmatpush1.bf16.msra.mxu0 %v9040
    %9373 = vmatprep.subr.bf16.mxu0 %v9049
    %9374 = vmatpush1.bf16.msra.mxu0 %v9048
    %9375 = vmatprep.subr.bf16.mxu0 %v9057
    %9376 = vmatpush1.bf16.msra.mxu0 %v9056
    %9377 = vmatprep.subr.bf16.mxu0 %v9065
    %9378 = vmatpush1.bf16.msra.mxu0 %v9064
    %9379 = vmatprep.subr.bf16.mxu0 %v9073
    %9380 = vmatpush1.bf16.msra.mxu0 %v9072
    %9381 = vmatprep.subr.bf16.mxu0 %v9081
    %9382 = vmatpush1.bf16.msra.mxu0 %v9080
    %9383 = vmatprep.subr.bf16.mxu0 %v9089
    %9384 = vmatpush1.bf16.msra.mxu0 %v9088
    %9385 = vmatprep.subr.bf16.mxu0 %v9097
    %9386 = vmatpush1.bf16.msra.mxu0 %v9096
    %9387 = vmatprep.subr.bf16.mxu0 %v9105
    %9388 = vmatpush1.bf16.msra.mxu0 %v9104
    %9389 = vmatprep.mubr.bf16.mxu0 %v8421
    %9390 = vmatmul.mubr.bf16.gmra.mrb[0].mxu0 %v8420
    %v9391 = vpop.f32.mrb[0].mxu0
    %v9392 = vadd.f32 %v8581, %v9391
    %v9393 = vpop.f32.mrb[0].mxu0
    %v9394 = vadd.f32 %v8585, %v9393
    %v9395 = vpop.f32.mrb[0].mxu0
    %v9396 = vpop.f32.mrb[0].mxu0
    %9397 = vdwg.mxu0
    %v9398 = vmax.f32 %v9269, 0.0
    %v9399 = vmax.f32 %v9271, 0.0
    %v9400 = vmax.f32 %v9310, 0.0
    %v9401 = vmax.f32 %v9312, 0.0
    %v9402 = vmax.f32 %v9351, 0.0
    %v9403 = vmax.f32 %v9353, 0.0
    %v9404 = vmax.f32 %v9392, 0.0
    %v9405 = vmax.f32 %v9394, 0.0
    %v9406 = vpack.c.bf16 %v9398, %v9398
    %v9407 = vpack.c.bf16 %v9399, %v9399
    %v9408 = vpack.c.bf16 %v9400, %v9400
    %v9409 = vpack.c.bf16 %v9401, %v9401
    %v9410 = vpack.c.bf16 %v9402, %v9402
    %v9411 = vpack.c.bf16 %v9403, %v9403
    %v9412 = vpack.c.bf16 %v9404, %v9404
    %v9413 = vpack.c.bf16 %v9405, %v9405
    %s9414 = scalar_lea.vmem [#allocation17], 3072
    %v9415 = vld [vmem:[%s9414] sm:$0xff]
    %v9416 = vld [vmem:[%s9414 + $0x8] sm:$0xff]
    %v9417 = vld [vmem:[%s9414 + $0x10] sm:$0xff]
    %v9418 = vld [vmem:[%s9414 + $0x18] sm:$0xff]
    %v9419 = vld [vmem:[%s9414 + $0x20] sm:$0xff]
    %v9420 = vld [vmem:[%s9414 + $0x28] sm:$0xff]
    %v9421 = vld [vmem:[%s9414 + $0x30] sm:$0xff]
    %v9422 = vld [vmem:[%s9414 + $0x38] sm:$0xff]
    %v9423 = vld [vmem:[%s9414 + $0x40] sm:$0xff]
    %v9424 = vld [vmem:[%s9414 + $0x48] sm:$0xff]
    %v9425 = vld [vmem:[%s9414 + $0x50] sm:$0xff]
    %v9426 = vld [vmem:[%s9414 + $0x58] sm:$0xff]
    %v9427 = vld [vmem:[%s9414 + $0x60] sm:$0xff]
    %v9428 = vld [vmem:[%s9414 + $0x68] sm:$0xff]
    %v9429 = vld [vmem:[%s9414 + $0x70] sm:$0xff]
    %v9430 = vld [vmem:[%s9414 + $0x78] sm:$0xff]
    %v9431 = vld [vmem:[%s9414 + $0x80] sm:$0xff]
    %v9432 = vld [vmem:[%s9414 + $0x88] sm:$0xff]
    %v9433 = vld [vmem:[%s9414 + $0x90] sm:$0xff]
    %v9434 = vld [vmem:[%s9414 + $0x98] sm:$0xff]
    %v9435 = vld [vmem:[%s9414 + $0xa0] sm:$0xff]
    %v9436 = vld [vmem:[%s9414 + $0xa8] sm:$0xff]
    %v9437 = vld [vmem:[%s9414 + $0xb0] sm:$0xff]
    %v9438 = vld [vmem:[%s9414 + $0xb8] sm:$0xff]
    %v9439 = vld [vmem:[%s9414 + $0xc0] sm:$0xff]
    %v9440 = vld [vmem:[%s9414 + $0xc8] sm:$0xff]
    %v9441 = vld [vmem:[%s9414 + $0xd0] sm:$0xff]
    %v9442 = vld [vmem:[%s9414 + $0xd8] sm:$0xff]
    %v9443 = vld [vmem:[%s9414 + $0xe0] sm:$0xff]
    %v9444 = vld [vmem:[%s9414 + $0xe8] sm:$0xff]
    %v9445 = vld [vmem:[%s9414 + $0xf0] sm:$0xff]
    %v9446 = vld [vmem:[%s9414 + $0xf8] sm:$0xff]
    %v9447 = vld [vmem:[%s9414 + $0x100] sm:$0xff]
    %v9448 = vld [vmem:[%s9414 + $0x108] sm:$0xff]
    %v9449 = vld [vmem:[%s9414 + $0x110] sm:$0xff]
    %v9450 = vld [vmem:[%s9414 + $0x118] sm:$0xff]
    %v9451 = vld [vmem:[%s9414 + $0x120] sm:$0xff]
    %v9452 = vld [vmem:[%s9414 + $0x128] sm:$0xff]
    %v9453 = vld [vmem:[%s9414 + $0x130] sm:$0xff]
    %v9454 = vld [vmem:[%s9414 + $0x138] sm:$0xff]
    %v9455 = vld [vmem:[%s9414 + $0x140] sm:$0xff]
    %v9456 = vld [vmem:[%s9414 + $0x148] sm:$0xff]
    %v9457 = vld [vmem:[%s9414 + $0x150] sm:$0xff]
    %v9458 = vld [vmem:[%s9414 + $0x158] sm:$0xff]
    %v9459 = vld [vmem:[%s9414 + $0x160] sm:$0xff]
    %v9460 = vld [vmem:[%s9414 + $0x168] sm:$0xff]
    %v9461 = vld [vmem:[%s9414 + $0x170] sm:$0xff]
    %v9462 = vld [vmem:[%s9414 + $0x178] sm:$0xff]
    %v9463 = vld [vmem:[%s9414 + $0x180] sm:$0xff]
    %v9464 = vld [vmem:[%s9414 + $0x188] sm:$0xff]
    %v9465 = vld [vmem:[%s9414 + $0x190] sm:$0xff]
    %v9466 = vld [vmem:[%s9414 + $0x198] sm:$0xff]
    %v9467 = vld [vmem:[%s9414 + $0x1a0] sm:$0xff]
    %v9468 = vld [vmem:[%s9414 + $0x1a8] sm:$0xff]
    %v9469 = vld [vmem:[%s9414 + $0x1b0] sm:$0xff]
    %v9470 = vld [vmem:[%s9414 + $0x1b8] sm:$0xff]
    %v9471 = vld [vmem:[%s9414 + $0x1c0] sm:$0xff]
    %v9472 = vld [vmem:[%s9414 + $0x1c8] sm:$0xff]
    %v9473 = vld [vmem:[%s9414 + $0x1d0] sm:$0xff]
    %v9474 = vld [vmem:[%s9414 + $0x1d8] sm:$0xff]
    %v9475 = vld [vmem:[%s9414 + $0x1e0] sm:$0xff]
    %v9476 = vld [vmem:[%s9414 + $0x1e8] sm:$0xff]
    %v9477 = vld [vmem:[%s9414 + $0x1f0] sm:$0xff]
    %v9478 = vld [vmem:[%s9414 + $0x1f8] sm:$0xff]
    %v9479 = vld [vmem:[%s9414 + $0x200] sm:$0xff]
    %v9480 = vld [vmem:[%s9414 + $0x208] sm:$0xff]
    %v9481 = vld [vmem:[%s9414 + $0x210] sm:$0xff]
    %v9482 = vld [vmem:[%s9414 + $0x218] sm:$0xff]
    %v9483 = vld [vmem:[%s9414 + $0x220] sm:$0xff]
    %v9484 = vld [vmem:[%s9414 + $0x228] sm:$0xff]
    %v9485 = vld [vmem:[%s9414 + $0x230] sm:$0xff]
    %v9486 = vld [vmem:[%s9414 + $0x238] sm:$0xff]
    %v9487 = vld [vmem:[%s9414 + $0x240] sm:$0xff]
    %v9488 = vld [vmem:[%s9414 + $0x248] sm:$0xff]
    %v9489 = vld [vmem:[%s9414 + $0x250] sm:$0xff]
    %v9490 = vld [vmem:[%s9414 + $0x258] sm:$0xff]
    %v9491 = vld [vmem:[%s9414 + $0x260] sm:$0xff]
    %v9492 = vld [vmem:[%s9414 + $0x268] sm:$0xff]
    %v9493 = vld [vmem:[%s9414 + $0x270] sm:$0xff]
    %v9494 = vld [vmem:[%s9414 + $0x278] sm:$0xff]
    %v9495 = vld [vmem:[%s9414 + $0x280] sm:$0xff]
    %v9496 = vld [vmem:[%s9414 + $0x288] sm:$0xff]
    %v9497 = vld [vmem:[%s9414 + $0x290] sm:$0xff]
    %v9498 = vld [vmem:[%s9414 + $0x298] sm:$0xff]
    %v9499 = vld [vmem:[%s9414 + $0x2a0] sm:$0xff]
    %v9500 = vld [vmem:[%s9414 + $0x2a8] sm:$0xff]
    %v9501 = vld [vmem:[%s9414 + $0x2b0] sm:$0xff]
    %v9502 = vld [vmem:[%s9414 + $0x2b8] sm:$0xff]
    %v9503 = vld [vmem:[%s9414 + $0x2c0] sm:$0xff]
    %v9504 = vld [vmem:[%s9414 + $0x2c8] sm:$0xff]
    %v9505 = vld [vmem:[%s9414 + $0x2d0] sm:$0xff]
    %v9506 = vld [vmem:[%s9414 + $0x2d8] sm:$0xff]
    %v9507 = vld [vmem:[%s9414 + $0x2e0] sm:$0xff]
    %v9508 = vld [vmem:[%s9414 + $0x2e8] sm:$0xff]
    %v9509 = vld [vmem:[%s9414 + $0x2f0] sm:$0xff]
    %v9510 = vld [vmem:[%s9414 + $0x2f8] sm:$0xff]
    %v9511 = vld [vmem:[%s9414 + $0x300] sm:$0xff]
    %v9512 = vld [vmem:[%s9414 + $0x308] sm:$0xff]
    %v9513 = vld [vmem:[%s9414 + $0x310] sm:$0xff]
    %v9514 = vld [vmem:[%s9414 + $0x318] sm:$0xff]
    %v9515 = vld [vmem:[%s9414 + $0x320] sm:$0xff]
    %v9516 = vld [vmem:[%s9414 + $0x328] sm:$0xff]
    %v9517 = vld [vmem:[%s9414 + $0x330] sm:$0xff]
    %v9518 = vld [vmem:[%s9414 + $0x338] sm:$0xff]
    %v9519 = vld [vmem:[%s9414 + $0x340] sm:$0xff]
    %v9520 = vld [vmem:[%s9414 + $0x348] sm:$0xff]
    %v9521 = vld [vmem:[%s9414 + $0x350] sm:$0xff]
    %v9522 = vld [vmem:[%s9414 + $0x358] sm:$0xff]
    %v9523 = vld [vmem:[%s9414 + $0x360] sm:$0xff]
    %v9524 = vld [vmem:[%s9414 + $0x368] sm:$0xff]
    %v9525 = vld [vmem:[%s9414 + $0x370] sm:$0xff]
    %v9526 = vld [vmem:[%s9414 + $0x378] sm:$0xff]
    %v9527 = vld [vmem:[%s9414 + $0x380] sm:$0xff]
    %v9528 = vld [vmem:[%s9414 + $0x388] sm:$0xff]
    %v9529 = vld [vmem:[%s9414 + $0x390] sm:$0xff]
    %v9530 = vld [vmem:[%s9414 + $0x398] sm:$0xff]
    %v9531 = vld [vmem:[%s9414 + $0x3a0] sm:$0xff]
    %v9532 = vld [vmem:[%s9414 + $0x3a8] sm:$0xff]
    %v9533 = vld [vmem:[%s9414 + $0x3b0] sm:$0xff]
    %v9534 = vld [vmem:[%s9414 + $0x3b8] sm:$0xff]
    %v9535 = vld [vmem:[%s9414 + $0x3c0] sm:$0xff]
    %v9536 = vld [vmem:[%s9414 + $0x3c8] sm:$0xff]
    %v9537 = vld [vmem:[%s9414 + $0x3d0] sm:$0xff]
    %v9538 = vld [vmem:[%s9414 + $0x3d8] sm:$0xff]
    %v9539 = vld [vmem:[%s9414 + $0x3e0] sm:$0xff]
    %v9540 = vld [vmem:[%s9414 + $0x3e8] sm:$0xff]
    %v9541 = vld [vmem:[%s9414 + $0x3f0] sm:$0xff]
    %v9542 = vld [vmem:[%s9414 + $0x3f8] sm:$0xff]
    %s9543 = scalar_lea.vmem [#allocation19], 6
    %v9544 = vld [vmem:[%s9543] sm:$0x3]
    %v9546 = vlaneseq
    %v9547 = vshrl.u32 %v9546, 7
    %v9548 = vsub.s32 0, %v9547
    %v9549 = vrot.slane %v9544, %v9548
    %v9550 = vlaneseq
    %v9551 = vshrl.u32 %v9550, 7
    %v9552 = vsub.s32 1, %v9551
    %v9553 = vrot.slane %v9544, %v9552
    %v9684 = vunpack.c.l.b16 %v9415
    %v9685 = vunpack.c.h.b16 %v9415
    %v9686 = vunpack.c.l.b16 %v9416
    %v9687 = vunpack.c.h.b16 %v9416
    %v9688 = vunpack.c.l.b16 %v9417
    %v9689 = vunpack.c.h.b16 %v9417
    %v9690 = vunpack.c.l.b16 %v9418
    %v9691 = vunpack.c.h.b16 %v9418
    %v9692 = vunpack.c.l.b16 %v9419
    %v9693 = vunpack.c.h.b16 %v9419
    %v9694 = vunpack.c.l.b16 %v9420
    %v9695 = vunpack.c.h.b16 %v9420
    %v9696 = vunpack.c.l.b16 %v9421
    %v9697 = vunpack.c.h.b16 %v9421
    %v9698 = vunpack.c.l.b16 %v9422
    %v9699 = vunpack.c.h.b16 %v9422
    %v9700 = vunpack.c.l.b16 %v9423
    %v9701 = vunpack.c.h.b16 %v9423
    %v9702 = vunpack.c.l.b16 %v9424
    %v9703 = vunpack.c.h.b16 %v9424
    %v9704 = vunpack.c.l.b16 %v9425
    %v9705 = vunpack.c.h.b16 %v9425
    %v9706 = vunpack.c.l.b16 %v9426
    %v9707 = vunpack.c.h.b16 %v9426
    %v9708 = vunpack.c.l.b16 %v9427
    %v9709 = vunpack.c.h.b16 %v9427
    %v9710 = vunpack.c.l.b16 %v9428
    %v9711 = vunpack.c.h.b16 %v9428
    %v9712 = vunpack.c.l.b16 %v9429
    %v9713 = vunpack.c.h.b16 %v9429
    %v9714 = vunpack.c.l.b16 %v9430
    %v9715 = vunpack.c.h.b16 %v9430
    %v9716 = vunpack.c.l.b16 %v9431
    %v9717 = vunpack.c.h.b16 %v9431
    %v9718 = vunpack.c.l.b16 %v9432
    %v9719 = vunpack.c.h.b16 %v9432
    %v9720 = vunpack.c.l.b16 %v9433
    %v9721 = vunpack.c.h.b16 %v9433
    %v9722 = vunpack.c.l.b16 %v9434
    %v9723 = vunpack.c.h.b16 %v9434
    %v9724 = vunpack.c.l.b16 %v9435
    %v9725 = vunpack.c.h.b16 %v9435
    %v9726 = vunpack.c.l.b16 %v9436
    %v9727 = vunpack.c.h.b16 %v9436
    %v9728 = vunpack.c.l.b16 %v9437
    %v9729 = vunpack.c.h.b16 %v9437
    %v9730 = vunpack.c.l.b16 %v9438
    %v9731 = vunpack.c.h.b16 %v9438
    %v9732 = vunpack.c.l.b16 %v9439
    %v9733 = vunpack.c.h.b16 %v9439
    %v9734 = vunpack.c.l.b16 %v9440
    %v9735 = vunpack.c.h.b16 %v9440
    %v9736 = vunpack.c.l.b16 %v9441
    %v9737 = vunpack.c.h.b16 %v9441
    %v9738 = vunpack.c.l.b16 %v9442
    %v9739 = vunpack.c.h.b16 %v9442
    %v9740 = vunpack.c.l.b16 %v9443
    %v9741 = vunpack.c.h.b16 %v9443
    %v9742 = vunpack.c.l.b16 %v9444
    %v9743 = vunpack.c.h.b16 %v9444
    %v9744 = vunpack.c.l.b16 %v9445
    %v9745 = vunpack.c.h.b16 %v9445
    %v9746 = vunpack.c.l.b16 %v9446
    %v9747 = vunpack.c.h.b16 %v9446
    %v9748 = vunpack.c.l.b16 %v9447
    %v9749 = vunpack.c.h.b16 %v9447
    %v9750 = vunpack.c.l.b16 %v9448
    %v9751 = vunpack.c.h.b16 %v9448
    %v9752 = vunpack.c.l.b16 %v9449
    %v9753 = vunpack.c.h.b16 %v9449
    %v9754 = vunpack.c.l.b16 %v9450
    %v9755 = vunpack.c.h.b16 %v9450
    %v9756 = vunpack.c.l.b16 %v9451
    %v9757 = vunpack.c.h.b16 %v9451
    %v9758 = vunpack.c.l.b16 %v9452
    %v9759 = vunpack.c.h.b16 %v9452
    %v9760 = vunpack.c.l.b16 %v9453
    %v9761 = vunpack.c.h.b16 %v9453
    %v9762 = vunpack.c.l.b16 %v9454
    %v9763 = vunpack.c.h.b16 %v9454
    %v9764 = vunpack.c.l.b16 %v9455
    %v9765 = vunpack.c.h.b16 %v9455
    %v9766 = vunpack.c.l.b16 %v9456
    %v9767 = vunpack.c.h.b16 %v9456
    %v9768 = vunpack.c.l.b16 %v9457
    %v9769 = vunpack.c.h.b16 %v9457
    %v9770 = vunpack.c.l.b16 %v9458
    %v9771 = vunpack.c.h.b16 %v9458
    %v9772 = vunpack.c.l.b16 %v9459
    %v9773 = vunpack.c.h.b16 %v9459
    %v9774 = vunpack.c.l.b16 %v9460
    %v9775 = vunpack.c.h.b16 %v9460
    %v9776 = vunpack.c.l.b16 %v9461
    %v9777 = vunpack.c.h.b16 %v9461
    %v9778 = vunpack.c.l.b16 %v9462
    %v9779 = vunpack.c.h.b16 %v9462
    %v9780 = vunpack.c.l.b16 %v9463
    %v9781 = vunpack.c.h.b16 %v9463
    %v9782 = vunpack.c.l.b16 %v9464
    %v9783 = vunpack.c.h.b16 %v9464
    %v9784 = vunpack.c.l.b16 %v9465
    %v9785 = vunpack.c.h.b16 %v9465
    %v9786 = vunpack.c.l.b16 %v9466
    %v9787 = vunpack.c.h.b16 %v9466
    %v9788 = vunpack.c.l.b16 %v9467
    %v9789 = vunpack.c.h.b16 %v9467
    %v9790 = vunpack.c.l.b16 %v9468
    %v9791 = vunpack.c.h.b16 %v9468
    %v9792 = vunpack.c.l.b16 %v9469
    %v9793 = vunpack.c.h.b16 %v9469
    %v9794 = vunpack.c.l.b16 %v9470
    %v9795 = vunpack.c.h.b16 %v9470
    %v9796 = vunpack.c.l.b16 %v9471
    %v9797 = vunpack.c.h.b16 %v9471
    %v9798 = vunpack.c.l.b16 %v9472
    %v9799 = vunpack.c.h.b16 %v9472
    %v9800 = vunpack.c.l.b16 %v9473
    %v9801 = vunpack.c.h.b16 %v9473
    %v9802 = vunpack.c.l.b16 %v9474
    %v9803 = vunpack.c.h.b16 %v9474
    %v9804 = vunpack.c.l.b16 %v9475
    %v9805 = vunpack.c.h.b16 %v9475
    %v9806 = vunpack.c.l.b16 %v9476
    %v9807 = vunpack.c.h.b16 %v9476
    %v9808 = vunpack.c.l.b16 %v9477
    %v9809 = vunpack.c.h.b16 %v9477
    %v9810 = vunpack.c.l.b16 %v9478
    %v9811 = vunpack.c.h.b16 %v9478
    %v9812 = vunpack.c.l.b16 %v9479
    %v9813 = vunpack.c.h.b16 %v9479
    %v9814 = vunpack.c.l.b16 %v9480
    %v9815 = vunpack.c.h.b16 %v9480
    %v9816 = vunpack.c.l.b16 %v9481
    %v9817 = vunpack.c.h.b16 %v9481
    %v9818 = vunpack.c.l.b16 %v9482
    %v9819 = vunpack.c.h.b16 %v9482
    %v9820 = vunpack.c.l.b16 %v9483
    %v9821 = vunpack.c.h.b16 %v9483
    %v9822 = vunpack.c.l.b16 %v9484
    %v9823 = vunpack.c.h.b16 %v9484
    %v9824 = vunpack.c.l.b16 %v9485
    %v9825 = vunpack.c.h.b16 %v9485
    %v9826 = vunpack.c.l.b16 %v9486
    %v9827 = vunpack.c.h.b16 %v9486
    %v9828 = vunpack.c.l.b16 %v9487
    %v9829 = vunpack.c.h.b16 %v9487
    %v9830 = vunpack.c.l.b16 %v9488
    %v9831 = vunpack.c.h.b16 %v9488
    %v9832 = vunpack.c.l.b16 %v9489
    %v9833 = vunpack.c.h.b16 %v9489
    %v9834 = vunpack.c.l.b16 %v9490
    %v9835 = vunpack.c.h.b16 %v9490
    %v9836 = vunpack.c.l.b16 %v9491
    %v9837 = vunpack.c.h.b16 %v9491
    %v9838 = vunpack.c.l.b16 %v9492
    %v9839 = vunpack.c.h.b16 %v9492
    %v9840 = vunpack.c.l.b16 %v9493
    %v9841 = vunpack.c.h.b16 %v9493
    %v9842 = vunpack.c.l.b16 %v9494
    %v9843 = vunpack.c.h.b16 %v9494
    %v9844 = vunpack.c.l.b16 %v9495
    %v9845 = vunpack.c.h.b16 %v9495
    %v9846 = vunpack.c.l.b16 %v9496
    %v9847 = vunpack.c.h.b16 %v9496
    %v9848 = vunpack.c.l.b16 %v9497
    %v9849 = vunpack.c.h.b16 %v9497
    %v9850 = vunpack.c.l.b16 %v9498
    %v9851 = vunpack.c.h.b16 %v9498
    %v9852 = vunpack.c.l.b16 %v9499
    %v9853 = vunpack.c.h.b16 %v9499
    %v9854 = vunpack.c.l.b16 %v9500
    %v9855 = vunpack.c.h.b16 %v9500
    %v9856 = vunpack.c.l.b16 %v9501
    %v9857 = vunpack.c.h.b16 %v9501
    %v9858 = vunpack.c.l.b16 %v9502
    %v9859 = vunpack.c.h.b16 %v9502
    %v9860 = vunpack.c.l.b16 %v9503
    %v9861 = vunpack.c.h.b16 %v9503
    %v9862 = vunpack.c.l.b16 %v9504
    %v9863 = vunpack.c.h.b16 %v9504
    %v9864 = vunpack.c.l.b16 %v9505
    %v9865 = vunpack.c.h.b16 %v9505
    %v9866 = vunpack.c.l.b16 %v9506
    %v9867 = vunpack.c.h.b16 %v9506
    %v9868 = vunpack.c.l.b16 %v9507
    %v9869 = vunpack.c.h.b16 %v9507
    %v9870 = vunpack.c.l.b16 %v9508
    %v9871 = vunpack.c.h.b16 %v9508
    %v9872 = vunpack.c.l.b16 %v9509
    %v9873 = vunpack.c.h.b16 %v9509
    %v9874 = vunpack.c.l.b16 %v9510
    %v9875 = vunpack.c.h.b16 %v9510
    %v9876 = vunpack.c.l.b16 %v9511
    %v9877 = vunpack.c.h.b16 %v9511
    %v9878 = vunpack.c.l.b16 %v9512
    %v9879 = vunpack.c.h.b16 %v9512
    %v9880 = vunpack.c.l.b16 %v9513
    %v9881 = vunpack.c.h.b16 %v9513
    %v9882 = vunpack.c.l.b16 %v9514
    %v9883 = vunpack.c.h.b16 %v9514
    %v9884 = vunpack.c.l.b16 %v9515
    %v9885 = vunpack.c.h.b16 %v9515
    %v9886 = vunpack.c.l.b16 %v9516
    %v9887 = vunpack.c.h.b16 %v9516
    %v9888 = vunpack.c.l.b16 %v9517
    %v9889 = vunpack.c.h.b16 %v9517
    %v9890 = vunpack.c.l.b16 %v9518
    %v9891 = vunpack.c.h.b16 %v9518
    %v9892 = vunpack.c.l.b16 %v9519
    %v9893 = vunpack.c.h.b16 %v9519
    %v9894 = vunpack.c.l.b16 %v9520
    %v9895 = vunpack.c.h.b16 %v9520
    %v9896 = vunpack.c.l.b16 %v9521
    %v9897 = vunpack.c.h.b16 %v9521
    %v9898 = vunpack.c.l.b16 %v9522
    %v9899 = vunpack.c.h.b16 %v9522
    %v9900 = vunpack.c.l.b16 %v9523
    %v9901 = vunpack.c.h.b16 %v9523
    %v9902 = vunpack.c.l.b16 %v9524
    %v9903 = vunpack.c.h.b16 %v9524
    %v9904 = vunpack.c.l.b16 %v9525
    %v9905 = vunpack.c.h.b16 %v9525
    %v9906 = vunpack.c.l.b16 %v9526
    %v9907 = vunpack.c.h.b16 %v9526
    %v9908 = vunpack.c.l.b16 %v9527
    %v9909 = vunpack.c.h.b16 %v9527
    %v9910 = vunpack.c.l.b16 %v9528
    %v9911 = vunpack.c.h.b16 %v9528
    %v9912 = vunpack.c.l.b16 %v9529
    %v9913 = vunpack.c.h.b16 %v9529
    %v9914 = vunpack.c.l.b16 %v9530
    %v9915 = vunpack.c.h.b16 %v9530
    %v9916 = vunpack.c.l.b16 %v9531
    %v9917 = vunpack.c.h.b16 %v9531
    %v9918 = vunpack.c.l.b16 %v9532
    %v9919 = vunpack.c.h.b16 %v9532
    %v9920 = vunpack.c.l.b16 %v9533
    %v9921 = vunpack.c.h.b16 %v9533
    %v9922 = vunpack.c.l.b16 %v9534
    %v9923 = vunpack.c.h.b16 %v9534
    %v9924 = vunpack.c.l.b16 %v9535
    %v9925 = vunpack.c.h.b16 %v9535
    %v9926 = vunpack.c.l.b16 %v9536
    %v9927 = vunpack.c.h.b16 %v9536
    %v9928 = vunpack.c.l.b16 %v9537
    %v9929 = vunpack.c.h.b16 %v9537
    %v9930 = vunpack.c.l.b16 %v9538
    %v9931 = vunpack.c.h.b16 %v9538
    %v9932 = vunpack.c.l.b16 %v9539
    %v9933 = vunpack.c.h.b16 %v9539
    %v9934 = vunpack.c.l.b16 %v9540
    %v9935 = vunpack.c.h.b16 %v9540
    %v9936 = vunpack.c.l.b16 %v9541
    %v9937 = vunpack.c.h.b16 %v9541
    %v9938 = vunpack.c.l.b16 %v9542
    %v9939 = vunpack.c.h.b16 %v9542
    %v9940 = vpack.c.b16 %v9686, %v9684
    %v9941 = vpack.c.b16 %v9687, %v9685
    %v9942 = vpack.c.b16 %v9690, %v9688
    %v9943 = vpack.c.b16 %v9691, %v9689
    %v9944 = vpack.c.b16 %v9694, %v9692
    %v9945 = vpack.c.b16 %v9695, %v9693
    %v9946 = vpack.c.b16 %v9698, %v9696
    %v9947 = vpack.c.b16 %v9699, %v9697
    %v9948 = vpack.c.b16 %v9702, %v9700
    %v9949 = vpack.c.b16 %v9703, %v9701
    %v9950 = vpack.c.b16 %v9706, %v9704
    %v9951 = vpack.c.b16 %v9707, %v9705
    %v9952 = vpack.c.b16 %v9710, %v9708
    %v9953 = vpack.c.b16 %v9711, %v9709
    %v9954 = vpack.c.b16 %v9714, %v9712
    %v9955 = vpack.c.b16 %v9715, %v9713
    %v9956 = vpack.c.b16 %v9718, %v9716
    %v9957 = vpack.c.b16 %v9719, %v9717
    %v9958 = vpack.c.b16 %v9722, %v9720
    %v9959 = vpack.c.b16 %v9723, %v9721
    %v9960 = vpack.c.b16 %v9726, %v9724
    %v9961 = vpack.c.b16 %v9727, %v9725
    %v9962 = vpack.c.b16 %v9730, %v9728
    %v9963 = vpack.c.b16 %v9731, %v9729
    %v9964 = vpack.c.b16 %v9734, %v9732
    %v9965 = vpack.c.b16 %v9735, %v9733
    %v9966 = vpack.c.b16 %v9738, %v9736
    %v9967 = vpack.c.b16 %v9739, %v9737
    %v9968 = vpack.c.b16 %v9742, %v9740
    %v9969 = vpack.c.b16 %v9743, %v9741
    %v9970 = vpack.c.b16 %v9746, %v9744
    %v9971 = vpack.c.b16 %v9747, %v9745
    %v9972 = vpack.c.b16 %v9750, %v9748
    %v9973 = vpack.c.b16 %v9751, %v9749
    %v9974 = vpack.c.b16 %v9754, %v9752
    %v9975 = vpack.c.b16 %v9755, %v9753
    %v9976 = vpack.c.b16 %v9758, %v9756
    %v9977 = vpack.c.b16 %v9759, %v9757
    %v9978 = vpack.c.b16 %v9762, %v9760
    %v9979 = vpack.c.b16 %v9763, %v9761
    %v9980 = vpack.c.b16 %v9766, %v9764
    %v9981 = vpack.c.b16 %v9767, %v9765
    %v9982 = vpack.c.b16 %v9770, %v9768
    %v9983 = vpack.c.b16 %v9771, %v9769
    %v9984 = vpack.c.b16 %v9774, %v9772
    %v9985 = vpack.c.b16 %v9775, %v9773
    %v9986 = vpack.c.b16 %v9778, %v9776
    %v9987 = vpack.c.b16 %v9779, %v9777
    %v9988 = vpack.c.b16 %v9782, %v9780
    %v9989 = vpack.c.b16 %v9783, %v9781
    %v9990 = vpack.c.b16 %v9786, %v9784
    %v9991 = vpack.c.b16 %v9787, %v9785
    %v9992 = vpack.c.b16 %v9790, %v9788
    %v9993 = vpack.c.b16 %v9791, %v9789
    %v9994 = vpack.c.b16 %v9794, %v9792
    %v9995 = vpack.c.b16 %v9795, %v9793
    %v9996 = vpack.c.b16 %v9798, %v9796
    %v9997 = vpack.c.b16 %v9799, %v9797
    %v9998 = vpack.c.b16 %v9802, %v9800
    %v9999 = vpack.c.b16 %v9803, %v9801
    %v10000 = vpack.c.b16 %v9806, %v9804
    %v10001 = vpack.c.b16 %v9807, %v9805
    %v10002 = vpack.c.b16 %v9810, %v9808
    %v10003 = vpack.c.b16 %v9811, %v9809
    %v10004 = vpack.c.b16 %v9814, %v9812
    %v10005 = vpack.c.b16 %v9815, %v9813
    %v10006 = vpack.c.b16 %v9818, %v9816
    %v10007 = vpack.c.b16 %v9819, %v9817
    %v10008 = vpack.c.b16 %v9822, %v9820
    %v10009 = vpack.c.b16 %v9823, %v9821
    %v10010 = vpack.c.b16 %v9826, %v9824
    %v10011 = vpack.c.b16 %v9827, %v9825
    %v10012 = vpack.c.b16 %v9830, %v9828
    %v10013 = vpack.c.b16 %v9831, %v9829
    %v10014 = vpack.c.b16 %v9834, %v9832
    %v10015 = vpack.c.b16 %v9835, %v9833
    %v10016 = vpack.c.b16 %v9838, %v9836
    %v10017 = vpack.c.b16 %v9839, %v9837
    %v10018 = vpack.c.b16 %v9842, %v9840
    %v10019 = vpack.c.b16 %v9843, %v9841
    %v10020 = vpack.c.b16 %v9846, %v9844
    %v10021 = vpack.c.b16 %v9847, %v9845
    %v10022 = vpack.c.b16 %v9850, %v9848
    %v10023 = vpack.c.b16 %v9851, %v9849
    %v10024 = vpack.c.b16 %v9854, %v9852
    %v10025 = vpack.c.b16 %v9855, %v9853
    %v10026 = vpack.c.b16 %v9858, %v9856
    %v10027 = vpack.c.b16 %v9859, %v9857
    %v10028 = vpack.c.b16 %v9862, %v9860
    %v10029 = vpack.c.b16 %v9863, %v9861
    %v10030 = vpack.c.b16 %v9866, %v9864
    %v10031 = vpack.c.b16 %v9867, %v9865
    %v10032 = vpack.c.b16 %v9870, %v9868
    %v10033 = vpack.c.b16 %v9871, %v9869
    %v10034 = vpack.c.b16 %v9874, %v9872
    %v10035 = vpack.c.b16 %v9875, %v9873
    %v10036 = vpack.c.b16 %v9878, %v9876
    %v10037 = vpack.c.b16 %v9879, %v9877
    %v10038 = vpack.c.b16 %v9882, %v9880
    %v10039 = vpack.c.b16 %v9883, %v9881
    %v10040 = vpack.c.b16 %v9886, %v9884
    %v10041 = vpack.c.b16 %v9887, %v9885
    %v10042 = vpack.c.b16 %v9890, %v9888
    %v10043 = vpack.c.b16 %v9891, %v9889
    %v10044 = vpack.c.b16 %v9894, %v9892
    %v10045 = vpack.c.b16 %v9895, %v9893
    %v10046 = vpack.c.b16 %v9898, %v9896
    %v10047 = vpack.c.b16 %v9899, %v9897
    %v10048 = vpack.c.b16 %v9902, %v9900
    %v10049 = vpack.c.b16 %v9903, %v9901
    %v10050 = vpack.c.b16 %v9906, %v9904
    %v10051 = vpack.c.b16 %v9907, %v9905
    %v10052 = vpack.c.b16 %v9910, %v9908
    %v10053 = vpack.c.b16 %v9911, %v9909
    %v10054 = vpack.c.b16 %v9914, %v9912
    %v10055 = vpack.c.b16 %v9915, %v9913
    %v10056 = vpack.c.b16 %v9918, %v9916
    %v10057 = vpack.c.b16 %v9919, %v9917
    %v10058 = vpack.c.b16 %v9922, %v9920
    %v10059 = vpack.c.b16 %v9923, %v9921
    %v10060 = vpack.c.b16 %v9926, %v9924
    %v10061 = vpack.c.b16 %v9927, %v9925
    %v10062 = vpack.c.b16 %v9930, %v9928
    %v10063 = vpack.c.b16 %v9931, %v9929
    %v10064 = vpack.c.b16 %v9934, %v9932
    %v10065 = vpack.c.b16 %v9935, %v9933
    %v10066 = vpack.c.b16 %v9938, %v9936
    %v10067 = vpack.c.b16 %v9939, %v9937
    %10196 = vmatprep.subr.bf16.mxu0 %v9941
    %10197 = vmatpush1.bf16.msra.mxu0 %v9940
    %10198 = vmatprep.subr.bf16.mxu0 %v9943
    %10199 = vmatpush1.bf16.msra.mxu0 %v9942
    %10200 = vmatprep.subr.bf16.mxu0 %v9945
    %10201 = vmatpush1.bf16.msra.mxu0 %v9944
    %10202 = vmatprep.subr.bf16.mxu0 %v9947
    %10203 = vmatpush1.bf16.msra.mxu0 %v9946
    %10204 = vmatprep.subr.bf16.mxu0 %v9949
    %10205 = vmatpush1.bf16.msra.mxu0 %v9948
    %10206 = vmatprep.subr.bf16.mxu0 %v9951
    %10207 = vmatpush1.bf16.msra.mxu0 %v9950
    %10208 = vmatprep.subr.bf16.mxu0 %v9953
    %10209 = vmatpush1.bf16.msra.mxu0 %v9952
    %10210 = vmatprep.subr.bf16.mxu0 %v9955
    %10211 = vmatpush1.bf16.msra.mxu0 %v9954
    %10212 = vmatprep.subr.bf16.mxu0 %v9957
    %10213 = vmatpush1.bf16.msra.mxu0 %v9956
    %10214 = vmatprep.subr.bf16.mxu0 %v9959
    %10215 = vmatpush1.bf16.msra.mxu0 %v9958
    %10216 = vmatprep.subr.bf16.mxu0 %v9961
    %10217 = vmatpush1.bf16.msra.mxu0 %v9960
    %10218 = vmatprep.subr.bf16.mxu0 %v9963
    %10219 = vmatpush1.bf16.msra.mxu0 %v9962
    %10220 = vmatprep.subr.bf16.mxu0 %v9965
    %10221 = vmatpush1.bf16.msra.mxu0 %v9964
    %10222 = vmatprep.subr.bf16.mxu0 %v9967
    %10223 = vmatpush1.bf16.msra.mxu0 %v9966
    %10224 = vmatprep.subr.bf16.mxu0 %v9969
    %10225 = vmatpush1.bf16.msra.mxu0 %v9968
    %10226 = vmatprep.subr.bf16.mxu0 %v9971
    %10227 = vmatpush1.bf16.msra.mxu0 %v9970
    %10228 = vmatprep.mubr.bf16.mxu0 %v9407
    %10229 = vmatmul.mubr.bf16.gmra.mrb[0].mxu0 %v9406
    %v10230 = vpop.f32.mrb[0].mxu0
    %v10231 = vadd.f32 %v9549, %v10230
    %v10232 = vpop.f32.mrb[0].mxu0
    %v10233 = vadd.f32 %v9553, %v10232
    %v10234 = vpop.f32.mrb[0].mxu0
    %v10235 = vpop.f32.mrb[0].mxu0
    %10236 = vdwg.mxu0
    %10237 = vmatprep.subr.bf16.mxu0 %v9973
    %10238 = vmatpush1.bf16.msra.mxu0 %v9972
    %10239 = vmatprep.subr.bf16.mxu0 %v9975
    %10240 = vmatpush1.bf16.msra.mxu0 %v9974
    %10241 = vmatprep.subr.bf16.mxu0 %v9977
    %10242 = vmatpush1.bf16.msra.mxu0 %v9976
    %10243 = vmatprep.subr.bf16.mxu0 %v9979
    %10244 = vmatpush1.bf16.msra.mxu0 %v9978
    %10245 = vmatprep.subr.bf16.mxu0 %v9981
    %10246 = vmatpush1.bf16.msra.mxu0 %v9980
    %10247 = vmatprep.subr.bf16.mxu0 %v9983
    %10248 = vmatpush1.bf16.msra.mxu0 %v9982
    %10249 = vmatprep.subr.bf16.mxu0 %v9985
    %10250 = vmatpush1.bf16.msra.mxu0 %v9984
    %10251 = vmatprep.subr.bf16.mxu0 %v9987
    %10252 = vmatpush1.bf16.msra.mxu0 %v9986
    %10253 = vmatprep.subr.bf16.mxu0 %v9989
    %10254 = vmatpush1.bf16.msra.mxu0 %v9988
    %10255 = vmatprep.subr.bf16.mxu0 %v9991
    %10256 = vmatpush1.bf16.msra.mxu0 %v9990
    %10257 = vmatprep.subr.bf16.mxu0 %v9993
    %10258 = vmatpush1.bf16.msra.mxu0 %v9992
    %10259 = vmatprep.subr.bf16.mxu0 %v9995
    %10260 = vmatpush1.bf16.msra.mxu0 %v9994
    %10261 = vmatprep.subr.bf16.mxu0 %v9997
    %10262 = vmatpush1.bf16.msra.mxu0 %v9996
    %10263 = vmatprep.subr.bf16.mxu0 %v9999
    %10264 = vmatpush1.bf16.msra.mxu0 %v9998
    %10265 = vmatprep.subr.bf16.mxu0 %v10001
    %10266 = vmatpush1.bf16.msra.mxu0 %v10000
    %10267 = vmatprep.subr.bf16.mxu0 %v10003
    %10268 = vmatpush1.bf16.msra.mxu0 %v10002
    %10269 = vmatprep.mubr.bf16.mxu0 %v9409
    %10270 = vmatmul.mubr.bf16.gmra.mrb[0].mxu0 %v9408
    %v10271 = vpop.f32.mrb[0].mxu0
    %v10272 = vadd.f32 %v10231, %v10271
    %v10273 = vpop.f32.mrb[0].mxu0
    %v10274 = vadd.f32 %v10233, %v10273
    %v10275 = vpop.f32.mrb[0].mxu0
    %v10276 = vpop.f32.mrb[0].mxu0
    %10277 = vdwg.mxu0
    %10278 = vmatprep.subr.bf16.mxu0 %v10005
    %10279 = vmatpush1.bf16.msra.mxu0 %v10004
    %10280 = vmatprep.subr.bf16.mxu0 %v10007
    %10281 = vmatpush1.bf16.msra.mxu0 %v10006
    %10282 = vmatprep.subr.bf16.mxu0 %v10009
    %10283 = vmatpush1.bf16.msra.mxu0 %v10008
    %10284 = vmatprep.subr.bf16.mxu0 %v10011
    %10285 = vmatpush1.bf16.msra.mxu0 %v10010
    %10286 = vmatprep.subr.bf16.mxu0 %v10013
    %10287 = vmatpush1.bf16.msra.mxu0 %v10012
    %10288 = vmatprep.subr.bf16.mxu0 %v10015
    %10289 = vmatpush1.bf16.msra.mxu0 %v10014
    %10290 = vmatprep.subr.bf16.mxu0 %v10017
    %10291 = vmatpush1.bf16.msra.mxu0 %v10016
    %10292 = vmatprep.subr.bf16.mxu0 %v10019
    %10293 = vmatpush1.bf16.msra.mxu0 %v10018
    %10294 = vmatprep.subr.bf16.mxu0 %v10021
    %10295 = vmatpush1.bf16.msra.mxu0 %v10020
    %10296 = vmatprep.subr.bf16.mxu0 %v10023
    %10297 = vmatpush1.bf16.msra.mxu0 %v10022
    %10298 = vmatprep.subr.bf16.mxu0 %v10025
    %10299 = vmatpush1.bf16.msra.mxu0 %v10024
    %10300 = vmatprep.subr.bf16.mxu0 %v10027
    %10301 = vmatpush1.bf16.msra.mxu0 %v10026
    %10302 = vmatprep.subr.bf16.mxu0 %v10029
    %10303 = vmatpush1.bf16.msra.mxu0 %v10028
    %10304 = vmatprep.subr.bf16.mxu0 %v10031
    %10305 = vmatpush1.bf16.msra.mxu0 %v10030
    %10306 = vmatprep.subr.bf16.mxu0 %v10033
    %10307 = vmatpush1.bf16.msra.mxu0 %v10032
    %10308 = vmatprep.subr.bf16.mxu0 %v10035
    %10309 = vmatpush1.bf16.msra.mxu0 %v10034
    %10310 = vmatprep.mubr.bf16.mxu0 %v9411
    %10311 = vmatmul.mubr.bf16.gmra.mrb[0].mxu0 %v9410
    %v10312 = vpop.f32.mrb[0].mxu0
    %v10313 = vadd.f32 %v10272, %v10312
    %v10314 = vpop.f32.mrb[0].mxu0
    %v10315 = vadd.f32 %v10274, %v10314
    %v10316 = vpop.f32.mrb[0].mxu0
    %v10317 = vpop.f32.mrb[0].mxu0
    %10318 = vdwg.mxu0
    %10319 = vmatprep.subr.bf16.mxu0 %v10037
    %10320 = vmatpush1.bf16.msra.mxu0 %v10036
    %10321 = vmatprep.subr.bf16.mxu0 %v10039
    %10322 = vmatpush1.bf16.msra.mxu0 %v10038
    %10323 = vmatprep.subr.bf16.mxu0 %v10041
    %10324 = vmatpush1.bf16.msra.mxu0 %v10040
    %10325 = vmatprep.subr.bf16.mxu0 %v10043
    %10326 = vmatpush1.bf16.msra.mxu0 %v10042
    %10327 = vmatprep.subr.bf16.mxu0 %v10045
    %10328 = vmatpush1.bf16.msra.mxu0 %v10044
    %10329 = vmatprep.subr.bf16.mxu0 %v10047
    %10330 = vmatpush1.bf16.msra.mxu0 %v10046
    %10331 = vmatprep.subr.bf16.mxu0 %v10049
    %10332 = vmatpush1.bf16.msra.mxu0 %v10048
    %10333 = vmatprep.subr.bf16.mxu0 %v10051
    %10334 = vmatpush1.bf16.msra.mxu0 %v10050
    %10335 = vmatprep.subr.bf16.mxu0 %v10053
    %10336 = vmatpush1.bf16.msra.mxu0 %v10052
    %10337 = vmatprep.subr.bf16.mxu0 %v10055
    %10338 = vmatpush1.bf16.msra.mxu0 %v10054
    %10339 = vmatprep.subr.bf16.mxu0 %v10057
    %10340 = vmatpush1.bf16.msra.mxu0 %v10056
    %10341 = vmatprep.subr.bf16.mxu0 %v10059
    %10342 = vmatpush1.bf16.msra.mxu0 %v10058
    %10343 = vmatprep.subr.bf16.mxu0 %v10061
    %10344 = vmatpush1.bf16.msra.mxu0 %v10060
    %10345 = vmatprep.subr.bf16.mxu0 %v10063
    %10346 = vmatpush1.bf16.msra.mxu0 %v10062
    %10347 = vmatprep.subr.bf16.mxu0 %v10065
    %10348 = vmatpush1.bf16.msra.mxu0 %v10064
    %10349 = vmatprep.subr.bf16.mxu0 %v10067
    %10350 = vmatpush1.bf16.msra.mxu0 %v10066
    %10351 = vmatprep.mubr.bf16.mxu0 %v9413
    %10352 = vmatmul.mubr.bf16.gmra.mrb[0].mxu0 %v9412
    %v10353 = vpop.f32.mrb[0].mxu0
    %v10354 = vadd.f32 %v10313, %v10353
    %v10355 = vpop.f32.mrb[0].mxu0
    %v10356 = vadd.f32 %v10315, %v10355
    %v10357 = vpop.f32.mrb[0].mxu0
    %v10358 = vpop.f32.mrb[0].mxu0
    %10359 = vdwg.mxu0
    %v10360 = vadd.f32 %v8418, %v10354
    %v10361 = vadd.f32 %v8419, %v10356
    %s10362 = scalar_lea.vmem [#allocation20], 6
    %v10363 = vld [vmem:[%s10362] sm:$0x3]
    %s10364 = scalar_lea.vmem [#allocation22], 6
    %v10365 = vld [vmem:[%s10364] sm:$0x3]
    %v10366 = vadd.f32 %v10360, %v10361
    %10367 = vadd.xlane.f32.xlu0 %v10366
    %v10368 = vpop.xlane.xlu0 %10367
    %v10369 = vmul.f32 %v10368, %v784
    %v10370 = vsub.f32 %v10360, %v10369
    %v10371 = vsub.f32 %v10361, %v10369
    %v10372 = vmul.f32 %v10370, %v10370
    %v10373 = vmul.f32 %v10371, %v10371
    %v10374 = vadd.f32 %v10372, %v10373
    %10375 = vadd.xlane.f32.xlu0 %v10374
    %v10376 = vpop.xlane.xlu0 %10375
    %v10377 = vmul.f32 %v10376, %v784
    %v10378 = vadd.f32 %v10377, 1e-05
    %v10379 = vrsqrt.pop %v10378
    %v10380 = vmul.f32 %v10370, %v10379
    %v10381 = vmul.f32 %v10371, %v10379
    %v10383 = vlaneseq
    %v10384 = vshrl.u32 %v10383, 7
    %v10385 = vsub.s32 0, %v10384
    %v10386 = vrot.slane %v10363, %v10385
    %v10387 = vlaneseq
    %v10388 = vshrl.u32 %v10387, 7
    %v10389 = vsub.s32 1, %v10388
    %v10390 = vrot.slane %v10363, %v10389
    %v10393 = vmul.f32 %v10380, %v10386
    %v10394 = vmul.f32 %v10381, %v10390
    %v10396 = vlaneseq
    %v10397 = vshrl.u32 %v10396, 7
    %v10398 = vsub.s32 0, %v10397
    %v10399 = vrot.slane %v10365, %v10398
    %v10400 = vlaneseq
    %v10401 = vshrl.u32 %v10400, 7
    %v10402 = vsub.s32 1, %v10401
    %v10403 = vrot.slane %v10365, %v10402
    %v10406 = vadd.f32 %v10393, %v10399
    %v10407 = vadd.f32 %v10394, %v10403
    %v10408 = vld [vmem:[#allocation23] sm:$0xff]
    %v10409 = vld [vmem:[#allocation23 + $0x8] sm:$0xff]
    %v10410 = vld [vmem:[#allocation23 + $0x10] sm:$0xff]
    %v10411 = vld [vmem:[#allocation23 + $0x18] sm:$0xff]
    %v10412 = vld [vmem:[#allocation23 + $0x20] sm:$0xff]
    %v10413 = vld [vmem:[#allocation23 + $0x28] sm:$0xff]
    %v10414 = vld [vmem:[#allocation23 + $0x30] sm:$0xff]
    %v10415 = vld [vmem:[#allocation23 + $0x38] sm:$0xff]
    %v10416 = vld [vmem:[#allocation23 + $0x40] sm:$0xff]
    %v10417 = vld [vmem:[#allocation23 + $0x48] sm:$0xff]
    %v10418 = vld [vmem:[#allocation23 + $0x50] sm:$0xff]
    %v10419 = vld [vmem:[#allocation23 + $0x58] sm:$0xff]
    %v10420 = vld [vmem:[#allocation23 + $0x60] sm:$0xff]
    %v10421 = vld [vmem:[#allocation23 + $0x68] sm:$0xff]
    %v10422 = vld [vmem:[#allocation23 + $0x70] sm:$0xff]
    %v10423 = vld [vmem:[#allocation23 + $0x78] sm:$0xff]
    %v10424 = vld [vmem:[#allocation23 + $0x80] sm:$0xff]
    %v10425 = vld [vmem:[#allocation23 + $0x88] sm:$0xff]
    %v10426 = vld [vmem:[#allocation23 + $0x90] sm:$0xff]
    %v10427 = vld [vmem:[#allocation23 + $0x98] sm:$0xff]
    %v10428 = vld [vmem:[#allocation23 + $0xa0] sm:$0xff]
    %v10429 = vld [vmem:[#allocation23 + $0xa8] sm:$0xff]
    %v10430 = vld [vmem:[#allocation23 + $0xb0] sm:$0xff]
    %v10431 = vld [vmem:[#allocation23 + $0xb8] sm:$0xff]
    %v10432 = vld [vmem:[#allocation23 + $0xc0] sm:$0xff]
    %v10433 = vld [vmem:[#allocation23 + $0xc8] sm:$0xff]
    %v10434 = vld [vmem:[#allocation23 + $0xd0] sm:$0xff]
    %v10435 = vld [vmem:[#allocation23 + $0xd8] sm:$0xff]
    %v10436 = vld [vmem:[#allocation23 + $0xe0] sm:$0xff]
    %v10437 = vld [vmem:[#allocation23 + $0xe8] sm:$0xff]
    %v10438 = vld [vmem:[#allocation23 + $0xf0] sm:$0xff]
    %v10439 = vld [vmem:[#allocation23 + $0xf8] sm:$0xff]
    %v10440 = vld [vmem:[#allocation25] sm:$0x1]
    %v10442 = vlaneseq
    %v10443 = vshrl.u32 %v10442, 7
    %v10444 = vsub.s32 0, %v10443
    %v10445 = vrot.slane %v10440, %v10444
    %10447 = vmatprep.subr.mxu0 0.0
    %10448 = vmatpush1.msra.mxu0 %v10408
    %10449 = vmatprep.subr.mxu0 0.0
    %10450 = vmatpush1.msra.mxu0 %v10409
    %10451 = vmatprep.subr.mxu0 0.0
    %10452 = vmatpush1.msra.mxu0 %v10410
    %10453 = vmatprep.subr.mxu0 0.0
    %10454 = vmatpush1.msra.mxu0 %v10411
    %10455 = vmatprep.subr.mxu0 0.0
    %10456 = vmatpush1.msra.mxu0 %v10412
    %10457 = vmatprep.subr.mxu0 0.0
    %10458 = vmatpush1.msra.mxu0 %v10413
    %10459 = vmatprep.subr.mxu0 0.0
    %10460 = vmatpush1.msra.mxu0 %v10414
    %10461 = vmatprep.subr.mxu0 0.0
    %10462 = vmatpush1.msra.mxu0 %v10415
    %10463 = vmatprep.subr.mxu0 0.0
    %10464 = vmatpush1.msra.mxu0 %v10416
    %10465 = vmatprep.subr.mxu0 0.0
    %10466 = vmatpush1.msra.mxu0 %v10417
    %10467 = vmatprep.subr.mxu0 0.0
    %10468 = vmatpush1.msra.mxu0 %v10418
    %10469 = vmatprep.subr.mxu0 0.0
    %10470 = vmatpush1.msra.mxu0 %v10419
    %10471 = vmatprep.subr.mxu0 0.0
    %10472 = vmatpush1.msra.mxu0 %v10420
    %10473 = vmatprep.subr.mxu0 0.0
    %10474 = vmatpush1.msra.mxu0 %v10421
    %10475 = vmatprep.subr.mxu0 0.0
    %10476 = vmatpush1.msra.mxu0 %v10422
    %10477 = vmatprep.subr.mxu0 0.0
    %10478 = vmatpush1.msra.mxu0 %v10423
    %10479 = vmatprep.subr.mxu0 0.0
    %10480 = vmatpush1.msra.mxu0 %v10424
    %10481 = vmatprep.subr.mxu0 0.0
    %10482 = vmatpush1.msra.mxu0 %v10425
    %10483 = vmatprep.subr.mxu0 0.0
    %10484 = vmatpush1.msra.mxu0 %v10426
    %10485 = vmatprep.subr.mxu0 0.0
    %10486 = vmatpush1.msra.mxu0 %v10427
    %10487 = vmatprep.subr.mxu0 0.0
    %10488 = vmatpush1.msra.mxu0 %v10428
    %10489 = vmatprep.subr.mxu0 0.0
    %10490 = vmatpush1.msra.mxu0 %v10429
    %10491 = vmatprep.subr.mxu0 0.0
    %10492 = vmatpush1.msra.mxu0 %v10430
    %10493 = vmatprep.subr.mxu0 0.0
    %10494 = vmatpush1.msra.mxu0 %v10431
    %10495 = vmatprep.subr.mxu0 0.0
    %10496 = vmatpush1.msra.mxu0 %v10432
    %10497 = vmatprep.subr.mxu0 0.0
    %10498 = vmatpush1.msra.mxu0 %v10433
    %10499 = vmatprep.subr.mxu0 0.0
    %10500 = vmatpush1.msra.mxu0 %v10434
    %10501 = vmatprep.subr.mxu0 0.0
    %10502 = vmatpush1.msra.mxu0 %v10435
    %10503 = vmatprep.subr.mxu0 0.0
    %10504 = vmatpush1.msra.mxu0 %v10436
    %10505 = vmatprep.subr.mxu0 0.0
    %10506 = vmatpush1.msra.mxu0 %v10437
    %10507 = vmatprep.subr.mxu0 0.0
    %10508 = vmatpush1.msra.mxu0 %v10438
    %10509 = vmatprep.subr.mxu0 0.0
    %10510 = vmatpush1.msra.mxu0 %v10439
    %10511 = vmatprep.mubr.f32.mxu0 %v10407
    %10512 = vmatmul.mubr.f32.gmra.mrb[0].mxu0 %v10406
    %v10513 = vpop.f32.mrb[0].mxu0
    %v10514 = vadd.f32 %v10445, %v10513
    %v10515 = vpop.f32.mrb[0].mxu0
    %10516 = vdwg.mxu0
    %v10517 = vmax.f32 %v10514, 0.0
    %v10518 = vld [vmem:[#allocation26] sm:$0xff]
    %v10519 = vld [vmem:[#allocation26 + $0x8] sm:$0xff]
    %v10520 = vld [vmem:[#allocation26 + $0x10] sm:$0xff]
    %v10521 = vld [vmem:[#allocation26 + $0x18] sm:$0xff]
    %v10522 = vld [vmem:[#allocation26 + $0x20] sm:$0xff]
    %v10523 = vld [vmem:[#allocation26 + $0x28] sm:$0xff]
    %v10524 = vld [vmem:[#allocation26 + $0x30] sm:$0xff]
    %v10525 = vld [vmem:[#allocation26 + $0x38] sm:$0xff]
    %v10526 = vld [vmem:[#allocation26 + $0x40] sm:$0xff]
    %v10527 = vld [vmem:[#allocation26 + $0x48] sm:$0xff]
    %v10528 = vld [vmem:[#allocation26 + $0x50] sm:$0xff]
    %v10529 = vld [vmem:[#allocation26 + $0x58] sm:$0xff]
    %v10530 = vld [vmem:[#allocation26 + $0x60] sm:$0xff]
    %v10531 = vld [vmem:[#allocation26 + $0x68] sm:$0xff]
    %v10532 = vld [vmem:[#allocation26 + $0x70] sm:$0xff]
    %v10533 = vld [vmem:[#allocation26 + $0x78] sm:$0xff]
    %v10534 = vld [vmem:[#allocation28] sm:$0x1]
    %v10536 = vlaneseq
    %v10537 = vshrl.u32 %v10536, 7
    %v10538 = vsub.s32 0, %v10537
    %v10539 = vrot.slane %v10534, %v10538
    %10541 = vmatprep.subr.mxu0 0.0
    %10542 = vmatpush1.msra.mxu0 %v10518
    %10543 = vmatprep.subr.mxu0 0.0
    %10544 = vmatpush1.msra.mxu0 %v10519
    %10545 = vmatprep.subr.mxu0 0.0
    %10546 = vmatpush1.msra.mxu0 %v10520
    %10547 = vmatprep.subr.mxu0 0.0
    %10548 = vmatpush1.msra.mxu0 %v10521
    %10549 = vmatprep.subr.mxu0 0.0
    %10550 = vmatpush1.msra.mxu0 %v10522
    %10551 = vmatprep.subr.mxu0 0.0
    %10552 = vmatpush1.msra.mxu0 %v10523
    %10553 = vmatprep.subr.mxu0 0.0
    %10554 = vmatpush1.msra.mxu0 %v10524
    %10555 = vmatprep.subr.mxu0 0.0
    %10556 = vmatpush1.msra.mxu0 %v10525
    %10557 = vmatprep.subr.mxu0 0.0
    %10558 = vmatpush1.msra.mxu0 %v10526
    %10559 = vmatprep.subr.mxu0 0.0
    %10560 = vmatpush1.msra.mxu0 %v10527
    %10561 = vmatprep.subr.mxu0 0.0
    %10562 = vmatpush1.msra.mxu0 %v10528
    %10563 = vmatprep.subr.mxu0 0.0
    %10564 = vmatpush1.msra.mxu0 %v10529
    %10565 = vmatprep.subr.mxu0 0.0
    %10566 = vmatpush1.msra.mxu0 %v10530
    %10567 = vmatprep.subr.mxu0 0.0
    %10568 = vmatpush1.msra.mxu0 %v10531
    %10569 = vmatprep.subr.mxu0 0.0
    %10570 = vmatpush1.msra.mxu0 %v10532
    %10571 = vmatprep.subr.mxu0 0.0
    %10572 = vmatpush1.msra.mxu0 %v10533
    %10573 = vmatprep.subr.mxu0 0.0
    %10574 = vmatpush1.msra.mxu0 0.0
    %10575 = vmatprep.subr.mxu0 0.0
    %10576 = vmatpush1.msra.mxu0 0.0
    %10577 = vmatprep.subr.mxu0 0.0
    %10578 = vmatpush1.msra.mxu0 0.0
    %10579 = vmatprep.subr.mxu0 0.0
    %10580 = vmatpush1.msra.mxu0 0.0
    %10581 = vmatprep.subr.mxu0 0.0
    %10582 = vmatpush1.msra.mxu0 0.0
    %10583 = vmatprep.subr.mxu0 0.0
    %10584 = vmatpush1.msra.mxu0 0.0
    %10585 = vmatprep.subr.mxu0 0.0
    %10586 = vmatpush1.msra.mxu0 0.0
    %10587 = vmatprep.subr.mxu0 0.0
    %10588 = vmatpush1.msra.mxu0 0.0
    %10589 = vmatprep.subr.mxu0 0.0
    %10590 = vmatpush1.msra.mxu0 0.0
    %10591 = vmatprep.subr.mxu0 0.0
    %10592 = vmatpush1.msra.mxu0 0.0
    %10593 = vmatprep.subr.mxu0 0.0
    %10594 = vmatpush1.msra.mxu0 0.0
    %10595 = vmatprep.subr.mxu0 0.0
    %10596 = vmatpush1.msra.mxu0 0.0
    %10597 = vmatprep.subr.mxu0 0.0
    %10598 = vmatpush1.msra.mxu0 0.0
    %10599 = vmatprep.subr.mxu0 0.0
    %10600 = vmatpush1.msra.mxu0 0.0
    %10601 = vmatprep.subr.mxu0 0.0
    %10602 = vmatpush1.msra.mxu0 0.0
    %10603 = vmatprep.subr.mxu0 0.0
    %10604 = vmatpush1.msra.mxu0 0.0
    %10605 = vmatprep.mubr.f32.mxu0 0.0
    %10606 = vmatmul.mubr.f32.gmra.mrb[0].mxu0 %v10517
    %v10607 = vpop.f32.mrb[0].mxu0
    %v10608 = vadd.f32 %v10539, %v10607
    %v10609 = vpop.f32.mrb[0].mxu0
    %10610 = vdwg.mxu0
    %10611 = vst [vmem:[#allocation29] sm:$0xff] %v10608
    // Predicated region
    $region138: #{tpu_custom_call.1} parent=1 // pred_check
      _
    $region139: #{tpu_custom_call.1} parent=1 // pred_check_branch
      %10613 = sbr.rel (0) target = $region141
    $region140: #{tpu_custom_call.1} parent=1 // pred_region
      %s10615 = ssub.s32 128, 128
      %10616 = vsyncadd [#allocation4], %s10615
      %s10618 = sshll.u32 [#allocation29], 4
      %s10619 = int_to_ptr.vmem [resolvable:$true] %s10618
      %10621 = dma.vmem_to_hbm [thread:$0]  %s10619, 128, %s17, [#allocation4]
    $region141: #{tpu_custom_call.1} parent=1 // pred_fallthru
      _
    // Predicated region
    $region142: #{tpu_custom_call.1} parent=1 // pred_check
      _
    $region143: #{tpu_custom_call.1} parent=1 // pred_check_branch
      %10623 = sbr.rel (0) target = $region145
    $region144: #{tpu_custom_call.1} parent=1 // pred_region
      %10624 = dma.done [#allocation4], 128
    $region145: #{tpu_custom_call.1} parent=1 // pred_fallthru
      _
    %10625 = vsyncpa [#allocation3], 1
    %10626 = vsyncpa [#allocation6], 1
    %10627 = vsyncpa [#allocation9], 1
    %10628 = vsyncpa [#allocation12], 1
    %10629 = vsyncpa [#allocation15], 1
    %10630 = vsyncpa [#allocation18], 1
    %10631 = vsyncpa [#allocation21], 1
    %10632 = vsyncpa [#allocation24], 1
    %10633 = vsyncpa [#allocation27], 1
    %10634 = vsyncpa [#allocation4], 1

</llo_original>
